<compile_context>
chip_gen: v7x
topology: tpu7x:2x2x1
jax: 0.10.0
libtpu: 0.0.40
codegen_flags: <defaults>
</compile_context>

<pallas_src>
import functools

import jax
import jax.numpy as jnp
from jax.experimental import pallas as pl
from jax.experimental.pallas import tpu as pltpu


def _attention_kernel(x_ref, wq_ref, wk_ref, wv_ref, wo_ref, b_ref, o_ref,
                      *, heads, n, tb):
    """One grid step over `tb` (batch*patch) slabs of `n` tokens each.

    x_ref : (tb*n, dim)            activations (bf16 stays bf16 for the MXU)
    wq/wk/wv_ref : (heads, dim, d) per-head projections (softmax scale folded in wq)
    wo_ref: (heads, d, dim)        per-head output projection
    b_ref : (1, dim)               output bias
    o_ref : (tb, n*dim)            lane-dense output block
    """
    f32 = jnp.float32
    rows = tb * n
    x = x_ref[...]                         # (rows, dim); no upcast before the MXU
    mxu_dt = x.dtype
    dim = x.shape[-1]

    y = None                               # (rows, dim) f32 accumulator over heads
    for h in range(heads):                 # heads is small & static -> unrolled
        # Per-head projections: plain 2-D MXU matmuls, no 16-lane slices/concats.
        q = jnp.dot(x, wq_ref[h], preferred_element_type=f32).astype(mxu_dt)
        k = jnp.dot(x, wk_ref[h], preferred_element_type=f32).astype(mxu_dt)
        v = jnp.dot(x, wv_ref[h], preferred_element_type=f32).astype(mxu_dt)
        d = q.shape[-1]
        # Leading-dim split only (minor dim unchanged) -> cheap regrouping.
        q = q.reshape(tb, n, d)
        k = k.reshape(tb, n, d)
        v = v.reshape(tb, n, d)

        # Scores + softmax in f32.  The d**-0.5 scale is pre-folded into wq by
        # the wrapper, so there is no extra vector multiply here.
        s = jnp.einsum("tnd,tmd->tnm", q, k, preferred_element_type=f32)
        s = s - jnp.max(s, axis=-1, keepdims=True)
        e = jnp.exp(s)
        # EUP approximate reciprocal: its own VLIW slot -> effectively free.
        attn = e * pl.reciprocal(jnp.sum(e, axis=-1, keepdims=True), approx=True)

        ctx = jnp.einsum("tnm,tmd->tnd", attn.astype(mxu_dt), v,
                         preferred_element_type=f32).astype(mxu_dt)
        yh = jnp.dot(ctx.reshape(rows, d), wo_ref[h], preferred_element_type=f32)
        y = yh if y is None else y + yh

    y = y + b_ref[...].astype(f32)         # (1, dim) broadcasts over (rows, dim)

    # Lane-dense store: regroup (rows, dim) -> (tb, n*dim) so the output block's
    # last dim is a full multiple of 128 lanes (unmasked vst, dense writeback).
    y3 = y.reshape(tb, n, dim)
    out = jnp.concatenate([y3[:, i, :] for i in range(n)], axis=-1)
    o_ref[...] = out.astype(o_ref.dtype)


def _has_two_tensorcores():
    """Best-effort: True on chips with 2 TensorCores sharing HBM (v4/v5p/v7x)."""
    try:
        kind = jax.devices()[0].device_kind.lower()
    except Exception:
        return False
    return any(tag in kind for tag in ("v4", "v5p", "v7"))


def _pick_tb(num_slabs, n, *, two_core, target_rows=1024):
    """Slabs per grid step.

    Heuristics (per the perf review):
      * big steps (~1024 rows, sweepable) to amortize the ~0.35us/step overhead,
      * prefer a divisor of num_slabs so the wrapper never pads / slices,
      * tb must be a multiple of 8 when grid > 1 (sublane rule of the lane-dense
        (tb, n*dim) output block),
      * only reserve >= 2 (even) grid steps on 2-TensorCore chips.
    """
    tb_cap = max(1, target_rows // max(n, 1))

    if tb_cap >= num_slabs:
        # Whole problem fits in one step.  On 2-TC chips split into two equal
        # steps (when the halves still satisfy the sublane rule); on single-TC
        # chips one big step is strictly better.
        half = num_slabs // 2
        if two_core and num_slabs >= 16 and num_slabs % 2 == 0 and half % 8 == 0:
            return half
        return num_slabs

    divisors = [t for t in range(8, tb_cap + 1, 8) if num_slabs % t == 0]
    if divisors:
        tb = max(divisors)
        # Soft preference: rows that are a multiple of 128 avoid MXU row padding
        # (helps v5e's 4x128 arrays) -- take it if it doesn't shrink tb too much.
        aligned = [t for t in divisors if (t * n) % 128 == 0]
        if aligned and 2 * max(aligned) >= tb:
            tb = max(aligned)
        if two_core:
            # Keep the step count even so both TensorCores get equal work.
            even = [t for t in divisors if (num_slabs // t) % 2 == 0]
            if even and 2 * max(even) >= tb:
                tb = max(even)
        return tb

    # No clean divisor <= cap: fall back to a padded tail step.
    return max(8, (tb_cap // 8) * 8)


def attention_pallas(x, w_qkv, w_out, b_out, *, heads,
                     slabs_per_step=None, target_rows=1024):
    """x: (b, p, n, dim); w_qkv: (dim, 3*inner); w_out: (inner, dim); b_out: (dim,).

    Weights are stored pre-transposed (y = x @ W), matching nn.Linear.weight.T.
    """
    b, p, n, dim = x.shape
    inner = w_out.shape[0]
    assert w_qkv.shape[-1] == 3 * inner and inner % heads == 0
    dh = inner // heads
    scale = dh ** -0.5
    num_slabs = b * p
    # TODO(synk): project_out=False (heads==1 and dim_head==dim -> nn.Identity)
    # is not special-cased; pass identity w_out / zero b_out for that config.

    two_core = _has_two_tensorcores()
    tb = slabs_per_step if slabs_per_step is not None else _pick_tb(
        num_slabs, n, two_core=two_core, target_rows=target_rows)
    grid = -(-num_slabs // tb)                       # cdiv
    slabs_pad = grid * tb
    rows = tb * n

    x_rows = x.reshape(num_slabs * n, dim)
    if slabs_pad != num_slabs:
        # Only reached when no divisor-sized tile exists; zero-padded slabs
        # produce finite garbage that is sliced off below.
        x_rows = jnp.pad(x_rows, ((0, (slabs_pad - num_slabs) * n), (0, 0)))

    # Per-head weight layouts prepared once in the wrapper (removes all in-kernel
    # 16-lane slices/concats); softmax scale folded into Wq (free: no kernel mul).
    wq, wk, wv = jnp.split(w_qkv, 3, axis=-1)        # each (dim, inner)

    def per_head(w):                                 # (dim, inner) -> (heads, dim, dh)
        return w.reshape(dim, heads, dh).transpose(1, 0, 2)

    wq_h = per_head(wq) * jnp.asarray(scale, w_qkv.dtype)
    wk_h = per_head(wk)
    wv_h = per_head(wv)
    wo_h = w_out.reshape(heads, dh, dim)
    bias2d = b_out.reshape(1, dim)

    kernel = functools.partial(_attention_kernel, heads=heads, n=n, tb=tb)

    out2d = pl.pallas_call(
        kernel,
        out_shape=jax.ShapeDtypeStruct((slabs_pad, n * dim), x.dtype),
        grid_spec=pltpu.PrefetchScalarGridSpec(
            num_scalar_prefetch=0,
            grid=(grid,),
            in_specs=[
                pl.BlockSpec((rows, dim), lambda i: (i, 0)),
                # Weights/bias: constant index_map -> stay VMEM-resident.
                pl.BlockSpec((heads, dim, dh), lambda i: (0, 0, 0)),
                pl.BlockSpec((heads, dim, dh), lambda i: (0, 0, 0)),
                pl.BlockSpec((heads, dim, dh), lambda i: (0, 0, 0)),
                pl.BlockSpec((heads, dh, dim), lambda i: (0, 0, 0)),
                pl.BlockSpec((1, dim), lambda i: (0, 0)),
            ],
            out_specs=pl.BlockSpec((tb, n * dim), lambda i: (i, 0)),
        ),
        compiler_params=pltpu.CompilerParams(
            dimension_semantics=("parallel",),
            # ~1024 rows/step needs ~10 MB incl. lane-padded f32 intermediates;
            # 32 MiB is within the default scoped limit on v6e/v7x and safely
            # below v5e's 128 MiB physical VMEM.
            vmem_limit_bytes=32 * 1024 * 1024),
    )(x_rows, wq_h, wk_h, wv_h, wo_h, bias2d)

    if slabs_pad != num_slabs:
        out2d = out2d[:num_slabs]
    return out2d.reshape(b, p, n, dim)


def attention_ref(x, w_qkv, w_out, b_out, *, heads):
    """Pure-JAX reference mirroring the PyTorch module."""
    b, p, n, dim = x.shape
    inner = w_out.shape[0]
    d = inner // heads
    scale = d ** -0.5
    qkv = jnp.einsum("bpnc,ck->bpnk", x, w_qkv)
    q, k, v = jnp.split(qkv, 3, axis=-1)

    def to_heads(t):
        return t.reshape(b, p, n, heads, d).transpose(0, 1, 3, 2, 4)

    q, k, v = map(to_heads, (q, k, v))
    dots = jnp.einsum("bphnd,bphmd->bphnm", q, k) * scale
    attn = jax.nn.softmax(dots, axis=-1)
    out = jnp.einsum("bphnm,bphmd->bphnd", attn, v)
    out = out.transpose(0, 1, 3, 2, 4).reshape(b, p, n, inner)
    return jnp.einsum("bpnk,kc->bpnc", out, w_out) + b_out


if __name__ == "__main__":
    # Small shapes consistent with MobileViT attention on unfolded patches.
    batch, patches, seq, dim = 2, 4, 8, 32
    heads, dim_head = 4, 16
    inner = heads * dim_head

    key = jax.random.PRNGKey(0)
    kx, kq, kw, kb = jax.random.split(key, 4)

    x = jax.random.normal(kx, (batch, patches, seq, dim), dtype=jnp.float32)
    # Deterministic synthetic parameters (stored pre-transposed: y = x @ W).
    w_qkv = jax.random.normal(kq, (dim, 3 * inner), dtype=jnp.float32) * dim ** -0.5
    w_out = jax.random.normal(kw, (inner, dim), dtype=jnp.float32) * inner ** -0.5
    b_out = jax.random.normal(kb, (dim,), dtype=jnp.float32) * 0.02
    # TODO(synk): nn.Dropout(0.0) is an identity in eval mode; omitted.

    # ---- f32, single grid step ---------------------------------------------
    y = jax.block_until_ready(attention_pallas(x, w_qkv, w_out, b_out, heads=heads))
    y_ref = attention_ref(x, w_qkv, w_out, b_out, heads=heads)
    assert y.shape == (batch, patches, seq, dim)
    # Approx (EUP) reciprocal in the softmax trades ~1e-3 relative error for a
    # free normalization -> tolerance relaxed accordingly.
    assert jnp.allclose(y, y_ref, atol=1e-2, rtol=1e-2), (
        float(jnp.max(jnp.abs(y - y_ref))))

    # ---- f32, multi-step grid: divisor tb (no pad) and padded tail step -----
    xb = jax.random.normal(kx, (4, 16, seq, dim), dtype=jnp.float32)
    yb_ref = attention_ref(xb, w_qkv, w_out, b_out, heads=heads)
    yb = jax.block_until_ready(
        attention_pallas(xb, w_qkv, w_out, b_out, heads=heads, slabs_per_step=16))
    assert jnp.allclose(yb, yb_ref, atol=1e-2, rtol=1e-2), (
        float(jnp.max(jnp.abs(yb - yb_ref))))
    yp = jax.block_until_ready(
        attention_pallas(xb, w_qkv, w_out, b_out, heads=heads, slabs_per_step=24))
    assert jnp.allclose(yp, yb_ref, atol=1e-2, rtol=1e-2), (
        float(jnp.max(jnp.abs(yp - yb_ref))))

    # ---- bf16 activations/weights: bf16 operands feed the MXU directly ------
    to_bf16 = lambda t: t.astype(jnp.bfloat16)
    y_bf = jax.block_until_ready(
        attention_pallas(to_bf16(x), to_bf16(w_qkv), to_bf16(w_out),
                         to_bf16(b_out), heads=heads))
    y_ref_bf = attention_ref(to_bf16(x).astype(jnp.float32),
                             to_bf16(w_qkv).astype(jnp.float32),
                             to_bf16(w_out).astype(jnp.float32),
                             to_bf16(b_out).astype(jnp.float32), heads=heads)
    # q/k/v/attn/ctx are rounded to bf16 between MXU matmuls (per perf review),
    # so compare against the f32 reference with a correspondingly loose tolerance.
    assert jnp.allclose(y_bf.astype(jnp.float32), y_ref_bf, atol=1.5e-1, rtol=1e-1), (
        float(jnp.max(jnp.abs(y_bf.astype(jnp.float32) - y_ref_bf))))

    print("KERNEL_OK")
</pallas_src>

<mosaic_0001>
module attributes {stable_mosaic.version = 11 : i64} {
  func.func @_attention_kernel(%arg0: i32, %arg1: memref<64x32xf32, #tpu.memory_space<vmem>>, %arg2: memref<4x32x16xf32, #tpu.memory_space<vmem>>, %arg3: memref<4x32x16xf32, #tpu.memory_space<vmem>>, %arg4: memref<4x32x16xf32, #tpu.memory_space<vmem>>, %arg5: memref<4x16x32xf32, #tpu.memory_space<vmem>>, %arg6: memref<1x32xf32, #tpu.memory_space<vmem>>, %arg7: memref<8x256xf32, #tpu.memory_space<vmem>>) attributes {dimension_semantics = [#tpu.dimension_semantics<parallel>], iteration_bounds = array<i64: 1>, scalar_prefetch = 0 : i64, scratch_operands = 0 : i64, tpu.core_type = #tpu.core_type<tc>, window_params = [{transform_indices = @transform_0, window_bounds = array<i64: 64, 32>}, {pipeline_mode = #tpu.pipeline_mode<synchronous>, transform_indices = @transform_1, window_bounds = array<i64: 4, 32, 16>}, {pipeline_mode = #tpu.pipeline_mode<synchronous>, transform_indices = @transform_2, window_bounds = array<i64: 4, 32, 16>}, {pipeline_mode = #tpu.pipeline_mode<synchronous>, transform_indices = @transform_3, window_bounds = array<i64: 4, 32, 16>}, {pipeline_mode = #tpu.pipeline_mode<synchronous>, transform_indices = @transform_4, window_bounds = array<i64: 4, 16, 32>}, {pipeline_mode = #tpu.pipeline_mode<synchronous>, transform_indices = @transform_5, window_bounds = array<i64: 1, 32>}, {transform_indices = @transform_6, window_bounds = array<i64: 8, 256>}]} {
    %c0 = arith.constant 0 : index
    %c0_0 = arith.constant 0 : index
    %0 = vector.load %arg1[%c0, %c0_0] : memref<64x32xf32, #tpu.memory_space<vmem>>, vector<64x32xf32>
    %c0_1 = arith.constant 0 : index
    %c0_2 = arith.constant 0 : index
    %c0_3 = arith.constant 0 : index
    %1 = vector.load %arg2[%c0_1, %c0_2, %c0_3] : memref<4x32x16xf32, #tpu.memory_space<vmem>>, vector<1x32x16xf32>
    %2 = vector.shape_cast %1 : vector<1x32x16xf32> to vector<32x16xf32>
    %cst = arith.constant dense<0.000000e+00> : vector<64x16xf32>
    %3 = tpu.matmul %0, %2, %cst {dimension_numbers = #tpu.dot_dimension_numbers<[1], [0], [0], [1], [0, 0, 1, 1], [], []>} : vector<64x32xf32>, vector<32x16xf32>, vector<64x16xf32> -> vector<64x16xf32>
    %c0_4 = arith.constant 0 : index
    %c0_5 = arith.constant 0 : index
    %c0_6 = arith.constant 0 : index
    %4 = vector.load %arg3[%c0_4, %c0_5, %c0_6] : memref<4x32x16xf32, #tpu.memory_space<vmem>>, vector<1x32x16xf32>
    %5 = vector.shape_cast %4 : vector<1x32x16xf32> to vector<32x16xf32>
    %cst_7 = arith.constant dense<0.000000e+00> : vector<64x16xf32>
    %6 = tpu.matmul %0, %5, %cst_7 {dimension_numbers = #tpu.dot_dimension_numbers<[1], [0], [0], [1], [0, 0, 1, 1], [], []>} : vector<64x32xf32>, vector<32x16xf32>, vector<64x16xf32> -> vector<64x16xf32>
    %c0_8 = arith.constant 0 : index
    %c0_9 = arith.constant 0 : index
    %c0_10 = arith.constant 0 : index
    %7 = vector.load %arg4[%c0_8, %c0_9, %c0_10] : memref<4x32x16xf32, #tpu.memory_space<vmem>>, vector<1x32x16xf32>
    %8 = vector.shape_cast %7 : vector<1x32x16xf32> to vector<32x16xf32>
    %cst_11 = arith.constant dense<0.000000e+00> : vector<64x16xf32>
    %9 = tpu.matmul %0, %8, %cst_11 {dimension_numbers = #tpu.dot_dimension_numbers<[1], [0], [0], [1], [0, 0, 1, 1], [], []>} : vector<64x32xf32>, vector<32x16xf32>, vector<64x16xf32> -> vector<64x16xf32>
    %10 = vector.shape_cast %3 : vector<64x16xf32> to vector<8x8x16xf32>
    %11 = vector.shape_cast %6 : vector<64x16xf32> to vector<8x8x16xf32>
    %12 = vector.shape_cast %9 : vector<64x16xf32> to vector<8x8x16xf32>
    "tpu.trace_start"() <{level = 10 : i32, message = "tnd,tmd->tnm"}> : () -> ()
    %cst_12 = arith.constant dense<0.000000e+00> : vector<8x8x8xf32>
    %13 = tpu.matmul %10, %11, %cst_12 {dimension_numbers = #tpu.dot_dimension_numbers<[2], [2], [1], [1], [0, 0, 0, 1, 1, 1], [0], [0]>} : vector<8x8x16xf32>, vector<8x8x16xf32>, vector<8x8x8xf32> -> vector<8x8x8xf32>
    "tpu.trace_stop"() : () -> ()
    %cst_13 = arith.constant dense<0xFF800000> : vector<8x8xf32>
    %14 = vector.multi_reduction <maximumf>, %13, %cst_13 [2] : vector<8x8x8xf32> to vector<8x8xf32>
    %15 = vector.shape_cast %14 : vector<8x8xf32> to vector<8x8x1xf32>
    %16 = vector.broadcast %15 : vector<8x8x1xf32> to vector<8x8x8xf32>
    %17 = arith.subf %13, %16 : vector<8x8x8xf32>
    %18 = math.exp %17 : vector<8x8x8xf32>
    %cst_14 = arith.constant dense<0.000000e+00> : vector<8x8xf32>
    %19 = vector.multi_reduction <add>, %18, %cst_14 [2] : vector<8x8x8xf32> to vector<8x8xf32>
    %20 = vector.shape_cast %19 : vector<8x8xf32> to vector<8x8x1xf32>
    %21 = tpu.reciprocal %20 {approx = true} : vector<8x8x1xf32> -> vector<8x8x1xf32>
    %22 = vector.broadcast %21 : vector<8x8x1xf32> to vector<8x8x8xf32>
    %23 = arith.mulf %18, %22 : vector<8x8x8xf32>
    "tpu.trace_start"() <{level = 10 : i32, message = "tnm,tmd->tnd"}> : () -> ()
    %cst_15 = arith.constant dense<0.000000e+00> : vector<8x8x16xf32>
    %24 = tpu.matmul %23, %12, %cst_15 {dimension_numbers = #tpu.dot_dimension_numbers<[2], [1], [1], [2], [0, 0, 0, 1, 1, 2], [0], [0]>} : vector<8x8x8xf32>, vector<8x8x16xf32>, vector<8x8x16xf32> -> vector<8x8x16xf32>
    "tpu.trace_stop"() : () -> ()
    %25 = vector.shape_cast %24 : vector<8x8x16xf32> to vector<64x16xf32>
    %c0_16 = arith.constant 0 : index
    %c0_17 = arith.constant 0 : index
    %c0_18 = arith.constant 0 : index
    %26 = vector.load %arg5[%c0_16, %c0_17, %c0_18] : memref<4x16x32xf32, #tpu.memory_space<vmem>>, vector<1x16x32xf32>
    %27 = vector.shape_cast %26 : vector<1x16x32xf32> to vector<16x32xf32>
    %cst_19 = arith.constant dense<0.000000e+00> : vector<64x32xf32>
    %28 = tpu.matmul %25, %27, %cst_19 {dimension_numbers = #tpu.dot_dimension_numbers<[1], [0], [0], [1], [0, 0, 1, 1], [], []>} : vector<64x16xf32>, vector<16x32xf32>, vector<64x32xf32> -> vector<64x32xf32>
    %c1 = arith.constant 1 : index
    %c0_20 = arith.constant 0 : index
    %c0_21 = arith.constant 0 : index
    %29 = vector.load %arg2[%c1, %c0_20, %c0_21] : memref<4x32x16xf32, #tpu.memory_space<vmem>>, vector<1x32x16xf32>
    %30 = vector.shape_cast %29 : vector<1x32x16xf32> to vector<32x16xf32>
    %cst_22 = arith.constant dense<0.000000e+00> : vector<64x16xf32>
    %31 = tpu.matmul %0, %30, %cst_22 {dimension_numbers = #tpu.dot_dimension_numbers<[1], [0], [0], [1], [0, 0, 1, 1], [], []>} : vector<64x32xf32>, vector<32x16xf32>, vector<64x16xf32> -> vector<64x16xf32>
    %c1_23 = arith.constant 1 : index
    %c0_24 = arith.constant 0 : index
    %c0_25 = arith.constant 0 : index
    %32 = vector.load %arg3[%c1_23, %c0_24, %c0_25] : memref<4x32x16xf32, #tpu.memory_space<vmem>>, vector<1x32x16xf32>
    %33 = vector.shape_cast %32 : vector<1x32x16xf32> to vector<32x16xf32>
    %cst_26 = arith.constant dense<0.000000e+00> : vector<64x16xf32>
    %34 = tpu.matmul %0, %33, %cst_26 {dimension_numbers = #tpu.dot_dimension_numbers<[1], [0], [0], [1], [0, 0, 1, 1], [], []>} : vector<64x32xf32>, vector<32x16xf32>, vector<64x16xf32> -> vector<64x16xf32>
    %c1_27 = arith.constant 1 : index
    %c0_28 = arith.constant 0 : index
    %c0_29 = arith.constant 0 : index
    %35 = vector.load %arg4[%c1_27, %c0_28, %c0_29] : memref<4x32x16xf32, #tpu.memory_space<vmem>>, vector<1x32x16xf32>
    %36 = vector.shape_cast %35 : vector<1x32x16xf32> to vector<32x16xf32>
    %cst_30 = arith.constant dense<0.000000e+00> : vector<64x16xf32>
    %37 = tpu.matmul %0, %36, %cst_30 {dimension_numbers = #tpu.dot_dimension_numbers<[1], [0], [0], [1], [0, 0, 1, 1], [], []>} : vector<64x32xf32>, vector<32x16xf32>, vector<64x16xf32> -> vector<64x16xf32>
    %38 = vector.shape_cast %31 : vector<64x16xf32> to vector<8x8x16xf32>
    %39 = vector.shape_cast %34 : vector<64x16xf32> to vector<8x8x16xf32>
    %40 = vector.shape_cast %37 : vector<64x16xf32> to vector<8x8x16xf32>
    "tpu.trace_start"() <{level = 10 : i32, message = "tnd,tmd->tnm"}> : () -> ()
    %cst_31 = arith.constant dense<0.000000e+00> : vector<8x8x8xf32>
    %41 = tpu.matmul %38, %39, %cst_31 {dimension_numbers = #tpu.dot_dimension_numbers<[2], [2], [1], [1], [0, 0, 0, 1, 1, 1], [0], [0]>} : vector<8x8x16xf32>, vector<8x8x16xf32>, vector<8x8x8xf32> -> vector<8x8x8xf32>
    "tpu.trace_stop"() : () -> ()
    %cst_32 = arith.constant dense<0xFF800000> : vector<8x8xf32>
    %42 = vector.multi_reduction <maximumf>, %41, %cst_32 [2] : vector<8x8x8xf32> to vector<8x8xf32>
    %43 = vector.shape_cast %42 : vector<8x8xf32> to vector<8x8x1xf32>
    %44 = vector.broadcast %43 : vector<8x8x1xf32> to vector<8x8x8xf32>
    %45 = arith.subf %41, %44 : vector<8x8x8xf32>
    %46 = math.exp %45 : vector<8x8x8xf32>
    %cst_33 = arith.constant dense<0.000000e+00> : vector<8x8xf32>
    %47 = vector.multi_reduction <add>, %46, %cst_33 [2] : vector<8x8x8xf32> to vector<8x8xf32>
    %48 = vector.shape_cast %47 : vector<8x8xf32> to vector<8x8x1xf32>
    %49 = tpu.reciprocal %48 {approx = true} : vector<8x8x1xf32> -> vector<8x8x1xf32>
    %50 = vector.broadcast %49 : vector<8x8x1xf32> to vector<8x8x8xf32>
    %51 = arith.mulf %46, %50 : vector<8x8x8xf32>
    "tpu.trace_start"() <{level = 10 : i32, message = "tnm,tmd->tnd"}> : () -> ()
    %cst_34 = arith.constant dense<0.000000e+00> : vector<8x8x16xf32>
    %52 = tpu.matmul %51, %40, %cst_34 {dimension_numbers = #tpu.dot_dimension_numbers<[2], [1], [1], [2], [0, 0, 0, 1, 1, 2], [0], [0]>} : vector<8x8x8xf32>, vector<8x8x16xf32>, vector<8x8x16xf32> -> vector<8x8x16xf32>
    "tpu.trace_stop"() : () -> ()
    %53 = vector.shape_cast %52 : vector<8x8x16xf32> to vector<64x16xf32>
    %c1_35 = arith.constant 1 : index
    %c0_36 = arith.constant 0 : index
    %c0_37 = arith.constant 0 : index
    %54 = vector.load %arg5[%c1_35, %c0_36, %c0_37] : memref<4x16x32xf32, #tpu.memory_space<vmem>>, vector<1x16x32xf32>
    %55 = vector.shape_cast %54 : vector<1x16x32xf32> to vector<16x32xf32>
    %cst_38 = arith.constant dense<0.000000e+00> : vector<64x32xf32>
    %56 = tpu.matmul %53, %55, %cst_38 {dimension_numbers = #tpu.dot_dimension_numbers<[1], [0], [0], [1], [0, 0, 1, 1], [], []>} : vector<64x16xf32>, vector<16x32xf32>, vector<64x32xf32> -> vector<64x32xf32>
    %57 = arith.addf %28, %56 : vector<64x32xf32>
    %c2 = arith.constant 2 : index
    %c0_39 = arith.constant 0 : index
    %c0_40 = arith.constant 0 : index
    %58 = vector.load %arg2[%c2, %c0_39, %c0_40] : memref<4x32x16xf32, #tpu.memory_space<vmem>>, vector<1x32x16xf32>
    %59 = vector.shape_cast %58 : vector<1x32x16xf32> to vector<32x16xf32>
    %cst_41 = arith.constant dense<0.000000e+00> : vector<64x16xf32>
    %60 = tpu.matmul %0, %59, %cst_41 {dimension_numbers = #tpu.dot_dimension_numbers<[1], [0], [0], [1], [0, 0, 1, 1], [], []>} : vector<64x32xf32>, vector<32x16xf32>, vector<64x16xf32> -> vector<64x16xf32>
    %c2_42 = arith.constant 2 : index
    %c0_43 = arith.constant 0 : index
    %c0_44 = arith.constant 0 : index
    %61 = vector.load %arg3[%c2_42, %c0_43, %c0_44] : memref<4x32x16xf32, #tpu.memory_space<vmem>>, vector<1x32x16xf32>
    %62 = vector.shape_cast %61 : vector<1x32x16xf32> to vector<32x16xf32>
    %cst_45 = arith.constant dense<0.000000e+00> : vector<64x16xf32>
    %63 = tpu.matmul %0, %62, %cst_45 {dimension_numbers = #tpu.dot_dimension_numbers<[1], [0], [0], [1], [0, 0, 1, 1], [], []>} : vector<64x32xf32>, vector<32x16xf32>, vector<64x16xf32> -> vector<64x16xf32>
    %c2_46 = arith.constant 2 : index
    %c0_47 = arith.constant 0 : index
    %c0_48 = arith.constant 0 : index
    %64 = vector.load %arg4[%c2_46, %c0_47, %c0_48] : memref<4x32x16xf32, #tpu.memory_space<vmem>>, vector<1x32x16xf32>
    %65 = vector.shape_cast %64 : vector<1x32x16xf32> to vector<32x16xf32>
    %cst_49 = arith.constant dense<0.000000e+00> : vector<64x16xf32>
    %66 = tpu.matmul %0, %65, %cst_49 {dimension_numbers = #tpu.dot_dimension_numbers<[1], [0], [0], [1], [0, 0, 1, 1], [], []>} : vector<64x32xf32>, vector<32x16xf32>, vector<64x16xf32> -> vector<64x16xf32>
    %67 = vector.shape_cast %60 : vector<64x16xf32> to vector<8x8x16xf32>
    %68 = vector.shape_cast %63 : vector<64x16xf32> to vector<8x8x16xf32>
    %69 = vector.shape_cast %66 : vector<64x16xf32> to vector<8x8x16xf32>
    "tpu.trace_start"() <{level = 10 : i32, message = "tnd,tmd->tnm"}> : () -> ()
    %cst_50 = arith.constant dense<0.000000e+00> : vector<8x8x8xf32>
    %70 = tpu.matmul %67, %68, %cst_50 {dimension_numbers = #tpu.dot_dimension_numbers<[2], [2], [1], [1], [0, 0, 0, 1, 1, 1], [0], [0]>} : vector<8x8x16xf32>, vector<8x8x16xf32>, vector<8x8x8xf32> -> vector<8x8x8xf32>
    "tpu.trace_stop"() : () -> ()
    %cst_51 = arith.constant dense<0xFF800000> : vector<8x8xf32>
    %71 = vector.multi_reduction <maximumf>, %70, %cst_51 [2] : vector<8x8x8xf32> to vector<8x8xf32>
    %72 = vector.shape_cast %71 : vector<8x8xf32> to vector<8x8x1xf32>
    %73 = vector.broadcast %72 : vector<8x8x1xf32> to vector<8x8x8xf32>
    %74 = arith.subf %70, %73 : vector<8x8x8xf32>
    %75 = math.exp %74 : vector<8x8x8xf32>
    %cst_52 = arith.constant dense<0.000000e+00> : vector<8x8xf32>
    %76 = vector.multi_reduction <add>, %75, %cst_52 [2] : vector<8x8x8xf32> to vector<8x8xf32>
    %77 = vector.shape_cast %76 : vector<8x8xf32> to vector<8x8x1xf32>
    %78 = tpu.reciprocal %77 {approx = true} : vector<8x8x1xf32> -> vector<8x8x1xf32>
    %79 = vector.broadcast %78 : vector<8x8x1xf32> to vector<8x8x8xf32>
    %80 = arith.mulf %75, %79 : vector<8x8x8xf32>
    "tpu.trace_start"() <{level = 10 : i32, message = "tnm,tmd->tnd"}> : () -> ()
    %cst_53 = arith.constant dense<0.000000e+00> : vector<8x8x16xf32>
    %81 = tpu.matmul %80, %69, %cst_53 {dimension_numbers = #tpu.dot_dimension_numbers<[2], [1], [1], [2], [0, 0, 0, 1, 1, 2], [0], [0]>} : vector<8x8x8xf32>, vector<8x8x16xf32>, vector<8x8x16xf32> -> vector<8x8x16xf32>
    "tpu.trace_stop"() : () -> ()
    %82 = vector.shape_cast %81 : vector<8x8x16xf32> to vector<64x16xf32>
    %c2_54 = arith.constant 2 : index
    %c0_55 = arith.constant 0 : index
    %c0_56 = arith.constant 0 : index
    %83 = vector.load %arg5[%c2_54, %c0_55, %c0_56] : memref<4x16x32xf32, #tpu.memory_space<vmem>>, vector<1x16x32xf32>
    %84 = vector.shape_cast %83 : vector<1x16x32xf32> to vector<16x32xf32>
    %cst_57 = arith.constant dense<0.000000e+00> : vector<64x32xf32>
    %85 = tpu.matmul %82, %84, %cst_57 {dimension_numbers = #tpu.dot_dimension_numbers<[1], [0], [0], [1], [0, 0, 1, 1], [], []>} : vector<64x16xf32>, vector<16x32xf32>, vector<64x32xf32> -> vector<64x32xf32>
    %86 = arith.addf %57, %85 : vector<64x32xf32>
    %c3 = arith.constant 3 : index
    %c0_58 = arith.constant 0 : index
    %c0_59 = arith.constant 0 : index
    %87 = vector.load %arg2[%c3, %c0_58, %c0_59] : memref<4x32x16xf32, #tpu.memory_space<vmem>>, vector<1x32x16xf32>
    %88 = vector.shape_cast %87 : vector<1x32x16xf32> to vector<32x16xf32>
    %cst_60 = arith.constant dense<0.000000e+00> : vector<64x16xf32>
    %89 = tpu.matmul %0, %88, %cst_60 {dimension_numbers = #tpu.dot_dimension_numbers<[1], [0], [0], [1], [0, 0, 1, 1], [], []>} : vector<64x32xf32>, vector<32x16xf32>, vector<64x16xf32> -> vector<64x16xf32>
    %c3_61 = arith.constant 3 : index
    %c0_62 = arith.constant 0 : index
    %c0_63 = arith.constant 0 : index
    %90 = vector.load %arg3[%c3_61, %c0_62, %c0_63] : memref<4x32x16xf32, #tpu.memory_space<vmem>>, vector<1x32x16xf32>
    %91 = vector.shape_cast %90 : vector<1x32x16xf32> to vector<32x16xf32>
    %cst_64 = arith.constant dense<0.000000e+00> : vector<64x16xf32>
    %92 = tpu.matmul %0, %91, %cst_64 {dimension_numbers = #tpu.dot_dimension_numbers<[1], [0], [0], [1], [0, 0, 1, 1], [], []>} : vector<64x32xf32>, vector<32x16xf32>, vector<64x16xf32> -> vector<64x16xf32>
    %c3_65 = arith.constant 3 : index
    %c0_66 = arith.constant 0 : index
    %c0_67 = arith.constant 0 : index
    %93 = vector.load %arg4[%c3_65, %c0_66, %c0_67] : memref<4x32x16xf32, #tpu.memory_space<vmem>>, vector<1x32x16xf32>
    %94 = vector.shape_cast %93 : vector<1x32x16xf32> to vector<32x16xf32>
    %cst_68 = arith.constant dense<0.000000e+00> : vector<64x16xf32>
    %95 = tpu.matmul %0, %94, %cst_68 {dimension_numbers = #tpu.dot_dimension_numbers<[1], [0], [0], [1], [0, 0, 1, 1], [], []>} : vector<64x32xf32>, vector<32x16xf32>, vector<64x16xf32> -> vector<64x16xf32>
    %96 = vector.shape_cast %89 : vector<64x16xf32> to vector<8x8x16xf32>
    %97 = vector.shape_cast %92 : vector<64x16xf32> to vector<8x8x16xf32>
    %98 = vector.shape_cast %95 : vector<64x16xf32> to vector<8x8x16xf32>
    "tpu.trace_start"() <{level = 10 : i32, message = "tnd,tmd->tnm"}> : () -> ()
    %cst_69 = arith.constant dense<0.000000e+00> : vector<8x8x8xf32>
    %99 = tpu.matmul %96, %97, %cst_69 {dimension_numbers = #tpu.dot_dimension_numbers<[2], [2], [1], [1], [0, 0, 0, 1, 1, 1], [0], [0]>} : vector<8x8x16xf32>, vector<8x8x16xf32>, vector<8x8x8xf32> -> vector<8x8x8xf32>
    "tpu.trace_stop"() : () -> ()
    %cst_70 = arith.constant dense<0xFF800000> : vector<8x8xf32>
    %100 = vector.multi_reduction <maximumf>, %99, %cst_70 [2] : vector<8x8x8xf32> to vector<8x8xf32>
    %101 = vector.shape_cast %100 : vector<8x8xf32> to vector<8x8x1xf32>
    %102 = vector.broadcast %101 : vector<8x8x1xf32> to vector<8x8x8xf32>
    %103 = arith.subf %99, %102 : vector<8x8x8xf32>
    %104 = math.exp %103 : vector<8x8x8xf32>
    %cst_71 = arith.constant dense<0.000000e+00> : vector<8x8xf32>
    %105 = vector.multi_reduction <add>, %104, %cst_71 [2] : vector<8x8x8xf32> to vector<8x8xf32>
    %106 = vector.shape_cast %105 : vector<8x8xf32> to vector<8x8x1xf32>
    %107 = tpu.reciprocal %106 {approx = true} : vector<8x8x1xf32> -> vector<8x8x1xf32>
    %108 = vector.broadcast %107 : vector<8x8x1xf32> to vector<8x8x8xf32>
    %109 = arith.mulf %104, %108 : vector<8x8x8xf32>
    "tpu.trace_start"() <{level = 10 : i32, message = "tnm,tmd->tnd"}> : () -> ()
    %cst_72 = arith.constant dense<0.000000e+00> : vector<8x8x16xf32>
    %110 = tpu.matmul %109, %98, %cst_72 {dimension_numbers = #tpu.dot_dimension_numbers<[2], [1], [1], [2], [0, 0, 0, 1, 1, 2], [0], [0]>} : vector<8x8x8xf32>, vector<8x8x16xf32>, vector<8x8x16xf32> -> vector<8x8x16xf32>
    "tpu.trace_stop"() : () -> ()
    %111 = vector.shape_cast %110 : vector<8x8x16xf32> to vector<64x16xf32>
    %c3_73 = arith.constant 3 : index
    %c0_74 = arith.constant 0 : index
    %c0_75 = arith.constant 0 : index
    %112 = vector.load %arg5[%c3_73, %c0_74, %c0_75] : memref<4x16x32xf32, #tpu.memory_space<vmem>>, vector<1x16x32xf32>
    %113 = vector.shape_cast %112 : vector<1x16x32xf32> to vector<16x32xf32>
    %cst_76 = arith.constant dense<0.000000e+00> : vector<64x32xf32>
    %114 = tpu.matmul %111, %113, %cst_76 {dimension_numbers = #tpu.dot_dimension_numbers<[1], [0], [0], [1], [0, 0, 1, 1], [], []>} : vector<64x16xf32>, vector<16x32xf32>, vector<64x32xf32> -> vector<64x32xf32>
    %115 = arith.addf %86, %114 : vector<64x32xf32>
    %c0_77 = arith.constant 0 : index
    %c0_78 = arith.constant 0 : index
    %116 = vector.load %arg6[%c0_77, %c0_78] : memref<1x32xf32, #tpu.memory_space<vmem>>, vector<1x32xf32>
    %117 = vector.broadcast %116 : vector<1x32xf32> to vector<64x32xf32>
    %118 = arith.addf %115, %117 : vector<64x32xf32>
    %119 = vector.shape_cast %118 : vector<64x32xf32> to vector<8x8x32xf32>
    %120 = vector.extract_strided_slice %119 {offsets = [0, 0, 0], sizes = [8, 1, 32], strides = [1, 1, 1]} : vector<8x8x32xf32> to vector<8x1x32xf32>
    %121 = vector.shape_cast %120 : vector<8x1x32xf32> to vector<8x32xf32>
    %122 = vector.extract_strided_slice %119 {offsets = [0, 1, 0], sizes = [8, 1, 32], strides = [1, 1, 1]} : vector<8x8x32xf32> to vector<8x1x32xf32>
    %123 = vector.shape_cast %122 : vector<8x1x32xf32> to vector<8x32xf32>
    %124 = vector.extract_strided_slice %119 {offsets = [0, 2, 0], sizes = [8, 1, 32], strides = [1, 1, 1]} : vector<8x8x32xf32> to vector<8x1x32xf32>
    %125 = vector.shape_cast %124 : vector<8x1x32xf32> to vector<8x32xf32>
    %126 = vector.extract_strided_slice %119 {offsets = [0, 3, 0], sizes = [8, 1, 32], strides = [1, 1, 1]} : vector<8x8x32xf32> to vector<8x1x32xf32>
    %127 = vector.shape_cast %126 : vector<8x1x32xf32> to vector<8x32xf32>
    %128 = vector.extract_strided_slice %119 {offsets = [0, 4, 0], sizes = [8, 1, 32], strides = [1, 1, 1]} : vector<8x8x32xf32> to vector<8x1x32xf32>
    %129 = vector.shape_cast %128 : vector<8x1x32xf32> to vector<8x32xf32>
    %130 = vector.extract_strided_slice %119 {offsets = [0, 5, 0], sizes = [8, 1, 32], strides = [1, 1, 1]} : vector<8x8x32xf32> to vector<8x1x32xf32>
    %131 = vector.shape_cast %130 : vector<8x1x32xf32> to vector<8x32xf32>
    %132 = vector.extract_strided_slice %119 {offsets = [0, 6, 0], sizes = [8, 1, 32], strides = [1, 1, 1]} : vector<8x8x32xf32> to vector<8x1x32xf32>
    %133 = vector.shape_cast %132 : vector<8x1x32xf32> to vector<8x32xf32>
    %134 = vector.extract_strided_slice %119 {offsets = [0, 7, 0], sizes = [8, 1, 32], strides = [1, 1, 1]} : vector<8x8x32xf32> to vector<8x1x32xf32>
    %135 = vector.shape_cast %134 : vector<8x1x32xf32> to vector<8x32xf32>
    %136 = tpu.concatenate %121, %123, %125, %127, %129, %131, %133, %135 in 1 : vector<8x32xf32>, vector<8x32xf32>, vector<8x32xf32>, vector<8x32xf32>, vector<8x32xf32>, vector<8x32xf32>, vector<8x32xf32>, vector<8x32xf32> -> vector<8x256xf32>
    %c0_79 = arith.constant 0 : index
    %c0_80 = arith.constant 0 : index
    %137 = vector.load %arg7[%c0_79, %c0_80] : memref<8x256xf32, #tpu.memory_space<vmem>>, vector<8x256xf32>
    tpu.vector_store %arg7[%c0_79, %c0_80], %136 {strides = array<i32>} : memref<8x256xf32, #tpu.memory_space<vmem>>, vector<8x256xf32>,
    return
  }
  func.func @transform_0(%arg0: i32) -> (i32, i32) {
    %c0_i32 = arith.constant 0 : i32
    %c0_i32_0 = arith.constant 0 : i32
    return %arg0, %c0_i32 : i32, i32
  }
  func.func @transform_1(%arg0: i32) -> (i32, i32, i32) {
    %c0_i32 = arith.constant 0 : i32
    %c0_i32_0 = arith.constant 0 : i32
    %c0_i32_1 = arith.constant 0 : i32
    %c0_i32_2 = arith.constant 0 : i32
    return %c0_i32, %c0_i32_0, %c0_i32_1 : i32, i32, i32
  }
  func.func @transform_2(%arg0: i32) -> (i32, i32, i32) {
    %c0_i32 = arith.constant 0 : i32
    %c0_i32_0 = arith.constant 0 : i32
    %c0_i32_1 = arith.constant 0 : i32
    %c0_i32_2 = arith.constant 0 : i32
    return %c0_i32, %c0_i32_0, %c0_i32_1 : i32, i32, i32
  }
  func.func @transform_3(%arg0: i32) -> (i32, i32, i32) {
    %c0_i32 = arith.constant 0 : i32
    %c0_i32_0 = arith.constant 0 : i32
    %c0_i32_1 = arith.constant 0 : i32
    %c0_i32_2 = arith.constant 0 : i32
    return %c0_i32, %c0_i32_0, %c0_i32_1 : i32, i32, i32
  }
  func.func @transform_4(%arg0: i32) -> (i32, i32, i32) {
    %c0_i32 = arith.constant 0 : i32
    %c0_i32_0 = arith.constant 0 : i32
    %c0_i32_1 = arith.constant 0 : i32
    %c0_i32_2 = arith.constant 0 : i32
    return %c0_i32, %c0_i32_0, %c0_i32_1 : i32, i32, i32
  }
  func.func @transform_5(%arg0: i32) -> (i32, i32) {
    %c0_i32 = arith.constant 0 : i32
    %c0_i32_0 = arith.constant 0 : i32
    %c0_i32_1 = arith.constant 0 : i32
    return %c0_i32, %c0_i32_0 : i32, i32
  }
  func.func @transform_6(%arg0: i32) -> (i32, i32) {
    %c0_i32 = arith.constant 0 : i32
    %c0_i32_0 = arith.constant 0 : i32
    return %arg0, %c0_i32 : i32, i32
  }
}

</mosaic_0001>

<llo_original>
// kernel: tpu_custom_call.1
$region0: #{tpu_custom_call.1}
  #allocation0 [shape = 'u32[]', space=smem, size = 0x4, offset = 0x4, fixed_abs, tag = 'smem constant byte address 0x4 - core index']
  #allocation1 [shape = 'u32[144,128]{1,0:T(1,128)}', space=vmem, size = 0x12000, scoped, tag = 'internal scratch']
  %s0 = inlined_call_operand.vmem [shape: f32[64,32], index: 0, kind: input, shape index: {}]
  %s1 = inlined_call_operand.vmem [shape: f32[4,32,16], index: 1, kind: input, shape index: {}]
  %s2 = inlined_call_operand.vmem [shape: f32[4,32,16], index: 2, kind: input, shape index: {}]
  %s3 = inlined_call_operand.vmem [shape: f32[4,32,16], index: 3, kind: input, shape index: {}]
  %s4 = inlined_call_operand.vmem [shape: f32[4,16,32], index: 4, kind: input, shape index: {}]
  %s5 = inlined_call_operand.vmem [shape: f32[1,32], index: 5, kind: input, shape index: {}]
  %s6 = inlined_call_operand.hbm [shape: f32[8,256], index: 6, kind: output, shape index: {}]
  %s7 = sld [smem:[#allocation0]]
  $region34: #{tpu_custom_call.1} parent=0
    _
  %s9 = ssub.s32 1, %s7
  %s10 = scalar_select 0, %s9, %s7
  $region1: #{tpu_custom_call.1} parent=0
    #allocation2 [shape = 'u8[8192]{0}', space=vmem, size = 0x2000, scoped, tag = 'output window, operand 0, single buffered']
    #allocation3 [shape = 's32[1]{0}', space=sflag, size = 0x4, scoped, tag = 'scoped memory for tpu_custom_call.1']
    %11 = vsyncpa [#allocation3], 0
    // Predicated region
    $region2: #{tpu_custom_call.1} parent=1 // pred_check
      _
    $region3: #{tpu_custom_call.1} parent=1 // pred_check_branch
      %13 = sbr.rel (0) target = $region5
    $region4: #{tpu_custom_call.1} parent=1 // pred_region
      _
    $region5: #{tpu_custom_call.1} parent=1 // pred_fallthru
      _
    // Predicated region
    $region6: #{tpu_custom_call.1} parent=1 // pred_check
      _
    $region7: #{tpu_custom_call.1} parent=1 // pred_check_branch
      %15 = sbr.rel (0) target = $region9
    $region8: #{tpu_custom_call.1} parent=1 // pred_region
      _
    $region9: #{tpu_custom_call.1} parent=1 // pred_fallthru
      _
    // Predicated region
    $region10: #{tpu_custom_call.1} parent=1 // pred_check
      _
    $region11: #{tpu_custom_call.1} parent=1 // pred_check_branch
      %17 = sbr.rel (0) target = $region13
    $region12: #{tpu_custom_call.1} parent=1 // pred_region
      _
    $region13: #{tpu_custom_call.1} parent=1 // pred_fallthru
      _
    // Predicated region
    $region14: #{tpu_custom_call.1} parent=1 // pred_check
      _
    $region15: #{tpu_custom_call.1} parent=1 // pred_check_branch
      %19 = sbr.rel (0) target = $region17
    $region16: #{tpu_custom_call.1} parent=1 // pred_region
      _
    $region17: #{tpu_custom_call.1} parent=1 // pred_fallthru
      _
    // Predicated region
    $region18: #{tpu_custom_call.1} parent=1 // pred_check
      _
    $region19: #{tpu_custom_call.1} parent=1 // pred_check_branch
      %21 = sbr.rel (0) target = $region21
    $region20: #{tpu_custom_call.1} parent=1 // pred_region
      _
    $region21: #{tpu_custom_call.1} parent=1 // pred_fallthru
      _
    // Predicated region
    $region22: #{tpu_custom_call.1} parent=1 // pred_check
      _
    $region23: #{tpu_custom_call.1} parent=1 // pred_check_branch
      %23 = sbr.rel (0) target = $region25
    $region24: #{tpu_custom_call.1} parent=1 // pred_region
      _
    $region25: #{tpu_custom_call.1} parent=1 // pred_fallthru
      _
    %v24 = vld [vmem:[%s0] sm:$0xff]
    %v25 = vld [vmem:[%s0 + $0x8] sm:$0xff]
    %v26 = vld [vmem:[%s0 + $0x10] sm:$0xff]
    %v27 = vld [vmem:[%s0 + $0x18] sm:$0xff]
    %v28 = vld [vmem:[%s0 + $0x20] sm:$0xff]
    %v29 = vld [vmem:[%s0 + $0x28] sm:$0xff]
    %v30 = vld [vmem:[%s0 + $0x30] sm:$0xff]
    %v31 = vld [vmem:[%s0 + $0x38] sm:$0xff]
    %v32 = vld [vmem:[%s1] sm:$0xff]
    %v33 = vld [vmem:[%s1 + $0x8] sm:$0xff]
    %v34 = vld [vmem:[%s1 + $0x10] sm:$0xff]
    %v35 = vld [vmem:[%s1 + $0x18] sm:$0xff]
    %vm36 = vcmask 261120
    %v38 = vsel %vm36, %v24, 0
    %v41 = vsel %vm36, %v25, 0
    %v44 = vsel %vm36, %v26, 0
    %v47 = vsel %vm36, %v27, 0
    %v50 = vsel %vm36, %v28, 0
    %v53 = vsel %vm36, %v29, 0
    %v56 = vsel %vm36, %v30, 0
    %v59 = vsel %vm36, %v31, 0
    %61 = vmatprep.subr.mxu0 0.0
    %62 = vmatpush1.msra.mxu0 %v32
    %63 = vmatprep.subr.mxu0 0.0
    %64 = vmatpush1.msra.mxu0 %v33
    %65 = vmatprep.subr.mxu0 0.0
    %66 = vmatpush1.msra.mxu0 %v34
    %67 = vmatprep.subr.mxu0 0.0
    %68 = vmatpush1.msra.mxu0 %v35
    %69 = vmatprep.subr.mxu0 0.0
    %70 = vmatpush1.msra.mxu0 0.0
    %71 = vmatprep.subr.mxu0 0.0
    %72 = vmatpush1.msra.mxu0 0.0
    %73 = vmatprep.subr.mxu0 0.0
    %74 = vmatpush1.msra.mxu0 0.0
    %75 = vmatprep.subr.mxu0 0.0
    %76 = vmatpush1.msra.mxu0 0.0
    %77 = vmatprep.subr.mxu0 0.0
    %78 = vmatpush1.msra.mxu0 0.0
    %79 = vmatprep.subr.mxu0 0.0
    %80 = vmatpush1.msra.mxu0 0.0
    %81 = vmatprep.subr.mxu0 0.0
    %82 = vmatpush1.msra.mxu0 0.0
    %83 = vmatprep.subr.mxu0 0.0
    %84 = vmatpush1.msra.mxu0 0.0
    %85 = vmatprep.subr.mxu0 0.0
    %86 = vmatpush1.msra.mxu0 0.0
    %87 = vmatprep.subr.mxu0 0.0
    %88 = vmatpush1.msra.mxu0 0.0
    %89 = vmatprep.subr.mxu0 0.0
    %90 = vmatpush1.msra.mxu0 0.0
    %91 = vmatprep.subr.mxu0 0.0
    %92 = vmatpush1.msra.mxu0 0.0
    %93 = vmatprep.subr.mxu0 0.0
    %94 = vmatpush1.msra.mxu0 0.0
    %95 = vmatprep.subr.mxu0 0.0
    %96 = vmatpush1.msra.mxu0 0.0
    %97 = vmatprep.subr.mxu0 0.0
    %98 = vmatpush1.msra.mxu0 0.0
    %99 = vmatprep.subr.mxu0 0.0
    %100 = vmatpush1.msra.mxu0 0.0
    %101 = vmatprep.subr.mxu0 0.0
    %102 = vmatpush1.msra.mxu0 0.0
    %103 = vmatprep.subr.mxu0 0.0
    %104 = vmatpush1.msra.mxu0 0.0
    %105 = vmatprep.subr.mxu0 0.0
    %106 = vmatpush1.msra.mxu0 0.0
    %107 = vmatprep.subr.mxu0 0.0
    %108 = vmatpush1.msra.mxu0 0.0
    %109 = vmatprep.subr.mxu0 0.0
    %110 = vmatpush1.msra.mxu0 0.0
    %111 = vmatprep.subr.mxu0 0.0
    %112 = vmatpush1.msra.mxu0 0.0
    %113 = vmatprep.subr.mxu0 0.0
    %114 = vmatpush1.msra.mxu0 0.0
    %115 = vmatprep.subr.mxu0 0.0
    %116 = vmatpush1.msra.mxu0 0.0
    %117 = vmatprep.subr.mxu0 0.0
    %118 = vmatpush1.msra.mxu0 0.0
    %119 = vmatprep.subr.mxu0 0.0
    %120 = vmatpush1.msra.mxu0 0.0
    %121 = vmatprep.subr.mxu0 0.0
    %122 = vmatpush1.msra.mxu0 0.0
    %123 = vmatprep.subr.mxu0 0.0
    %124 = vmatpush1.msra.mxu0 0.0
    %125 = vmatprep.mubr.f32.mxu0 0.0
    %126 = vmatmul.mubr.f32.gmra.mrb[0].mxu0 %v38
    %v127 = vpop.f32.mrb[0].mxu0
    %v128 = vadd.f32 0.0, %v127
    %v129 = vpop.f32.mrb[0].mxu0
    %130 = vmatprep.mubr.f32.mxu0 0.0
    %131 = vmatmul.mubr.f32.gmra.mrb[0].mxu0 %v41
    %v132 = vpop.f32.mrb[0].mxu0
    %v133 = vadd.f32 0.0, %v132
    %v134 = vpop.f32.mrb[0].mxu0
    %135 = vmatprep.mubr.f32.mxu0 0.0
    %136 = vmatmul.mubr.f32.gmra.mrb[0].mxu0 %v44
    %v137 = vpop.f32.mrb[0].mxu0
    %v138 = vadd.f32 0.0, %v137
    %v139 = vpop.f32.mrb[0].mxu0
    %140 = vmatprep.mubr.f32.mxu0 0.0
    %141 = vmatmul.mubr.f32.gmra.mrb[0].mxu0 %v47
    %v142 = vpop.f32.mrb[0].mxu0
    %v143 = vadd.f32 0.0, %v142
    %v144 = vpop.f32.mrb[0].mxu0
    %145 = vmatprep.mubr.f32.mxu0 0.0
    %146 = vmatmul.mubr.f32.gmra.mrb[0].mxu0 %v50
    %v147 = vpop.f32.mrb[0].mxu0
    %v148 = vadd.f32 0.0, %v147
    %v149 = vpop.f32.mrb[0].mxu0
    %150 = vmatprep.mubr.f32.mxu0 0.0
    %151 = vmatmul.mubr.f32.gmra.mrb[0].mxu0 %v53
    %v152 = vpop.f32.mrb[0].mxu0
    %v153 = vadd.f32 0.0, %v152
    %v154 = vpop.f32.mrb[0].mxu0
    %155 = vmatprep.mubr.f32.mxu0 0.0
    %156 = vmatmul.mubr.f32.gmra.mrb[0].mxu0 %v56
    %v157 = vpop.f32.mrb[0].mxu0
    %v158 = vadd.f32 0.0, %v157
    %v159 = vpop.f32.mrb[0].mxu0
    %160 = vmatprep.mubr.f32.mxu0 0.0
    %161 = vmatmul.mubr.f32.gmra.mrb[0].mxu0 %v59
    %v162 = vpop.f32.mrb[0].mxu0
    %v163 = vadd.f32 0.0, %v162
    %v164 = vpop.f32.mrb[0].mxu0
    %165 = vdwg.mxu0
    %v166 = vld [vmem:[%s2] sm:$0xff]
    %v167 = vld [vmem:[%s2 + $0x8] sm:$0xff]
    %v168 = vld [vmem:[%s2 + $0x10] sm:$0xff]
    %v169 = vld [vmem:[%s2 + $0x18] sm:$0xff]
    %170 = vmatprep.subr.mxu0 0.0
    %171 = vmatpush1.msra.mxu0 %v166
    %172 = vmatprep.subr.mxu0 0.0
    %173 = vmatpush1.msra.mxu0 %v167
    %174 = vmatprep.subr.mxu0 0.0
    %175 = vmatpush1.msra.mxu0 %v168
    %176 = vmatprep.subr.mxu0 0.0
    %177 = vmatpush1.msra.mxu0 %v169
    %178 = vmatprep.subr.mxu0 0.0
    %179 = vmatpush1.msra.mxu0 0.0
    %180 = vmatprep.subr.mxu0 0.0
    %181 = vmatpush1.msra.mxu0 0.0
    %182 = vmatprep.subr.mxu0 0.0
    %183 = vmatpush1.msra.mxu0 0.0
    %184 = vmatprep.subr.mxu0 0.0
    %185 = vmatpush1.msra.mxu0 0.0
    %186 = vmatprep.subr.mxu0 0.0
    %187 = vmatpush1.msra.mxu0 0.0
    %188 = vmatprep.subr.mxu0 0.0
    %189 = vmatpush1.msra.mxu0 0.0
    %190 = vmatprep.subr.mxu0 0.0
    %191 = vmatpush1.msra.mxu0 0.0
    %192 = vmatprep.subr.mxu0 0.0
    %193 = vmatpush1.msra.mxu0 0.0
    %194 = vmatprep.subr.mxu0 0.0
    %195 = vmatpush1.msra.mxu0 0.0
    %196 = vmatprep.subr.mxu0 0.0
    %197 = vmatpush1.msra.mxu0 0.0
    %198 = vmatprep.subr.mxu0 0.0
    %199 = vmatpush1.msra.mxu0 0.0
    %200 = vmatprep.subr.mxu0 0.0
    %201 = vmatpush1.msra.mxu0 0.0
    %202 = vmatprep.subr.mxu0 0.0
    %203 = vmatpush1.msra.mxu0 0.0
    %204 = vmatprep.subr.mxu0 0.0
    %205 = vmatpush1.msra.mxu0 0.0
    %206 = vmatprep.subr.mxu0 0.0
    %207 = vmatpush1.msra.mxu0 0.0
    %208 = vmatprep.subr.mxu0 0.0
    %209 = vmatpush1.msra.mxu0 0.0
    %210 = vmatprep.subr.mxu0 0.0
    %211 = vmatpush1.msra.mxu0 0.0
    %212 = vmatprep.subr.mxu0 0.0
    %213 = vmatpush1.msra.mxu0 0.0
    %214 = vmatprep.subr.mxu0 0.0
    %215 = vmatpush1.msra.mxu0 0.0
    %216 = vmatprep.subr.mxu0 0.0
    %217 = vmatpush1.msra.mxu0 0.0
    %218 = vmatprep.subr.mxu0 0.0
    %219 = vmatpush1.msra.mxu0 0.0
    %220 = vmatprep.subr.mxu0 0.0
    %221 = vmatpush1.msra.mxu0 0.0
    %222 = vmatprep.subr.mxu0 0.0
    %223 = vmatpush1.msra.mxu0 0.0
    %224 = vmatprep.subr.mxu0 0.0
    %225 = vmatpush1.msra.mxu0 0.0
    %226 = vmatprep.subr.mxu0 0.0
    %227 = vmatpush1.msra.mxu0 0.0
    %228 = vmatprep.subr.mxu0 0.0
    %229 = vmatpush1.msra.mxu0 0.0
    %230 = vmatprep.subr.mxu0 0.0
    %231 = vmatpush1.msra.mxu0 0.0
    %232 = vmatprep.subr.mxu0 0.0
    %233 = vmatpush1.msra.mxu0 0.0
    %234 = vmatprep.mubr.f32.mxu0 0.0
    %235 = vmatmul.mubr.f32.gmra.mrb[0].mxu0 %v38
    %v236 = vpop.f32.mrb[0].mxu0
    %v237 = vadd.f32 0.0, %v236
    %v238 = vpop.f32.mrb[0].mxu0
    %239 = vmatprep.mubr.f32.mxu0 0.0
    %240 = vmatmul.mubr.f32.gmra.mrb[0].mxu0 %v41
    %v241 = vpop.f32.mrb[0].mxu0
    %v242 = vadd.f32 0.0, %v241
    %v243 = vpop.f32.mrb[0].mxu0
    %244 = vmatprep.mubr.f32.mxu0 0.0
    %245 = vmatmul.mubr.f32.gmra.mrb[0].mxu0 %v44
    %v246 = vpop.f32.mrb[0].mxu0
    %v247 = vadd.f32 0.0, %v246
    %v248 = vpop.f32.mrb[0].mxu0
    %249 = vmatprep.mubr.f32.mxu0 0.0
    %250 = vmatmul.mubr.f32.gmra.mrb[0].mxu0 %v47
    %v251 = vpop.f32.mrb[0].mxu0
    %v252 = vadd.f32 0.0, %v251
    %v253 = vpop.f32.mrb[0].mxu0
    %254 = vmatprep.mubr.f32.mxu0 0.0
    %255 = vmatmul.mubr.f32.gmra.mrb[0].mxu0 %v50
    %v256 = vpop.f32.mrb[0].mxu0
    %v257 = vadd.f32 0.0, %v256
    %v258 = vpop.f32.mrb[0].mxu0
    %259 = vmatprep.mubr.f32.mxu0 0.0
    %260 = vmatmul.mubr.f32.gmra.mrb[0].mxu0 %v53
    %v261 = vpop.f32.mrb[0].mxu0
    %v262 = vadd.f32 0.0, %v261
    %v263 = vpop.f32.mrb[0].mxu0
    %264 = vmatprep.mubr.f32.mxu0 0.0
    %265 = vmatmul.mubr.f32.gmra.mrb[0].mxu0 %v56
    %v266 = vpop.f32.mrb[0].mxu0
    %v267 = vadd.f32 0.0, %v266
    %v268 = vpop.f32.mrb[0].mxu0
    %269 = vmatprep.mubr.f32.mxu0 0.0
    %270 = vmatmul.mubr.f32.gmra.mrb[0].mxu0 %v59
    %v271 = vpop.f32.mrb[0].mxu0
    %v272 = vadd.f32 0.0, %v271
    %v273 = vpop.f32.mrb[0].mxu0
    %274 = vdwg.mxu0
    %v275 = vld [vmem:[%s3] sm:$0xff]
    %v276 = vld [vmem:[%s3 + $0x8] sm:$0xff]
    %v277 = vld [vmem:[%s3 + $0x10] sm:$0xff]
    %v278 = vld [vmem:[%s3 + $0x18] sm:$0xff]
    %279 = vmatprep.subr.mxu0 0.0
    %280 = vmatpush1.msra.mxu0 %v275
    %281 = vmatprep.subr.mxu0 0.0
    %282 = vmatpush1.msra.mxu0 %v276
    %283 = vmatprep.subr.mxu0 0.0
    %284 = vmatpush1.msra.mxu0 %v277
    %285 = vmatprep.subr.mxu0 0.0
    %286 = vmatpush1.msra.mxu0 %v278
    %287 = vmatprep.subr.mxu0 0.0
    %288 = vmatpush1.msra.mxu0 0.0
    %289 = vmatprep.subr.mxu0 0.0
    %290 = vmatpush1.msra.mxu0 0.0
    %291 = vmatprep.subr.mxu0 0.0
    %292 = vmatpush1.msra.mxu0 0.0
    %293 = vmatprep.subr.mxu0 0.0
    %294 = vmatpush1.msra.mxu0 0.0
    %295 = vmatprep.subr.mxu0 0.0
    %296 = vmatpush1.msra.mxu0 0.0
    %297 = vmatprep.subr.mxu0 0.0
    %298 = vmatpush1.msra.mxu0 0.0
    %299 = vmatprep.subr.mxu0 0.0
    %300 = vmatpush1.msra.mxu0 0.0
    %301 = vmatprep.subr.mxu0 0.0
    %302 = vmatpush1.msra.mxu0 0.0
    %303 = vmatprep.subr.mxu0 0.0
    %304 = vmatpush1.msra.mxu0 0.0
    %305 = vmatprep.subr.mxu0 0.0
    %306 = vmatpush1.msra.mxu0 0.0
    %307 = vmatprep.subr.mxu0 0.0
    %308 = vmatpush1.msra.mxu0 0.0
    %309 = vmatprep.subr.mxu0 0.0
    %310 = vmatpush1.msra.mxu0 0.0
    %311 = vmatprep.subr.mxu0 0.0
    %312 = vmatpush1.msra.mxu0 0.0
    %313 = vmatprep.subr.mxu0 0.0
    %314 = vmatpush1.msra.mxu0 0.0
    %315 = vmatprep.subr.mxu0 0.0
    %316 = vmatpush1.msra.mxu0 0.0
    %317 = vmatprep.subr.mxu0 0.0
    %318 = vmatpush1.msra.mxu0 0.0
    %319 = vmatprep.subr.mxu0 0.0
    %320 = vmatpush1.msra.mxu0 0.0
    %321 = vmatprep.subr.mxu0 0.0
    %322 = vmatpush1.msra.mxu0 0.0
    %323 = vmatprep.subr.mxu0 0.0
    %324 = vmatpush1.msra.mxu0 0.0
    %325 = vmatprep.subr.mxu0 0.0
    %326 = vmatpush1.msra.mxu0 0.0
    %327 = vmatprep.subr.mxu0 0.0
    %328 = vmatpush1.msra.mxu0 0.0
    %329 = vmatprep.subr.mxu0 0.0
    %330 = vmatpush1.msra.mxu0 0.0
    %331 = vmatprep.subr.mxu0 0.0
    %332 = vmatpush1.msra.mxu0 0.0
    %333 = vmatprep.subr.mxu0 0.0
    %334 = vmatpush1.msra.mxu0 0.0
    %335 = vmatprep.subr.mxu0 0.0
    %336 = vmatpush1.msra.mxu0 0.0
    %337 = vmatprep.subr.mxu0 0.0
    %338 = vmatpush1.msra.mxu0 0.0
    %339 = vmatprep.subr.mxu0 0.0
    %340 = vmatpush1.msra.mxu0 0.0
    %341 = vmatprep.subr.mxu0 0.0
    %342 = vmatpush1.msra.mxu0 0.0
    %343 = vmatprep.mubr.f32.mxu0 0.0
    %344 = vmatmul.mubr.f32.gmra.mrb[0].mxu0 %v38
    %v345 = vpop.f32.mrb[0].mxu0
    %v346 = vadd.f32 0.0, %v345
    %v347 = vpop.f32.mrb[0].mxu0
    %348 = vmatprep.mubr.f32.mxu0 0.0
    %349 = vmatmul.mubr.f32.gmra.mrb[0].mxu0 %v41
    %v350 = vpop.f32.mrb[0].mxu0
    %v351 = vadd.f32 0.0, %v350
    %v352 = vpop.f32.mrb[0].mxu0
    %353 = vmatprep.mubr.f32.mxu0 0.0
    %354 = vmatmul.mubr.f32.gmra.mrb[0].mxu0 %v44
    %v355 = vpop.f32.mrb[0].mxu0
    %v356 = vadd.f32 0.0, %v355
    %v357 = vpop.f32.mrb[0].mxu0
    %358 = vmatprep.mubr.f32.mxu0 0.0
    %359 = vmatmul.mubr.f32.gmra.mrb[0].mxu0 %v47
    %v360 = vpop.f32.mrb[0].mxu0
    %v361 = vadd.f32 0.0, %v360
    %v362 = vpop.f32.mrb[0].mxu0
    %363 = vmatprep.mubr.f32.mxu0 0.0
    %364 = vmatmul.mubr.f32.gmra.mrb[0].mxu0 %v50
    %v365 = vpop.f32.mrb[0].mxu0
    %v366 = vadd.f32 0.0, %v365
    %v367 = vpop.f32.mrb[0].mxu0
    %368 = vmatprep.mubr.f32.mxu0 0.0
    %369 = vmatmul.mubr.f32.gmra.mrb[0].mxu0 %v53
    %v370 = vpop.f32.mrb[0].mxu0
    %v371 = vadd.f32 0.0, %v370
    %v372 = vpop.f32.mrb[0].mxu0
    %373 = vmatprep.mubr.f32.mxu0 0.0
    %374 = vmatmul.mubr.f32.gmra.mrb[0].mxu0 %v56
    %v375 = vpop.f32.mrb[0].mxu0
    %v376 = vadd.f32 0.0, %v375
    %v377 = vpop.f32.mrb[0].mxu0
    %378 = vmatprep.mubr.f32.mxu0 0.0
    %379 = vmatmul.mubr.f32.gmra.mrb[0].mxu0 %v59
    %v380 = vpop.f32.mrb[0].mxu0
    %v381 = vadd.f32 0.0, %v380
    %v382 = vpop.f32.mrb[0].mxu0
    %383 = vdwg.mxu0
    %vm384 = vcmask 130048
    %v386 = vsel %vm384, %v128, 0
    %v389 = vsel %vm384, %v237, 0
    %391 = vmatprep.subr.mxu0 0.0
    %392 = vmatpush1.xpose.msra.mxu0 %v389
    %393 = vmatprep.subr.mxu0 0.0
    %394 = vmatpush1.xpose.msra.mxu0 0.0
    %395 = vmatprep.subr.mxu0 0.0
    %396 = vmatpush1.xpose.msra.mxu0 0.0
    %397 = vmatprep.subr.mxu0 0.0
    %398 = vmatpush1.xpose.msra.mxu0 0.0
    %399 = vmatprep.subr.mxu0 0.0
    %400 = vmatpush1.xpose.msra.mxu0 0.0
    %401 = vmatprep.subr.mxu0 0.0
    %402 = vmatpush1.xpose.msra.mxu0 0.0
    %403 = vmatprep.subr.mxu0 0.0
    %404 = vmatpush1.xpose.msra.mxu0 0.0
    %405 = vmatprep.subr.mxu0 0.0
    %406 = vmatpush1.xpose.msra.mxu0 0.0
    %407 = vmatprep.subr.mxu0 0.0
    %408 = vmatpush1.xpose.msra.mxu0 0.0
    %409 = vmatprep.subr.mxu0 0.0
    %410 = vmatpush1.xpose.msra.mxu0 0.0
    %411 = vmatprep.subr.mxu0 0.0
    %412 = vmatpush1.xpose.msra.mxu0 0.0
    %413 = vmatprep.subr.mxu0 0.0
    %414 = vmatpush1.xpose.msra.mxu0 0.0
    %415 = vmatprep.subr.mxu0 0.0
    %416 = vmatpush1.xpose.msra.mxu0 0.0
    %417 = vmatprep.subr.mxu0 0.0
    %418 = vmatpush1.xpose.msra.mxu0 0.0
    %419 = vmatprep.subr.mxu0 0.0
    %420 = vmatpush1.xpose.msra.mxu0 0.0
    %421 = vmatprep.subr.mxu0 0.0
    %422 = vmatpush1.xpose.msra.mxu0 0.0
    %423 = vmatprep.subr.mxu0 0.0
    %424 = vmatpush1.xpose.msra.mxu0 0.0
    %425 = vmatprep.subr.mxu0 0.0
    %426 = vmatpush1.xpose.msra.mxu0 0.0
    %427 = vmatprep.subr.mxu0 0.0
    %428 = vmatpush1.xpose.msra.mxu0 0.0
    %429 = vmatprep.subr.mxu0 0.0
    %430 = vmatpush1.xpose.msra.mxu0 0.0
    %431 = vmatprep.subr.mxu0 0.0
    %432 = vmatpush1.xpose.msra.mxu0 0.0
    %433 = vmatprep.subr.mxu0 0.0
    %434 = vmatpush1.xpose.msra.mxu0 0.0
    %435 = vmatprep.subr.mxu0 0.0
    %436 = vmatpush1.xpose.msra.mxu0 0.0
    %437 = vmatprep.subr.mxu0 0.0
    %438 = vmatpush1.xpose.msra.mxu0 0.0
    %439 = vmatprep.subr.mxu0 0.0
    %440 = vmatpush1.xpose.msra.mxu0 0.0
    %441 = vmatprep.subr.mxu0 0.0
    %442 = vmatpush1.xpose.msra.mxu0 0.0
    %443 = vmatprep.subr.mxu0 0.0
    %444 = vmatpush1.xpose.msra.mxu0 0.0
    %445 = vmatprep.subr.mxu0 0.0
    %446 = vmatpush1.xpose.msra.mxu0 0.0
    %447 = vmatprep.subr.mxu0 0.0
    %448 = vmatpush1.xpose.msra.mxu0 0.0
    %449 = vmatprep.subr.mxu0 0.0
    %450 = vmatpush1.xpose.msra.mxu0 0.0
    %451 = vmatprep.subr.mxu0 0.0
    %452 = vmatpush1.xpose.msra.mxu0 0.0
    %453 = vmatprep.subr.mxu0 0.0
    %454 = vmatpush1.xpose.msra.mxu0 0.0
    %455 = vmatprep.mubr.f32.mxu0 0.0
    %456 = vmatmul.mubr.f32.gmra.mrb[0].mxu0 %v386
    %v457 = vpop.f32.mrb[0].mxu0
    %v458 = vadd.f32 0.0, %v457
    %v459 = vpop.f32.mrb[0].mxu0
    %460 = vdwg.mxu0
    %v462 = vsel %vm384, %v133, 0
    %v465 = vsel %vm384, %v242, 0
    %467 = vmatprep.subr.mxu0 0.0
    %468 = vmatpush1.xpose.msra.mxu0 %v465
    %469 = vmatprep.subr.mxu0 0.0
    %470 = vmatpush1.xpose.msra.mxu0 0.0
    %471 = vmatprep.subr.mxu0 0.0
    %472 = vmatpush1.xpose.msra.mxu0 0.0
    %473 = vmatprep.subr.mxu0 0.0
    %474 = vmatpush1.xpose.msra.mxu0 0.0
    %475 = vmatprep.subr.mxu0 0.0
    %476 = vmatpush1.xpose.msra.mxu0 0.0
    %477 = vmatprep.subr.mxu0 0.0
    %478 = vmatpush1.xpose.msra.mxu0 0.0
    %479 = vmatprep.subr.mxu0 0.0
    %480 = vmatpush1.xpose.msra.mxu0 0.0
    %481 = vmatprep.subr.mxu0 0.0
    %482 = vmatpush1.xpose.msra.mxu0 0.0
    %483 = vmatprep.subr.mxu0 0.0
    %484 = vmatpush1.xpose.msra.mxu0 0.0
    %485 = vmatprep.subr.mxu0 0.0
    %486 = vmatpush1.xpose.msra.mxu0 0.0
    %487 = vmatprep.subr.mxu0 0.0
    %488 = vmatpush1.xpose.msra.mxu0 0.0
    %489 = vmatprep.subr.mxu0 0.0
    %490 = vmatpush1.xpose.msra.mxu0 0.0
    %491 = vmatprep.subr.mxu0 0.0
    %492 = vmatpush1.xpose.msra.mxu0 0.0
    %493 = vmatprep.subr.mxu0 0.0
    %494 = vmatpush1.xpose.msra.mxu0 0.0
    %495 = vmatprep.subr.mxu0 0.0
    %496 = vmatpush1.xpose.msra.mxu0 0.0
    %497 = vmatprep.subr.mxu0 0.0
    %498 = vmatpush1.xpose.msra.mxu0 0.0
    %499 = vmatprep.subr.mxu0 0.0
    %500 = vmatpush1.xpose.msra.mxu0 0.0
    %501 = vmatprep.subr.mxu0 0.0
    %502 = vmatpush1.xpose.msra.mxu0 0.0
    %503 = vmatprep.subr.mxu0 0.0
    %504 = vmatpush1.xpose.msra.mxu0 0.0
    %505 = vmatprep.subr.mxu0 0.0
    %506 = vmatpush1.xpose.msra.mxu0 0.0
    %507 = vmatprep.subr.mxu0 0.0
    %508 = vmatpush1.xpose.msra.mxu0 0.0
    %509 = vmatprep.subr.mxu0 0.0
    %510 = vmatpush1.xpose.msra.mxu0 0.0
    %511 = vmatprep.subr.mxu0 0.0
    %512 = vmatpush1.xpose.msra.mxu0 0.0
    %513 = vmatprep.subr.mxu0 0.0
    %514 = vmatpush1.xpose.msra.mxu0 0.0
    %515 = vmatprep.subr.mxu0 0.0
    %516 = vmatpush1.xpose.msra.mxu0 0.0
    %517 = vmatprep.subr.mxu0 0.0
    %518 = vmatpush1.xpose.msra.mxu0 0.0
    %519 = vmatprep.subr.mxu0 0.0
    %520 = vmatpush1.xpose.msra.mxu0 0.0
    %521 = vmatprep.subr.mxu0 0.0
    %522 = vmatpush1.xpose.msra.mxu0 0.0
    %523 = vmatprep.subr.mxu0 0.0
    %524 = vmatpush1.xpose.msra.mxu0 0.0
    %525 = vmatprep.subr.mxu0 0.0
    %526 = vmatpush1.xpose.msra.mxu0 0.0
    %527 = vmatprep.subr.mxu0 0.0
    %528 = vmatpush1.xpose.msra.mxu0 0.0
    %529 = vmatprep.subr.mxu0 0.0
    %530 = vmatpush1.xpose.msra.mxu0 0.0
    %531 = vmatprep.mubr.f32.mxu0 0.0
    %532 = vmatmul.mubr.f32.gmra.mrb[0].mxu0 %v462
    %v533 = vpop.f32.mrb[0].mxu0
    %v534 = vadd.f32 0.0, %v533
    %v535 = vpop.f32.mrb[0].mxu0
    %536 = vdwg.mxu0
    %v538 = vsel %vm384, %v138, 0
    %v541 = vsel %vm384, %v247, 0
    %543 = vmatprep.subr.mxu0 0.0
    %544 = vmatpush1.xpose.msra.mxu0 %v541
    %545 = vmatprep.subr.mxu0 0.0
    %546 = vmatpush1.xpose.msra.mxu0 0.0
    %547 = vmatprep.subr.mxu0 0.0
    %548 = vmatpush1.xpose.msra.mxu0 0.0
    %549 = vmatprep.subr.mxu0 0.0
    %550 = vmatpush1.xpose.msra.mxu0 0.0
    %551 = vmatprep.subr.mxu0 0.0
    %552 = vmatpush1.xpose.msra.mxu0 0.0
    %553 = vmatprep.subr.mxu0 0.0
    %554 = vmatpush1.xpose.msra.mxu0 0.0
    %555 = vmatprep.subr.mxu0 0.0
    %556 = vmatpush1.xpose.msra.mxu0 0.0
    %557 = vmatprep.subr.mxu0 0.0
    %558 = vmatpush1.xpose.msra.mxu0 0.0
    %559 = vmatprep.subr.mxu0 0.0
    %560 = vmatpush1.xpose.msra.mxu0 0.0
    %561 = vmatprep.subr.mxu0 0.0
    %562 = vmatpush1.xpose.msra.mxu0 0.0
    %563 = vmatprep.subr.mxu0 0.0
    %564 = vmatpush1.xpose.msra.mxu0 0.0
    %565 = vmatprep.subr.mxu0 0.0
    %566 = vmatpush1.xpose.msra.mxu0 0.0
    %567 = vmatprep.subr.mxu0 0.0
    %568 = vmatpush1.xpose.msra.mxu0 0.0
    %569 = vmatprep.subr.mxu0 0.0
    %570 = vmatpush1.xpose.msra.mxu0 0.0
    %571 = vmatprep.subr.mxu0 0.0
    %572 = vmatpush1.xpose.msra.mxu0 0.0
    %573 = vmatprep.subr.mxu0 0.0
    %574 = vmatpush1.xpose.msra.mxu0 0.0
    %575 = vmatprep.subr.mxu0 0.0
    %576 = vmatpush1.xpose.msra.mxu0 0.0
    %577 = vmatprep.subr.mxu0 0.0
    %578 = vmatpush1.xpose.msra.mxu0 0.0
    %579 = vmatprep.subr.mxu0 0.0
    %580 = vmatpush1.xpose.msra.mxu0 0.0
    %581 = vmatprep.subr.mxu0 0.0
    %582 = vmatpush1.xpose.msra.mxu0 0.0
    %583 = vmatprep.subr.mxu0 0.0
    %584 = vmatpush1.xpose.msra.mxu0 0.0
    %585 = vmatprep.subr.mxu0 0.0
    %586 = vmatpush1.xpose.msra.mxu0 0.0
    %587 = vmatprep.subr.mxu0 0.0
    %588 = vmatpush1.xpose.msra.mxu0 0.0
    %589 = vmatprep.subr.mxu0 0.0
    %590 = vmatpush1.xpose.msra.mxu0 0.0
    %591 = vmatprep.subr.mxu0 0.0
    %592 = vmatpush1.xpose.msra.mxu0 0.0
    %593 = vmatprep.subr.mxu0 0.0
    %594 = vmatpush1.xpose.msra.mxu0 0.0
    %595 = vmatprep.subr.mxu0 0.0
    %596 = vmatpush1.xpose.msra.mxu0 0.0
    %597 = vmatprep.subr.mxu0 0.0
    %598 = vmatpush1.xpose.msra.mxu0 0.0
    %599 = vmatprep.subr.mxu0 0.0
    %600 = vmatpush1.xpose.msra.mxu0 0.0
    %601 = vmatprep.subr.mxu0 0.0
    %602 = vmatpush1.xpose.msra.mxu0 0.0
    %603 = vmatprep.subr.mxu0 0.0
    %604 = vmatpush1.xpose.msra.mxu0 0.0
    %605 = vmatprep.subr.mxu0 0.0
    %606 = vmatpush1.xpose.msra.mxu0 0.0
    %607 = vmatprep.mubr.f32.mxu0 0.0
    %608 = vmatmul.mubr.f32.gmra.mrb[0].mxu0 %v538
    %v609 = vpop.f32.mrb[0].mxu0
    %v610 = vadd.f32 0.0, %v609
    %v611 = vpop.f32.mrb[0].mxu0
    %612 = vdwg.mxu0
    %v614 = vsel %vm384, %v143, 0
    %v617 = vsel %vm384, %v252, 0
    %619 = vmatprep.subr.mxu0 0.0
    %620 = vmatpush1.xpose.msra.mxu0 %v617
    %621 = vmatprep.subr.mxu0 0.0
    %622 = vmatpush1.xpose.msra.mxu0 0.0
    %623 = vmatprep.subr.mxu0 0.0
    %624 = vmatpush1.xpose.msra.mxu0 0.0
    %625 = vmatprep.subr.mxu0 0.0
    %626 = vmatpush1.xpose.msra.mxu0 0.0
    %627 = vmatprep.subr.mxu0 0.0
    %628 = vmatpush1.xpose.msra.mxu0 0.0
    %629 = vmatprep.subr.mxu0 0.0
    %630 = vmatpush1.xpose.msra.mxu0 0.0
    %631 = vmatprep.subr.mxu0 0.0
    %632 = vmatpush1.xpose.msra.mxu0 0.0
    %633 = vmatprep.subr.mxu0 0.0
    %634 = vmatpush1.xpose.msra.mxu0 0.0
    %635 = vmatprep.subr.mxu0 0.0
    %636 = vmatpush1.xpose.msra.mxu0 0.0
    %637 = vmatprep.subr.mxu0 0.0
    %638 = vmatpush1.xpose.msra.mxu0 0.0
    %639 = vmatprep.subr.mxu0 0.0
    %640 = vmatpush1.xpose.msra.mxu0 0.0
    %641 = vmatprep.subr.mxu0 0.0
    %642 = vmatpush1.xpose.msra.mxu0 0.0
    %643 = vmatprep.subr.mxu0 0.0
    %644 = vmatpush1.xpose.msra.mxu0 0.0
    %645 = vmatprep.subr.mxu0 0.0
    %646 = vmatpush1.xpose.msra.mxu0 0.0
    %647 = vmatprep.subr.mxu0 0.0
    %648 = vmatpush1.xpose.msra.mxu0 0.0
    %649 = vmatprep.subr.mxu0 0.0
    %650 = vmatpush1.xpose.msra.mxu0 0.0
    %651 = vmatprep.subr.mxu0 0.0
    %652 = vmatpush1.xpose.msra.mxu0 0.0
    %653 = vmatprep.subr.mxu0 0.0
    %654 = vmatpush1.xpose.msra.mxu0 0.0
    %655 = vmatprep.subr.mxu0 0.0
    %656 = vmatpush1.xpose.msra.mxu0 0.0
    %657 = vmatprep.subr.mxu0 0.0
    %658 = vmatpush1.xpose.msra.mxu0 0.0
    %659 = vmatprep.subr.mxu0 0.0
    %660 = vmatpush1.xpose.msra.mxu0 0.0
    %661 = vmatprep.subr.mxu0 0.0
    %662 = vmatpush1.xpose.msra.mxu0 0.0
    %663 = vmatprep.subr.mxu0 0.0
    %664 = vmatpush1.xpose.msra.mxu0 0.0
    %665 = vmatprep.subr.mxu0 0.0
    %666 = vmatpush1.xpose.msra.mxu0 0.0
    %667 = vmatprep.subr.mxu0 0.0
    %668 = vmatpush1.xpose.msra.mxu0 0.0
    %669 = vmatprep.subr.mxu0 0.0
    %670 = vmatpush1.xpose.msra.mxu0 0.0
    %671 = vmatprep.subr.mxu0 0.0
    %672 = vmatpush1.xpose.msra.mxu0 0.0
    %673 = vmatprep.subr.mxu0 0.0
    %674 = vmatpush1.xpose.msra.mxu0 0.0
    %675 = vmatprep.subr.mxu0 0.0
    %676 = vmatpush1.xpose.msra.mxu0 0.0
    %677 = vmatprep.subr.mxu0 0.0
    %678 = vmatpush1.xpose.msra.mxu0 0.0
    %679 = vmatprep.subr.mxu0 0.0
    %680 = vmatpush1.xpose.msra.mxu0 0.0
    %681 = vmatprep.subr.mxu0 0.0
    %682 = vmatpush1.xpose.msra.mxu0 0.0
    %683 = vmatprep.mubr.f32.mxu0 0.0
    %684 = vmatmul.mubr.f32.gmra.mrb[0].mxu0 %v614
    %v685 = vpop.f32.mrb[0].mxu0
    %v686 = vadd.f32 0.0, %v685
    %v687 = vpop.f32.mrb[0].mxu0
    %688 = vdwg.mxu0
    %v690 = vsel %vm384, %v148, 0
    %v693 = vsel %vm384, %v257, 0
    %695 = vmatprep.subr.mxu0 0.0
    %696 = vmatpush1.xpose.msra.mxu0 %v693
    %697 = vmatprep.subr.mxu0 0.0
    %698 = vmatpush1.xpose.msra.mxu0 0.0
    %699 = vmatprep.subr.mxu0 0.0
    %700 = vmatpush1.xpose.msra.mxu0 0.0
    %701 = vmatprep.subr.mxu0 0.0
    %702 = vmatpush1.xpose.msra.mxu0 0.0
    %703 = vmatprep.subr.mxu0 0.0
    %704 = vmatpush1.xpose.msra.mxu0 0.0
    %705 = vmatprep.subr.mxu0 0.0
    %706 = vmatpush1.xpose.msra.mxu0 0.0
    %707 = vmatprep.subr.mxu0 0.0
    %708 = vmatpush1.xpose.msra.mxu0 0.0
    %709 = vmatprep.subr.mxu0 0.0
    %710 = vmatpush1.xpose.msra.mxu0 0.0
    %711 = vmatprep.subr.mxu0 0.0
    %712 = vmatpush1.xpose.msra.mxu0 0.0
    %713 = vmatprep.subr.mxu0 0.0
    %714 = vmatpush1.xpose.msra.mxu0 0.0
    %715 = vmatprep.subr.mxu0 0.0
    %716 = vmatpush1.xpose.msra.mxu0 0.0
    %717 = vmatprep.subr.mxu0 0.0
    %718 = vmatpush1.xpose.msra.mxu0 0.0
    %719 = vmatprep.subr.mxu0 0.0
    %720 = vmatpush1.xpose.msra.mxu0 0.0
    %721 = vmatprep.subr.mxu0 0.0
    %722 = vmatpush1.xpose.msra.mxu0 0.0
    %723 = vmatprep.subr.mxu0 0.0
    %724 = vmatpush1.xpose.msra.mxu0 0.0
    %725 = vmatprep.subr.mxu0 0.0
    %726 = vmatpush1.xpose.msra.mxu0 0.0
    %727 = vmatprep.subr.mxu0 0.0
    %728 = vmatpush1.xpose.msra.mxu0 0.0
    %729 = vmatprep.subr.mxu0 0.0
    %730 = vmatpush1.xpose.msra.mxu0 0.0
    %731 = vmatprep.subr.mxu0 0.0
    %732 = vmatpush1.xpose.msra.mxu0 0.0
    %733 = vmatprep.subr.mxu0 0.0
    %734 = vmatpush1.xpose.msra.mxu0 0.0
    %735 = vmatprep.subr.mxu0 0.0
    %736 = vmatpush1.xpose.msra.mxu0 0.0
    %737 = vmatprep.subr.mxu0 0.0
    %738 = vmatpush1.xpose.msra.mxu0 0.0
    %739 = vmatprep.subr.mxu0 0.0
    %740 = vmatpush1.xpose.msra.mxu0 0.0
    %741 = vmatprep.subr.mxu0 0.0
    %742 = vmatpush1.xpose.msra.mxu0 0.0
    %743 = vmatprep.subr.mxu0 0.0
    %744 = vmatpush1.xpose.msra.mxu0 0.0
    %745 = vmatprep.subr.mxu0 0.0
    %746 = vmatpush1.xpose.msra.mxu0 0.0
    %747 = vmatprep.subr.mxu0 0.0
    %748 = vmatpush1.xpose.msra.mxu0 0.0
    %749 = vmatprep.subr.mxu0 0.0
    %750 = vmatpush1.xpose.msra.mxu0 0.0
    %751 = vmatprep.subr.mxu0 0.0
    %752 = vmatpush1.xpose.msra.mxu0 0.0
    %753 = vmatprep.subr.mxu0 0.0
    %754 = vmatpush1.xpose.msra.mxu0 0.0
    %755 = vmatprep.subr.mxu0 0.0
    %756 = vmatpush1.xpose.msra.mxu0 0.0
    %757 = vmatprep.subr.mxu0 0.0
    %758 = vmatpush1.xpose.msra.mxu0 0.0
    %759 = vmatprep.mubr.f32.mxu0 0.0
    %760 = vmatmul.mubr.f32.gmra.mrb[0].mxu0 %v690
    %v761 = vpop.f32.mrb[0].mxu0
    %v762 = vadd.f32 0.0, %v761
    %v763 = vpop.f32.mrb[0].mxu0
    %764 = vdwg.mxu0
    %v766 = vsel %vm384, %v153, 0
    %v769 = vsel %vm384, %v262, 0
    %771 = vmatprep.subr.mxu0 0.0
    %772 = vmatpush1.xpose.msra.mxu0 %v769
    %773 = vmatprep.subr.mxu0 0.0
    %774 = vmatpush1.xpose.msra.mxu0 0.0
    %775 = vmatprep.subr.mxu0 0.0
    %776 = vmatpush1.xpose.msra.mxu0 0.0
    %777 = vmatprep.subr.mxu0 0.0
    %778 = vmatpush1.xpose.msra.mxu0 0.0
    %779 = vmatprep.subr.mxu0 0.0
    %780 = vmatpush1.xpose.msra.mxu0 0.0
    %781 = vmatprep.subr.mxu0 0.0
    %782 = vmatpush1.xpose.msra.mxu0 0.0
    %783 = vmatprep.subr.mxu0 0.0
    %784 = vmatpush1.xpose.msra.mxu0 0.0
    %785 = vmatprep.subr.mxu0 0.0
    %786 = vmatpush1.xpose.msra.mxu0 0.0
    %787 = vmatprep.subr.mxu0 0.0
    %788 = vmatpush1.xpose.msra.mxu0 0.0
    %789 = vmatprep.subr.mxu0 0.0
    %790 = vmatpush1.xpose.msra.mxu0 0.0
    %791 = vmatprep.subr.mxu0 0.0
    %792 = vmatpush1.xpose.msra.mxu0 0.0
    %793 = vmatprep.subr.mxu0 0.0
    %794 = vmatpush1.xpose.msra.mxu0 0.0
    %795 = vmatprep.subr.mxu0 0.0
    %796 = vmatpush1.xpose.msra.mxu0 0.0
    %797 = vmatprep.subr.mxu0 0.0
    %798 = vmatpush1.xpose.msra.mxu0 0.0
    %799 = vmatprep.subr.mxu0 0.0
    %800 = vmatpush1.xpose.msra.mxu0 0.0
    %801 = vmatprep.subr.mxu0 0.0
    %802 = vmatpush1.xpose.msra.mxu0 0.0
    %803 = vmatprep.subr.mxu0 0.0
    %804 = vmatpush1.xpose.msra.mxu0 0.0
    %805 = vmatprep.subr.mxu0 0.0
    %806 = vmatpush1.xpose.msra.mxu0 0.0
    %807 = vmatprep.subr.mxu0 0.0
    %808 = vmatpush1.xpose.msra.mxu0 0.0
    %809 = vmatprep.subr.mxu0 0.0
    %810 = vmatpush1.xpose.msra.mxu0 0.0
    %811 = vmatprep.subr.mxu0 0.0
    %812 = vmatpush1.xpose.msra.mxu0 0.0
    %813 = vmatprep.subr.mxu0 0.0
    %814 = vmatpush1.xpose.msra.mxu0 0.0
    %815 = vmatprep.subr.mxu0 0.0
    %816 = vmatpush1.xpose.msra.mxu0 0.0
    %817 = vmatprep.subr.mxu0 0.0
    %818 = vmatpush1.xpose.msra.mxu0 0.0
    %819 = vmatprep.subr.mxu0 0.0
    %820 = vmatpush1.xpose.msra.mxu0 0.0
    %821 = vmatprep.subr.mxu0 0.0
    %822 = vmatpush1.xpose.msra.mxu0 0.0
    %823 = vmatprep.subr.mxu0 0.0
    %824 = vmatpush1.xpose.msra.mxu0 0.0
    %825 = vmatprep.subr.mxu0 0.0
    %826 = vmatpush1.xpose.msra.mxu0 0.0
    %827 = vmatprep.subr.mxu0 0.0
    %828 = vmatpush1.xpose.msra.mxu0 0.0
    %829 = vmatprep.subr.mxu0 0.0
    %830 = vmatpush1.xpose.msra.mxu0 0.0
    %831 = vmatprep.subr.mxu0 0.0
    %832 = vmatpush1.xpose.msra.mxu0 0.0
    %833 = vmatprep.subr.mxu0 0.0
    %834 = vmatpush1.xpose.msra.mxu0 0.0
    %835 = vmatprep.mubr.f32.mxu0 0.0
    %836 = vmatmul.mubr.f32.gmra.mrb[0].mxu0 %v766
    %v837 = vpop.f32.mrb[0].mxu0
    %v838 = vadd.f32 0.0, %v837
    %v839 = vpop.f32.mrb[0].mxu0
    %840 = vdwg.mxu0
    %v842 = vsel %vm384, %v158, 0
    %v845 = vsel %vm384, %v267, 0
    %847 = vmatprep.subr.mxu0 0.0
    %848 = vmatpush1.xpose.msra.mxu0 %v845
    %849 = vmatprep.subr.mxu0 0.0
    %850 = vmatpush1.xpose.msra.mxu0 0.0
    %851 = vmatprep.subr.mxu0 0.0
    %852 = vmatpush1.xpose.msra.mxu0 0.0
    %853 = vmatprep.subr.mxu0 0.0
    %854 = vmatpush1.xpose.msra.mxu0 0.0
    %855 = vmatprep.subr.mxu0 0.0
    %856 = vmatpush1.xpose.msra.mxu0 0.0
    %857 = vmatprep.subr.mxu0 0.0
    %858 = vmatpush1.xpose.msra.mxu0 0.0
    %859 = vmatprep.subr.mxu0 0.0
    %860 = vmatpush1.xpose.msra.mxu0 0.0
    %861 = vmatprep.subr.mxu0 0.0
    %862 = vmatpush1.xpose.msra.mxu0 0.0
    %863 = vmatprep.subr.mxu0 0.0
    %864 = vmatpush1.xpose.msra.mxu0 0.0
    %865 = vmatprep.subr.mxu0 0.0
    %866 = vmatpush1.xpose.msra.mxu0 0.0
    %867 = vmatprep.subr.mxu0 0.0
    %868 = vmatpush1.xpose.msra.mxu0 0.0
    %869 = vmatprep.subr.mxu0 0.0
    %870 = vmatpush1.xpose.msra.mxu0 0.0
    %871 = vmatprep.subr.mxu0 0.0
    %872 = vmatpush1.xpose.msra.mxu0 0.0
    %873 = vmatprep.subr.mxu0 0.0
    %874 = vmatpush1.xpose.msra.mxu0 0.0
    %875 = vmatprep.subr.mxu0 0.0
    %876 = vmatpush1.xpose.msra.mxu0 0.0
    %877 = vmatprep.subr.mxu0 0.0
    %878 = vmatpush1.xpose.msra.mxu0 0.0
    %879 = vmatprep.subr.mxu0 0.0
    %880 = vmatpush1.xpose.msra.mxu0 0.0
    %881 = vmatprep.subr.mxu0 0.0
    %882 = vmatpush1.xpose.msra.mxu0 0.0
    %883 = vmatprep.subr.mxu0 0.0
    %884 = vmatpush1.xpose.msra.mxu0 0.0
    %885 = vmatprep.subr.mxu0 0.0
    %886 = vmatpush1.xpose.msra.mxu0 0.0
    %887 = vmatprep.subr.mxu0 0.0
    %888 = vmatpush1.xpose.msra.mxu0 0.0
    %889 = vmatprep.subr.mxu0 0.0
    %890 = vmatpush1.xpose.msra.mxu0 0.0
    %891 = vmatprep.subr.mxu0 0.0
    %892 = vmatpush1.xpose.msra.mxu0 0.0
    %893 = vmatprep.subr.mxu0 0.0
    %894 = vmatpush1.xpose.msra.mxu0 0.0
    %895 = vmatprep.subr.mxu0 0.0
    %896 = vmatpush1.xpose.msra.mxu0 0.0
    %897 = vmatprep.subr.mxu0 0.0
    %898 = vmatpush1.xpose.msra.mxu0 0.0
    %899 = vmatprep.subr.mxu0 0.0
    %900 = vmatpush1.xpose.msra.mxu0 0.0
    %901 = vmatprep.subr.mxu0 0.0
    %902 = vmatpush1.xpose.msra.mxu0 0.0
    %903 = vmatprep.subr.mxu0 0.0
    %904 = vmatpush1.xpose.msra.mxu0 0.0
    %905 = vmatprep.subr.mxu0 0.0
    %906 = vmatpush1.xpose.msra.mxu0 0.0
    %907 = vmatprep.subr.mxu0 0.0
    %908 = vmatpush1.xpose.msra.mxu0 0.0
    %909 = vmatprep.subr.mxu0 0.0
    %910 = vmatpush1.xpose.msra.mxu0 0.0
    %911 = vmatprep.mubr.f32.mxu0 0.0
    %912 = vmatmul.mubr.f32.gmra.mrb[0].mxu0 %v842
    %v913 = vpop.f32.mrb[0].mxu0
    %v914 = vadd.f32 0.0, %v913
    %v915 = vpop.f32.mrb[0].mxu0
    %916 = vdwg.mxu0
    %v918 = vsel %vm384, %v163, 0
    %v921 = vsel %vm384, %v272, 0
    %923 = vmatprep.subr.mxu0 0.0
    %924 = vmatpush1.xpose.msra.mxu0 %v921
    %925 = vmatprep.subr.mxu0 0.0
    %926 = vmatpush1.xpose.msra.mxu0 0.0
    %927 = vmatprep.subr.mxu0 0.0
    %928 = vmatpush1.xpose.msra.mxu0 0.0
    %929 = vmatprep.subr.mxu0 0.0
    %930 = vmatpush1.xpose.msra.mxu0 0.0
    %931 = vmatprep.subr.mxu0 0.0
    %932 = vmatpush1.xpose.msra.mxu0 0.0
    %933 = vmatprep.subr.mxu0 0.0
    %934 = vmatpush1.xpose.msra.mxu0 0.0
    %935 = vmatprep.subr.mxu0 0.0
    %936 = vmatpush1.xpose.msra.mxu0 0.0
    %937 = vmatprep.subr.mxu0 0.0
    %938 = vmatpush1.xpose.msra.mxu0 0.0
    %939 = vmatprep.subr.mxu0 0.0
    %940 = vmatpush1.xpose.msra.mxu0 0.0
    %941 = vmatprep.subr.mxu0 0.0
    %942 = vmatpush1.xpose.msra.mxu0 0.0
    %943 = vmatprep.subr.mxu0 0.0
    %944 = vmatpush1.xpose.msra.mxu0 0.0
    %945 = vmatprep.subr.mxu0 0.0
    %946 = vmatpush1.xpose.msra.mxu0 0.0
    %947 = vmatprep.subr.mxu0 0.0
    %948 = vmatpush1.xpose.msra.mxu0 0.0
    %949 = vmatprep.subr.mxu0 0.0
    %950 = vmatpush1.xpose.msra.mxu0 0.0
    %951 = vmatprep.subr.mxu0 0.0
    %952 = vmatpush1.xpose.msra.mxu0 0.0
    %953 = vmatprep.subr.mxu0 0.0
    %954 = vmatpush1.xpose.msra.mxu0 0.0
    %955 = vmatprep.subr.mxu0 0.0
    %956 = vmatpush1.xpose.msra.mxu0 0.0
    %957 = vmatprep.subr.mxu0 0.0
    %958 = vmatpush1.xpose.msra.mxu0 0.0
    %959 = vmatprep.subr.mxu0 0.0
    %960 = vmatpush1.xpose.msra.mxu0 0.0
    %961 = vmatprep.subr.mxu0 0.0
    %962 = vmatpush1.xpose.msra.mxu0 0.0
    %963 = vmatprep.subr.mxu0 0.0
    %964 = vmatpush1.xpose.msra.mxu0 0.0
    %965 = vmatprep.subr.mxu0 0.0
    %966 = vmatpush1.xpose.msra.mxu0 0.0
    %967 = vmatprep.subr.mxu0 0.0
    %968 = vmatpush1.xpose.msra.mxu0 0.0
    %969 = vmatprep.subr.mxu0 0.0
    %970 = vmatpush1.xpose.msra.mxu0 0.0
    %971 = vmatprep.subr.mxu0 0.0
    %972 = vmatpush1.xpose.msra.mxu0 0.0
    %973 = vmatprep.subr.mxu0 0.0
    %974 = vmatpush1.xpose.msra.mxu0 0.0
    %975 = vmatprep.subr.mxu0 0.0
    %976 = vmatpush1.xpose.msra.mxu0 0.0
    %977 = vmatprep.subr.mxu0 0.0
    %978 = vmatpush1.xpose.msra.mxu0 0.0
    %979 = vmatprep.subr.mxu0 0.0
    %980 = vmatpush1.xpose.msra.mxu0 0.0
    %981 = vmatprep.subr.mxu0 0.0
    %982 = vmatpush1.xpose.msra.mxu0 0.0
    %983 = vmatprep.subr.mxu0 0.0
    %984 = vmatpush1.xpose.msra.mxu0 0.0
    %985 = vmatprep.subr.mxu0 0.0
    %986 = vmatpush1.xpose.msra.mxu0 0.0
    %987 = vmatprep.mubr.f32.mxu0 0.0
    %988 = vmatmul.mubr.f32.gmra.mrb[0].mxu0 %v918
    %v989 = vpop.f32.mrb[0].mxu0
    %v990 = vadd.f32 0.0, %v989
    %v991 = vpop.f32.mrb[0].mxu0
    %992 = vdwg.mxu0
    %vm993 = vcmask 64512
    %v994 = vsel %vm993, %v458, -inf
    %995 = vmax.xlane.f32.xlu0 %v994
    %v996 = vpop.xlane.xlu0 %995
    %v997 = vsel %vm993, %v534, -inf
    %998 = vmax.xlane.f32.xlu0 %v997
    %v999 = vpop.xlane.xlu0 %998
    %v1000 = vsel %vm993, %v610, -inf
    %1001 = vmax.xlane.f32.xlu0 %v1000
    %v1002 = vpop.xlane.xlu0 %1001
    %v1003 = vsel %vm993, %v686, -inf
    %1004 = vmax.xlane.f32.xlu0 %v1003
    %v1005 = vpop.xlane.xlu0 %1004
    %v1006 = vsel %vm993, %v762, -inf
    %1007 = vmax.xlane.f32.xlu0 %v1006
    %v1008 = vpop.xlane.xlu0 %1007
    %v1009 = vsel %vm993, %v838, -inf
    %1010 = vmax.xlane.f32.xlu0 %v1009
    %v1011 = vpop.xlane.xlu0 %1010
    %v1012 = vsel %vm993, %v914, -inf
    %1013 = vmax.xlane.f32.xlu0 %v1012
    %v1014 = vpop.xlane.xlu0 %1013
    %v1015 = vsel %vm993, %v990, -inf
    %1016 = vmax.xlane.f32.xlu0 %v1015
    %v1017 = vpop.xlane.xlu0 %1016
    %v1018 = vsub.f32 %v458, %v996
    %v1019 = vsub.f32 %v534, %v999
    %v1020 = vsub.f32 %v610, %v1002
    %v1021 = vsub.f32 %v686, %v1005
    %v1022 = vsub.f32 %v762, %v1008
    %v1023 = vsub.f32 %v838, %v1011
    %v1024 = vsub.f32 %v914, %v1014
    %v1025 = vsub.f32 %v990, %v1017
    %v1026 = vmul.f32 %v1018, 1.442695
    %v1027 = vpow.pop %v1026
    %v1028 = vmul.f32 %v1019, 1.442695
    %v1029 = vpow.pop %v1028
    %v1030 = vmul.f32 %v1020, 1.442695
    %v1031 = vpow.pop %v1030
    %v1032 = vmul.f32 %v1021, 1.442695
    %v1033 = vpow.pop %v1032
    %v1034 = vmul.f32 %v1022, 1.442695
    %v1035 = vpow.pop %v1034
    %v1036 = vmul.f32 %v1023, 1.442695
    %v1037 = vpow.pop %v1036
    %v1038 = vmul.f32 %v1024, 1.442695
    %v1039 = vpow.pop %v1038
    %v1040 = vmul.f32 %v1025, 1.442695
    %v1041 = vpow.pop %v1040
    %v1042 = vsel %vm993, %v1027, 0.0
    %1043 = vadd.xlane.f32.xlu0 %v1042
    %v1044 = vpop.xlane.xlu0 %1043
    %v1045 = vsel %vm993, %v1029, 0.0
    %1046 = vadd.xlane.f32.xlu0 %v1045
    %v1047 = vpop.xlane.xlu0 %1046
    %v1048 = vsel %vm993, %v1031, 0.0
    %1049 = vadd.xlane.f32.xlu0 %v1048
    %v1050 = vpop.xlane.xlu0 %1049
    %v1051 = vsel %vm993, %v1033, 0.0
    %1052 = vadd.xlane.f32.xlu0 %v1051
    %v1053 = vpop.xlane.xlu0 %1052
    %v1054 = vsel %vm993, %v1035, 0.0
    %1055 = vadd.xlane.f32.xlu0 %v1054
    %v1056 = vpop.xlane.xlu0 %1055
    %v1057 = vsel %vm993, %v1037, 0.0
    %1058 = vadd.xlane.f32.xlu0 %v1057
    %v1059 = vpop.xlane.xlu0 %1058
    %v1060 = vsel %vm993, %v1039, 0.0
    %1061 = vadd.xlane.f32.xlu0 %v1060
    %v1062 = vpop.xlane.xlu0 %1061
    %v1063 = vsel %vm993, %v1041, 0.0
    %1064 = vadd.xlane.f32.xlu0 %v1063
    %v1065 = vpop.xlane.xlu0 %1064
    %v1066 = vrcp.pop %v1044
    %v1067 = vrcp.pop %v1047
    %v1068 = vrcp.pop %v1050
    %v1069 = vrcp.pop %v1053
    %v1070 = vrcp.pop %v1056
    %v1071 = vrcp.pop %v1059
    %v1072 = vrcp.pop %v1062
    %v1073 = vrcp.pop %v1065
    %v1074 = vmul.f32 %v1027, %v1066
    %v1075 = vmul.f32 %v1029, %v1067
    %v1076 = vmul.f32 %v1031, %v1068
    %v1077 = vmul.f32 %v1033, %v1069
    %v1078 = vmul.f32 %v1035, %v1070
    %v1079 = vmul.f32 %v1037, %v1071
    %v1080 = vmul.f32 %v1039, %v1072
    %v1081 = vmul.f32 %v1041, %v1073
    %v1083 = vsel %vm993, %v1074, 0
    %1085 = vmatprep.subr.mxu0 0.0
    %1086 = vmatpush1.msra.mxu0 %v346
    %1087 = vmatprep.subr.mxu0 0.0
    %1088 = vmatpush1.msra.mxu0 0.0
    %1089 = vmatprep.subr.mxu0 0.0
    %1090 = vmatpush1.msra.mxu0 0.0
    %1091 = vmatprep.subr.mxu0 0.0
    %1092 = vmatpush1.msra.mxu0 0.0
    %1093 = vmatprep.subr.mxu0 0.0
    %1094 = vmatpush1.msra.mxu0 0.0
    %1095 = vmatprep.subr.mxu0 0.0
    %1096 = vmatpush1.msra.mxu0 0.0
    %1097 = vmatprep.subr.mxu0 0.0
    %1098 = vmatpush1.msra.mxu0 0.0
    %1099 = vmatprep.subr.mxu0 0.0
    %1100 = vmatpush1.msra.mxu0 0.0
    %1101 = vmatprep.subr.mxu0 0.0
    %1102 = vmatpush1.msra.mxu0 0.0
    %1103 = vmatprep.subr.mxu0 0.0
    %1104 = vmatpush1.msra.mxu0 0.0
    %1105 = vmatprep.subr.mxu0 0.0
    %1106 = vmatpush1.msra.mxu0 0.0
    %1107 = vmatprep.subr.mxu0 0.0
    %1108 = vmatpush1.msra.mxu0 0.0
    %1109 = vmatprep.subr.mxu0 0.0
    %1110 = vmatpush1.msra.mxu0 0.0
    %1111 = vmatprep.subr.mxu0 0.0
    %1112 = vmatpush1.msra.mxu0 0.0
    %1113 = vmatprep.subr.mxu0 0.0
    %1114 = vmatpush1.msra.mxu0 0.0
    %1115 = vmatprep.subr.mxu0 0.0
    %1116 = vmatpush1.msra.mxu0 0.0
    %1117 = vmatprep.subr.mxu0 0.0
    %1118 = vmatpush1.msra.mxu0 0.0
    %1119 = vmatprep.subr.mxu0 0.0
    %1120 = vmatpush1.msra.mxu0 0.0
    %1121 = vmatprep.subr.mxu0 0.0
    %1122 = vmatpush1.msra.mxu0 0.0
    %1123 = vmatprep.subr.mxu0 0.0
    %1124 = vmatpush1.msra.mxu0 0.0
    %1125 = vmatprep.subr.mxu0 0.0
    %1126 = vmatpush1.msra.mxu0 0.0
    %1127 = vmatprep.subr.mxu0 0.0
    %1128 = vmatpush1.msra.mxu0 0.0
    %1129 = vmatprep.subr.mxu0 0.0
    %1130 = vmatpush1.msra.mxu0 0.0
    %1131 = vmatprep.subr.mxu0 0.0
    %1132 = vmatpush1.msra.mxu0 0.0
    %1133 = vmatprep.subr.mxu0 0.0
    %1134 = vmatpush1.msra.mxu0 0.0
    %1135 = vmatprep.subr.mxu0 0.0
    %1136 = vmatpush1.msra.mxu0 0.0
    %1137 = vmatprep.subr.mxu0 0.0
    %1138 = vmatpush1.msra.mxu0 0.0
    %1139 = vmatprep.subr.mxu0 0.0
    %1140 = vmatpush1.msra.mxu0 0.0
    %1141 = vmatprep.subr.mxu0 0.0
    %1142 = vmatpush1.msra.mxu0 0.0
    %1143 = vmatprep.subr.mxu0 0.0
    %1144 = vmatpush1.msra.mxu0 0.0
    %1145 = vmatprep.subr.mxu0 0.0
    %1146 = vmatpush1.msra.mxu0 0.0
    %1147 = vmatprep.subr.mxu0 0.0
    %1148 = vmatpush1.msra.mxu0 0.0
    %1149 = vmatprep.mubr.f32.mxu0 0.0
    %1150 = vmatmul.mubr.f32.gmra.mrb[0].mxu0 %v1083
    %v1151 = vpop.f32.mrb[0].mxu0
    %v1152 = vadd.f32 0.0, %v1151
    %v1153 = vpop.f32.mrb[0].mxu0
    %1154 = vdwg.mxu0
    %v1156 = vsel %vm993, %v1075, 0
    %1158 = vmatprep.subr.mxu0 0.0
    %1159 = vmatpush1.msra.mxu0 %v351
    %1160 = vmatprep.subr.mxu0 0.0
    %1161 = vmatpush1.msra.mxu0 0.0
    %1162 = vmatprep.subr.mxu0 0.0
    %1163 = vmatpush1.msra.mxu0 0.0
    %1164 = vmatprep.subr.mxu0 0.0
    %1165 = vmatpush1.msra.mxu0 0.0
    %1166 = vmatprep.subr.mxu0 0.0
    %1167 = vmatpush1.msra.mxu0 0.0
    %1168 = vmatprep.subr.mxu0 0.0
    %1169 = vmatpush1.msra.mxu0 0.0
    %1170 = vmatprep.subr.mxu0 0.0
    %1171 = vmatpush1.msra.mxu0 0.0
    %1172 = vmatprep.subr.mxu0 0.0
    %1173 = vmatpush1.msra.mxu0 0.0
    %1174 = vmatprep.subr.mxu0 0.0
    %1175 = vmatpush1.msra.mxu0 0.0
    %1176 = vmatprep.subr.mxu0 0.0
    %1177 = vmatpush1.msra.mxu0 0.0
    %1178 = vmatprep.subr.mxu0 0.0
    %1179 = vmatpush1.msra.mxu0 0.0
    %1180 = vmatprep.subr.mxu0 0.0
    %1181 = vmatpush1.msra.mxu0 0.0
    %1182 = vmatprep.subr.mxu0 0.0
    %1183 = vmatpush1.msra.mxu0 0.0
    %1184 = vmatprep.subr.mxu0 0.0
    %1185 = vmatpush1.msra.mxu0 0.0
    %1186 = vmatprep.subr.mxu0 0.0
    %1187 = vmatpush1.msra.mxu0 0.0
    %1188 = vmatprep.subr.mxu0 0.0
    %1189 = vmatpush1.msra.mxu0 0.0
    %1190 = vmatprep.subr.mxu0 0.0
    %1191 = vmatpush1.msra.mxu0 0.0
    %1192 = vmatprep.subr.mxu0 0.0
    %1193 = vmatpush1.msra.mxu0 0.0
    %1194 = vmatprep.subr.mxu0 0.0
    %1195 = vmatpush1.msra.mxu0 0.0
    %1196 = vmatprep.subr.mxu0 0.0
    %1197 = vmatpush1.msra.mxu0 0.0
    %1198 = vmatprep.subr.mxu0 0.0
    %1199 = vmatpush1.msra.mxu0 0.0
    %1200 = vmatprep.subr.mxu0 0.0
    %1201 = vmatpush1.msra.mxu0 0.0
    %1202 = vmatprep.subr.mxu0 0.0
    %1203 = vmatpush1.msra.mxu0 0.0
    %1204 = vmatprep.subr.mxu0 0.0
    %1205 = vmatpush1.msra.mxu0 0.0
    %1206 = vmatprep.subr.mxu0 0.0
    %1207 = vmatpush1.msra.mxu0 0.0
    %1208 = vmatprep.subr.mxu0 0.0
    %1209 = vmatpush1.msra.mxu0 0.0
    %1210 = vmatprep.subr.mxu0 0.0
    %1211 = vmatpush1.msra.mxu0 0.0
    %1212 = vmatprep.subr.mxu0 0.0
    %1213 = vmatpush1.msra.mxu0 0.0
    %1214 = vmatprep.subr.mxu0 0.0
    %1215 = vmatpush1.msra.mxu0 0.0
    %1216 = vmatprep.subr.mxu0 0.0
    %1217 = vmatpush1.msra.mxu0 0.0
    %1218 = vmatprep.subr.mxu0 0.0
    %1219 = vmatpush1.msra.mxu0 0.0
    %1220 = vmatprep.subr.mxu0 0.0
    %1221 = vmatpush1.msra.mxu0 0.0
    %1222 = vmatprep.mubr.f32.mxu0 0.0
    %1223 = vmatmul.mubr.f32.gmra.mrb[0].mxu0 %v1156
    %v1224 = vpop.f32.mrb[0].mxu0
    %v1225 = vadd.f32 0.0, %v1224
    %v1226 = vpop.f32.mrb[0].mxu0
    %1227 = vdwg.mxu0
    %v1229 = vsel %vm993, %v1076, 0
    %1231 = vmatprep.subr.mxu0 0.0
    %1232 = vmatpush1.msra.mxu0 %v356
    %1233 = vmatprep.subr.mxu0 0.0
    %1234 = vmatpush1.msra.mxu0 0.0
    %1235 = vmatprep.subr.mxu0 0.0
    %1236 = vmatpush1.msra.mxu0 0.0
    %1237 = vmatprep.subr.mxu0 0.0
    %1238 = vmatpush1.msra.mxu0 0.0
    %1239 = vmatprep.subr.mxu0 0.0
    %1240 = vmatpush1.msra.mxu0 0.0
    %1241 = vmatprep.subr.mxu0 0.0
    %1242 = vmatpush1.msra.mxu0 0.0
    %1243 = vmatprep.subr.mxu0 0.0
    %1244 = vmatpush1.msra.mxu0 0.0
    %1245 = vmatprep.subr.mxu0 0.0
    %1246 = vmatpush1.msra.mxu0 0.0
    %1247 = vmatprep.subr.mxu0 0.0
    %1248 = vmatpush1.msra.mxu0 0.0
    %1249 = vmatprep.subr.mxu0 0.0
    %1250 = vmatpush1.msra.mxu0 0.0
    %1251 = vmatprep.subr.mxu0 0.0
    %1252 = vmatpush1.msra.mxu0 0.0
    %1253 = vmatprep.subr.mxu0 0.0
    %1254 = vmatpush1.msra.mxu0 0.0
    %1255 = vmatprep.subr.mxu0 0.0
    %1256 = vmatpush1.msra.mxu0 0.0
    %1257 = vmatprep.subr.mxu0 0.0
    %1258 = vmatpush1.msra.mxu0 0.0
    %1259 = vmatprep.subr.mxu0 0.0
    %1260 = vmatpush1.msra.mxu0 0.0
    %1261 = vmatprep.subr.mxu0 0.0
    %1262 = vmatpush1.msra.mxu0 0.0
    %1263 = vmatprep.subr.mxu0 0.0
    %1264 = vmatpush1.msra.mxu0 0.0
    %1265 = vmatprep.subr.mxu0 0.0
    %1266 = vmatpush1.msra.mxu0 0.0
    %1267 = vmatprep.subr.mxu0 0.0
    %1268 = vmatpush1.msra.mxu0 0.0
    %1269 = vmatprep.subr.mxu0 0.0
    %1270 = vmatpush1.msra.mxu0 0.0
    %1271 = vmatprep.subr.mxu0 0.0
    %1272 = vmatpush1.msra.mxu0 0.0
    %1273 = vmatprep.subr.mxu0 0.0
    %1274 = vmatpush1.msra.mxu0 0.0
    %1275 = vmatprep.subr.mxu0 0.0
    %1276 = vmatpush1.msra.mxu0 0.0
    %1277 = vmatprep.subr.mxu0 0.0
    %1278 = vmatpush1.msra.mxu0 0.0
    %1279 = vmatprep.subr.mxu0 0.0
    %1280 = vmatpush1.msra.mxu0 0.0
    %1281 = vmatprep.subr.mxu0 0.0
    %1282 = vmatpush1.msra.mxu0 0.0
    %1283 = vmatprep.subr.mxu0 0.0
    %1284 = vmatpush1.msra.mxu0 0.0
    %1285 = vmatprep.subr.mxu0 0.0
    %1286 = vmatpush1.msra.mxu0 0.0
    %1287 = vmatprep.subr.mxu0 0.0
    %1288 = vmatpush1.msra.mxu0 0.0
    %1289 = vmatprep.subr.mxu0 0.0
    %1290 = vmatpush1.msra.mxu0 0.0
    %1291 = vmatprep.subr.mxu0 0.0
    %1292 = vmatpush1.msra.mxu0 0.0
    %1293 = vmatprep.subr.mxu0 0.0
    %1294 = vmatpush1.msra.mxu0 0.0
    %1295 = vmatprep.mubr.f32.mxu0 0.0
    %1296 = vmatmul.mubr.f32.gmra.mrb[0].mxu0 %v1229
    %v1297 = vpop.f32.mrb[0].mxu0
    %v1298 = vadd.f32 0.0, %v1297
    %v1299 = vpop.f32.mrb[0].mxu0
    %1300 = vdwg.mxu0
    %v1302 = vsel %vm993, %v1077, 0
    %1304 = vmatprep.subr.mxu0 0.0
    %1305 = vmatpush1.msra.mxu0 %v361
    %1306 = vmatprep.subr.mxu0 0.0
    %1307 = vmatpush1.msra.mxu0 0.0
    %1308 = vmatprep.subr.mxu0 0.0
    %1309 = vmatpush1.msra.mxu0 0.0
    %1310 = vmatprep.subr.mxu0 0.0
    %1311 = vmatpush1.msra.mxu0 0.0
    %1312 = vmatprep.subr.mxu0 0.0
    %1313 = vmatpush1.msra.mxu0 0.0
    %1314 = vmatprep.subr.mxu0 0.0
    %1315 = vmatpush1.msra.mxu0 0.0
    %1316 = vmatprep.subr.mxu0 0.0
    %1317 = vmatpush1.msra.mxu0 0.0
    %1318 = vmatprep.subr.mxu0 0.0
    %1319 = vmatpush1.msra.mxu0 0.0
    %1320 = vmatprep.subr.mxu0 0.0
    %1321 = vmatpush1.msra.mxu0 0.0
    %1322 = vmatprep.subr.mxu0 0.0
    %1323 = vmatpush1.msra.mxu0 0.0
    %1324 = vmatprep.subr.mxu0 0.0
    %1325 = vmatpush1.msra.mxu0 0.0
    %1326 = vmatprep.subr.mxu0 0.0
    %1327 = vmatpush1.msra.mxu0 0.0
    %1328 = vmatprep.subr.mxu0 0.0
    %1329 = vmatpush1.msra.mxu0 0.0
    %1330 = vmatprep.subr.mxu0 0.0
    %1331 = vmatpush1.msra.mxu0 0.0
    %1332 = vmatprep.subr.mxu0 0.0
    %1333 = vmatpush1.msra.mxu0 0.0
    %1334 = vmatprep.subr.mxu0 0.0
    %1335 = vmatpush1.msra.mxu0 0.0
    %1336 = vmatprep.subr.mxu0 0.0
    %1337 = vmatpush1.msra.mxu0 0.0
    %1338 = vmatprep.subr.mxu0 0.0
    %1339 = vmatpush1.msra.mxu0 0.0
    %1340 = vmatprep.subr.mxu0 0.0
    %1341 = vmatpush1.msra.mxu0 0.0
    %1342 = vmatprep.subr.mxu0 0.0
    %1343 = vmatpush1.msra.mxu0 0.0
    %1344 = vmatprep.subr.mxu0 0.0
    %1345 = vmatpush1.msra.mxu0 0.0
    %1346 = vmatprep.subr.mxu0 0.0
    %1347 = vmatpush1.msra.mxu0 0.0
    %1348 = vmatprep.subr.mxu0 0.0
    %1349 = vmatpush1.msra.mxu0 0.0
    %1350 = vmatprep.subr.mxu0 0.0
    %1351 = vmatpush1.msra.mxu0 0.0
    %1352 = vmatprep.subr.mxu0 0.0
    %1353 = vmatpush1.msra.mxu0 0.0
    %1354 = vmatprep.subr.mxu0 0.0
    %1355 = vmatpush1.msra.mxu0 0.0
    %1356 = vmatprep.subr.mxu0 0.0
    %1357 = vmatpush1.msra.mxu0 0.0
    %1358 = vmatprep.subr.mxu0 0.0
    %1359 = vmatpush1.msra.mxu0 0.0
    %1360 = vmatprep.subr.mxu0 0.0
    %1361 = vmatpush1.msra.mxu0 0.0
    %1362 = vmatprep.subr.mxu0 0.0
    %1363 = vmatpush1.msra.mxu0 0.0
    %1364 = vmatprep.subr.mxu0 0.0
    %1365 = vmatpush1.msra.mxu0 0.0
    %1366 = vmatprep.subr.mxu0 0.0
    %1367 = vmatpush1.msra.mxu0 0.0
    %1368 = vmatprep.mubr.f32.mxu0 0.0
    %1369 = vmatmul.mubr.f32.gmra.mrb[0].mxu0 %v1302
    %v1370 = vpop.f32.mrb[0].mxu0
    %v1371 = vadd.f32 0.0, %v1370
    %v1372 = vpop.f32.mrb[0].mxu0
    %1373 = vdwg.mxu0
    %v1375 = vsel %vm993, %v1078, 0
    %1377 = vmatprep.subr.mxu0 0.0
    %1378 = vmatpush1.msra.mxu0 %v366
    %1379 = vmatprep.subr.mxu0 0.0
    %1380 = vmatpush1.msra.mxu0 0.0
    %1381 = vmatprep.subr.mxu0 0.0
    %1382 = vmatpush1.msra.mxu0 0.0
    %1383 = vmatprep.subr.mxu0 0.0
    %1384 = vmatpush1.msra.mxu0 0.0
    %1385 = vmatprep.subr.mxu0 0.0
    %1386 = vmatpush1.msra.mxu0 0.0
    %1387 = vmatprep.subr.mxu0 0.0
    %1388 = vmatpush1.msra.mxu0 0.0
    %1389 = vmatprep.subr.mxu0 0.0
    %1390 = vmatpush1.msra.mxu0 0.0
    %1391 = vmatprep.subr.mxu0 0.0
    %1392 = vmatpush1.msra.mxu0 0.0
    %1393 = vmatprep.subr.mxu0 0.0
    %1394 = vmatpush1.msra.mxu0 0.0
    %1395 = vmatprep.subr.mxu0 0.0
    %1396 = vmatpush1.msra.mxu0 0.0
    %1397 = vmatprep.subr.mxu0 0.0
    %1398 = vmatpush1.msra.mxu0 0.0
    %1399 = vmatprep.subr.mxu0 0.0
    %1400 = vmatpush1.msra.mxu0 0.0
    %1401 = vmatprep.subr.mxu0 0.0
    %1402 = vmatpush1.msra.mxu0 0.0
    %1403 = vmatprep.subr.mxu0 0.0
    %1404 = vmatpush1.msra.mxu0 0.0
    %1405 = vmatprep.subr.mxu0 0.0
    %1406 = vmatpush1.msra.mxu0 0.0
    %1407 = vmatprep.subr.mxu0 0.0
    %1408 = vmatpush1.msra.mxu0 0.0
    %1409 = vmatprep.subr.mxu0 0.0
    %1410 = vmatpush1.msra.mxu0 0.0
    %1411 = vmatprep.subr.mxu0 0.0
    %1412 = vmatpush1.msra.mxu0 0.0
    %1413 = vmatprep.subr.mxu0 0.0
    %1414 = vmatpush1.msra.mxu0 0.0
    %1415 = vmatprep.subr.mxu0 0.0
    %1416 = vmatpush1.msra.mxu0 0.0
    %1417 = vmatprep.subr.mxu0 0.0
    %1418 = vmatpush1.msra.mxu0 0.0
    %1419 = vmatprep.subr.mxu0 0.0
    %1420 = vmatpush1.msra.mxu0 0.0
    %1421 = vmatprep.subr.mxu0 0.0
    %1422 = vmatpush1.msra.mxu0 0.0
    %1423 = vmatprep.subr.mxu0 0.0
    %1424 = vmatpush1.msra.mxu0 0.0
    %1425 = vmatprep.subr.mxu0 0.0
    %1426 = vmatpush1.msra.mxu0 0.0
    %1427 = vmatprep.subr.mxu0 0.0
    %1428 = vmatpush1.msra.mxu0 0.0
    %1429 = vmatprep.subr.mxu0 0.0
    %1430 = vmatpush1.msra.mxu0 0.0
    %1431 = vmatprep.subr.mxu0 0.0
    %1432 = vmatpush1.msra.mxu0 0.0
    %1433 = vmatprep.subr.mxu0 0.0
    %1434 = vmatpush1.msra.mxu0 0.0
    %1435 = vmatprep.subr.mxu0 0.0
    %1436 = vmatpush1.msra.mxu0 0.0
    %1437 = vmatprep.subr.mxu0 0.0
    %1438 = vmatpush1.msra.mxu0 0.0
    %1439 = vmatprep.subr.mxu0 0.0
    %1440 = vmatpush1.msra.mxu0 0.0
    %1441 = vmatprep.mubr.f32.mxu0 0.0
    %1442 = vmatmul.mubr.f32.gmra.mrb[0].mxu0 %v1375
    %v1443 = vpop.f32.mrb[0].mxu0
    %v1444 = vadd.f32 0.0, %v1443
    %v1445 = vpop.f32.mrb[0].mxu0
    %1446 = vdwg.mxu0
    %v1448 = vsel %vm993, %v1079, 0
    %1450 = vmatprep.subr.mxu0 0.0
    %1451 = vmatpush1.msra.mxu0 %v371
    %1452 = vmatprep.subr.mxu0 0.0
    %1453 = vmatpush1.msra.mxu0 0.0
    %1454 = vmatprep.subr.mxu0 0.0
    %1455 = vmatpush1.msra.mxu0 0.0
    %1456 = vmatprep.subr.mxu0 0.0
    %1457 = vmatpush1.msra.mxu0 0.0
    %1458 = vmatprep.subr.mxu0 0.0
    %1459 = vmatpush1.msra.mxu0 0.0
    %1460 = vmatprep.subr.mxu0 0.0
    %1461 = vmatpush1.msra.mxu0 0.0
    %1462 = vmatprep.subr.mxu0 0.0
    %1463 = vmatpush1.msra.mxu0 0.0
    %1464 = vmatprep.subr.mxu0 0.0
    %1465 = vmatpush1.msra.mxu0 0.0
    %1466 = vmatprep.subr.mxu0 0.0
    %1467 = vmatpush1.msra.mxu0 0.0
    %1468 = vmatprep.subr.mxu0 0.0
    %1469 = vmatpush1.msra.mxu0 0.0
    %1470 = vmatprep.subr.mxu0 0.0
    %1471 = vmatpush1.msra.mxu0 0.0
    %1472 = vmatprep.subr.mxu0 0.0
    %1473 = vmatpush1.msra.mxu0 0.0
    %1474 = vmatprep.subr.mxu0 0.0
    %1475 = vmatpush1.msra.mxu0 0.0
    %1476 = vmatprep.subr.mxu0 0.0
    %1477 = vmatpush1.msra.mxu0 0.0
    %1478 = vmatprep.subr.mxu0 0.0
    %1479 = vmatpush1.msra.mxu0 0.0
    %1480 = vmatprep.subr.mxu0 0.0
    %1481 = vmatpush1.msra.mxu0 0.0
    %1482 = vmatprep.subr.mxu0 0.0
    %1483 = vmatpush1.msra.mxu0 0.0
    %1484 = vmatprep.subr.mxu0 0.0
    %1485 = vmatpush1.msra.mxu0 0.0
    %1486 = vmatprep.subr.mxu0 0.0
    %1487 = vmatpush1.msra.mxu0 0.0
    %1488 = vmatprep.subr.mxu0 0.0
    %1489 = vmatpush1.msra.mxu0 0.0
    %1490 = vmatprep.subr.mxu0 0.0
    %1491 = vmatpush1.msra.mxu0 0.0
    %1492 = vmatprep.subr.mxu0 0.0
    %1493 = vmatpush1.msra.mxu0 0.0
    %1494 = vmatprep.subr.mxu0 0.0
    %1495 = vmatpush1.msra.mxu0 0.0
    %1496 = vmatprep.subr.mxu0 0.0
    %1497 = vmatpush1.msra.mxu0 0.0
    %1498 = vmatprep.subr.mxu0 0.0
    %1499 = vmatpush1.msra.mxu0 0.0
    %1500 = vmatprep.subr.mxu0 0.0
    %1501 = vmatpush1.msra.mxu0 0.0
    %1502 = vmatprep.subr.mxu0 0.0
    %1503 = vmatpush1.msra.mxu0 0.0
    %1504 = vmatprep.subr.mxu0 0.0
    %1505 = vmatpush1.msra.mxu0 0.0
    %1506 = vmatprep.subr.mxu0 0.0
    %1507 = vmatpush1.msra.mxu0 0.0
    %1508 = vmatprep.subr.mxu0 0.0
    %1509 = vmatpush1.msra.mxu0 0.0
    %1510 = vmatprep.subr.mxu0 0.0
    %1511 = vmatpush1.msra.mxu0 0.0
    %1512 = vmatprep.subr.mxu0 0.0
    %1513 = vmatpush1.msra.mxu0 0.0
    %1514 = vmatprep.mubr.f32.mxu0 0.0
    %1515 = vmatmul.mubr.f32.gmra.mrb[0].mxu0 %v1448
    %v1516 = vpop.f32.mrb[0].mxu0
    %v1517 = vadd.f32 0.0, %v1516
    %v1518 = vpop.f32.mrb[0].mxu0
    %1519 = vdwg.mxu0
    %v1521 = vsel %vm993, %v1080, 0
    %1523 = vmatprep.subr.mxu0 0.0
    %1524 = vmatpush1.msra.mxu0 %v376
    %1525 = vmatprep.subr.mxu0 0.0
    %1526 = vmatpush1.msra.mxu0 0.0
    %1527 = vmatprep.subr.mxu0 0.0
    %1528 = vmatpush1.msra.mxu0 0.0
    %1529 = vmatprep.subr.mxu0 0.0
    %1530 = vmatpush1.msra.mxu0 0.0
    %1531 = vmatprep.subr.mxu0 0.0
    %1532 = vmatpush1.msra.mxu0 0.0
    %1533 = vmatprep.subr.mxu0 0.0
    %1534 = vmatpush1.msra.mxu0 0.0
    %1535 = vmatprep.subr.mxu0 0.0
    %1536 = vmatpush1.msra.mxu0 0.0
    %1537 = vmatprep.subr.mxu0 0.0
    %1538 = vmatpush1.msra.mxu0 0.0
    %1539 = vmatprep.subr.mxu0 0.0
    %1540 = vmatpush1.msra.mxu0 0.0
    %1541 = vmatprep.subr.mxu0 0.0
    %1542 = vmatpush1.msra.mxu0 0.0
    %1543 = vmatprep.subr.mxu0 0.0
    %1544 = vmatpush1.msra.mxu0 0.0
    %1545 = vmatprep.subr.mxu0 0.0
    %1546 = vmatpush1.msra.mxu0 0.0
    %1547 = vmatprep.subr.mxu0 0.0
    %1548 = vmatpush1.msra.mxu0 0.0
    %1549 = vmatprep.subr.mxu0 0.0
    %1550 = vmatpush1.msra.mxu0 0.0
    %1551 = vmatprep.subr.mxu0 0.0
    %1552 = vmatpush1.msra.mxu0 0.0
    %1553 = vmatprep.subr.mxu0 0.0
    %1554 = vmatpush1.msra.mxu0 0.0
    %1555 = vmatprep.subr.mxu0 0.0
    %1556 = vmatpush1.msra.mxu0 0.0
    %1557 = vmatprep.subr.mxu0 0.0
    %1558 = vmatpush1.msra.mxu0 0.0
    %1559 = vmatprep.subr.mxu0 0.0
    %1560 = vmatpush1.msra.mxu0 0.0
    %1561 = vmatprep.subr.mxu0 0.0
    %1562 = vmatpush1.msra.mxu0 0.0
    %1563 = vmatprep.subr.mxu0 0.0
    %1564 = vmatpush1.msra.mxu0 0.0
    %1565 = vmatprep.subr.mxu0 0.0
    %1566 = vmatpush1.msra.mxu0 0.0
    %1567 = vmatprep.subr.mxu0 0.0
    %1568 = vmatpush1.msra.mxu0 0.0
    %1569 = vmatprep.subr.mxu0 0.0
    %1570 = vmatpush1.msra.mxu0 0.0
    %1571 = vmatprep.subr.mxu0 0.0
    %1572 = vmatpush1.msra.mxu0 0.0
    %1573 = vmatprep.subr.mxu0 0.0
    %1574 = vmatpush1.msra.mxu0 0.0
    %1575 = vmatprep.subr.mxu0 0.0
    %1576 = vmatpush1.msra.mxu0 0.0
    %1577 = vmatprep.subr.mxu0 0.0
    %1578 = vmatpush1.msra.mxu0 0.0
    %1579 = vmatprep.subr.mxu0 0.0
    %1580 = vmatpush1.msra.mxu0 0.0
    %1581 = vmatprep.subr.mxu0 0.0
    %1582 = vmatpush1.msra.mxu0 0.0
    %1583 = vmatprep.subr.mxu0 0.0
    %1584 = vmatpush1.msra.mxu0 0.0
    %1585 = vmatprep.subr.mxu0 0.0
    %1586 = vmatpush1.msra.mxu0 0.0
    %1587 = vmatprep.mubr.f32.mxu0 0.0
    %1588 = vmatmul.mubr.f32.gmra.mrb[0].mxu0 %v1521
    %v1589 = vpop.f32.mrb[0].mxu0
    %v1590 = vadd.f32 0.0, %v1589
    %v1591 = vpop.f32.mrb[0].mxu0
    %1592 = vdwg.mxu0
    %v1594 = vsel %vm993, %v1081, 0
    %1596 = vmatprep.subr.mxu0 0.0
    %1597 = vmatpush1.msra.mxu0 %v381
    %1598 = vmatprep.subr.mxu0 0.0
    %1599 = vmatpush1.msra.mxu0 0.0
    %1600 = vmatprep.subr.mxu0 0.0
    %1601 = vmatpush1.msra.mxu0 0.0
    %1602 = vmatprep.subr.mxu0 0.0
    %1603 = vmatpush1.msra.mxu0 0.0
    %1604 = vmatprep.subr.mxu0 0.0
    %1605 = vmatpush1.msra.mxu0 0.0
    %1606 = vmatprep.subr.mxu0 0.0
    %1607 = vmatpush1.msra.mxu0 0.0
    %1608 = vmatprep.subr.mxu0 0.0
    %1609 = vmatpush1.msra.mxu0 0.0
    %1610 = vmatprep.subr.mxu0 0.0
    %1611 = vmatpush1.msra.mxu0 0.0
    %1612 = vmatprep.subr.mxu0 0.0
    %1613 = vmatpush1.msra.mxu0 0.0
    %1614 = vmatprep.subr.mxu0 0.0
    %1615 = vmatpush1.msra.mxu0 0.0
    %1616 = vmatprep.subr.mxu0 0.0
    %1617 = vmatpush1.msra.mxu0 0.0
    %1618 = vmatprep.subr.mxu0 0.0
    %1619 = vmatpush1.msra.mxu0 0.0
    %1620 = vmatprep.subr.mxu0 0.0
    %1621 = vmatpush1.msra.mxu0 0.0
    %1622 = vmatprep.subr.mxu0 0.0
    %1623 = vmatpush1.msra.mxu0 0.0
    %1624 = vmatprep.subr.mxu0 0.0
    %1625 = vmatpush1.msra.mxu0 0.0
    %1626 = vmatprep.subr.mxu0 0.0
    %1627 = vmatpush1.msra.mxu0 0.0
    %1628 = vmatprep.subr.mxu0 0.0
    %1629 = vmatpush1.msra.mxu0 0.0
    %1630 = vmatprep.subr.mxu0 0.0
    %1631 = vmatpush1.msra.mxu0 0.0
    %1632 = vmatprep.subr.mxu0 0.0
    %1633 = vmatpush1.msra.mxu0 0.0
    %1634 = vmatprep.subr.mxu0 0.0
    %1635 = vmatpush1.msra.mxu0 0.0
    %1636 = vmatprep.subr.mxu0 0.0
    %1637 = vmatpush1.msra.mxu0 0.0
    %1638 = vmatprep.subr.mxu0 0.0
    %1639 = vmatpush1.msra.mxu0 0.0
    %1640 = vmatprep.subr.mxu0 0.0
    %1641 = vmatpush1.msra.mxu0 0.0
    %1642 = vmatprep.subr.mxu0 0.0
    %1643 = vmatpush1.msra.mxu0 0.0
    %1644 = vmatprep.subr.mxu0 0.0
    %1645 = vmatpush1.msra.mxu0 0.0
    %1646 = vmatprep.subr.mxu0 0.0
    %1647 = vmatpush1.msra.mxu0 0.0
    %1648 = vmatprep.subr.mxu0 0.0
    %1649 = vmatpush1.msra.mxu0 0.0
    %1650 = vmatprep.subr.mxu0 0.0
    %1651 = vmatpush1.msra.mxu0 0.0
    %1652 = vmatprep.subr.mxu0 0.0
    %1653 = vmatpush1.msra.mxu0 0.0
    %1654 = vmatprep.subr.mxu0 0.0
    %1655 = vmatpush1.msra.mxu0 0.0
    %1656 = vmatprep.subr.mxu0 0.0
    %1657 = vmatpush1.msra.mxu0 0.0
    %1658 = vmatprep.subr.mxu0 0.0
    %1659 = vmatpush1.msra.mxu0 0.0
    %1660 = vmatprep.mubr.f32.mxu0 0.0
    %1661 = vmatmul.mubr.f32.gmra.mrb[0].mxu0 %v1594
    %v1662 = vpop.f32.mrb[0].mxu0
    %v1663 = vadd.f32 0.0, %v1662
    %v1664 = vpop.f32.mrb[0].mxu0
    %1665 = vdwg.mxu0
    %v1666 = vld [vmem:[%s4] sm:$0xff]
    %v1667 = vld [vmem:[%s4 + $0x8] sm:$0xff]
    %s1668 = scalar_lea.vmem %s1, 32
    %v1669 = vld [vmem:[%s1668] sm:$0xff]
    %v1670 = vld [vmem:[%s1668 + $0x8] sm:$0xff]
    %v1671 = vld [vmem:[%s1668 + $0x10] sm:$0xff]
    %v1672 = vld [vmem:[%s1668 + $0x18] sm:$0xff]
    %1673 = vmatprep.subr.mxu0 0.0
    %1674 = vmatpush1.msra.mxu0 %v1669
    %1675 = vmatprep.subr.mxu0 0.0
    %1676 = vmatpush1.msra.mxu0 %v1670
    %1677 = vmatprep.subr.mxu0 0.0
    %1678 = vmatpush1.msra.mxu0 %v1671
    %1679 = vmatprep.subr.mxu0 0.0
    %1680 = vmatpush1.msra.mxu0 %v1672
    %1681 = vmatprep.subr.mxu0 0.0
    %1682 = vmatpush1.msra.mxu0 0.0
    %1683 = vmatprep.subr.mxu0 0.0
    %1684 = vmatpush1.msra.mxu0 0.0
    %1685 = vmatprep.subr.mxu0 0.0
    %1686 = vmatpush1.msra.mxu0 0.0
    %1687 = vmatprep.subr.mxu0 0.0
    %1688 = vmatpush1.msra.mxu0 0.0
    %1689 = vmatprep.subr.mxu0 0.0
    %1690 = vmatpush1.msra.mxu0 0.0
    %1691 = vmatprep.subr.mxu0 0.0
    %1692 = vmatpush1.msra.mxu0 0.0
    %1693 = vmatprep.subr.mxu0 0.0
    %1694 = vmatpush1.msra.mxu0 0.0
    %1695 = vmatprep.subr.mxu0 0.0
    %1696 = vmatpush1.msra.mxu0 0.0
    %1697 = vmatprep.subr.mxu0 0.0
    %1698 = vmatpush1.msra.mxu0 0.0
    %1699 = vmatprep.subr.mxu0 0.0
    %1700 = vmatpush1.msra.mxu0 0.0
    %1701 = vmatprep.subr.mxu0 0.0
    %1702 = vmatpush1.msra.mxu0 0.0
    %1703 = vmatprep.subr.mxu0 0.0
    %1704 = vmatpush1.msra.mxu0 0.0
    %1705 = vmatprep.subr.mxu0 0.0
    %1706 = vmatpush1.msra.mxu0 0.0
    %1707 = vmatprep.subr.mxu0 0.0
    %1708 = vmatpush1.msra.mxu0 0.0
    %1709 = vmatprep.subr.mxu0 0.0
    %1710 = vmatpush1.msra.mxu0 0.0
    %1711 = vmatprep.subr.mxu0 0.0
    %1712 = vmatpush1.msra.mxu0 0.0
    %1713 = vmatprep.subr.mxu0 0.0
    %1714 = vmatpush1.msra.mxu0 0.0
    %1715 = vmatprep.subr.mxu0 0.0
    %1716 = vmatpush1.msra.mxu0 0.0
    %1717 = vmatprep.subr.mxu0 0.0
    %1718 = vmatpush1.msra.mxu0 0.0
    %1719 = vmatprep.subr.mxu0 0.0
    %1720 = vmatpush1.msra.mxu0 0.0
    %1721 = vmatprep.subr.mxu0 0.0
    %1722 = vmatpush1.msra.mxu0 0.0
    %1723 = vmatprep.subr.mxu0 0.0
    %1724 = vmatpush1.msra.mxu0 0.0
    %1725 = vmatprep.subr.mxu0 0.0
    %1726 = vmatpush1.msra.mxu0 0.0
    %1727 = vmatprep.subr.mxu0 0.0
    %1728 = vmatpush1.msra.mxu0 0.0
    %1729 = vmatprep.subr.mxu0 0.0
    %1730 = vmatpush1.msra.mxu0 0.0
    %1731 = vmatprep.subr.mxu0 0.0
    %1732 = vmatpush1.msra.mxu0 0.0
    %1733 = vmatprep.subr.mxu0 0.0
    %1734 = vmatpush1.msra.mxu0 0.0
    %1735 = vmatprep.subr.mxu0 0.0
    %1736 = vmatpush1.msra.mxu0 0.0
    %1737 = vmatprep.mubr.f32.mxu0 0.0
    %1738 = vmatmul.mubr.f32.gmra.mrb[0].mxu0 %v38
    %v1739 = vpop.f32.mrb[0].mxu0
    %v1740 = vadd.f32 0.0, %v1739
    %v1741 = vpop.f32.mrb[0].mxu0
    %1742 = vmatprep.mubr.f32.mxu0 0.0
    %1743 = vmatmul.mubr.f32.gmra.mrb[0].mxu0 %v41
    %v1744 = vpop.f32.mrb[0].mxu0
    %v1745 = vadd.f32 0.0, %v1744
    %v1746 = vpop.f32.mrb[0].mxu0
    %1747 = vmatprep.mubr.f32.mxu0 0.0
    %1748 = vmatmul.mubr.f32.gmra.mrb[0].mxu0 %v44
    %v1749 = vpop.f32.mrb[0].mxu0
    %v1750 = vadd.f32 0.0, %v1749
    %v1751 = vpop.f32.mrb[0].mxu0
    %1752 = vmatprep.mubr.f32.mxu0 0.0
    %1753 = vmatmul.mubr.f32.gmra.mrb[0].mxu0 %v47
    %v1754 = vpop.f32.mrb[0].mxu0
    %v1755 = vadd.f32 0.0, %v1754
    %v1756 = vpop.f32.mrb[0].mxu0
    %1757 = vmatprep.mubr.f32.mxu0 0.0
    %1758 = vmatmul.mubr.f32.gmra.mrb[0].mxu0 %v50
    %v1759 = vpop.f32.mrb[0].mxu0
    %v1760 = vadd.f32 0.0, %v1759
    %v1761 = vpop.f32.mrb[0].mxu0
    %1762 = vmatprep.mubr.f32.mxu0 0.0
    %1763 = vmatmul.mubr.f32.gmra.mrb[0].mxu0 %v53
    %v1764 = vpop.f32.mrb[0].mxu0
    %v1765 = vadd.f32 0.0, %v1764
    %v1766 = vpop.f32.mrb[0].mxu0
    %1767 = vmatprep.mubr.f32.mxu0 0.0
    %1768 = vmatmul.mubr.f32.gmra.mrb[0].mxu0 %v56
    %v1769 = vpop.f32.mrb[0].mxu0
    %v1770 = vadd.f32 0.0, %v1769
    %v1771 = vpop.f32.mrb[0].mxu0
    %1772 = vmatprep.mubr.f32.mxu0 0.0
    %1773 = vmatmul.mubr.f32.gmra.mrb[0].mxu0 %v59
    %v1774 = vpop.f32.mrb[0].mxu0
    %v1775 = vadd.f32 0.0, %v1774
    %v1776 = vpop.f32.mrb[0].mxu0
    %1777 = vdwg.mxu0
    %s1778 = scalar_lea.vmem %s2, 32
    %v1779 = vld [vmem:[%s1778] sm:$0xff]
    %v1780 = vld [vmem:[%s1778 + $0x8] sm:$0xff]
    %v1781 = vld [vmem:[%s1778 + $0x10] sm:$0xff]
    %v1782 = vld [vmem:[%s1778 + $0x18] sm:$0xff]
    %1783 = vmatprep.subr.mxu0 0.0
    %1784 = vmatpush1.msra.mxu0 %v1779
    %1785 = vmatprep.subr.mxu0 0.0
    %1786 = vmatpush1.msra.mxu0 %v1780
    %1787 = vmatprep.subr.mxu0 0.0
    %1788 = vmatpush1.msra.mxu0 %v1781
    %1789 = vmatprep.subr.mxu0 0.0
    %1790 = vmatpush1.msra.mxu0 %v1782
    %1791 = vmatprep.subr.mxu0 0.0
    %1792 = vmatpush1.msra.mxu0 0.0
    %1793 = vmatprep.subr.mxu0 0.0
    %1794 = vmatpush1.msra.mxu0 0.0
    %1795 = vmatprep.subr.mxu0 0.0
    %1796 = vmatpush1.msra.mxu0 0.0
    %1797 = vmatprep.subr.mxu0 0.0
    %1798 = vmatpush1.msra.mxu0 0.0
    %1799 = vmatprep.subr.mxu0 0.0
    %1800 = vmatpush1.msra.mxu0 0.0
    %1801 = vmatprep.subr.mxu0 0.0
    %1802 = vmatpush1.msra.mxu0 0.0
    %1803 = vmatprep.subr.mxu0 0.0
    %1804 = vmatpush1.msra.mxu0 0.0
    %1805 = vmatprep.subr.mxu0 0.0
    %1806 = vmatpush1.msra.mxu0 0.0
    %1807 = vmatprep.subr.mxu0 0.0
    %1808 = vmatpush1.msra.mxu0 0.0
    %1809 = vmatprep.subr.mxu0 0.0
    %1810 = vmatpush1.msra.mxu0 0.0
    %1811 = vmatprep.subr.mxu0 0.0
    %1812 = vmatpush1.msra.mxu0 0.0
    %1813 = vmatprep.subr.mxu0 0.0
    %1814 = vmatpush1.msra.mxu0 0.0
    %1815 = vmatprep.subr.mxu0 0.0
    %1816 = vmatpush1.msra.mxu0 0.0
    %1817 = vmatprep.subr.mxu0 0.0
    %1818 = vmatpush1.msra.mxu0 0.0
    %1819 = vmatprep.subr.mxu0 0.0
    %1820 = vmatpush1.msra.mxu0 0.0
    %1821 = vmatprep.subr.mxu0 0.0
    %1822 = vmatpush1.msra.mxu0 0.0
    %1823 = vmatprep.subr.mxu0 0.0
    %1824 = vmatpush1.msra.mxu0 0.0
    %1825 = vmatprep.subr.mxu0 0.0
    %1826 = vmatpush1.msra.mxu0 0.0
    %1827 = vmatprep.subr.mxu0 0.0
    %1828 = vmatpush1.msra.mxu0 0.0
    %1829 = vmatprep.subr.mxu0 0.0
    %1830 = vmatpush1.msra.mxu0 0.0
    %1831 = vmatprep.subr.mxu0 0.0
    %1832 = vmatpush1.msra.mxu0 0.0
    %1833 = vmatprep.subr.mxu0 0.0
    %1834 = vmatpush1.msra.mxu0 0.0
    %1835 = vmatprep.subr.mxu0 0.0
    %1836 = vmatpush1.msra.mxu0 0.0
    %1837 = vmatprep.subr.mxu0 0.0
    %1838 = vmatpush1.msra.mxu0 0.0
    %1839 = vmatprep.subr.mxu0 0.0
    %1840 = vmatpush1.msra.mxu0 0.0
    %1841 = vmatprep.subr.mxu0 0.0
    %1842 = vmatpush1.msra.mxu0 0.0
    %1843 = vmatprep.subr.mxu0 0.0
    %1844 = vmatpush1.msra.mxu0 0.0
    %1845 = vmatprep.subr.mxu0 0.0
    %1846 = vmatpush1.msra.mxu0 0.0
    %1847 = vmatprep.mubr.f32.mxu0 0.0
    %1848 = vmatmul.mubr.f32.gmra.mrb[0].mxu0 %v38
    %v1849 = vpop.f32.mrb[0].mxu0
    %v1850 = vadd.f32 0.0, %v1849
    %v1851 = vpop.f32.mrb[0].mxu0
    %1852 = vmatprep.mubr.f32.mxu0 0.0
    %1853 = vmatmul.mubr.f32.gmra.mrb[0].mxu0 %v41
    %v1854 = vpop.f32.mrb[0].mxu0
    %v1855 = vadd.f32 0.0, %v1854
    %v1856 = vpop.f32.mrb[0].mxu0
    %1857 = vmatprep.mubr.f32.mxu0 0.0
    %1858 = vmatmul.mubr.f32.gmra.mrb[0].mxu0 %v44
    %v1859 = vpop.f32.mrb[0].mxu0
    %v1860 = vadd.f32 0.0, %v1859
    %v1861 = vpop.f32.mrb[0].mxu0
    %1862 = vmatprep.mubr.f32.mxu0 0.0
    %1863 = vmatmul.mubr.f32.gmra.mrb[0].mxu0 %v47
    %v1864 = vpop.f32.mrb[0].mxu0
    %v1865 = vadd.f32 0.0, %v1864
    %v1866 = vpop.f32.mrb[0].mxu0
    %1867 = vmatprep.mubr.f32.mxu0 0.0
    %1868 = vmatmul.mubr.f32.gmra.mrb[0].mxu0 %v50
    %v1869 = vpop.f32.mrb[0].mxu0
    %v1870 = vadd.f32 0.0, %v1869
    %v1871 = vpop.f32.mrb[0].mxu0
    %1872 = vmatprep.mubr.f32.mxu0 0.0
    %1873 = vmatmul.mubr.f32.gmra.mrb[0].mxu0 %v53
    %v1874 = vpop.f32.mrb[0].mxu0
    %v1875 = vadd.f32 0.0, %v1874
    %v1876 = vpop.f32.mrb[0].mxu0
    %1877 = vmatprep.mubr.f32.mxu0 0.0
    %1878 = vmatmul.mubr.f32.gmra.mrb[0].mxu0 %v56
    %v1879 = vpop.f32.mrb[0].mxu0
    %v1880 = vadd.f32 0.0, %v1879
    %v1881 = vpop.f32.mrb[0].mxu0
    %1882 = vmatprep.mubr.f32.mxu0 0.0
    %1883 = vmatmul.mubr.f32.gmra.mrb[0].mxu0 %v59
    %v1884 = vpop.f32.mrb[0].mxu0
    %v1885 = vadd.f32 0.0, %v1884
    %v1886 = vpop.f32.mrb[0].mxu0
    %1887 = vdwg.mxu0
    %s1888 = scalar_lea.vmem %s3, 32
    %v1889 = vld [vmem:[%s1888] sm:$0xff]
    %v1890 = vld [vmem:[%s1888 + $0x8] sm:$0xff]
    %v1891 = vld [vmem:[%s1888 + $0x10] sm:$0xff]
    %v1892 = vld [vmem:[%s1888 + $0x18] sm:$0xff]
    %1893 = vmatprep.subr.mxu0 0.0
    %1894 = vmatpush1.msra.mxu0 %v1889
    %1895 = vmatprep.subr.mxu0 0.0
    %1896 = vmatpush1.msra.mxu0 %v1890
    %1897 = vmatprep.subr.mxu0 0.0
    %1898 = vmatpush1.msra.mxu0 %v1891
    %1899 = vmatprep.subr.mxu0 0.0
    %1900 = vmatpush1.msra.mxu0 %v1892
    %1901 = vmatprep.subr.mxu0 0.0
    %1902 = vmatpush1.msra.mxu0 0.0
    %1903 = vmatprep.subr.mxu0 0.0
    %1904 = vmatpush1.msra.mxu0 0.0
    %1905 = vmatprep.subr.mxu0 0.0
    %1906 = vmatpush1.msra.mxu0 0.0
    %1907 = vmatprep.subr.mxu0 0.0
    %1908 = vmatpush1.msra.mxu0 0.0
    %1909 = vmatprep.subr.mxu0 0.0
    %1910 = vmatpush1.msra.mxu0 0.0
    %1911 = vmatprep.subr.mxu0 0.0
    %1912 = vmatpush1.msra.mxu0 0.0
    %1913 = vmatprep.subr.mxu0 0.0
    %1914 = vmatpush1.msra.mxu0 0.0
    %1915 = vmatprep.subr.mxu0 0.0
    %1916 = vmatpush1.msra.mxu0 0.0
    %1917 = vmatprep.subr.mxu0 0.0
    %1918 = vmatpush1.msra.mxu0 0.0
    %1919 = vmatprep.subr.mxu0 0.0
    %1920 = vmatpush1.msra.mxu0 0.0
    %1921 = vmatprep.subr.mxu0 0.0
    %1922 = vmatpush1.msra.mxu0 0.0
    %1923 = vmatprep.subr.mxu0 0.0
    %1924 = vmatpush1.msra.mxu0 0.0
    %1925 = vmatprep.subr.mxu0 0.0
    %1926 = vmatpush1.msra.mxu0 0.0
    %1927 = vmatprep.subr.mxu0 0.0
    %1928 = vmatpush1.msra.mxu0 0.0
    %1929 = vmatprep.subr.mxu0 0.0
    %1930 = vmatpush1.msra.mxu0 0.0
    %1931 = vmatprep.subr.mxu0 0.0
    %1932 = vmatpush1.msra.mxu0 0.0
    %1933 = vmatprep.subr.mxu0 0.0
    %1934 = vmatpush1.msra.mxu0 0.0
    %1935 = vmatprep.subr.mxu0 0.0
    %1936 = vmatpush1.msra.mxu0 0.0
    %1937 = vmatprep.subr.mxu0 0.0
    %1938 = vmatpush1.msra.mxu0 0.0
    %1939 = vmatprep.subr.mxu0 0.0
    %1940 = vmatpush1.msra.mxu0 0.0
    %1941 = vmatprep.subr.mxu0 0.0
    %1942 = vmatpush1.msra.mxu0 0.0
    %1943 = vmatprep.subr.mxu0 0.0
    %1944 = vmatpush1.msra.mxu0 0.0
    %1945 = vmatprep.subr.mxu0 0.0
    %1946 = vmatpush1.msra.mxu0 0.0
    %1947 = vmatprep.subr.mxu0 0.0
    %1948 = vmatpush1.msra.mxu0 0.0
    %1949 = vmatprep.subr.mxu0 0.0
    %1950 = vmatpush1.msra.mxu0 0.0
    %1951 = vmatprep.subr.mxu0 0.0
    %1952 = vmatpush1.msra.mxu0 0.0
    %1953 = vmatprep.subr.mxu0 0.0
    %1954 = vmatpush1.msra.mxu0 0.0
    %1955 = vmatprep.subr.mxu0 0.0
    %1956 = vmatpush1.msra.mxu0 0.0
    %1957 = vmatprep.mubr.f32.mxu0 0.0
    %1958 = vmatmul.mubr.f32.gmra.mrb[0].mxu0 %v38
    %v1959 = vpop.f32.mrb[0].mxu0
    %v1960 = vadd.f32 0.0, %v1959
    %v1961 = vpop.f32.mrb[0].mxu0
    %1962 = vmatprep.mubr.f32.mxu0 0.0
    %1963 = vmatmul.mubr.f32.gmra.mrb[0].mxu0 %v41
    %v1964 = vpop.f32.mrb[0].mxu0
    %v1965 = vadd.f32 0.0, %v1964
    %v1966 = vpop.f32.mrb[0].mxu0
    %1967 = vmatprep.mubr.f32.mxu0 0.0
    %1968 = vmatmul.mubr.f32.gmra.mrb[0].mxu0 %v44
    %v1969 = vpop.f32.mrb[0].mxu0
    %v1970 = vadd.f32 0.0, %v1969
    %v1971 = vpop.f32.mrb[0].mxu0
    %1972 = vmatprep.mubr.f32.mxu0 0.0
    %1973 = vmatmul.mubr.f32.gmra.mrb[0].mxu0 %v47
    %v1974 = vpop.f32.mrb[0].mxu0
    %v1975 = vadd.f32 0.0, %v1974
    %v1976 = vpop.f32.mrb[0].mxu0
    %1977 = vmatprep.mubr.f32.mxu0 0.0
    %1978 = vmatmul.mubr.f32.gmra.mrb[0].mxu0 %v50
    %v1979 = vpop.f32.mrb[0].mxu0
    %v1980 = vadd.f32 0.0, %v1979
    %v1981 = vpop.f32.mrb[0].mxu0
    %1982 = vmatprep.mubr.f32.mxu0 0.0
    %1983 = vmatmul.mubr.f32.gmra.mrb[0].mxu0 %v53
    %v1984 = vpop.f32.mrb[0].mxu0
    %v1985 = vadd.f32 0.0, %v1984
    %v1986 = vpop.f32.mrb[0].mxu0
    %1987 = vmatprep.mubr.f32.mxu0 0.0
    %1988 = vmatmul.mubr.f32.gmra.mrb[0].mxu0 %v56
    %v1989 = vpop.f32.mrb[0].mxu0
    %v1990 = vadd.f32 0.0, %v1989
    %v1991 = vpop.f32.mrb[0].mxu0
    %1992 = vmatprep.mubr.f32.mxu0 0.0
    %1993 = vmatmul.mubr.f32.gmra.mrb[0].mxu0 %v59
    %v1994 = vpop.f32.mrb[0].mxu0
    %v1995 = vadd.f32 0.0, %v1994
    %v1996 = vpop.f32.mrb[0].mxu0
    %1997 = vdwg.mxu0
    %v1999 = vsel %vm384, %v1740, 0
    %v2002 = vsel %vm384, %v1850, 0
    %2004 = vmatprep.subr.mxu0 0.0
    %2005 = vmatpush1.xpose.msra.mxu0 %v2002
    %2006 = vmatprep.subr.mxu0 0.0
    %2007 = vmatpush1.xpose.msra.mxu0 0.0
    %2008 = vmatprep.subr.mxu0 0.0
    %2009 = vmatpush1.xpose.msra.mxu0 0.0
    %2010 = vmatprep.subr.mxu0 0.0
    %2011 = vmatpush1.xpose.msra.mxu0 0.0
    %2012 = vmatprep.subr.mxu0 0.0
    %2013 = vmatpush1.xpose.msra.mxu0 0.0
    %2014 = vmatprep.subr.mxu0 0.0
    %2015 = vmatpush1.xpose.msra.mxu0 0.0
    %2016 = vmatprep.subr.mxu0 0.0
    %2017 = vmatpush1.xpose.msra.mxu0 0.0
    %2018 = vmatprep.subr.mxu0 0.0
    %2019 = vmatpush1.xpose.msra.mxu0 0.0
    %2020 = vmatprep.subr.mxu0 0.0
    %2021 = vmatpush1.xpose.msra.mxu0 0.0
    %2022 = vmatprep.subr.mxu0 0.0
    %2023 = vmatpush1.xpose.msra.mxu0 0.0
    %2024 = vmatprep.subr.mxu0 0.0
    %2025 = vmatpush1.xpose.msra.mxu0 0.0
    %2026 = vmatprep.subr.mxu0 0.0
    %2027 = vmatpush1.xpose.msra.mxu0 0.0
    %2028 = vmatprep.subr.mxu0 0.0
    %2029 = vmatpush1.xpose.msra.mxu0 0.0
    %2030 = vmatprep.subr.mxu0 0.0
    %2031 = vmatpush1.xpose.msra.mxu0 0.0
    %2032 = vmatprep.subr.mxu0 0.0
    %2033 = vmatpush1.xpose.msra.mxu0 0.0
    %2034 = vmatprep.subr.mxu0 0.0
    %2035 = vmatpush1.xpose.msra.mxu0 0.0
    %2036 = vmatprep.subr.mxu0 0.0
    %2037 = vmatpush1.xpose.msra.mxu0 0.0
    %2038 = vmatprep.subr.mxu0 0.0
    %2039 = vmatpush1.xpose.msra.mxu0 0.0
    %2040 = vmatprep.subr.mxu0 0.0
    %2041 = vmatpush1.xpose.msra.mxu0 0.0
    %2042 = vmatprep.subr.mxu0 0.0
    %2043 = vmatpush1.xpose.msra.mxu0 0.0
    %2044 = vmatprep.subr.mxu0 0.0
    %2045 = vmatpush1.xpose.msra.mxu0 0.0
    %2046 = vmatprep.subr.mxu0 0.0
    %2047 = vmatpush1.xpose.msra.mxu0 0.0
    %2048 = vmatprep.subr.mxu0 0.0
    %2049 = vmatpush1.xpose.msra.mxu0 0.0
    %2050 = vmatprep.subr.mxu0 0.0
    %2051 = vmatpush1.xpose.msra.mxu0 0.0
    %2052 = vmatprep.subr.mxu0 0.0
    %2053 = vmatpush1.xpose.msra.mxu0 0.0
    %2054 = vmatprep.subr.mxu0 0.0
    %2055 = vmatpush1.xpose.msra.mxu0 0.0
    %2056 = vmatprep.subr.mxu0 0.0
    %2057 = vmatpush1.xpose.msra.mxu0 0.0
    %2058 = vmatprep.subr.mxu0 0.0
    %2059 = vmatpush1.xpose.msra.mxu0 0.0
    %2060 = vmatprep.subr.mxu0 0.0
    %2061 = vmatpush1.xpose.msra.mxu0 0.0
    %2062 = vmatprep.subr.mxu0 0.0
    %2063 = vmatpush1.xpose.msra.mxu0 0.0
    %2064 = vmatprep.subr.mxu0 0.0
    %2065 = vmatpush1.xpose.msra.mxu0 0.0
    %2066 = vmatprep.subr.mxu0 0.0
    %2067 = vmatpush1.xpose.msra.mxu0 0.0
    %2068 = vmatprep.mubr.f32.mxu0 0.0
    %2069 = vmatmul.mubr.f32.gmra.mrb[0].mxu0 %v1999
    %v2070 = vpop.f32.mrb[0].mxu0
    %v2071 = vadd.f32 0.0, %v2070
    %v2072 = vpop.f32.mrb[0].mxu0
    %2073 = vdwg.mxu0
    %v2075 = vsel %vm384, %v1745, 0
    %v2078 = vsel %vm384, %v1855, 0
    %2080 = vmatprep.subr.mxu0 0.0
    %2081 = vmatpush1.xpose.msra.mxu0 %v2078
    %2082 = vmatprep.subr.mxu0 0.0
    %2083 = vmatpush1.xpose.msra.mxu0 0.0
    %2084 = vmatprep.subr.mxu0 0.0
    %2085 = vmatpush1.xpose.msra.mxu0 0.0
    %2086 = vmatprep.subr.mxu0 0.0
    %2087 = vmatpush1.xpose.msra.mxu0 0.0
    %2088 = vmatprep.subr.mxu0 0.0
    %2089 = vmatpush1.xpose.msra.mxu0 0.0
    %2090 = vmatprep.subr.mxu0 0.0
    %2091 = vmatpush1.xpose.msra.mxu0 0.0
    %2092 = vmatprep.subr.mxu0 0.0
    %2093 = vmatpush1.xpose.msra.mxu0 0.0
    %2094 = vmatprep.subr.mxu0 0.0
    %2095 = vmatpush1.xpose.msra.mxu0 0.0
    %2096 = vmatprep.subr.mxu0 0.0
    %2097 = vmatpush1.xpose.msra.mxu0 0.0
    %2098 = vmatprep.subr.mxu0 0.0
    %2099 = vmatpush1.xpose.msra.mxu0 0.0
    %2100 = vmatprep.subr.mxu0 0.0
    %2101 = vmatpush1.xpose.msra.mxu0 0.0
    %2102 = vmatprep.subr.mxu0 0.0
    %2103 = vmatpush1.xpose.msra.mxu0 0.0
    %2104 = vmatprep.subr.mxu0 0.0
    %2105 = vmatpush1.xpose.msra.mxu0 0.0
    %2106 = vmatprep.subr.mxu0 0.0
    %2107 = vmatpush1.xpose.msra.mxu0 0.0
    %2108 = vmatprep.subr.mxu0 0.0
    %2109 = vmatpush1.xpose.msra.mxu0 0.0
    %2110 = vmatprep.subr.mxu0 0.0
    %2111 = vmatpush1.xpose.msra.mxu0 0.0
    %2112 = vmatprep.subr.mxu0 0.0
    %2113 = vmatpush1.xpose.msra.mxu0 0.0
    %2114 = vmatprep.subr.mxu0 0.0
    %2115 = vmatpush1.xpose.msra.mxu0 0.0
    %2116 = vmatprep.subr.mxu0 0.0
    %2117 = vmatpush1.xpose.msra.mxu0 0.0
    %2118 = vmatprep.subr.mxu0 0.0
    %2119 = vmatpush1.xpose.msra.mxu0 0.0
    %2120 = vmatprep.subr.mxu0 0.0
    %2121 = vmatpush1.xpose.msra.mxu0 0.0
    %2122 = vmatprep.subr.mxu0 0.0
    %2123 = vmatpush1.xpose.msra.mxu0 0.0
    %2124 = vmatprep.subr.mxu0 0.0
    %2125 = vmatpush1.xpose.msra.mxu0 0.0
    %2126 = vmatprep.subr.mxu0 0.0
    %2127 = vmatpush1.xpose.msra.mxu0 0.0
    %2128 = vmatprep.subr.mxu0 0.0
    %2129 = vmatpush1.xpose.msra.mxu0 0.0
    %2130 = vmatprep.subr.mxu0 0.0
    %2131 = vmatpush1.xpose.msra.mxu0 0.0
    %2132 = vmatprep.subr.mxu0 0.0
    %2133 = vmatpush1.xpose.msra.mxu0 0.0
    %2134 = vmatprep.subr.mxu0 0.0
    %2135 = vmatpush1.xpose.msra.mxu0 0.0
    %2136 = vmatprep.subr.mxu0 0.0
    %2137 = vmatpush1.xpose.msra.mxu0 0.0
    %2138 = vmatprep.subr.mxu0 0.0
    %2139 = vmatpush1.xpose.msra.mxu0 0.0
    %2140 = vmatprep.subr.mxu0 0.0
    %2141 = vmatpush1.xpose.msra.mxu0 0.0
    %2142 = vmatprep.subr.mxu0 0.0
    %2143 = vmatpush1.xpose.msra.mxu0 0.0
    %2144 = vmatprep.mubr.f32.mxu0 0.0
    %2145 = vmatmul.mubr.f32.gmra.mrb[0].mxu0 %v2075
    %v2146 = vpop.f32.mrb[0].mxu0
    %v2147 = vadd.f32 0.0, %v2146
    %v2148 = vpop.f32.mrb[0].mxu0
    %2149 = vdwg.mxu0
    %v2151 = vsel %vm384, %v1750, 0
    %v2154 = vsel %vm384, %v1860, 0
    %2156 = vmatprep.subr.mxu0 0.0
    %2157 = vmatpush1.xpose.msra.mxu0 %v2154
    %2158 = vmatprep.subr.mxu0 0.0
    %2159 = vmatpush1.xpose.msra.mxu0 0.0
    %2160 = vmatprep.subr.mxu0 0.0
    %2161 = vmatpush1.xpose.msra.mxu0 0.0
    %2162 = vmatprep.subr.mxu0 0.0
    %2163 = vmatpush1.xpose.msra.mxu0 0.0
    %2164 = vmatprep.subr.mxu0 0.0
    %2165 = vmatpush1.xpose.msra.mxu0 0.0
    %2166 = vmatprep.subr.mxu0 0.0
    %2167 = vmatpush1.xpose.msra.mxu0 0.0
    %2168 = vmatprep.subr.mxu0 0.0
    %2169 = vmatpush1.xpose.msra.mxu0 0.0
    %2170 = vmatprep.subr.mxu0 0.0
    %2171 = vmatpush1.xpose.msra.mxu0 0.0
    %2172 = vmatprep.subr.mxu0 0.0
    %2173 = vmatpush1.xpose.msra.mxu0 0.0
    %2174 = vmatprep.subr.mxu0 0.0
    %2175 = vmatpush1.xpose.msra.mxu0 0.0
    %2176 = vmatprep.subr.mxu0 0.0
    %2177 = vmatpush1.xpose.msra.mxu0 0.0
    %2178 = vmatprep.subr.mxu0 0.0
    %2179 = vmatpush1.xpose.msra.mxu0 0.0
    %2180 = vmatprep.subr.mxu0 0.0
    %2181 = vmatpush1.xpose.msra.mxu0 0.0
    %2182 = vmatprep.subr.mxu0 0.0
    %2183 = vmatpush1.xpose.msra.mxu0 0.0
    %2184 = vmatprep.subr.mxu0 0.0
    %2185 = vmatpush1.xpose.msra.mxu0 0.0
    %2186 = vmatprep.subr.mxu0 0.0
    %2187 = vmatpush1.xpose.msra.mxu0 0.0
    %2188 = vmatprep.subr.mxu0 0.0
    %2189 = vmatpush1.xpose.msra.mxu0 0.0
    %2190 = vmatprep.subr.mxu0 0.0
    %2191 = vmatpush1.xpose.msra.mxu0 0.0
    %2192 = vmatprep.subr.mxu0 0.0
    %2193 = vmatpush1.xpose.msra.mxu0 0.0
    %2194 = vmatprep.subr.mxu0 0.0
    %2195 = vmatpush1.xpose.msra.mxu0 0.0
    %2196 = vmatprep.subr.mxu0 0.0
    %2197 = vmatpush1.xpose.msra.mxu0 0.0
    %2198 = vmatprep.subr.mxu0 0.0
    %2199 = vmatpush1.xpose.msra.mxu0 0.0
    %2200 = vmatprep.subr.mxu0 0.0
    %2201 = vmatpush1.xpose.msra.mxu0 0.0
    %2202 = vmatprep.subr.mxu0 0.0
    %2203 = vmatpush1.xpose.msra.mxu0 0.0
    %2204 = vmatprep.subr.mxu0 0.0
    %2205 = vmatpush1.xpose.msra.mxu0 0.0
    %2206 = vmatprep.subr.mxu0 0.0
    %2207 = vmatpush1.xpose.msra.mxu0 0.0
    %2208 = vmatprep.subr.mxu0 0.0
    %2209 = vmatpush1.xpose.msra.mxu0 0.0
    %2210 = vmatprep.subr.mxu0 0.0
    %2211 = vmatpush1.xpose.msra.mxu0 0.0
    %2212 = vmatprep.subr.mxu0 0.0
    %2213 = vmatpush1.xpose.msra.mxu0 0.0
    %2214 = vmatprep.subr.mxu0 0.0
    %2215 = vmatpush1.xpose.msra.mxu0 0.0
    %2216 = vmatprep.subr.mxu0 0.0
    %2217 = vmatpush1.xpose.msra.mxu0 0.0
    %2218 = vmatprep.subr.mxu0 0.0
    %2219 = vmatpush1.xpose.msra.mxu0 0.0
    %2220 = vmatprep.mubr.f32.mxu0 0.0
    %2221 = vmatmul.mubr.f32.gmra.mrb[0].mxu0 %v2151
    %v2222 = vpop.f32.mrb[0].mxu0
    %v2223 = vadd.f32 0.0, %v2222
    %v2224 = vpop.f32.mrb[0].mxu0
    %2225 = vdwg.mxu0
    %v2227 = vsel %vm384, %v1755, 0
    %v2230 = vsel %vm384, %v1865, 0
    %2232 = vmatprep.subr.mxu0 0.0
    %2233 = vmatpush1.xpose.msra.mxu0 %v2230
    %2234 = vmatprep.subr.mxu0 0.0
    %2235 = vmatpush1.xpose.msra.mxu0 0.0
    %2236 = vmatprep.subr.mxu0 0.0
    %2237 = vmatpush1.xpose.msra.mxu0 0.0
    %2238 = vmatprep.subr.mxu0 0.0
    %2239 = vmatpush1.xpose.msra.mxu0 0.0
    %2240 = vmatprep.subr.mxu0 0.0
    %2241 = vmatpush1.xpose.msra.mxu0 0.0
    %2242 = vmatprep.subr.mxu0 0.0
    %2243 = vmatpush1.xpose.msra.mxu0 0.0
    %2244 = vmatprep.subr.mxu0 0.0
    %2245 = vmatpush1.xpose.msra.mxu0 0.0
    %2246 = vmatprep.subr.mxu0 0.0
    %2247 = vmatpush1.xpose.msra.mxu0 0.0
    %2248 = vmatprep.subr.mxu0 0.0
    %2249 = vmatpush1.xpose.msra.mxu0 0.0
    %2250 = vmatprep.subr.mxu0 0.0
    %2251 = vmatpush1.xpose.msra.mxu0 0.0
    %2252 = vmatprep.subr.mxu0 0.0
    %2253 = vmatpush1.xpose.msra.mxu0 0.0
    %2254 = vmatprep.subr.mxu0 0.0
    %2255 = vmatpush1.xpose.msra.mxu0 0.0
    %2256 = vmatprep.subr.mxu0 0.0
    %2257 = vmatpush1.xpose.msra.mxu0 0.0
    %2258 = vmatprep.subr.mxu0 0.0
    %2259 = vmatpush1.xpose.msra.mxu0 0.0
    %2260 = vmatprep.subr.mxu0 0.0
    %2261 = vmatpush1.xpose.msra.mxu0 0.0
    %2262 = vmatprep.subr.mxu0 0.0
    %2263 = vmatpush1.xpose.msra.mxu0 0.0
    %2264 = vmatprep.subr.mxu0 0.0
    %2265 = vmatpush1.xpose.msra.mxu0 0.0
    %2266 = vmatprep.subr.mxu0 0.0
    %2267 = vmatpush1.xpose.msra.mxu0 0.0
    %2268 = vmatprep.subr.mxu0 0.0
    %2269 = vmatpush1.xpose.msra.mxu0 0.0
    %2270 = vmatprep.subr.mxu0 0.0
    %2271 = vmatpush1.xpose.msra.mxu0 0.0
    %2272 = vmatprep.subr.mxu0 0.0
    %2273 = vmatpush1.xpose.msra.mxu0 0.0
    %2274 = vmatprep.subr.mxu0 0.0
    %2275 = vmatpush1.xpose.msra.mxu0 0.0
    %2276 = vmatprep.subr.mxu0 0.0
    %2277 = vmatpush1.xpose.msra.mxu0 0.0
    %2278 = vmatprep.subr.mxu0 0.0
    %2279 = vmatpush1.xpose.msra.mxu0 0.0
    %2280 = vmatprep.subr.mxu0 0.0
    %2281 = vmatpush1.xpose.msra.mxu0 0.0
    %2282 = vmatprep.subr.mxu0 0.0
    %2283 = vmatpush1.xpose.msra.mxu0 0.0
    %2284 = vmatprep.subr.mxu0 0.0
    %2285 = vmatpush1.xpose.msra.mxu0 0.0
    %2286 = vmatprep.subr.mxu0 0.0
    %2287 = vmatpush1.xpose.msra.mxu0 0.0
    %2288 = vmatprep.subr.mxu0 0.0
    %2289 = vmatpush1.xpose.msra.mxu0 0.0
    %2290 = vmatprep.subr.mxu0 0.0
    %2291 = vmatpush1.xpose.msra.mxu0 0.0
    %2292 = vmatprep.subr.mxu0 0.0
    %2293 = vmatpush1.xpose.msra.mxu0 0.0
    %2294 = vmatprep.subr.mxu0 0.0
    %2295 = vmatpush1.xpose.msra.mxu0 0.0
    %2296 = vmatprep.mubr.f32.mxu0 0.0
    %2297 = vmatmul.mubr.f32.gmra.mrb[0].mxu0 %v2227
    %v2298 = vpop.f32.mrb[0].mxu0
    %v2299 = vadd.f32 0.0, %v2298
    %v2300 = vpop.f32.mrb[0].mxu0
    %2301 = vdwg.mxu0
    %v2303 = vsel %vm384, %v1760, 0
    %v2306 = vsel %vm384, %v1870, 0
    %2308 = vmatprep.subr.mxu0 0.0
    %2309 = vmatpush1.xpose.msra.mxu0 %v2306
    %2310 = vmatprep.subr.mxu0 0.0
    %2311 = vmatpush1.xpose.msra.mxu0 0.0
    %2312 = vmatprep.subr.mxu0 0.0
    %2313 = vmatpush1.xpose.msra.mxu0 0.0
    %2314 = vmatprep.subr.mxu0 0.0
    %2315 = vmatpush1.xpose.msra.mxu0 0.0
    %2316 = vmatprep.subr.mxu0 0.0
    %2317 = vmatpush1.xpose.msra.mxu0 0.0
    %2318 = vmatprep.subr.mxu0 0.0
    %2319 = vmatpush1.xpose.msra.mxu0 0.0
    %2320 = vmatprep.subr.mxu0 0.0
    %2321 = vmatpush1.xpose.msra.mxu0 0.0
    %2322 = vmatprep.subr.mxu0 0.0
    %2323 = vmatpush1.xpose.msra.mxu0 0.0
    %2324 = vmatprep.subr.mxu0 0.0
    %2325 = vmatpush1.xpose.msra.mxu0 0.0
    %2326 = vmatprep.subr.mxu0 0.0
    %2327 = vmatpush1.xpose.msra.mxu0 0.0
    %2328 = vmatprep.subr.mxu0 0.0
    %2329 = vmatpush1.xpose.msra.mxu0 0.0
    %2330 = vmatprep.subr.mxu0 0.0
    %2331 = vmatpush1.xpose.msra.mxu0 0.0
    %2332 = vmatprep.subr.mxu0 0.0
    %2333 = vmatpush1.xpose.msra.mxu0 0.0
    %2334 = vmatprep.subr.mxu0 0.0
    %2335 = vmatpush1.xpose.msra.mxu0 0.0
    %2336 = vmatprep.subr.mxu0 0.0
    %2337 = vmatpush1.xpose.msra.mxu0 0.0
    %2338 = vmatprep.subr.mxu0 0.0
    %2339 = vmatpush1.xpose.msra.mxu0 0.0
    %2340 = vmatprep.subr.mxu0 0.0
    %2341 = vmatpush1.xpose.msra.mxu0 0.0
    %2342 = vmatprep.subr.mxu0 0.0
    %2343 = vmatpush1.xpose.msra.mxu0 0.0
    %2344 = vmatprep.subr.mxu0 0.0
    %2345 = vmatpush1.xpose.msra.mxu0 0.0
    %2346 = vmatprep.subr.mxu0 0.0
    %2347 = vmatpush1.xpose.msra.mxu0 0.0
    %2348 = vmatprep.subr.mxu0 0.0
    %2349 = vmatpush1.xpose.msra.mxu0 0.0
    %2350 = vmatprep.subr.mxu0 0.0
    %2351 = vmatpush1.xpose.msra.mxu0 0.0
    %2352 = vmatprep.subr.mxu0 0.0
    %2353 = vmatpush1.xpose.msra.mxu0 0.0
    %2354 = vmatprep.subr.mxu0 0.0
    %2355 = vmatpush1.xpose.msra.mxu0 0.0
    %2356 = vmatprep.subr.mxu0 0.0
    %2357 = vmatpush1.xpose.msra.mxu0 0.0
    %2358 = vmatprep.subr.mxu0 0.0
    %2359 = vmatpush1.xpose.msra.mxu0 0.0
    %2360 = vmatprep.subr.mxu0 0.0
    %2361 = vmatpush1.xpose.msra.mxu0 0.0
    %2362 = vmatprep.subr.mxu0 0.0
    %2363 = vmatpush1.xpose.msra.mxu0 0.0
    %2364 = vmatprep.subr.mxu0 0.0
    %2365 = vmatpush1.xpose.msra.mxu0 0.0
    %2366 = vmatprep.subr.mxu0 0.0
    %2367 = vmatpush1.xpose.msra.mxu0 0.0
    %2368 = vmatprep.subr.mxu0 0.0
    %2369 = vmatpush1.xpose.msra.mxu0 0.0
    %2370 = vmatprep.subr.mxu0 0.0
    %2371 = vmatpush1.xpose.msra.mxu0 0.0
    %2372 = vmatprep.mubr.f32.mxu0 0.0
    %2373 = vmatmul.mubr.f32.gmra.mrb[0].mxu0 %v2303
    %v2374 = vpop.f32.mrb[0].mxu0
    %v2375 = vadd.f32 0.0, %v2374
    %v2376 = vpop.f32.mrb[0].mxu0
    %2377 = vdwg.mxu0
    %v2379 = vsel %vm384, %v1765, 0
    %v2382 = vsel %vm384, %v1875, 0
    %2384 = vmatprep.subr.mxu0 0.0
    %2385 = vmatpush1.xpose.msra.mxu0 %v2382
    %2386 = vmatprep.subr.mxu0 0.0
    %2387 = vmatpush1.xpose.msra.mxu0 0.0
    %2388 = vmatprep.subr.mxu0 0.0
    %2389 = vmatpush1.xpose.msra.mxu0 0.0
    %2390 = vmatprep.subr.mxu0 0.0
    %2391 = vmatpush1.xpose.msra.mxu0 0.0
    %2392 = vmatprep.subr.mxu0 0.0
    %2393 = vmatpush1.xpose.msra.mxu0 0.0
    %2394 = vmatprep.subr.mxu0 0.0
    %2395 = vmatpush1.xpose.msra.mxu0 0.0
    %2396 = vmatprep.subr.mxu0 0.0
    %2397 = vmatpush1.xpose.msra.mxu0 0.0
    %2398 = vmatprep.subr.mxu0 0.0
    %2399 = vmatpush1.xpose.msra.mxu0 0.0
    %2400 = vmatprep.subr.mxu0 0.0
    %2401 = vmatpush1.xpose.msra.mxu0 0.0
    %2402 = vmatprep.subr.mxu0 0.0
    %2403 = vmatpush1.xpose.msra.mxu0 0.0
    %2404 = vmatprep.subr.mxu0 0.0
    %2405 = vmatpush1.xpose.msra.mxu0 0.0
    %2406 = vmatprep.subr.mxu0 0.0
    %2407 = vmatpush1.xpose.msra.mxu0 0.0
    %2408 = vmatprep.subr.mxu0 0.0
    %2409 = vmatpush1.xpose.msra.mxu0 0.0
    %2410 = vmatprep.subr.mxu0 0.0
    %2411 = vmatpush1.xpose.msra.mxu0 0.0
    %2412 = vmatprep.subr.mxu0 0.0
    %2413 = vmatpush1.xpose.msra.mxu0 0.0
    %2414 = vmatprep.subr.mxu0 0.0
    %2415 = vmatpush1.xpose.msra.mxu0 0.0
    %2416 = vmatprep.subr.mxu0 0.0
    %2417 = vmatpush1.xpose.msra.mxu0 0.0
    %2418 = vmatprep.subr.mxu0 0.0
    %2419 = vmatpush1.xpose.msra.mxu0 0.0
    %2420 = vmatprep.subr.mxu0 0.0
    %2421 = vmatpush1.xpose.msra.mxu0 0.0
    %2422 = vmatprep.subr.mxu0 0.0
    %2423 = vmatpush1.xpose.msra.mxu0 0.0
    %2424 = vmatprep.subr.mxu0 0.0
    %2425 = vmatpush1.xpose.msra.mxu0 0.0
    %2426 = vmatprep.subr.mxu0 0.0
    %2427 = vmatpush1.xpose.msra.mxu0 0.0
    %2428 = vmatprep.subr.mxu0 0.0
    %2429 = vmatpush1.xpose.msra.mxu0 0.0
    %2430 = vmatprep.subr.mxu0 0.0
    %2431 = vmatpush1.xpose.msra.mxu0 0.0
    %2432 = vmatprep.subr.mxu0 0.0
    %2433 = vmatpush1.xpose.msra.mxu0 0.0
    %2434 = vmatprep.subr.mxu0 0.0
    %2435 = vmatpush1.xpose.msra.mxu0 0.0
    %2436 = vmatprep.subr.mxu0 0.0
    %2437 = vmatpush1.xpose.msra.mxu0 0.0
    %2438 = vmatprep.subr.mxu0 0.0
    %2439 = vmatpush1.xpose.msra.mxu0 0.0
    %2440 = vmatprep.subr.mxu0 0.0
    %2441 = vmatpush1.xpose.msra.mxu0 0.0
    %2442 = vmatprep.subr.mxu0 0.0
    %2443 = vmatpush1.xpose.msra.mxu0 0.0
    %2444 = vmatprep.subr.mxu0 0.0
    %2445 = vmatpush1.xpose.msra.mxu0 0.0
    %2446 = vmatprep.subr.mxu0 0.0
    %2447 = vmatpush1.xpose.msra.mxu0 0.0
    %2448 = vmatprep.mubr.f32.mxu0 0.0
    %2449 = vmatmul.mubr.f32.gmra.mrb[0].mxu0 %v2379
    %v2450 = vpop.f32.mrb[0].mxu0
    %v2451 = vadd.f32 0.0, %v2450
    %v2452 = vpop.f32.mrb[0].mxu0
    %2453 = vdwg.mxu0
    %v2455 = vsel %vm384, %v1770, 0
    %v2458 = vsel %vm384, %v1880, 0
    %2460 = vmatprep.subr.mxu0 0.0
    %2461 = vmatpush1.xpose.msra.mxu0 %v2458
    %2462 = vmatprep.subr.mxu0 0.0
    %2463 = vmatpush1.xpose.msra.mxu0 0.0
    %2464 = vmatprep.subr.mxu0 0.0
    %2465 = vmatpush1.xpose.msra.mxu0 0.0
    %2466 = vmatprep.subr.mxu0 0.0
    %2467 = vmatpush1.xpose.msra.mxu0 0.0
    %2468 = vmatprep.subr.mxu0 0.0
    %2469 = vmatpush1.xpose.msra.mxu0 0.0
    %2470 = vmatprep.subr.mxu0 0.0
    %2471 = vmatpush1.xpose.msra.mxu0 0.0
    %2472 = vmatprep.subr.mxu0 0.0
    %2473 = vmatpush1.xpose.msra.mxu0 0.0
    %2474 = vmatprep.subr.mxu0 0.0
    %2475 = vmatpush1.xpose.msra.mxu0 0.0
    %2476 = vmatprep.subr.mxu0 0.0
    %2477 = vmatpush1.xpose.msra.mxu0 0.0
    %2478 = vmatprep.subr.mxu0 0.0
    %2479 = vmatpush1.xpose.msra.mxu0 0.0
    %2480 = vmatprep.subr.mxu0 0.0
    %2481 = vmatpush1.xpose.msra.mxu0 0.0
    %2482 = vmatprep.subr.mxu0 0.0
    %2483 = vmatpush1.xpose.msra.mxu0 0.0
    %2484 = vmatprep.subr.mxu0 0.0
    %2485 = vmatpush1.xpose.msra.mxu0 0.0
    %2486 = vmatprep.subr.mxu0 0.0
    %2487 = vmatpush1.xpose.msra.mxu0 0.0
    %2488 = vmatprep.subr.mxu0 0.0
    %2489 = vmatpush1.xpose.msra.mxu0 0.0
    %2490 = vmatprep.subr.mxu0 0.0
    %2491 = vmatpush1.xpose.msra.mxu0 0.0
    %2492 = vmatprep.subr.mxu0 0.0
    %2493 = vmatpush1.xpose.msra.mxu0 0.0
    %2494 = vmatprep.subr.mxu0 0.0
    %2495 = vmatpush1.xpose.msra.mxu0 0.0
    %2496 = vmatprep.subr.mxu0 0.0
    %2497 = vmatpush1.xpose.msra.mxu0 0.0
    %2498 = vmatprep.subr.mxu0 0.0
    %2499 = vmatpush1.xpose.msra.mxu0 0.0
    %2500 = vmatprep.subr.mxu0 0.0
    %2501 = vmatpush1.xpose.msra.mxu0 0.0
    %2502 = vmatprep.subr.mxu0 0.0
    %2503 = vmatpush1.xpose.msra.mxu0 0.0
    %2504 = vmatprep.subr.mxu0 0.0
    %2505 = vmatpush1.xpose.msra.mxu0 0.0
    %2506 = vmatprep.subr.mxu0 0.0
    %2507 = vmatpush1.xpose.msra.mxu0 0.0
    %2508 = vmatprep.subr.mxu0 0.0
    %2509 = vmatpush1.xpose.msra.mxu0 0.0
    %2510 = vmatprep.subr.mxu0 0.0
    %2511 = vmatpush1.xpose.msra.mxu0 0.0
    %2512 = vmatprep.subr.mxu0 0.0
    %2513 = vmatpush1.xpose.msra.mxu0 0.0
    %2514 = vmatprep.subr.mxu0 0.0
    %2515 = vmatpush1.xpose.msra.mxu0 0.0
    %2516 = vmatprep.subr.mxu0 0.0
    %2517 = vmatpush1.xpose.msra.mxu0 0.0
    %2518 = vmatprep.subr.mxu0 0.0
    %2519 = vmatpush1.xpose.msra.mxu0 0.0
    %2520 = vmatprep.subr.mxu0 0.0
    %2521 = vmatpush1.xpose.msra.mxu0 0.0
    %2522 = vmatprep.subr.mxu0 0.0
    %2523 = vmatpush1.xpose.msra.mxu0 0.0
    %2524 = vmatprep.mubr.f32.mxu0 0.0
    %2525 = vmatmul.mubr.f32.gmra.mrb[0].mxu0 %v2455
    %v2526 = vpop.f32.mrb[0].mxu0
    %v2527 = vadd.f32 0.0, %v2526
    %v2528 = vpop.f32.mrb[0].mxu0
    %2529 = vdwg.mxu0
    %v2531 = vsel %vm384, %v1775, 0
    %v2534 = vsel %vm384, %v1885, 0
    %2536 = vmatprep.subr.mxu0 0.0
    %2537 = vmatpush1.xpose.msra.mxu0 %v2534
    %2538 = vmatprep.subr.mxu0 0.0
    %2539 = vmatpush1.xpose.msra.mxu0 0.0
    %2540 = vmatprep.subr.mxu0 0.0
    %2541 = vmatpush1.xpose.msra.mxu0 0.0
    %2542 = vmatprep.subr.mxu0 0.0
    %2543 = vmatpush1.xpose.msra.mxu0 0.0
    %2544 = vmatprep.subr.mxu0 0.0
    %2545 = vmatpush1.xpose.msra.mxu0 0.0
    %2546 = vmatprep.subr.mxu0 0.0
    %2547 = vmatpush1.xpose.msra.mxu0 0.0
    %2548 = vmatprep.subr.mxu0 0.0
    %2549 = vmatpush1.xpose.msra.mxu0 0.0
    %2550 = vmatprep.subr.mxu0 0.0
    %2551 = vmatpush1.xpose.msra.mxu0 0.0
    %2552 = vmatprep.subr.mxu0 0.0
    %2553 = vmatpush1.xpose.msra.mxu0 0.0
    %2554 = vmatprep.subr.mxu0 0.0
    %2555 = vmatpush1.xpose.msra.mxu0 0.0
    %2556 = vmatprep.subr.mxu0 0.0
    %2557 = vmatpush1.xpose.msra.mxu0 0.0
    %2558 = vmatprep.subr.mxu0 0.0
    %2559 = vmatpush1.xpose.msra.mxu0 0.0
    %2560 = vmatprep.subr.mxu0 0.0
    %2561 = vmatpush1.xpose.msra.mxu0 0.0
    %2562 = vmatprep.subr.mxu0 0.0
    %2563 = vmatpush1.xpose.msra.mxu0 0.0
    %2564 = vmatprep.subr.mxu0 0.0
    %2565 = vmatpush1.xpose.msra.mxu0 0.0
    %2566 = vmatprep.subr.mxu0 0.0
    %2567 = vmatpush1.xpose.msra.mxu0 0.0
    %2568 = vmatprep.subr.mxu0 0.0
    %2569 = vmatpush1.xpose.msra.mxu0 0.0
    %2570 = vmatprep.subr.mxu0 0.0
    %2571 = vmatpush1.xpose.msra.mxu0 0.0
    %2572 = vmatprep.subr.mxu0 0.0
    %2573 = vmatpush1.xpose.msra.mxu0 0.0
    %2574 = vmatprep.subr.mxu0 0.0
    %2575 = vmatpush1.xpose.msra.mxu0 0.0
    %2576 = vmatprep.subr.mxu0 0.0
    %2577 = vmatpush1.xpose.msra.mxu0 0.0
    %2578 = vmatprep.subr.mxu0 0.0
    %2579 = vmatpush1.xpose.msra.mxu0 0.0
    %2580 = vmatprep.subr.mxu0 0.0
    %2581 = vmatpush1.xpose.msra.mxu0 0.0
    %2582 = vmatprep.subr.mxu0 0.0
    %2583 = vmatpush1.xpose.msra.mxu0 0.0
    %2584 = vmatprep.subr.mxu0 0.0
    %2585 = vmatpush1.xpose.msra.mxu0 0.0
    %2586 = vmatprep.subr.mxu0 0.0
    %2587 = vmatpush1.xpose.msra.mxu0 0.0
    %2588 = vmatprep.subr.mxu0 0.0
    %2589 = vmatpush1.xpose.msra.mxu0 0.0
    %2590 = vmatprep.subr.mxu0 0.0
    %2591 = vmatpush1.xpose.msra.mxu0 0.0
    %2592 = vmatprep.subr.mxu0 0.0
    %2593 = vmatpush1.xpose.msra.mxu0 0.0
    %2594 = vmatprep.subr.mxu0 0.0
    %2595 = vmatpush1.xpose.msra.mxu0 0.0
    %2596 = vmatprep.subr.mxu0 0.0
    %2597 = vmatpush1.xpose.msra.mxu0 0.0
    %2598 = vmatprep.subr.mxu0 0.0
    %2599 = vmatpush1.xpose.msra.mxu0 0.0
    %2600 = vmatprep.mubr.f32.mxu0 0.0
    %2601 = vmatmul.mubr.f32.gmra.mrb[0].mxu0 %v2531
    %v2602 = vpop.f32.mrb[0].mxu0
    %v2603 = vadd.f32 0.0, %v2602
    %v2604 = vpop.f32.mrb[0].mxu0
    %2605 = vdwg.mxu0
    %v2606 = vsel %vm993, %v2071, -inf
    %2607 = vmax.xlane.f32.xlu0 %v2606
    %v2608 = vpop.xlane.xlu0 %2607
    %v2609 = vsel %vm993, %v2147, -inf
    %2610 = vmax.xlane.f32.xlu0 %v2609
    %v2611 = vpop.xlane.xlu0 %2610
    %v2612 = vsel %vm993, %v2223, -inf
    %2613 = vmax.xlane.f32.xlu0 %v2612
    %v2614 = vpop.xlane.xlu0 %2613
    %v2615 = vsel %vm993, %v2299, -inf
    %2616 = vmax.xlane.f32.xlu0 %v2615
    %v2617 = vpop.xlane.xlu0 %2616
    %v2618 = vsel %vm993, %v2375, -inf
    %2619 = vmax.xlane.f32.xlu0 %v2618
    %v2620 = vpop.xlane.xlu0 %2619
    %v2621 = vsel %vm993, %v2451, -inf
    %2622 = vmax.xlane.f32.xlu0 %v2621
    %v2623 = vpop.xlane.xlu0 %2622
    %v2624 = vsel %vm993, %v2527, -inf
    %2625 = vmax.xlane.f32.xlu0 %v2624
    %v2626 = vpop.xlane.xlu0 %2625
    %v2627 = vsel %vm993, %v2603, -inf
    %2628 = vmax.xlane.f32.xlu0 %v2627
    %v2629 = vpop.xlane.xlu0 %2628
    %v2630 = vsub.f32 %v2071, %v2608
    %v2631 = vsub.f32 %v2147, %v2611
    %v2632 = vsub.f32 %v2223, %v2614
    %v2633 = vsub.f32 %v2299, %v2617
    %v2634 = vsub.f32 %v2375, %v2620
    %v2635 = vsub.f32 %v2451, %v2623
    %v2636 = vsub.f32 %v2527, %v2626
    %v2637 = vsub.f32 %v2603, %v2629
    %v2638 = vmul.f32 %v2630, 1.442695
    %v2639 = vpow.pop %v2638
    %v2640 = vmul.f32 %v2631, 1.442695
    %v2641 = vpow.pop %v2640
    %v2642 = vmul.f32 %v2632, 1.442695
    %v2643 = vpow.pop %v2642
    %v2644 = vmul.f32 %v2633, 1.442695
    %v2645 = vpow.pop %v2644
    %v2646 = vmul.f32 %v2634, 1.442695
    %v2647 = vpow.pop %v2646
    %v2648 = vmul.f32 %v2635, 1.442695
    %v2649 = vpow.pop %v2648
    %v2650 = vmul.f32 %v2636, 1.442695
    %v2651 = vpow.pop %v2650
    %v2652 = vmul.f32 %v2637, 1.442695
    %v2653 = vpow.pop %v2652
    %v2654 = vsel %vm993, %v2639, 0.0
    %2655 = vadd.xlane.f32.xlu0 %v2654
    %v2656 = vpop.xlane.xlu0 %2655
    %v2657 = vsel %vm993, %v2641, 0.0
    %2658 = vadd.xlane.f32.xlu0 %v2657
    %v2659 = vpop.xlane.xlu0 %2658
    %v2660 = vsel %vm993, %v2643, 0.0
    %2661 = vadd.xlane.f32.xlu0 %v2660
    %v2662 = vpop.xlane.xlu0 %2661
    %v2663 = vsel %vm993, %v2645, 0.0
    %2664 = vadd.xlane.f32.xlu0 %v2663
    %v2665 = vpop.xlane.xlu0 %2664
    %v2666 = vsel %vm993, %v2647, 0.0
    %2667 = vadd.xlane.f32.xlu0 %v2666
    %v2668 = vpop.xlane.xlu0 %2667
    %v2669 = vsel %vm993, %v2649, 0.0
    %2670 = vadd.xlane.f32.xlu0 %v2669
    %v2671 = vpop.xlane.xlu0 %2670
    %v2672 = vsel %vm993, %v2651, 0.0
    %2673 = vadd.xlane.f32.xlu0 %v2672
    %v2674 = vpop.xlane.xlu0 %2673
    %v2675 = vsel %vm993, %v2653, 0.0
    %2676 = vadd.xlane.f32.xlu0 %v2675
    %v2677 = vpop.xlane.xlu0 %2676
    %v2678 = vrcp.pop %v2656
    %v2679 = vrcp.pop %v2659
    %v2680 = vrcp.pop %v2662
    %v2681 = vrcp.pop %v2665
    %v2682 = vrcp.pop %v2668
    %v2683 = vrcp.pop %v2671
    %v2684 = vrcp.pop %v2674
    %v2685 = vrcp.pop %v2677
    %v2686 = vmul.f32 %v2639, %v2678
    %v2687 = vmul.f32 %v2641, %v2679
    %v2688 = vmul.f32 %v2643, %v2680
    %v2689 = vmul.f32 %v2645, %v2681
    %v2690 = vmul.f32 %v2647, %v2682
    %v2691 = vmul.f32 %v2649, %v2683
    %v2692 = vmul.f32 %v2651, %v2684
    %v2693 = vmul.f32 %v2653, %v2685
    %v2695 = vsel %vm993, %v2686, 0
    %2697 = vmatprep.subr.mxu0 0.0
    %2698 = vmatpush1.msra.mxu0 %v1960
    %2699 = vmatprep.subr.mxu0 0.0
    %2700 = vmatpush1.msra.mxu0 0.0
    %2701 = vmatprep.subr.mxu0 0.0
    %2702 = vmatpush1.msra.mxu0 0.0
    %2703 = vmatprep.subr.mxu0 0.0
    %2704 = vmatpush1.msra.mxu0 0.0
    %2705 = vmatprep.subr.mxu0 0.0
    %2706 = vmatpush1.msra.mxu0 0.0
    %2707 = vmatprep.subr.mxu0 0.0
    %2708 = vmatpush1.msra.mxu0 0.0
    %2709 = vmatprep.subr.mxu0 0.0
    %2710 = vmatpush1.msra.mxu0 0.0
    %2711 = vmatprep.subr.mxu0 0.0
    %2712 = vmatpush1.msra.mxu0 0.0
    %2713 = vmatprep.subr.mxu0 0.0
    %2714 = vmatpush1.msra.mxu0 0.0
    %2715 = vmatprep.subr.mxu0 0.0
    %2716 = vmatpush1.msra.mxu0 0.0
    %2717 = vmatprep.subr.mxu0 0.0
    %2718 = vmatpush1.msra.mxu0 0.0
    %2719 = vmatprep.subr.mxu0 0.0
    %2720 = vmatpush1.msra.mxu0 0.0
    %2721 = vmatprep.subr.mxu0 0.0
    %2722 = vmatpush1.msra.mxu0 0.0
    %2723 = vmatprep.subr.mxu0 0.0
    %2724 = vmatpush1.msra.mxu0 0.0
    %2725 = vmatprep.subr.mxu0 0.0
    %2726 = vmatpush1.msra.mxu0 0.0
    %2727 = vmatprep.subr.mxu0 0.0
    %2728 = vmatpush1.msra.mxu0 0.0
    %2729 = vmatprep.subr.mxu0 0.0
    %2730 = vmatpush1.msra.mxu0 0.0
    %2731 = vmatprep.subr.mxu0 0.0
    %2732 = vmatpush1.msra.mxu0 0.0
    %2733 = vmatprep.subr.mxu0 0.0
    %2734 = vmatpush1.msra.mxu0 0.0
    %2735 = vmatprep.subr.mxu0 0.0
    %2736 = vmatpush1.msra.mxu0 0.0
    %2737 = vmatprep.subr.mxu0 0.0
    %2738 = vmatpush1.msra.mxu0 0.0
    %2739 = vmatprep.subr.mxu0 0.0
    %2740 = vmatpush1.msra.mxu0 0.0
    %2741 = vmatprep.subr.mxu0 0.0
    %2742 = vmatpush1.msra.mxu0 0.0
    %2743 = vmatprep.subr.mxu0 0.0
    %2744 = vmatpush1.msra.mxu0 0.0
    %2745 = vmatprep.subr.mxu0 0.0
    %2746 = vmatpush1.msra.mxu0 0.0
    %2747 = vmatprep.subr.mxu0 0.0
    %2748 = vmatpush1.msra.mxu0 0.0
    %2749 = vmatprep.subr.mxu0 0.0
    %2750 = vmatpush1.msra.mxu0 0.0
    %2751 = vmatprep.subr.mxu0 0.0
    %2752 = vmatpush1.msra.mxu0 0.0
    %2753 = vmatprep.subr.mxu0 0.0
    %2754 = vmatpush1.msra.mxu0 0.0
    %2755 = vmatprep.subr.mxu0 0.0
    %2756 = vmatpush1.msra.mxu0 0.0
    %2757 = vmatprep.subr.mxu0 0.0
    %2758 = vmatpush1.msra.mxu0 0.0
    %2759 = vmatprep.subr.mxu0 0.0
    %2760 = vmatpush1.msra.mxu0 0.0
    %2761 = vmatprep.mubr.f32.mxu0 0.0
    %2762 = vmatmul.mubr.f32.gmra.mrb[0].mxu0 %v2695
    %v2763 = vpop.f32.mrb[0].mxu0
    %v2764 = vadd.f32 0.0, %v2763
    %v2765 = vpop.f32.mrb[0].mxu0
    %2766 = vdwg.mxu0
    %v2768 = vsel %vm993, %v2687, 0
    %2770 = vmatprep.subr.mxu0 0.0
    %2771 = vmatpush1.msra.mxu0 %v1965
    %2772 = vmatprep.subr.mxu0 0.0
    %2773 = vmatpush1.msra.mxu0 0.0
    %2774 = vmatprep.subr.mxu0 0.0
    %2775 = vmatpush1.msra.mxu0 0.0
    %2776 = vmatprep.subr.mxu0 0.0
    %2777 = vmatpush1.msra.mxu0 0.0
    %2778 = vmatprep.subr.mxu0 0.0
    %2779 = vmatpush1.msra.mxu0 0.0
    %2780 = vmatprep.subr.mxu0 0.0
    %2781 = vmatpush1.msra.mxu0 0.0
    %2782 = vmatprep.subr.mxu0 0.0
    %2783 = vmatpush1.msra.mxu0 0.0
    %2784 = vmatprep.subr.mxu0 0.0
    %2785 = vmatpush1.msra.mxu0 0.0
    %2786 = vmatprep.subr.mxu0 0.0
    %2787 = vmatpush1.msra.mxu0 0.0
    %2788 = vmatprep.subr.mxu0 0.0
    %2789 = vmatpush1.msra.mxu0 0.0
    %2790 = vmatprep.subr.mxu0 0.0
    %2791 = vmatpush1.msra.mxu0 0.0
    %2792 = vmatprep.subr.mxu0 0.0
    %2793 = vmatpush1.msra.mxu0 0.0
    %2794 = vmatprep.subr.mxu0 0.0
    %2795 = vmatpush1.msra.mxu0 0.0
    %2796 = vmatprep.subr.mxu0 0.0
    %2797 = vmatpush1.msra.mxu0 0.0
    %2798 = vmatprep.subr.mxu0 0.0
    %2799 = vmatpush1.msra.mxu0 0.0
    %2800 = vmatprep.subr.mxu0 0.0
    %2801 = vmatpush1.msra.mxu0 0.0
    %2802 = vmatprep.subr.mxu0 0.0
    %2803 = vmatpush1.msra.mxu0 0.0
    %2804 = vmatprep.subr.mxu0 0.0
    %2805 = vmatpush1.msra.mxu0 0.0
    %2806 = vmatprep.subr.mxu0 0.0
    %2807 = vmatpush1.msra.mxu0 0.0
    %2808 = vmatprep.subr.mxu0 0.0
    %2809 = vmatpush1.msra.mxu0 0.0
    %2810 = vmatprep.subr.mxu0 0.0
    %2811 = vmatpush1.msra.mxu0 0.0
    %2812 = vmatprep.subr.mxu0 0.0
    %2813 = vmatpush1.msra.mxu0 0.0
    %2814 = vmatprep.subr.mxu0 0.0
    %2815 = vmatpush1.msra.mxu0 0.0
    %2816 = vmatprep.subr.mxu0 0.0
    %2817 = vmatpush1.msra.mxu0 0.0
    %2818 = vmatprep.subr.mxu0 0.0
    %2819 = vmatpush1.msra.mxu0 0.0
    %2820 = vmatprep.subr.mxu0 0.0
    %2821 = vmatpush1.msra.mxu0 0.0
    %2822 = vmatprep.subr.mxu0 0.0
    %2823 = vmatpush1.msra.mxu0 0.0
    %2824 = vmatprep.subr.mxu0 0.0
    %2825 = vmatpush1.msra.mxu0 0.0
    %2826 = vmatprep.subr.mxu0 0.0
    %2827 = vmatpush1.msra.mxu0 0.0
    %2828 = vmatprep.subr.mxu0 0.0
    %2829 = vmatpush1.msra.mxu0 0.0
    %2830 = vmatprep.subr.mxu0 0.0
    %2831 = vmatpush1.msra.mxu0 0.0
    %2832 = vmatprep.subr.mxu0 0.0
    %2833 = vmatpush1.msra.mxu0 0.0
    %2834 = vmatprep.mubr.f32.mxu0 0.0
    %2835 = vmatmul.mubr.f32.gmra.mrb[0].mxu0 %v2768
    %v2836 = vpop.f32.mrb[0].mxu0
    %v2837 = vadd.f32 0.0, %v2836
    %v2838 = vpop.f32.mrb[0].mxu0
    %2839 = vdwg.mxu0
    %v2841 = vsel %vm993, %v2688, 0
    %2843 = vmatprep.subr.mxu0 0.0
    %2844 = vmatpush1.msra.mxu0 %v1970
    %2845 = vmatprep.subr.mxu0 0.0
    %2846 = vmatpush1.msra.mxu0 0.0
    %2847 = vmatprep.subr.mxu0 0.0
    %2848 = vmatpush1.msra.mxu0 0.0
    %2849 = vmatprep.subr.mxu0 0.0
    %2850 = vmatpush1.msra.mxu0 0.0
    %2851 = vmatprep.subr.mxu0 0.0
    %2852 = vmatpush1.msra.mxu0 0.0
    %2853 = vmatprep.subr.mxu0 0.0
    %2854 = vmatpush1.msra.mxu0 0.0
    %2855 = vmatprep.subr.mxu0 0.0
    %2856 = vmatpush1.msra.mxu0 0.0
    %2857 = vmatprep.subr.mxu0 0.0
    %2858 = vmatpush1.msra.mxu0 0.0
    %2859 = vmatprep.subr.mxu0 0.0
    %2860 = vmatpush1.msra.mxu0 0.0
    %2861 = vmatprep.subr.mxu0 0.0
    %2862 = vmatpush1.msra.mxu0 0.0
    %2863 = vmatprep.subr.mxu0 0.0
    %2864 = vmatpush1.msra.mxu0 0.0
    %2865 = vmatprep.subr.mxu0 0.0
    %2866 = vmatpush1.msra.mxu0 0.0
    %2867 = vmatprep.subr.mxu0 0.0
    %2868 = vmatpush1.msra.mxu0 0.0
    %2869 = vmatprep.subr.mxu0 0.0
    %2870 = vmatpush1.msra.mxu0 0.0
    %2871 = vmatprep.subr.mxu0 0.0
    %2872 = vmatpush1.msra.mxu0 0.0
    %2873 = vmatprep.subr.mxu0 0.0
    %2874 = vmatpush1.msra.mxu0 0.0
    %2875 = vmatprep.subr.mxu0 0.0
    %2876 = vmatpush1.msra.mxu0 0.0
    %2877 = vmatprep.subr.mxu0 0.0
    %2878 = vmatpush1.msra.mxu0 0.0
    %2879 = vmatprep.subr.mxu0 0.0
    %2880 = vmatpush1.msra.mxu0 0.0
    %2881 = vmatprep.subr.mxu0 0.0
    %2882 = vmatpush1.msra.mxu0 0.0
    %2883 = vmatprep.subr.mxu0 0.0
    %2884 = vmatpush1.msra.mxu0 0.0
    %2885 = vmatprep.subr.mxu0 0.0
    %2886 = vmatpush1.msra.mxu0 0.0
    %2887 = vmatprep.subr.mxu0 0.0
    %2888 = vmatpush1.msra.mxu0 0.0
    %2889 = vmatprep.subr.mxu0 0.0
    %2890 = vmatpush1.msra.mxu0 0.0
    %2891 = vmatprep.subr.mxu0 0.0
    %2892 = vmatpush1.msra.mxu0 0.0
    %2893 = vmatprep.subr.mxu0 0.0
    %2894 = vmatpush1.msra.mxu0 0.0
    %2895 = vmatprep.subr.mxu0 0.0
    %2896 = vmatpush1.msra.mxu0 0.0
    %2897 = vmatprep.subr.mxu0 0.0
    %2898 = vmatpush1.msra.mxu0 0.0
    %2899 = vmatprep.subr.mxu0 0.0
    %2900 = vmatpush1.msra.mxu0 0.0
    %2901 = vmatprep.subr.mxu0 0.0
    %2902 = vmatpush1.msra.mxu0 0.0
    %2903 = vmatprep.subr.mxu0 0.0
    %2904 = vmatpush1.msra.mxu0 0.0
    %2905 = vmatprep.subr.mxu0 0.0
    %2906 = vmatpush1.msra.mxu0 0.0
    %2907 = vmatprep.mubr.f32.mxu0 0.0
    %2908 = vmatmul.mubr.f32.gmra.mrb[0].mxu0 %v2841
    %v2909 = vpop.f32.mrb[0].mxu0
    %v2910 = vadd.f32 0.0, %v2909
    %v2911 = vpop.f32.mrb[0].mxu0
    %2912 = vdwg.mxu0
    %v2914 = vsel %vm993, %v2689, 0
    %2916 = vmatprep.subr.mxu0 0.0
    %2917 = vmatpush1.msra.mxu0 %v1975
    %2918 = vmatprep.subr.mxu0 0.0
    %2919 = vmatpush1.msra.mxu0 0.0
    %2920 = vmatprep.subr.mxu0 0.0
    %2921 = vmatpush1.msra.mxu0 0.0
    %2922 = vmatprep.subr.mxu0 0.0
    %2923 = vmatpush1.msra.mxu0 0.0
    %2924 = vmatprep.subr.mxu0 0.0
    %2925 = vmatpush1.msra.mxu0 0.0
    %2926 = vmatprep.subr.mxu0 0.0
    %2927 = vmatpush1.msra.mxu0 0.0
    %2928 = vmatprep.subr.mxu0 0.0
    %2929 = vmatpush1.msra.mxu0 0.0
    %2930 = vmatprep.subr.mxu0 0.0
    %2931 = vmatpush1.msra.mxu0 0.0
    %2932 = vmatprep.subr.mxu0 0.0
    %2933 = vmatpush1.msra.mxu0 0.0
    %2934 = vmatprep.subr.mxu0 0.0
    %2935 = vmatpush1.msra.mxu0 0.0
    %2936 = vmatprep.subr.mxu0 0.0
    %2937 = vmatpush1.msra.mxu0 0.0
    %2938 = vmatprep.subr.mxu0 0.0
    %2939 = vmatpush1.msra.mxu0 0.0
    %2940 = vmatprep.subr.mxu0 0.0
    %2941 = vmatpush1.msra.mxu0 0.0
    %2942 = vmatprep.subr.mxu0 0.0
    %2943 = vmatpush1.msra.mxu0 0.0
    %2944 = vmatprep.subr.mxu0 0.0
    %2945 = vmatpush1.msra.mxu0 0.0
    %2946 = vmatprep.subr.mxu0 0.0
    %2947 = vmatpush1.msra.mxu0 0.0
    %2948 = vmatprep.subr.mxu0 0.0
    %2949 = vmatpush1.msra.mxu0 0.0
    %2950 = vmatprep.subr.mxu0 0.0
    %2951 = vmatpush1.msra.mxu0 0.0
    %2952 = vmatprep.subr.mxu0 0.0
    %2953 = vmatpush1.msra.mxu0 0.0
    %2954 = vmatprep.subr.mxu0 0.0
    %2955 = vmatpush1.msra.mxu0 0.0
    %2956 = vmatprep.subr.mxu0 0.0
    %2957 = vmatpush1.msra.mxu0 0.0
    %2958 = vmatprep.subr.mxu0 0.0
    %2959 = vmatpush1.msra.mxu0 0.0
    %2960 = vmatprep.subr.mxu0 0.0
    %2961 = vmatpush1.msra.mxu0 0.0
    %2962 = vmatprep.subr.mxu0 0.0
    %2963 = vmatpush1.msra.mxu0 0.0
    %2964 = vmatprep.subr.mxu0 0.0
    %2965 = vmatpush1.msra.mxu0 0.0
    %2966 = vmatprep.subr.mxu0 0.0
    %2967 = vmatpush1.msra.mxu0 0.0
    %2968 = vmatprep.subr.mxu0 0.0
    %2969 = vmatpush1.msra.mxu0 0.0
    %2970 = vmatprep.subr.mxu0 0.0
    %2971 = vmatpush1.msra.mxu0 0.0
    %2972 = vmatprep.subr.mxu0 0.0
    %2973 = vmatpush1.msra.mxu0 0.0
    %2974 = vmatprep.subr.mxu0 0.0
    %2975 = vmatpush1.msra.mxu0 0.0
    %2976 = vmatprep.subr.mxu0 0.0
    %2977 = vmatpush1.msra.mxu0 0.0
    %2978 = vmatprep.subr.mxu0 0.0
    %2979 = vmatpush1.msra.mxu0 0.0
    %2980 = vmatprep.mubr.f32.mxu0 0.0
    %2981 = vmatmul.mubr.f32.gmra.mrb[0].mxu0 %v2914
    %v2982 = vpop.f32.mrb[0].mxu0
    %v2983 = vadd.f32 0.0, %v2982
    %v2984 = vpop.f32.mrb[0].mxu0
    %2985 = vdwg.mxu0
    %v2987 = vsel %vm993, %v2690, 0
    %2989 = vmatprep.subr.mxu0 0.0
    %2990 = vmatpush1.msra.mxu0 %v1980
    %2991 = vmatprep.subr.mxu0 0.0
    %2992 = vmatpush1.msra.mxu0 0.0
    %2993 = vmatprep.subr.mxu0 0.0
    %2994 = vmatpush1.msra.mxu0 0.0
    %2995 = vmatprep.subr.mxu0 0.0
    %2996 = vmatpush1.msra.mxu0 0.0
    %2997 = vmatprep.subr.mxu0 0.0
    %2998 = vmatpush1.msra.mxu0 0.0
    %2999 = vmatprep.subr.mxu0 0.0
    %3000 = vmatpush1.msra.mxu0 0.0
    %3001 = vmatprep.subr.mxu0 0.0
    %3002 = vmatpush1.msra.mxu0 0.0
    %3003 = vmatprep.subr.mxu0 0.0
    %3004 = vmatpush1.msra.mxu0 0.0
    %3005 = vmatprep.subr.mxu0 0.0
    %3006 = vmatpush1.msra.mxu0 0.0
    %3007 = vmatprep.subr.mxu0 0.0
    %3008 = vmatpush1.msra.mxu0 0.0
    %3009 = vmatprep.subr.mxu0 0.0
    %3010 = vmatpush1.msra.mxu0 0.0
    %3011 = vmatprep.subr.mxu0 0.0
    %3012 = vmatpush1.msra.mxu0 0.0
    %3013 = vmatprep.subr.mxu0 0.0
    %3014 = vmatpush1.msra.mxu0 0.0
    %3015 = vmatprep.subr.mxu0 0.0
    %3016 = vmatpush1.msra.mxu0 0.0
    %3017 = vmatprep.subr.mxu0 0.0
    %3018 = vmatpush1.msra.mxu0 0.0
    %3019 = vmatprep.subr.mxu0 0.0
    %3020 = vmatpush1.msra.mxu0 0.0
    %3021 = vmatprep.subr.mxu0 0.0
    %3022 = vmatpush1.msra.mxu0 0.0
    %3023 = vmatprep.subr.mxu0 0.0
    %3024 = vmatpush1.msra.mxu0 0.0
    %3025 = vmatprep.subr.mxu0 0.0
    %3026 = vmatpush1.msra.mxu0 0.0
    %3027 = vmatprep.subr.mxu0 0.0
    %3028 = vmatpush1.msra.mxu0 0.0
    %3029 = vmatprep.subr.mxu0 0.0
    %3030 = vmatpush1.msra.mxu0 0.0
    %3031 = vmatprep.subr.mxu0 0.0
    %3032 = vmatpush1.msra.mxu0 0.0
    %3033 = vmatprep.subr.mxu0 0.0
    %3034 = vmatpush1.msra.mxu0 0.0
    %3035 = vmatprep.subr.mxu0 0.0
    %3036 = vmatpush1.msra.mxu0 0.0
    %3037 = vmatprep.subr.mxu0 0.0
    %3038 = vmatpush1.msra.mxu0 0.0
    %3039 = vmatprep.subr.mxu0 0.0
    %3040 = vmatpush1.msra.mxu0 0.0
    %3041 = vmatprep.subr.mxu0 0.0
    %3042 = vmatpush1.msra.mxu0 0.0
    %3043 = vmatprep.subr.mxu0 0.0
    %3044 = vmatpush1.msra.mxu0 0.0
    %3045 = vmatprep.subr.mxu0 0.0
    %3046 = vmatpush1.msra.mxu0 0.0
    %3047 = vmatprep.subr.mxu0 0.0
    %3048 = vmatpush1.msra.mxu0 0.0
    %3049 = vmatprep.subr.mxu0 0.0
    %3050 = vmatpush1.msra.mxu0 0.0
    %3051 = vmatprep.subr.mxu0 0.0
    %3052 = vmatpush1.msra.mxu0 0.0
    %3053 = vmatprep.mubr.f32.mxu0 0.0
    %3054 = vmatmul.mubr.f32.gmra.mrb[0].mxu0 %v2987
    %v3055 = vpop.f32.mrb[0].mxu0
    %v3056 = vadd.f32 0.0, %v3055
    %v3057 = vpop.f32.mrb[0].mxu0
    %3058 = vdwg.mxu0
    %v3060 = vsel %vm993, %v2691, 0
    %3062 = vmatprep.subr.mxu0 0.0
    %3063 = vmatpush1.msra.mxu0 %v1985
    %3064 = vmatprep.subr.mxu0 0.0
    %3065 = vmatpush1.msra.mxu0 0.0
    %3066 = vmatprep.subr.mxu0 0.0
    %3067 = vmatpush1.msra.mxu0 0.0
    %3068 = vmatprep.subr.mxu0 0.0
    %3069 = vmatpush1.msra.mxu0 0.0
    %3070 = vmatprep.subr.mxu0 0.0
    %3071 = vmatpush1.msra.mxu0 0.0
    %3072 = vmatprep.subr.mxu0 0.0
    %3073 = vmatpush1.msra.mxu0 0.0
    %3074 = vmatprep.subr.mxu0 0.0
    %3075 = vmatpush1.msra.mxu0 0.0
    %3076 = vmatprep.subr.mxu0 0.0
    %3077 = vmatpush1.msra.mxu0 0.0
    %3078 = vmatprep.subr.mxu0 0.0
    %3079 = vmatpush1.msra.mxu0 0.0
    %3080 = vmatprep.subr.mxu0 0.0
    %3081 = vmatpush1.msra.mxu0 0.0
    %3082 = vmatprep.subr.mxu0 0.0
    %3083 = vmatpush1.msra.mxu0 0.0
    %3084 = vmatprep.subr.mxu0 0.0
    %3085 = vmatpush1.msra.mxu0 0.0
    %3086 = vmatprep.subr.mxu0 0.0
    %3087 = vmatpush1.msra.mxu0 0.0
    %3088 = vmatprep.subr.mxu0 0.0
    %3089 = vmatpush1.msra.mxu0 0.0
    %3090 = vmatprep.subr.mxu0 0.0
    %3091 = vmatpush1.msra.mxu0 0.0
    %3092 = vmatprep.subr.mxu0 0.0
    %3093 = vmatpush1.msra.mxu0 0.0
    %3094 = vmatprep.subr.mxu0 0.0
    %3095 = vmatpush1.msra.mxu0 0.0
    %3096 = vmatprep.subr.mxu0 0.0
    %3097 = vmatpush1.msra.mxu0 0.0
    %3098 = vmatprep.subr.mxu0 0.0
    %3099 = vmatpush1.msra.mxu0 0.0
    %3100 = vmatprep.subr.mxu0 0.0
    %3101 = vmatpush1.msra.mxu0 0.0
    %3102 = vmatprep.subr.mxu0 0.0
    %3103 = vmatpush1.msra.mxu0 0.0
    %3104 = vmatprep.subr.mxu0 0.0
    %3105 = vmatpush1.msra.mxu0 0.0
    %3106 = vmatprep.subr.mxu0 0.0
    %3107 = vmatpush1.msra.mxu0 0.0
    %3108 = vmatprep.subr.mxu0 0.0
    %3109 = vmatpush1.msra.mxu0 0.0
    %3110 = vmatprep.subr.mxu0 0.0
    %3111 = vmatpush1.msra.mxu0 0.0
    %3112 = vmatprep.subr.mxu0 0.0
    %3113 = vmatpush1.msra.mxu0 0.0
    %3114 = vmatprep.subr.mxu0 0.0
    %3115 = vmatpush1.msra.mxu0 0.0
    %3116 = vmatprep.subr.mxu0 0.0
    %3117 = vmatpush1.msra.mxu0 0.0
    %3118 = vmatprep.subr.mxu0 0.0
    %3119 = vmatpush1.msra.mxu0 0.0
    %3120 = vmatprep.subr.mxu0 0.0
    %3121 = vmatpush1.msra.mxu0 0.0
    %3122 = vmatprep.subr.mxu0 0.0
    %3123 = vmatpush1.msra.mxu0 0.0
    %3124 = vmatprep.subr.mxu0 0.0
    %3125 = vmatpush1.msra.mxu0 0.0
    %3126 = vmatprep.mubr.f32.mxu0 0.0
    %3127 = vmatmul.mubr.f32.gmra.mrb[0].mxu0 %v3060
    %v3128 = vpop.f32.mrb[0].mxu0
    %v3129 = vadd.f32 0.0, %v3128
    %v3130 = vpop.f32.mrb[0].mxu0
    %3131 = vdwg.mxu0
    %v3133 = vsel %vm993, %v2692, 0
    %3135 = vmatprep.subr.mxu0 0.0
    %3136 = vmatpush1.msra.mxu0 %v1990
    %3137 = vmatprep.subr.mxu0 0.0
    %3138 = vmatpush1.msra.mxu0 0.0
    %3139 = vmatprep.subr.mxu0 0.0
    %3140 = vmatpush1.msra.mxu0 0.0
    %3141 = vmatprep.subr.mxu0 0.0
    %3142 = vmatpush1.msra.mxu0 0.0
    %3143 = vmatprep.subr.mxu0 0.0
    %3144 = vmatpush1.msra.mxu0 0.0
    %3145 = vmatprep.subr.mxu0 0.0
    %3146 = vmatpush1.msra.mxu0 0.0
    %3147 = vmatprep.subr.mxu0 0.0
    %3148 = vmatpush1.msra.mxu0 0.0
    %3149 = vmatprep.subr.mxu0 0.0
    %3150 = vmatpush1.msra.mxu0 0.0
    %3151 = vmatprep.subr.mxu0 0.0
    %3152 = vmatpush1.msra.mxu0 0.0
    %3153 = vmatprep.subr.mxu0 0.0
    %3154 = vmatpush1.msra.mxu0 0.0
    %3155 = vmatprep.subr.mxu0 0.0
    %3156 = vmatpush1.msra.mxu0 0.0
    %3157 = vmatprep.subr.mxu0 0.0
    %3158 = vmatpush1.msra.mxu0 0.0
    %3159 = vmatprep.subr.mxu0 0.0
    %3160 = vmatpush1.msra.mxu0 0.0
    %3161 = vmatprep.subr.mxu0 0.0
    %3162 = vmatpush1.msra.mxu0 0.0
    %3163 = vmatprep.subr.mxu0 0.0
    %3164 = vmatpush1.msra.mxu0 0.0
    %3165 = vmatprep.subr.mxu0 0.0
    %3166 = vmatpush1.msra.mxu0 0.0
    %3167 = vmatprep.subr.mxu0 0.0
    %3168 = vmatpush1.msra.mxu0 0.0
    %3169 = vmatprep.subr.mxu0 0.0
    %3170 = vmatpush1.msra.mxu0 0.0
    %3171 = vmatprep.subr.mxu0 0.0
    %3172 = vmatpush1.msra.mxu0 0.0
    %3173 = vmatprep.subr.mxu0 0.0
    %3174 = vmatpush1.msra.mxu0 0.0
    %3175 = vmatprep.subr.mxu0 0.0
    %3176 = vmatpush1.msra.mxu0 0.0
    %3177 = vmatprep.subr.mxu0 0.0
    %3178 = vmatpush1.msra.mxu0 0.0
    %3179 = vmatprep.subr.mxu0 0.0
    %3180 = vmatpush1.msra.mxu0 0.0
    %3181 = vmatprep.subr.mxu0 0.0
    %3182 = vmatpush1.msra.mxu0 0.0
    %3183 = vmatprep.subr.mxu0 0.0
    %3184 = vmatpush1.msra.mxu0 0.0
    %3185 = vmatprep.subr.mxu0 0.0
    %3186 = vmatpush1.msra.mxu0 0.0
    %3187 = vmatprep.subr.mxu0 0.0
    %3188 = vmatpush1.msra.mxu0 0.0
    %3189 = vmatprep.subr.mxu0 0.0
    %3190 = vmatpush1.msra.mxu0 0.0
    %3191 = vmatprep.subr.mxu0 0.0
    %3192 = vmatpush1.msra.mxu0 0.0
    %3193 = vmatprep.subr.mxu0 0.0
    %3194 = vmatpush1.msra.mxu0 0.0
    %3195 = vmatprep.subr.mxu0 0.0
    %3196 = vmatpush1.msra.mxu0 0.0
    %3197 = vmatprep.subr.mxu0 0.0
    %3198 = vmatpush1.msra.mxu0 0.0
    %3199 = vmatprep.mubr.f32.mxu0 0.0
    %3200 = vmatmul.mubr.f32.gmra.mrb[0].mxu0 %v3133
    %v3201 = vpop.f32.mrb[0].mxu0
    %v3202 = vadd.f32 0.0, %v3201
    %v3203 = vpop.f32.mrb[0].mxu0
    %3204 = vdwg.mxu0
    %v3206 = vsel %vm993, %v2693, 0
    %3208 = vmatprep.subr.mxu0 0.0
    %3209 = vmatpush1.msra.mxu0 %v1995
    %3210 = vmatprep.subr.mxu0 0.0
    %3211 = vmatpush1.msra.mxu0 0.0
    %3212 = vmatprep.subr.mxu0 0.0
    %3213 = vmatpush1.msra.mxu0 0.0
    %3214 = vmatprep.subr.mxu0 0.0
    %3215 = vmatpush1.msra.mxu0 0.0
    %3216 = vmatprep.subr.mxu0 0.0
    %3217 = vmatpush1.msra.mxu0 0.0
    %3218 = vmatprep.subr.mxu0 0.0
    %3219 = vmatpush1.msra.mxu0 0.0
    %3220 = vmatprep.subr.mxu0 0.0
    %3221 = vmatpush1.msra.mxu0 0.0
    %3222 = vmatprep.subr.mxu0 0.0
    %3223 = vmatpush1.msra.mxu0 0.0
    %3224 = vmatprep.subr.mxu0 0.0
    %3225 = vmatpush1.msra.mxu0 0.0
    %3226 = vmatprep.subr.mxu0 0.0
    %3227 = vmatpush1.msra.mxu0 0.0
    %3228 = vmatprep.subr.mxu0 0.0
    %3229 = vmatpush1.msra.mxu0 0.0
    %3230 = vmatprep.subr.mxu0 0.0
    %3231 = vmatpush1.msra.mxu0 0.0
    %3232 = vmatprep.subr.mxu0 0.0
    %3233 = vmatpush1.msra.mxu0 0.0
    %3234 = vmatprep.subr.mxu0 0.0
    %3235 = vmatpush1.msra.mxu0 0.0
    %3236 = vmatprep.subr.mxu0 0.0
    %3237 = vmatpush1.msra.mxu0 0.0
    %3238 = vmatprep.subr.mxu0 0.0
    %3239 = vmatpush1.msra.mxu0 0.0
    %3240 = vmatprep.subr.mxu0 0.0
    %3241 = vmatpush1.msra.mxu0 0.0
    %3242 = vmatprep.subr.mxu0 0.0
    %3243 = vmatpush1.msra.mxu0 0.0
    %3244 = vmatprep.subr.mxu0 0.0
    %3245 = vmatpush1.msra.mxu0 0.0
    %3246 = vmatprep.subr.mxu0 0.0
    %3247 = vmatpush1.msra.mxu0 0.0
    %3248 = vmatprep.subr.mxu0 0.0
    %3249 = vmatpush1.msra.mxu0 0.0
    %3250 = vmatprep.subr.mxu0 0.0
    %3251 = vmatpush1.msra.mxu0 0.0
    %3252 = vmatprep.subr.mxu0 0.0
    %3253 = vmatpush1.msra.mxu0 0.0
    %3254 = vmatprep.subr.mxu0 0.0
    %3255 = vmatpush1.msra.mxu0 0.0
    %3256 = vmatprep.subr.mxu0 0.0
    %3257 = vmatpush1.msra.mxu0 0.0
    %3258 = vmatprep.subr.mxu0 0.0
    %3259 = vmatpush1.msra.mxu0 0.0
    %3260 = vmatprep.subr.mxu0 0.0
    %3261 = vmatpush1.msra.mxu0 0.0
    %3262 = vmatprep.subr.mxu0 0.0
    %3263 = vmatpush1.msra.mxu0 0.0
    %3264 = vmatprep.subr.mxu0 0.0
    %3265 = vmatpush1.msra.mxu0 0.0
    %3266 = vmatprep.subr.mxu0 0.0
    %3267 = vmatpush1.msra.mxu0 0.0
    %3268 = vmatprep.subr.mxu0 0.0
    %3269 = vmatpush1.msra.mxu0 0.0
    %3270 = vmatprep.subr.mxu0 0.0
    %3271 = vmatpush1.msra.mxu0 0.0
    %3272 = vmatprep.mubr.f32.mxu0 0.0
    %3273 = vmatmul.mubr.f32.gmra.mrb[0].mxu0 %v3206
    %v3274 = vpop.f32.mrb[0].mxu0
    %v3275 = vadd.f32 0.0, %v3274
    %v3276 = vpop.f32.mrb[0].mxu0
    %3277 = vdwg.mxu0
    %s3278 = scalar_lea.vmem %s4, 16
    %v3279 = vld [vmem:[%s3278] sm:$0xff]
    %v3280 = vld [vmem:[%s3278 + $0x8] sm:$0xff]
    %v3282 = vsel %vm384, %v2764, 0
    %v3285 = vsel %vm384, %v2837, 0
    %v3288 = vsel %vm384, %v2910, 0
    %v3291 = vsel %vm384, %v2983, 0
    %v3294 = vsel %vm384, %v3056, 0
    %v3297 = vsel %vm384, %v3129, 0
    %v3300 = vsel %vm384, %v3202, 0
    %v3303 = vsel %vm384, %v3275, 0
    %3305 = vmatprep.subr.mxu0 0.0
    %3306 = vmatpush1.msra.mxu0 %v3279
    %3307 = vmatprep.subr.mxu0 0.0
    %3308 = vmatpush1.msra.mxu0 %v3280
    %3309 = vmatprep.subr.mxu0 0.0
    %3310 = vmatpush1.msra.mxu0 0.0
    %3311 = vmatprep.subr.mxu0 0.0
    %3312 = vmatpush1.msra.mxu0 0.0
    %3313 = vmatprep.subr.mxu0 0.0
    %3314 = vmatpush1.msra.mxu0 0.0
    %3315 = vmatprep.subr.mxu0 0.0
    %3316 = vmatpush1.msra.mxu0 0.0
    %3317 = vmatprep.subr.mxu0 0.0
    %3318 = vmatpush1.msra.mxu0 0.0
    %3319 = vmatprep.subr.mxu0 0.0
    %3320 = vmatpush1.msra.mxu0 0.0
    %3321 = vmatprep.subr.mxu0 0.0
    %3322 = vmatpush1.msra.mxu0 0.0
    %3323 = vmatprep.subr.mxu0 0.0
    %3324 = vmatpush1.msra.mxu0 0.0
    %3325 = vmatprep.subr.mxu0 0.0
    %3326 = vmatpush1.msra.mxu0 0.0
    %3327 = vmatprep.subr.mxu0 0.0
    %3328 = vmatpush1.msra.mxu0 0.0
    %3329 = vmatprep.subr.mxu0 0.0
    %3330 = vmatpush1.msra.mxu0 0.0
    %3331 = vmatprep.subr.mxu0 0.0
    %3332 = vmatpush1.msra.mxu0 0.0
    %3333 = vmatprep.subr.mxu0 0.0
    %3334 = vmatpush1.msra.mxu0 0.0
    %3335 = vmatprep.subr.mxu0 0.0
    %3336 = vmatpush1.msra.mxu0 0.0
    %3337 = vmatprep.subr.mxu0 0.0
    %3338 = vmatpush1.msra.mxu0 0.0
    %3339 = vmatprep.subr.mxu0 0.0
    %3340 = vmatpush1.msra.mxu0 0.0
    %3341 = vmatprep.subr.mxu0 0.0
    %3342 = vmatpush1.msra.mxu0 0.0
    %3343 = vmatprep.subr.mxu0 0.0
    %3344 = vmatpush1.msra.mxu0 0.0
    %3345 = vmatprep.subr.mxu0 0.0
    %3346 = vmatpush1.msra.mxu0 0.0
    %3347 = vmatprep.subr.mxu0 0.0
    %3348 = vmatpush1.msra.mxu0 0.0
    %3349 = vmatprep.subr.mxu0 0.0
    %3350 = vmatpush1.msra.mxu0 0.0
    %3351 = vmatprep.subr.mxu0 0.0
    %3352 = vmatpush1.msra.mxu0 0.0
    %3353 = vmatprep.subr.mxu0 0.0
    %3354 = vmatpush1.msra.mxu0 0.0
    %3355 = vmatprep.subr.mxu0 0.0
    %3356 = vmatpush1.msra.mxu0 0.0
    %3357 = vmatprep.subr.mxu0 0.0
    %3358 = vmatpush1.msra.mxu0 0.0
    %3359 = vmatprep.subr.mxu0 0.0
    %3360 = vmatpush1.msra.mxu0 0.0
    %3361 = vmatprep.subr.mxu0 0.0
    %3362 = vmatpush1.msra.mxu0 0.0
    %3363 = vmatprep.subr.mxu0 0.0
    %3364 = vmatpush1.msra.mxu0 0.0
    %3365 = vmatprep.subr.mxu0 0.0
    %3366 = vmatpush1.msra.mxu0 0.0
    %3367 = vmatprep.subr.mxu0 0.0
    %3368 = vmatpush1.msra.mxu0 0.0
    %3369 = vmatprep.mubr.f32.mxu0 0.0
    %3370 = vmatmul.mubr.f32.gmra.mrb[0].mxu0 %v3282
    %v3371 = vpop.f32.mrb[0].mxu0
    %v3372 = vadd.f32 0.0, %v3371
    %v3373 = vpop.f32.mrb[0].mxu0
    %3374 = vmatprep.mubr.f32.mxu0 0.0
    %3375 = vmatmul.mubr.f32.gmra.mrb[0].mxu0 %v3285
    %v3376 = vpop.f32.mrb[0].mxu0
    %v3377 = vadd.f32 0.0, %v3376
    %v3378 = vpop.f32.mrb[0].mxu0
    %3379 = vmatprep.mubr.f32.mxu0 0.0
    %3380 = vmatmul.mubr.f32.gmra.mrb[0].mxu0 %v3288
    %v3381 = vpop.f32.mrb[0].mxu0
    %v3382 = vadd.f32 0.0, %v3381
    %v3383 = vpop.f32.mrb[0].mxu0
    %3384 = vmatprep.mubr.f32.mxu0 0.0
    %3385 = vmatmul.mubr.f32.gmra.mrb[0].mxu0 %v3291
    %v3386 = vpop.f32.mrb[0].mxu0
    %v3387 = vadd.f32 0.0, %v3386
    %v3388 = vpop.f32.mrb[0].mxu0
    %3389 = vmatprep.mubr.f32.mxu0 0.0
    %3390 = vmatmul.mubr.f32.gmra.mrb[0].mxu0 %v3294
    %v3391 = vpop.f32.mrb[0].mxu0
    %v3392 = vadd.f32 0.0, %v3391
    %v3393 = vpop.f32.mrb[0].mxu0
    %3394 = vmatprep.mubr.f32.mxu0 0.0
    %3395 = vmatmul.mubr.f32.gmra.mrb[0].mxu0 %v3297
    %v3396 = vpop.f32.mrb[0].mxu0
    %v3397 = vadd.f32 0.0, %v3396
    %v3398 = vpop.f32.mrb[0].mxu0
    %3399 = vmatprep.mubr.f32.mxu0 0.0
    %3400 = vmatmul.mubr.f32.gmra.mrb[0].mxu0 %v3300
    %v3401 = vpop.f32.mrb[0].mxu0
    %v3402 = vadd.f32 0.0, %v3401
    %v3403 = vpop.f32.mrb[0].mxu0
    %3404 = vmatprep.mubr.f32.mxu0 0.0
    %3405 = vmatmul.mubr.f32.gmra.mrb[0].mxu0 %v3303
    %v3406 = vpop.f32.mrb[0].mxu0
    %v3407 = vadd.f32 0.0, %v3406
    %v3408 = vpop.f32.mrb[0].mxu0
    %3409 = vdwg.mxu0
    %v3411 = vsel %vm384, %v1152, 0
    %v3414 = vsel %vm384, %v1225, 0
    %v3417 = vsel %vm384, %v1298, 0
    %v3420 = vsel %vm384, %v1371, 0
    %v3423 = vsel %vm384, %v1444, 0
    %v3426 = vsel %vm384, %v1517, 0
    %v3429 = vsel %vm384, %v1590, 0
    %v3432 = vsel %vm384, %v1663, 0
    %3434 = vmatprep.subr.mxu0 0.0
    %3435 = vmatpush1.msra.mxu0 %v1666
    %3436 = vmatprep.subr.mxu0 0.0
    %3437 = vmatpush1.msra.mxu0 %v1667
    %3438 = vmatprep.subr.mxu0 0.0
    %3439 = vmatpush1.msra.mxu0 0.0
    %3440 = vmatprep.subr.mxu0 0.0
    %3441 = vmatpush1.msra.mxu0 0.0
    %3442 = vmatprep.subr.mxu0 0.0
    %3443 = vmatpush1.msra.mxu0 0.0
    %3444 = vmatprep.subr.mxu0 0.0
    %3445 = vmatpush1.msra.mxu0 0.0
    %3446 = vmatprep.subr.mxu0 0.0
    %3447 = vmatpush1.msra.mxu0 0.0
    %3448 = vmatprep.subr.mxu0 0.0
    %3449 = vmatpush1.msra.mxu0 0.0
    %3450 = vmatprep.subr.mxu0 0.0
    %3451 = vmatpush1.msra.mxu0 0.0
    %3452 = vmatprep.subr.mxu0 0.0
    %3453 = vmatpush1.msra.mxu0 0.0
    %3454 = vmatprep.subr.mxu0 0.0
    %3455 = vmatpush1.msra.mxu0 0.0
    %3456 = vmatprep.subr.mxu0 0.0
    %3457 = vmatpush1.msra.mxu0 0.0
    %3458 = vmatprep.subr.mxu0 0.0
    %3459 = vmatpush1.msra.mxu0 0.0
    %3460 = vmatprep.subr.mxu0 0.0
    %3461 = vmatpush1.msra.mxu0 0.0
    %3462 = vmatprep.subr.mxu0 0.0
    %3463 = vmatpush1.msra.mxu0 0.0
    %3464 = vmatprep.subr.mxu0 0.0
    %3465 = vmatpush1.msra.mxu0 0.0
    %3466 = vmatprep.subr.mxu0 0.0
    %3467 = vmatpush1.msra.mxu0 0.0
    %3468 = vmatprep.subr.mxu0 0.0
    %3469 = vmatpush1.msra.mxu0 0.0
    %3470 = vmatprep.subr.mxu0 0.0
    %3471 = vmatpush1.msra.mxu0 0.0
    %3472 = vmatprep.subr.mxu0 0.0
    %3473 = vmatpush1.msra.mxu0 0.0
    %3474 = vmatprep.subr.mxu0 0.0
    %3475 = vmatpush1.msra.mxu0 0.0
    %3476 = vmatprep.subr.mxu0 0.0
    %3477 = vmatpush1.msra.mxu0 0.0
    %3478 = vmatprep.subr.mxu0 0.0
    %3479 = vmatpush1.msra.mxu0 0.0
    %3480 = vmatprep.subr.mxu0 0.0
    %3481 = vmatpush1.msra.mxu0 0.0
    %3482 = vmatprep.subr.mxu0 0.0
    %3483 = vmatpush1.msra.mxu0 0.0
    %3484 = vmatprep.subr.mxu0 0.0
    %3485 = vmatpush1.msra.mxu0 0.0
    %3486 = vmatprep.subr.mxu0 0.0
    %3487 = vmatpush1.msra.mxu0 0.0
    %3488 = vmatprep.subr.mxu0 0.0
    %3489 = vmatpush1.msra.mxu0 0.0
    %3490 = vmatprep.subr.mxu0 0.0
    %3491 = vmatpush1.msra.mxu0 0.0
    %3492 = vmatprep.subr.mxu0 0.0
    %3493 = vmatpush1.msra.mxu0 0.0
    %3494 = vmatprep.subr.mxu0 0.0
    %3495 = vmatpush1.msra.mxu0 0.0
    %3496 = vmatprep.subr.mxu0 0.0
    %3497 = vmatpush1.msra.mxu0 0.0
    %3498 = vmatprep.mubr.f32.mxu0 0.0
    %3499 = vmatmul.mubr.f32.gmra.mrb[0].mxu0 %v3411
    %v3500 = vpop.f32.mrb[0].mxu0
    %v3501 = vadd.f32 %v3372, %v3500
    %v3502 = vpop.f32.mrb[0].mxu0
    %3503 = vmatprep.mubr.f32.mxu0 0.0
    %3504 = vmatmul.mubr.f32.gmra.mrb[0].mxu0 %v3414
    %v3505 = vpop.f32.mrb[0].mxu0
    %v3506 = vadd.f32 %v3377, %v3505
    %v3507 = vpop.f32.mrb[0].mxu0
    %3508 = vmatprep.mubr.f32.mxu0 0.0
    %3509 = vmatmul.mubr.f32.gmra.mrb[0].mxu0 %v3417
    %v3510 = vpop.f32.mrb[0].mxu0
    %v3511 = vadd.f32 %v3382, %v3510
    %v3512 = vpop.f32.mrb[0].mxu0
    %3513 = vmatprep.mubr.f32.mxu0 0.0
    %3514 = vmatmul.mubr.f32.gmra.mrb[0].mxu0 %v3420
    %v3515 = vpop.f32.mrb[0].mxu0
    %v3516 = vadd.f32 %v3387, %v3515
    %v3517 = vpop.f32.mrb[0].mxu0
    %3518 = vmatprep.mubr.f32.mxu0 0.0
    %3519 = vmatmul.mubr.f32.gmra.mrb[0].mxu0 %v3423
    %v3520 = vpop.f32.mrb[0].mxu0
    %v3521 = vadd.f32 %v3392, %v3520
    %v3522 = vpop.f32.mrb[0].mxu0
    %3523 = vmatprep.mubr.f32.mxu0 0.0
    %3524 = vmatmul.mubr.f32.gmra.mrb[0].mxu0 %v3426
    %v3525 = vpop.f32.mrb[0].mxu0
    %v3526 = vadd.f32 %v3397, %v3525
    %v3527 = vpop.f32.mrb[0].mxu0
    %3528 = vmatprep.mubr.f32.mxu0 0.0
    %3529 = vmatmul.mubr.f32.gmra.mrb[0].mxu0 %v3429
    %v3530 = vpop.f32.mrb[0].mxu0
    %v3531 = vadd.f32 %v3402, %v3530
    %v3532 = vpop.f32.mrb[0].mxu0
    %3533 = vmatprep.mubr.f32.mxu0 0.0
    %3534 = vmatmul.mubr.f32.gmra.mrb[0].mxu0 %v3432
    %v3535 = vpop.f32.mrb[0].mxu0
    %v3536 = vadd.f32 %v3407, %v3535
    %v3537 = vpop.f32.mrb[0].mxu0
    %3538 = vdwg.mxu0
    %s3539 = scalar_lea.vmem %s1, 64
    %v3540 = vld [vmem:[%s3539] sm:$0xff]
    %v3541 = vld [vmem:[%s3539 + $0x8] sm:$0xff]
    %v3542 = vld [vmem:[%s3539 + $0x10] sm:$0xff]
    %v3543 = vld [vmem:[%s3539 + $0x18] sm:$0xff]
    %3544 = vmatprep.subr.mxu0 0.0
    %3545 = vmatpush1.msra.mxu0 %v3540
    %3546 = vmatprep.subr.mxu0 0.0
    %3547 = vmatpush1.msra.mxu0 %v3541
    %3548 = vmatprep.subr.mxu0 0.0
    %3549 = vmatpush1.msra.mxu0 %v3542
    %3550 = vmatprep.subr.mxu0 0.0
    %3551 = vmatpush1.msra.mxu0 %v3543
    %3552 = vmatprep.subr.mxu0 0.0
    %3553 = vmatpush1.msra.mxu0 0.0
    %3554 = vmatprep.subr.mxu0 0.0
    %3555 = vmatpush1.msra.mxu0 0.0
    %3556 = vmatprep.subr.mxu0 0.0
    %3557 = vmatpush1.msra.mxu0 0.0
    %3558 = vmatprep.subr.mxu0 0.0
    %3559 = vmatpush1.msra.mxu0 0.0
    %3560 = vmatprep.subr.mxu0 0.0
    %3561 = vmatpush1.msra.mxu0 0.0
    %3562 = vmatprep.subr.mxu0 0.0
    %3563 = vmatpush1.msra.mxu0 0.0
    %3564 = vmatprep.subr.mxu0 0.0
    %3565 = vmatpush1.msra.mxu0 0.0
    %3566 = vmatprep.subr.mxu0 0.0
    %3567 = vmatpush1.msra.mxu0 0.0
    %3568 = vmatprep.subr.mxu0 0.0
    %3569 = vmatpush1.msra.mxu0 0.0
    %3570 = vmatprep.subr.mxu0 0.0
    %3571 = vmatpush1.msra.mxu0 0.0
    %3572 = vmatprep.subr.mxu0 0.0
    %3573 = vmatpush1.msra.mxu0 0.0
    %3574 = vmatprep.subr.mxu0 0.0
    %3575 = vmatpush1.msra.mxu0 0.0
    %3576 = vmatprep.subr.mxu0 0.0
    %3577 = vmatpush1.msra.mxu0 0.0
    %3578 = vmatprep.subr.mxu0 0.0
    %3579 = vmatpush1.msra.mxu0 0.0
    %3580 = vmatprep.subr.mxu0 0.0
    %3581 = vmatpush1.msra.mxu0 0.0
    %3582 = vmatprep.subr.mxu0 0.0
    %3583 = vmatpush1.msra.mxu0 0.0
    %3584 = vmatprep.subr.mxu0 0.0
    %3585 = vmatpush1.msra.mxu0 0.0
    %3586 = vmatprep.subr.mxu0 0.0
    %3587 = vmatpush1.msra.mxu0 0.0
    %3588 = vmatprep.subr.mxu0 0.0
    %3589 = vmatpush1.msra.mxu0 0.0
    %3590 = vmatprep.subr.mxu0 0.0
    %3591 = vmatpush1.msra.mxu0 0.0
    %3592 = vmatprep.subr.mxu0 0.0
    %3593 = vmatpush1.msra.mxu0 0.0
    %3594 = vmatprep.subr.mxu0 0.0
    %3595 = vmatpush1.msra.mxu0 0.0
    %3596 = vmatprep.subr.mxu0 0.0
    %3597 = vmatpush1.msra.mxu0 0.0
    %3598 = vmatprep.subr.mxu0 0.0
    %3599 = vmatpush1.msra.mxu0 0.0
    %3600 = vmatprep.subr.mxu0 0.0
    %3601 = vmatpush1.msra.mxu0 0.0
    %3602 = vmatprep.subr.mxu0 0.0
    %3603 = vmatpush1.msra.mxu0 0.0
    %3604 = vmatprep.subr.mxu0 0.0
    %3605 = vmatpush1.msra.mxu0 0.0
    %3606 = vmatprep.subr.mxu0 0.0
    %3607 = vmatpush1.msra.mxu0 0.0
    %3608 = vmatprep.mubr.f32.mxu0 0.0
    %3609 = vmatmul.mubr.f32.gmra.mrb[0].mxu0 %v38
    %v3610 = vpop.f32.mrb[0].mxu0
    %v3611 = vadd.f32 0.0, %v3610
    %v3612 = vpop.f32.mrb[0].mxu0
    %3613 = vmatprep.mubr.f32.mxu0 0.0
    %3614 = vmatmul.mubr.f32.gmra.mrb[0].mxu0 %v41
    %v3615 = vpop.f32.mrb[0].mxu0
    %v3616 = vadd.f32 0.0, %v3615
    %v3617 = vpop.f32.mrb[0].mxu0
    %3618 = vmatprep.mubr.f32.mxu0 0.0
    %3619 = vmatmul.mubr.f32.gmra.mrb[0].mxu0 %v44
    %v3620 = vpop.f32.mrb[0].mxu0
    %v3621 = vadd.f32 0.0, %v3620
    %v3622 = vpop.f32.mrb[0].mxu0
    %3623 = vmatprep.mubr.f32.mxu0 0.0
    %3624 = vmatmul.mubr.f32.gmra.mrb[0].mxu0 %v47
    %v3625 = vpop.f32.mrb[0].mxu0
    %v3626 = vadd.f32 0.0, %v3625
    %v3627 = vpop.f32.mrb[0].mxu0
    %3628 = vmatprep.mubr.f32.mxu0 0.0
    %3629 = vmatmul.mubr.f32.gmra.mrb[0].mxu0 %v50
    %v3630 = vpop.f32.mrb[0].mxu0
    %v3631 = vadd.f32 0.0, %v3630
    %v3632 = vpop.f32.mrb[0].mxu0
    %3633 = vmatprep.mubr.f32.mxu0 0.0
    %3634 = vmatmul.mubr.f32.gmra.mrb[0].mxu0 %v53
    %v3635 = vpop.f32.mrb[0].mxu0
    %v3636 = vadd.f32 0.0, %v3635
    %v3637 = vpop.f32.mrb[0].mxu0
    %3638 = vmatprep.mubr.f32.mxu0 0.0
    %3639 = vmatmul.mubr.f32.gmra.mrb[0].mxu0 %v56
    %v3640 = vpop.f32.mrb[0].mxu0
    %v3641 = vadd.f32 0.0, %v3640
    %v3642 = vpop.f32.mrb[0].mxu0
    %3643 = vmatprep.mubr.f32.mxu0 0.0
    %3644 = vmatmul.mubr.f32.gmra.mrb[0].mxu0 %v59
    %v3645 = vpop.f32.mrb[0].mxu0
    %v3646 = vadd.f32 0.0, %v3645
    %v3647 = vpop.f32.mrb[0].mxu0
    %3648 = vdwg.mxu0
    %s3649 = scalar_lea.vmem %s2, 64
    %v3650 = vld [vmem:[%s3649] sm:$0xff]
    %v3651 = vld [vmem:[%s3649 + $0x8] sm:$0xff]
    %v3652 = vld [vmem:[%s3649 + $0x10] sm:$0xff]
    %v3653 = vld [vmem:[%s3649 + $0x18] sm:$0xff]
    %3654 = vmatprep.subr.mxu0 0.0
    %3655 = vmatpush1.msra.mxu0 %v3650
    %3656 = vmatprep.subr.mxu0 0.0
    %3657 = vmatpush1.msra.mxu0 %v3651
    %3658 = vmatprep.subr.mxu0 0.0
    %3659 = vmatpush1.msra.mxu0 %v3652
    %3660 = vmatprep.subr.mxu0 0.0
    %3661 = vmatpush1.msra.mxu0 %v3653
    %3662 = vmatprep.subr.mxu0 0.0
    %3663 = vmatpush1.msra.mxu0 0.0
    %3664 = vmatprep.subr.mxu0 0.0
    %3665 = vmatpush1.msra.mxu0 0.0
    %3666 = vmatprep.subr.mxu0 0.0
    %3667 = vmatpush1.msra.mxu0 0.0
    %3668 = vmatprep.subr.mxu0 0.0
    %3669 = vmatpush1.msra.mxu0 0.0
    %3670 = vmatprep.subr.mxu0 0.0
    %3671 = vmatpush1.msra.mxu0 0.0
    %3672 = vmatprep.subr.mxu0 0.0
    %3673 = vmatpush1.msra.mxu0 0.0
    %3674 = vmatprep.subr.mxu0 0.0
    %3675 = vmatpush1.msra.mxu0 0.0
    %3676 = vmatprep.subr.mxu0 0.0
    %3677 = vmatpush1.msra.mxu0 0.0
    %3678 = vmatprep.subr.mxu0 0.0
    %3679 = vmatpush1.msra.mxu0 0.0
    %3680 = vmatprep.subr.mxu0 0.0
    %3681 = vmatpush1.msra.mxu0 0.0
    %3682 = vmatprep.subr.mxu0 0.0
    %3683 = vmatpush1.msra.mxu0 0.0
    %3684 = vmatprep.subr.mxu0 0.0
    %3685 = vmatpush1.msra.mxu0 0.0
    %3686 = vmatprep.subr.mxu0 0.0
    %3687 = vmatpush1.msra.mxu0 0.0
    %3688 = vmatprep.subr.mxu0 0.0
    %3689 = vmatpush1.msra.mxu0 0.0
    %3690 = vmatprep.subr.mxu0 0.0
    %3691 = vmatpush1.msra.mxu0 0.0
    %3692 = vmatprep.subr.mxu0 0.0
    %3693 = vmatpush1.msra.mxu0 0.0
    %3694 = vmatprep.subr.mxu0 0.0
    %3695 = vmatpush1.msra.mxu0 0.0
    %3696 = vmatprep.subr.mxu0 0.0
    %3697 = vmatpush1.msra.mxu0 0.0
    %3698 = vmatprep.subr.mxu0 0.0
    %3699 = vmatpush1.msra.mxu0 0.0
    %3700 = vmatprep.subr.mxu0 0.0
    %3701 = vmatpush1.msra.mxu0 0.0
    %3702 = vmatprep.subr.mxu0 0.0
    %3703 = vmatpush1.msra.mxu0 0.0
    %3704 = vmatprep.subr.mxu0 0.0
    %3705 = vmatpush1.msra.mxu0 0.0
    %3706 = vmatprep.subr.mxu0 0.0
    %3707 = vmatpush1.msra.mxu0 0.0
    %3708 = vmatprep.subr.mxu0 0.0
    %3709 = vmatpush1.msra.mxu0 0.0
    %3710 = vmatprep.subr.mxu0 0.0
    %3711 = vmatpush1.msra.mxu0 0.0
    %3712 = vmatprep.subr.mxu0 0.0
    %3713 = vmatpush1.msra.mxu0 0.0
    %3714 = vmatprep.subr.mxu0 0.0
    %3715 = vmatpush1.msra.mxu0 0.0
    %3716 = vmatprep.subr.mxu0 0.0
    %3717 = vmatpush1.msra.mxu0 0.0
    %3718 = vmatprep.mubr.f32.mxu0 0.0
    %3719 = vmatmul.mubr.f32.gmra.mrb[0].mxu0 %v38
    %v3720 = vpop.f32.mrb[0].mxu0
    %v3721 = vadd.f32 0.0, %v3720
    %v3722 = vpop.f32.mrb[0].mxu0
    %3723 = vmatprep.mubr.f32.mxu0 0.0
    %3724 = vmatmul.mubr.f32.gmra.mrb[0].mxu0 %v41
    %v3725 = vpop.f32.mrb[0].mxu0
    %v3726 = vadd.f32 0.0, %v3725
    %v3727 = vpop.f32.mrb[0].mxu0
    %3728 = vmatprep.mubr.f32.mxu0 0.0
    %3729 = vmatmul.mubr.f32.gmra.mrb[0].mxu0 %v44
    %v3730 = vpop.f32.mrb[0].mxu0
    %v3731 = vadd.f32 0.0, %v3730
    %v3732 = vpop.f32.mrb[0].mxu0
    %3733 = vmatprep.mubr.f32.mxu0 0.0
    %3734 = vmatmul.mubr.f32.gmra.mrb[0].mxu0 %v47
    %v3735 = vpop.f32.mrb[0].mxu0
    %v3736 = vadd.f32 0.0, %v3735
    %v3737 = vpop.f32.mrb[0].mxu0
    %3738 = vmatprep.mubr.f32.mxu0 0.0
    %3739 = vmatmul.mubr.f32.gmra.mrb[0].mxu0 %v50
    %v3740 = vpop.f32.mrb[0].mxu0
    %v3741 = vadd.f32 0.0, %v3740
    %v3742 = vpop.f32.mrb[0].mxu0
    %3743 = vmatprep.mubr.f32.mxu0 0.0
    %3744 = vmatmul.mubr.f32.gmra.mrb[0].mxu0 %v53
    %v3745 = vpop.f32.mrb[0].mxu0
    %v3746 = vadd.f32 0.0, %v3745
    %v3747 = vpop.f32.mrb[0].mxu0
    %3748 = vmatprep.mubr.f32.mxu0 0.0
    %3749 = vmatmul.mubr.f32.gmra.mrb[0].mxu0 %v56
    %v3750 = vpop.f32.mrb[0].mxu0
    %v3751 = vadd.f32 0.0, %v3750
    %v3752 = vpop.f32.mrb[0].mxu0
    %3753 = vmatprep.mubr.f32.mxu0 0.0
    %3754 = vmatmul.mubr.f32.gmra.mrb[0].mxu0 %v59
    %v3755 = vpop.f32.mrb[0].mxu0
    %v3756 = vadd.f32 0.0, %v3755
    %v3757 = vpop.f32.mrb[0].mxu0
    %3758 = vdwg.mxu0
    %s3759 = scalar_lea.vmem %s3, 64
    %v3760 = vld [vmem:[%s3759] sm:$0xff]
    %v3761 = vld [vmem:[%s3759 + $0x8] sm:$0xff]
    %v3762 = vld [vmem:[%s3759 + $0x10] sm:$0xff]
    %v3763 = vld [vmem:[%s3759 + $0x18] sm:$0xff]
    %3764 = vmatprep.subr.mxu0 0.0
    %3765 = vmatpush1.msra.mxu0 %v3760
    %3766 = vmatprep.subr.mxu0 0.0
    %3767 = vmatpush1.msra.mxu0 %v3761
    %3768 = vmatprep.subr.mxu0 0.0
    %3769 = vmatpush1.msra.mxu0 %v3762
    %3770 = vmatprep.subr.mxu0 0.0
    %3771 = vmatpush1.msra.mxu0 %v3763
    %3772 = vmatprep.subr.mxu0 0.0
    %3773 = vmatpush1.msra.mxu0 0.0
    %3774 = vmatprep.subr.mxu0 0.0
    %3775 = vmatpush1.msra.mxu0 0.0
    %3776 = vmatprep.subr.mxu0 0.0
    %3777 = vmatpush1.msra.mxu0 0.0
    %3778 = vmatprep.subr.mxu0 0.0
    %3779 = vmatpush1.msra.mxu0 0.0
    %3780 = vmatprep.subr.mxu0 0.0
    %3781 = vmatpush1.msra.mxu0 0.0
    %3782 = vmatprep.subr.mxu0 0.0
    %3783 = vmatpush1.msra.mxu0 0.0
    %3784 = vmatprep.subr.mxu0 0.0
    %3785 = vmatpush1.msra.mxu0 0.0
    %3786 = vmatprep.subr.mxu0 0.0
    %3787 = vmatpush1.msra.mxu0 0.0
    %3788 = vmatprep.subr.mxu0 0.0
    %3789 = vmatpush1.msra.mxu0 0.0
    %3790 = vmatprep.subr.mxu0 0.0
    %3791 = vmatpush1.msra.mxu0 0.0
    %3792 = vmatprep.subr.mxu0 0.0
    %3793 = vmatpush1.msra.mxu0 0.0
    %3794 = vmatprep.subr.mxu0 0.0
    %3795 = vmatpush1.msra.mxu0 0.0
    %3796 = vmatprep.subr.mxu0 0.0
    %3797 = vmatpush1.msra.mxu0 0.0
    %3798 = vmatprep.subr.mxu0 0.0
    %3799 = vmatpush1.msra.mxu0 0.0
    %3800 = vmatprep.subr.mxu0 0.0
    %3801 = vmatpush1.msra.mxu0 0.0
    %3802 = vmatprep.subr.mxu0 0.0
    %3803 = vmatpush1.msra.mxu0 0.0
    %3804 = vmatprep.subr.mxu0 0.0
    %3805 = vmatpush1.msra.mxu0 0.0
    %3806 = vmatprep.subr.mxu0 0.0
    %3807 = vmatpush1.msra.mxu0 0.0
    %3808 = vmatprep.subr.mxu0 0.0
    %3809 = vmatpush1.msra.mxu0 0.0
    %3810 = vmatprep.subr.mxu0 0.0
    %3811 = vmatpush1.msra.mxu0 0.0
    %3812 = vmatprep.subr.mxu0 0.0
    %3813 = vmatpush1.msra.mxu0 0.0
    %3814 = vmatprep.subr.mxu0 0.0
    %3815 = vmatpush1.msra.mxu0 0.0
    %3816 = vmatprep.subr.mxu0 0.0
    %3817 = vmatpush1.msra.mxu0 0.0
    %3818 = vmatprep.subr.mxu0 0.0
    %3819 = vmatpush1.msra.mxu0 0.0
    %3820 = vmatprep.subr.mxu0 0.0
    %3821 = vmatpush1.msra.mxu0 0.0
    %3822 = vmatprep.subr.mxu0 0.0
    %3823 = vmatpush1.msra.mxu0 0.0
    %3824 = vmatprep.subr.mxu0 0.0
    %3825 = vmatpush1.msra.mxu0 0.0
    %3826 = vmatprep.subr.mxu0 0.0
    %3827 = vmatpush1.msra.mxu0 0.0
    %3828 = vmatprep.mubr.f32.mxu0 0.0
    %3829 = vmatmul.mubr.f32.gmra.mrb[0].mxu0 %v38
    %v3830 = vpop.f32.mrb[0].mxu0
    %v3831 = vadd.f32 0.0, %v3830
    %v3832 = vpop.f32.mrb[0].mxu0
    %3833 = vmatprep.mubr.f32.mxu0 0.0
    %3834 = vmatmul.mubr.f32.gmra.mrb[0].mxu0 %v41
    %v3835 = vpop.f32.mrb[0].mxu0
    %v3836 = vadd.f32 0.0, %v3835
    %v3837 = vpop.f32.mrb[0].mxu0
    %3838 = vmatprep.mubr.f32.mxu0 0.0
    %3839 = vmatmul.mubr.f32.gmra.mrb[0].mxu0 %v44
    %v3840 = vpop.f32.mrb[0].mxu0
    %v3841 = vadd.f32 0.0, %v3840
    %v3842 = vpop.f32.mrb[0].mxu0
    %3843 = vmatprep.mubr.f32.mxu0 0.0
    %3844 = vmatmul.mubr.f32.gmra.mrb[0].mxu0 %v47
    %v3845 = vpop.f32.mrb[0].mxu0
    %v3846 = vadd.f32 0.0, %v3845
    %v3847 = vpop.f32.mrb[0].mxu0
    %3848 = vmatprep.mubr.f32.mxu0 0.0
    %3849 = vmatmul.mubr.f32.gmra.mrb[0].mxu0 %v50
    %v3850 = vpop.f32.mrb[0].mxu0
    %v3851 = vadd.f32 0.0, %v3850
    %v3852 = vpop.f32.mrb[0].mxu0
    %3853 = vmatprep.mubr.f32.mxu0 0.0
    %3854 = vmatmul.mubr.f32.gmra.mrb[0].mxu0 %v53
    %v3855 = vpop.f32.mrb[0].mxu0
    %v3856 = vadd.f32 0.0, %v3855
    %v3857 = vpop.f32.mrb[0].mxu0
    %3858 = vmatprep.mubr.f32.mxu0 0.0
    %3859 = vmatmul.mubr.f32.gmra.mrb[0].mxu0 %v56
    %v3860 = vpop.f32.mrb[0].mxu0
    %v3861 = vadd.f32 0.0, %v3860
    %v3862 = vpop.f32.mrb[0].mxu0
    %3863 = vmatprep.mubr.f32.mxu0 0.0
    %3864 = vmatmul.mubr.f32.gmra.mrb[0].mxu0 %v59
    %v3865 = vpop.f32.mrb[0].mxu0
    %v3866 = vadd.f32 0.0, %v3865
    %v3867 = vpop.f32.mrb[0].mxu0
    %3868 = vdwg.mxu0
    %v3870 = vsel %vm384, %v3611, 0
    %v3873 = vsel %vm384, %v3721, 0
    %3875 = vmatprep.subr.mxu0 0.0
    %3876 = vmatpush1.xpose.msra.mxu0 %v3873
    %3877 = vmatprep.subr.mxu0 0.0
    %3878 = vmatpush1.xpose.msra.mxu0 0.0
    %3879 = vmatprep.subr.mxu0 0.0
    %3880 = vmatpush1.xpose.msra.mxu0 0.0
    %3881 = vmatprep.subr.mxu0 0.0
    %3882 = vmatpush1.xpose.msra.mxu0 0.0
    %3883 = vmatprep.subr.mxu0 0.0
    %3884 = vmatpush1.xpose.msra.mxu0 0.0
    %3885 = vmatprep.subr.mxu0 0.0
    %3886 = vmatpush1.xpose.msra.mxu0 0.0
    %3887 = vmatprep.subr.mxu0 0.0
    %3888 = vmatpush1.xpose.msra.mxu0 0.0
    %3889 = vmatprep.subr.mxu0 0.0
    %3890 = vmatpush1.xpose.msra.mxu0 0.0
    %3891 = vmatprep.subr.mxu0 0.0
    %3892 = vmatpush1.xpose.msra.mxu0 0.0
    %3893 = vmatprep.subr.mxu0 0.0
    %3894 = vmatpush1.xpose.msra.mxu0 0.0
    %3895 = vmatprep.subr.mxu0 0.0
    %3896 = vmatpush1.xpose.msra.mxu0 0.0
    %3897 = vmatprep.subr.mxu0 0.0
    %3898 = vmatpush1.xpose.msra.mxu0 0.0
    %3899 = vmatprep.subr.mxu0 0.0
    %3900 = vmatpush1.xpose.msra.mxu0 0.0
    %3901 = vmatprep.subr.mxu0 0.0
    %3902 = vmatpush1.xpose.msra.mxu0 0.0
    %3903 = vmatprep.subr.mxu0 0.0
    %3904 = vmatpush1.xpose.msra.mxu0 0.0
    %3905 = vmatprep.subr.mxu0 0.0
    %3906 = vmatpush1.xpose.msra.mxu0 0.0
    %3907 = vmatprep.subr.mxu0 0.0
    %3908 = vmatpush1.xpose.msra.mxu0 0.0
    %3909 = vmatprep.subr.mxu0 0.0
    %3910 = vmatpush1.xpose.msra.mxu0 0.0
    %3911 = vmatprep.subr.mxu0 0.0
    %3912 = vmatpush1.xpose.msra.mxu0 0.0
    %3913 = vmatprep.subr.mxu0 0.0
    %3914 = vmatpush1.xpose.msra.mxu0 0.0
    %3915 = vmatprep.subr.mxu0 0.0
    %3916 = vmatpush1.xpose.msra.mxu0 0.0
    %3917 = vmatprep.subr.mxu0 0.0
    %3918 = vmatpush1.xpose.msra.mxu0 0.0
    %3919 = vmatprep.subr.mxu0 0.0
    %3920 = vmatpush1.xpose.msra.mxu0 0.0
    %3921 = vmatprep.subr.mxu0 0.0
    %3922 = vmatpush1.xpose.msra.mxu0 0.0
    %3923 = vmatprep.subr.mxu0 0.0
    %3924 = vmatpush1.xpose.msra.mxu0 0.0
    %3925 = vmatprep.subr.mxu0 0.0
    %3926 = vmatpush1.xpose.msra.mxu0 0.0
    %3927 = vmatprep.subr.mxu0 0.0
    %3928 = vmatpush1.xpose.msra.mxu0 0.0
    %3929 = vmatprep.subr.mxu0 0.0
    %3930 = vmatpush1.xpose.msra.mxu0 0.0
    %3931 = vmatprep.subr.mxu0 0.0
    %3932 = vmatpush1.xpose.msra.mxu0 0.0
    %3933 = vmatprep.subr.mxu0 0.0
    %3934 = vmatpush1.xpose.msra.mxu0 0.0
    %3935 = vmatprep.subr.mxu0 0.0
    %3936 = vmatpush1.xpose.msra.mxu0 0.0
    %3937 = vmatprep.subr.mxu0 0.0
    %3938 = vmatpush1.xpose.msra.mxu0 0.0
    %3939 = vmatprep.mubr.f32.mxu0 0.0
    %3940 = vmatmul.mubr.f32.gmra.mrb[0].mxu0 %v3870
    %v3941 = vpop.f32.mrb[0].mxu0
    %v3942 = vadd.f32 0.0, %v3941
    %v3943 = vpop.f32.mrb[0].mxu0
    %3944 = vdwg.mxu0
    %v3946 = vsel %vm384, %v3616, 0
    %v3949 = vsel %vm384, %v3726, 0
    %3951 = vmatprep.subr.mxu0 0.0
    %3952 = vmatpush1.xpose.msra.mxu0 %v3949
    %3953 = vmatprep.subr.mxu0 0.0
    %3954 = vmatpush1.xpose.msra.mxu0 0.0
    %3955 = vmatprep.subr.mxu0 0.0
    %3956 = vmatpush1.xpose.msra.mxu0 0.0
    %3957 = vmatprep.subr.mxu0 0.0
    %3958 = vmatpush1.xpose.msra.mxu0 0.0
    %3959 = vmatprep.subr.mxu0 0.0
    %3960 = vmatpush1.xpose.msra.mxu0 0.0
    %3961 = vmatprep.subr.mxu0 0.0
    %3962 = vmatpush1.xpose.msra.mxu0 0.0
    %3963 = vmatprep.subr.mxu0 0.0
    %3964 = vmatpush1.xpose.msra.mxu0 0.0
    %3965 = vmatprep.subr.mxu0 0.0
    %3966 = vmatpush1.xpose.msra.mxu0 0.0
    %3967 = vmatprep.subr.mxu0 0.0
    %3968 = vmatpush1.xpose.msra.mxu0 0.0
    %3969 = vmatprep.subr.mxu0 0.0
    %3970 = vmatpush1.xpose.msra.mxu0 0.0
    %3971 = vmatprep.subr.mxu0 0.0
    %3972 = vmatpush1.xpose.msra.mxu0 0.0
    %3973 = vmatprep.subr.mxu0 0.0
    %3974 = vmatpush1.xpose.msra.mxu0 0.0
    %3975 = vmatprep.subr.mxu0 0.0
    %3976 = vmatpush1.xpose.msra.mxu0 0.0
    %3977 = vmatprep.subr.mxu0 0.0
    %3978 = vmatpush1.xpose.msra.mxu0 0.0
    %3979 = vmatprep.subr.mxu0 0.0
    %3980 = vmatpush1.xpose.msra.mxu0 0.0
    %3981 = vmatprep.subr.mxu0 0.0
    %3982 = vmatpush1.xpose.msra.mxu0 0.0
    %3983 = vmatprep.subr.mxu0 0.0
    %3984 = vmatpush1.xpose.msra.mxu0 0.0
    %3985 = vmatprep.subr.mxu0 0.0
    %3986 = vmatpush1.xpose.msra.mxu0 0.0
    %3987 = vmatprep.subr.mxu0 0.0
    %3988 = vmatpush1.xpose.msra.mxu0 0.0
    %3989 = vmatprep.subr.mxu0 0.0
    %3990 = vmatpush1.xpose.msra.mxu0 0.0
    %3991 = vmatprep.subr.mxu0 0.0
    %3992 = vmatpush1.xpose.msra.mxu0 0.0
    %3993 = vmatprep.subr.mxu0 0.0
    %3994 = vmatpush1.xpose.msra.mxu0 0.0
    %3995 = vmatprep.subr.mxu0 0.0
    %3996 = vmatpush1.xpose.msra.mxu0 0.0
    %3997 = vmatprep.subr.mxu0 0.0
    %3998 = vmatpush1.xpose.msra.mxu0 0.0
    %3999 = vmatprep.subr.mxu0 0.0
    %4000 = vmatpush1.xpose.msra.mxu0 0.0
    %4001 = vmatprep.subr.mxu0 0.0
    %4002 = vmatpush1.xpose.msra.mxu0 0.0
    %4003 = vmatprep.subr.mxu0 0.0
    %4004 = vmatpush1.xpose.msra.mxu0 0.0
    %4005 = vmatprep.subr.mxu0 0.0
    %4006 = vmatpush1.xpose.msra.mxu0 0.0
    %4007 = vmatprep.subr.mxu0 0.0
    %4008 = vmatpush1.xpose.msra.mxu0 0.0
    %4009 = vmatprep.subr.mxu0 0.0
    %4010 = vmatpush1.xpose.msra.mxu0 0.0
    %4011 = vmatprep.subr.mxu0 0.0
    %4012 = vmatpush1.xpose.msra.mxu0 0.0
    %4013 = vmatprep.subr.mxu0 0.0
    %4014 = vmatpush1.xpose.msra.mxu0 0.0
    %4015 = vmatprep.mubr.f32.mxu0 0.0
    %4016 = vmatmul.mubr.f32.gmra.mrb[0].mxu0 %v3946
    %v4017 = vpop.f32.mrb[0].mxu0
    %v4018 = vadd.f32 0.0, %v4017
    %v4019 = vpop.f32.mrb[0].mxu0
    %4020 = vdwg.mxu0
    %v4022 = vsel %vm384, %v3621, 0
    %v4025 = vsel %vm384, %v3731, 0
    %4027 = vmatprep.subr.mxu0 0.0
    %4028 = vmatpush1.xpose.msra.mxu0 %v4025
    %4029 = vmatprep.subr.mxu0 0.0
    %4030 = vmatpush1.xpose.msra.mxu0 0.0
    %4031 = vmatprep.subr.mxu0 0.0
    %4032 = vmatpush1.xpose.msra.mxu0 0.0
    %4033 = vmatprep.subr.mxu0 0.0
    %4034 = vmatpush1.xpose.msra.mxu0 0.0
    %4035 = vmatprep.subr.mxu0 0.0
    %4036 = vmatpush1.xpose.msra.mxu0 0.0
    %4037 = vmatprep.subr.mxu0 0.0
    %4038 = vmatpush1.xpose.msra.mxu0 0.0
    %4039 = vmatprep.subr.mxu0 0.0
    %4040 = vmatpush1.xpose.msra.mxu0 0.0
    %4041 = vmatprep.subr.mxu0 0.0
    %4042 = vmatpush1.xpose.msra.mxu0 0.0
    %4043 = vmatprep.subr.mxu0 0.0
    %4044 = vmatpush1.xpose.msra.mxu0 0.0
    %4045 = vmatprep.subr.mxu0 0.0
    %4046 = vmatpush1.xpose.msra.mxu0 0.0
    %4047 = vmatprep.subr.mxu0 0.0
    %4048 = vmatpush1.xpose.msra.mxu0 0.0
    %4049 = vmatprep.subr.mxu0 0.0
    %4050 = vmatpush1.xpose.msra.mxu0 0.0
    %4051 = vmatprep.subr.mxu0 0.0
    %4052 = vmatpush1.xpose.msra.mxu0 0.0
    %4053 = vmatprep.subr.mxu0 0.0
    %4054 = vmatpush1.xpose.msra.mxu0 0.0
    %4055 = vmatprep.subr.mxu0 0.0
    %4056 = vmatpush1.xpose.msra.mxu0 0.0
    %4057 = vmatprep.subr.mxu0 0.0
    %4058 = vmatpush1.xpose.msra.mxu0 0.0
    %4059 = vmatprep.subr.mxu0 0.0
    %4060 = vmatpush1.xpose.msra.mxu0 0.0
    %4061 = vmatprep.subr.mxu0 0.0
    %4062 = vmatpush1.xpose.msra.mxu0 0.0
    %4063 = vmatprep.subr.mxu0 0.0
    %4064 = vmatpush1.xpose.msra.mxu0 0.0
    %4065 = vmatprep.subr.mxu0 0.0
    %4066 = vmatpush1.xpose.msra.mxu0 0.0
    %4067 = vmatprep.subr.mxu0 0.0
    %4068 = vmatpush1.xpose.msra.mxu0 0.0
    %4069 = vmatprep.subr.mxu0 0.0
    %4070 = vmatpush1.xpose.msra.mxu0 0.0
    %4071 = vmatprep.subr.mxu0 0.0
    %4072 = vmatpush1.xpose.msra.mxu0 0.0
    %4073 = vmatprep.subr.mxu0 0.0
    %4074 = vmatpush1.xpose.msra.mxu0 0.0
    %4075 = vmatprep.subr.mxu0 0.0
    %4076 = vmatpush1.xpose.msra.mxu0 0.0
    %4077 = vmatprep.subr.mxu0 0.0
    %4078 = vmatpush1.xpose.msra.mxu0 0.0
    %4079 = vmatprep.subr.mxu0 0.0
    %4080 = vmatpush1.xpose.msra.mxu0 0.0
    %4081 = vmatprep.subr.mxu0 0.0
    %4082 = vmatpush1.xpose.msra.mxu0 0.0
    %4083 = vmatprep.subr.mxu0 0.0
    %4084 = vmatpush1.xpose.msra.mxu0 0.0
    %4085 = vmatprep.subr.mxu0 0.0
    %4086 = vmatpush1.xpose.msra.mxu0 0.0
    %4087 = vmatprep.subr.mxu0 0.0
    %4088 = vmatpush1.xpose.msra.mxu0 0.0
    %4089 = vmatprep.subr.mxu0 0.0
    %4090 = vmatpush1.xpose.msra.mxu0 0.0
    %4091 = vmatprep.mubr.f32.mxu0 0.0
    %4092 = vmatmul.mubr.f32.gmra.mrb[0].mxu0 %v4022
    %v4093 = vpop.f32.mrb[0].mxu0
    %v4094 = vadd.f32 0.0, %v4093
    %v4095 = vpop.f32.mrb[0].mxu0
    %4096 = vdwg.mxu0
    %v4098 = vsel %vm384, %v3626, 0
    %v4101 = vsel %vm384, %v3736, 0
    %4103 = vmatprep.subr.mxu0 0.0
    %4104 = vmatpush1.xpose.msra.mxu0 %v4101
    %4105 = vmatprep.subr.mxu0 0.0
    %4106 = vmatpush1.xpose.msra.mxu0 0.0
    %4107 = vmatprep.subr.mxu0 0.0
    %4108 = vmatpush1.xpose.msra.mxu0 0.0
    %4109 = vmatprep.subr.mxu0 0.0
    %4110 = vmatpush1.xpose.msra.mxu0 0.0
    %4111 = vmatprep.subr.mxu0 0.0
    %4112 = vmatpush1.xpose.msra.mxu0 0.0
    %4113 = vmatprep.subr.mxu0 0.0
    %4114 = vmatpush1.xpose.msra.mxu0 0.0
    %4115 = vmatprep.subr.mxu0 0.0
    %4116 = vmatpush1.xpose.msra.mxu0 0.0
    %4117 = vmatprep.subr.mxu0 0.0
    %4118 = vmatpush1.xpose.msra.mxu0 0.0
    %4119 = vmatprep.subr.mxu0 0.0
    %4120 = vmatpush1.xpose.msra.mxu0 0.0
    %4121 = vmatprep.subr.mxu0 0.0
    %4122 = vmatpush1.xpose.msra.mxu0 0.0
    %4123 = vmatprep.subr.mxu0 0.0
    %4124 = vmatpush1.xpose.msra.mxu0 0.0
    %4125 = vmatprep.subr.mxu0 0.0
    %4126 = vmatpush1.xpose.msra.mxu0 0.0
    %4127 = vmatprep.subr.mxu0 0.0
    %4128 = vmatpush1.xpose.msra.mxu0 0.0
    %4129 = vmatprep.subr.mxu0 0.0
    %4130 = vmatpush1.xpose.msra.mxu0 0.0
    %4131 = vmatprep.subr.mxu0 0.0
    %4132 = vmatpush1.xpose.msra.mxu0 0.0
    %4133 = vmatprep.subr.mxu0 0.0
    %4134 = vmatpush1.xpose.msra.mxu0 0.0
    %4135 = vmatprep.subr.mxu0 0.0
    %4136 = vmatpush1.xpose.msra.mxu0 0.0
    %4137 = vmatprep.subr.mxu0 0.0
    %4138 = vmatpush1.xpose.msra.mxu0 0.0
    %4139 = vmatprep.subr.mxu0 0.0
    %4140 = vmatpush1.xpose.msra.mxu0 0.0
    %4141 = vmatprep.subr.mxu0 0.0
    %4142 = vmatpush1.xpose.msra.mxu0 0.0
    %4143 = vmatprep.subr.mxu0 0.0
    %4144 = vmatpush1.xpose.msra.mxu0 0.0
    %4145 = vmatprep.subr.mxu0 0.0
    %4146 = vmatpush1.xpose.msra.mxu0 0.0
    %4147 = vmatprep.subr.mxu0 0.0
    %4148 = vmatpush1.xpose.msra.mxu0 0.0
    %4149 = vmatprep.subr.mxu0 0.0
    %4150 = vmatpush1.xpose.msra.mxu0 0.0
    %4151 = vmatprep.subr.mxu0 0.0
    %4152 = vmatpush1.xpose.msra.mxu0 0.0
    %4153 = vmatprep.subr.mxu0 0.0
    %4154 = vmatpush1.xpose.msra.mxu0 0.0
    %4155 = vmatprep.subr.mxu0 0.0
    %4156 = vmatpush1.xpose.msra.mxu0 0.0
    %4157 = vmatprep.subr.mxu0 0.0
    %4158 = vmatpush1.xpose.msra.mxu0 0.0
    %4159 = vmatprep.subr.mxu0 0.0
    %4160 = vmatpush1.xpose.msra.mxu0 0.0
    %4161 = vmatprep.subr.mxu0 0.0
    %4162 = vmatpush1.xpose.msra.mxu0 0.0
    %4163 = vmatprep.subr.mxu0 0.0
    %4164 = vmatpush1.xpose.msra.mxu0 0.0
    %4165 = vmatprep.subr.mxu0 0.0
    %4166 = vmatpush1.xpose.msra.mxu0 0.0
    %4167 = vmatprep.mubr.f32.mxu0 0.0
    %4168 = vmatmul.mubr.f32.gmra.mrb[0].mxu0 %v4098
    %v4169 = vpop.f32.mrb[0].mxu0
    %v4170 = vadd.f32 0.0, %v4169
    %v4171 = vpop.f32.mrb[0].mxu0
    %4172 = vdwg.mxu0
    %v4174 = vsel %vm384, %v3631, 0
    %v4177 = vsel %vm384, %v3741, 0
    %4179 = vmatprep.subr.mxu0 0.0
    %4180 = vmatpush1.xpose.msra.mxu0 %v4177
    %4181 = vmatprep.subr.mxu0 0.0
    %4182 = vmatpush1.xpose.msra.mxu0 0.0
    %4183 = vmatprep.subr.mxu0 0.0
    %4184 = vmatpush1.xpose.msra.mxu0 0.0
    %4185 = vmatprep.subr.mxu0 0.0
    %4186 = vmatpush1.xpose.msra.mxu0 0.0
    %4187 = vmatprep.subr.mxu0 0.0
    %4188 = vmatpush1.xpose.msra.mxu0 0.0
    %4189 = vmatprep.subr.mxu0 0.0
    %4190 = vmatpush1.xpose.msra.mxu0 0.0
    %4191 = vmatprep.subr.mxu0 0.0
    %4192 = vmatpush1.xpose.msra.mxu0 0.0
    %4193 = vmatprep.subr.mxu0 0.0
    %4194 = vmatpush1.xpose.msra.mxu0 0.0
    %4195 = vmatprep.subr.mxu0 0.0
    %4196 = vmatpush1.xpose.msra.mxu0 0.0
    %4197 = vmatprep.subr.mxu0 0.0
    %4198 = vmatpush1.xpose.msra.mxu0 0.0
    %4199 = vmatprep.subr.mxu0 0.0
    %4200 = vmatpush1.xpose.msra.mxu0 0.0
    %4201 = vmatprep.subr.mxu0 0.0
    %4202 = vmatpush1.xpose.msra.mxu0 0.0
    %4203 = vmatprep.subr.mxu0 0.0
    %4204 = vmatpush1.xpose.msra.mxu0 0.0
    %4205 = vmatprep.subr.mxu0 0.0
    %4206 = vmatpush1.xpose.msra.mxu0 0.0
    %4207 = vmatprep.subr.mxu0 0.0
    %4208 = vmatpush1.xpose.msra.mxu0 0.0
    %4209 = vmatprep.subr.mxu0 0.0
    %4210 = vmatpush1.xpose.msra.mxu0 0.0
    %4211 = vmatprep.subr.mxu0 0.0
    %4212 = vmatpush1.xpose.msra.mxu0 0.0
    %4213 = vmatprep.subr.mxu0 0.0
    %4214 = vmatpush1.xpose.msra.mxu0 0.0
    %4215 = vmatprep.subr.mxu0 0.0
    %4216 = vmatpush1.xpose.msra.mxu0 0.0
    %4217 = vmatprep.subr.mxu0 0.0
    %4218 = vmatpush1.xpose.msra.mxu0 0.0
    %4219 = vmatprep.subr.mxu0 0.0
    %4220 = vmatpush1.xpose.msra.mxu0 0.0
    %4221 = vmatprep.subr.mxu0 0.0
    %4222 = vmatpush1.xpose.msra.mxu0 0.0
    %4223 = vmatprep.subr.mxu0 0.0
    %4224 = vmatpush1.xpose.msra.mxu0 0.0
    %4225 = vmatprep.subr.mxu0 0.0
    %4226 = vmatpush1.xpose.msra.mxu0 0.0
    %4227 = vmatprep.subr.mxu0 0.0
    %4228 = vmatpush1.xpose.msra.mxu0 0.0
    %4229 = vmatprep.subr.mxu0 0.0
    %4230 = vmatpush1.xpose.msra.mxu0 0.0
    %4231 = vmatprep.subr.mxu0 0.0
    %4232 = vmatpush1.xpose.msra.mxu0 0.0
    %4233 = vmatprep.subr.mxu0 0.0
    %4234 = vmatpush1.xpose.msra.mxu0 0.0
    %4235 = vmatprep.subr.mxu0 0.0
    %4236 = vmatpush1.xpose.msra.mxu0 0.0
    %4237 = vmatprep.subr.mxu0 0.0
    %4238 = vmatpush1.xpose.msra.mxu0 0.0
    %4239 = vmatprep.subr.mxu0 0.0
    %4240 = vmatpush1.xpose.msra.mxu0 0.0
    %4241 = vmatprep.subr.mxu0 0.0
    %4242 = vmatpush1.xpose.msra.mxu0 0.0
    %4243 = vmatprep.mubr.f32.mxu0 0.0
    %4244 = vmatmul.mubr.f32.gmra.mrb[0].mxu0 %v4174
    %v4245 = vpop.f32.mrb[0].mxu0
    %v4246 = vadd.f32 0.0, %v4245
    %v4247 = vpop.f32.mrb[0].mxu0
    %4248 = vdwg.mxu0
    %v4250 = vsel %vm384, %v3636, 0
    %v4253 = vsel %vm384, %v3746, 0
    %4255 = vmatprep.subr.mxu0 0.0
    %4256 = vmatpush1.xpose.msra.mxu0 %v4253
    %4257 = vmatprep.subr.mxu0 0.0
    %4258 = vmatpush1.xpose.msra.mxu0 0.0
    %4259 = vmatprep.subr.mxu0 0.0
    %4260 = vmatpush1.xpose.msra.mxu0 0.0
    %4261 = vmatprep.subr.mxu0 0.0
    %4262 = vmatpush1.xpose.msra.mxu0 0.0
    %4263 = vmatprep.subr.mxu0 0.0
    %4264 = vmatpush1.xpose.msra.mxu0 0.0
    %4265 = vmatprep.subr.mxu0 0.0
    %4266 = vmatpush1.xpose.msra.mxu0 0.0
    %4267 = vmatprep.subr.mxu0 0.0
    %4268 = vmatpush1.xpose.msra.mxu0 0.0
    %4269 = vmatprep.subr.mxu0 0.0
    %4270 = vmatpush1.xpose.msra.mxu0 0.0
    %4271 = vmatprep.subr.mxu0 0.0
    %4272 = vmatpush1.xpose.msra.mxu0 0.0
    %4273 = vmatprep.subr.mxu0 0.0
    %4274 = vmatpush1.xpose.msra.mxu0 0.0
    %4275 = vmatprep.subr.mxu0 0.0
    %4276 = vmatpush1.xpose.msra.mxu0 0.0
    %4277 = vmatprep.subr.mxu0 0.0
    %4278 = vmatpush1.xpose.msra.mxu0 0.0
    %4279 = vmatprep.subr.mxu0 0.0
    %4280 = vmatpush1.xpose.msra.mxu0 0.0
    %4281 = vmatprep.subr.mxu0 0.0
    %4282 = vmatpush1.xpose.msra.mxu0 0.0
    %4283 = vmatprep.subr.mxu0 0.0
    %4284 = vmatpush1.xpose.msra.mxu0 0.0
    %4285 = vmatprep.subr.mxu0 0.0
    %4286 = vmatpush1.xpose.msra.mxu0 0.0
    %4287 = vmatprep.subr.mxu0 0.0
    %4288 = vmatpush1.xpose.msra.mxu0 0.0
    %4289 = vmatprep.subr.mxu0 0.0
    %4290 = vmatpush1.xpose.msra.mxu0 0.0
    %4291 = vmatprep.subr.mxu0 0.0
    %4292 = vmatpush1.xpose.msra.mxu0 0.0
    %4293 = vmatprep.subr.mxu0 0.0
    %4294 = vmatpush1.xpose.msra.mxu0 0.0
    %4295 = vmatprep.subr.mxu0 0.0
    %4296 = vmatpush1.xpose.msra.mxu0 0.0
    %4297 = vmatprep.subr.mxu0 0.0
    %4298 = vmatpush1.xpose.msra.mxu0 0.0
    %4299 = vmatprep.subr.mxu0 0.0
    %4300 = vmatpush1.xpose.msra.mxu0 0.0
    %4301 = vmatprep.subr.mxu0 0.0
    %4302 = vmatpush1.xpose.msra.mxu0 0.0
    %4303 = vmatprep.subr.mxu0 0.0
    %4304 = vmatpush1.xpose.msra.mxu0 0.0
    %4305 = vmatprep.subr.mxu0 0.0
    %4306 = vmatpush1.xpose.msra.mxu0 0.0
    %4307 = vmatprep.subr.mxu0 0.0
    %4308 = vmatpush1.xpose.msra.mxu0 0.0
    %4309 = vmatprep.subr.mxu0 0.0
    %4310 = vmatpush1.xpose.msra.mxu0 0.0
    %4311 = vmatprep.subr.mxu0 0.0
    %4312 = vmatpush1.xpose.msra.mxu0 0.0
    %4313 = vmatprep.subr.mxu0 0.0
    %4314 = vmatpush1.xpose.msra.mxu0 0.0
    %4315 = vmatprep.subr.mxu0 0.0
    %4316 = vmatpush1.xpose.msra.mxu0 0.0
    %4317 = vmatprep.subr.mxu0 0.0
    %4318 = vmatpush1.xpose.msra.mxu0 0.0
    %4319 = vmatprep.mubr.f32.mxu0 0.0
    %4320 = vmatmul.mubr.f32.gmra.mrb[0].mxu0 %v4250
    %v4321 = vpop.f32.mrb[0].mxu0
    %v4322 = vadd.f32 0.0, %v4321
    %v4323 = vpop.f32.mrb[0].mxu0
    %4324 = vdwg.mxu0
    %v4326 = vsel %vm384, %v3641, 0
    %v4329 = vsel %vm384, %v3751, 0
    %4331 = vmatprep.subr.mxu0 0.0
    %4332 = vmatpush1.xpose.msra.mxu0 %v4329
    %4333 = vmatprep.subr.mxu0 0.0
    %4334 = vmatpush1.xpose.msra.mxu0 0.0
    %4335 = vmatprep.subr.mxu0 0.0
    %4336 = vmatpush1.xpose.msra.mxu0 0.0
    %4337 = vmatprep.subr.mxu0 0.0
    %4338 = vmatpush1.xpose.msra.mxu0 0.0
    %4339 = vmatprep.subr.mxu0 0.0
    %4340 = vmatpush1.xpose.msra.mxu0 0.0
    %4341 = vmatprep.subr.mxu0 0.0
    %4342 = vmatpush1.xpose.msra.mxu0 0.0
    %4343 = vmatprep.subr.mxu0 0.0
    %4344 = vmatpush1.xpose.msra.mxu0 0.0
    %4345 = vmatprep.subr.mxu0 0.0
    %4346 = vmatpush1.xpose.msra.mxu0 0.0
    %4347 = vmatprep.subr.mxu0 0.0
    %4348 = vmatpush1.xpose.msra.mxu0 0.0
    %4349 = vmatprep.subr.mxu0 0.0
    %4350 = vmatpush1.xpose.msra.mxu0 0.0
    %4351 = vmatprep.subr.mxu0 0.0
    %4352 = vmatpush1.xpose.msra.mxu0 0.0
    %4353 = vmatprep.subr.mxu0 0.0
    %4354 = vmatpush1.xpose.msra.mxu0 0.0
    %4355 = vmatprep.subr.mxu0 0.0
    %4356 = vmatpush1.xpose.msra.mxu0 0.0
    %4357 = vmatprep.subr.mxu0 0.0
    %4358 = vmatpush1.xpose.msra.mxu0 0.0
    %4359 = vmatprep.subr.mxu0 0.0
    %4360 = vmatpush1.xpose.msra.mxu0 0.0
    %4361 = vmatprep.subr.mxu0 0.0
    %4362 = vmatpush1.xpose.msra.mxu0 0.0
    %4363 = vmatprep.subr.mxu0 0.0
    %4364 = vmatpush1.xpose.msra.mxu0 0.0
    %4365 = vmatprep.subr.mxu0 0.0
    %4366 = vmatpush1.xpose.msra.mxu0 0.0
    %4367 = vmatprep.subr.mxu0 0.0
    %4368 = vmatpush1.xpose.msra.mxu0 0.0
    %4369 = vmatprep.subr.mxu0 0.0
    %4370 = vmatpush1.xpose.msra.mxu0 0.0
    %4371 = vmatprep.subr.mxu0 0.0
    %4372 = vmatpush1.xpose.msra.mxu0 0.0
    %4373 = vmatprep.subr.mxu0 0.0
    %4374 = vmatpush1.xpose.msra.mxu0 0.0
    %4375 = vmatprep.subr.mxu0 0.0
    %4376 = vmatpush1.xpose.msra.mxu0 0.0
    %4377 = vmatprep.subr.mxu0 0.0
    %4378 = vmatpush1.xpose.msra.mxu0 0.0
    %4379 = vmatprep.subr.mxu0 0.0
    %4380 = vmatpush1.xpose.msra.mxu0 0.0
    %4381 = vmatprep.subr.mxu0 0.0
    %4382 = vmatpush1.xpose.msra.mxu0 0.0
    %4383 = vmatprep.subr.mxu0 0.0
    %4384 = vmatpush1.xpose.msra.mxu0 0.0
    %4385 = vmatprep.subr.mxu0 0.0
    %4386 = vmatpush1.xpose.msra.mxu0 0.0
    %4387 = vmatprep.subr.mxu0 0.0
    %4388 = vmatpush1.xpose.msra.mxu0 0.0
    %4389 = vmatprep.subr.mxu0 0.0
    %4390 = vmatpush1.xpose.msra.mxu0 0.0
    %4391 = vmatprep.subr.mxu0 0.0
    %4392 = vmatpush1.xpose.msra.mxu0 0.0
    %4393 = vmatprep.subr.mxu0 0.0
    %4394 = vmatpush1.xpose.msra.mxu0 0.0
    %4395 = vmatprep.mubr.f32.mxu0 0.0
    %4396 = vmatmul.mubr.f32.gmra.mrb[0].mxu0 %v4326
    %v4397 = vpop.f32.mrb[0].mxu0
    %v4398 = vadd.f32 0.0, %v4397
    %v4399 = vpop.f32.mrb[0].mxu0
    %4400 = vdwg.mxu0
    %v4402 = vsel %vm384, %v3646, 0
    %v4405 = vsel %vm384, %v3756, 0
    %4407 = vmatprep.subr.mxu0 0.0
    %4408 = vmatpush1.xpose.msra.mxu0 %v4405
    %4409 = vmatprep.subr.mxu0 0.0
    %4410 = vmatpush1.xpose.msra.mxu0 0.0
    %4411 = vmatprep.subr.mxu0 0.0
    %4412 = vmatpush1.xpose.msra.mxu0 0.0
    %4413 = vmatprep.subr.mxu0 0.0
    %4414 = vmatpush1.xpose.msra.mxu0 0.0
    %4415 = vmatprep.subr.mxu0 0.0
    %4416 = vmatpush1.xpose.msra.mxu0 0.0
    %4417 = vmatprep.subr.mxu0 0.0
    %4418 = vmatpush1.xpose.msra.mxu0 0.0
    %4419 = vmatprep.subr.mxu0 0.0
    %4420 = vmatpush1.xpose.msra.mxu0 0.0
    %4421 = vmatprep.subr.mxu0 0.0
    %4422 = vmatpush1.xpose.msra.mxu0 0.0
    %4423 = vmatprep.subr.mxu0 0.0
    %4424 = vmatpush1.xpose.msra.mxu0 0.0
    %4425 = vmatprep.subr.mxu0 0.0
    %4426 = vmatpush1.xpose.msra.mxu0 0.0
    %4427 = vmatprep.subr.mxu0 0.0
    %4428 = vmatpush1.xpose.msra.mxu0 0.0
    %4429 = vmatprep.subr.mxu0 0.0
    %4430 = vmatpush1.xpose.msra.mxu0 0.0
    %4431 = vmatprep.subr.mxu0 0.0
    %4432 = vmatpush1.xpose.msra.mxu0 0.0
    %4433 = vmatprep.subr.mxu0 0.0
    %4434 = vmatpush1.xpose.msra.mxu0 0.0
    %4435 = vmatprep.subr.mxu0 0.0
    %4436 = vmatpush1.xpose.msra.mxu0 0.0
    %4437 = vmatprep.subr.mxu0 0.0
    %4438 = vmatpush1.xpose.msra.mxu0 0.0
    %4439 = vmatprep.subr.mxu0 0.0
    %4440 = vmatpush1.xpose.msra.mxu0 0.0
    %4441 = vmatprep.subr.mxu0 0.0
    %4442 = vmatpush1.xpose.msra.mxu0 0.0
    %4443 = vmatprep.subr.mxu0 0.0
    %4444 = vmatpush1.xpose.msra.mxu0 0.0
    %4445 = vmatprep.subr.mxu0 0.0
    %4446 = vmatpush1.xpose.msra.mxu0 0.0
    %4447 = vmatprep.subr.mxu0 0.0
    %4448 = vmatpush1.xpose.msra.mxu0 0.0
    %4449 = vmatprep.subr.mxu0 0.0
    %4450 = vmatpush1.xpose.msra.mxu0 0.0
    %4451 = vmatprep.subr.mxu0 0.0
    %4452 = vmatpush1.xpose.msra.mxu0 0.0
    %4453 = vmatprep.subr.mxu0 0.0
    %4454 = vmatpush1.xpose.msra.mxu0 0.0
    %4455 = vmatprep.subr.mxu0 0.0
    %4456 = vmatpush1.xpose.msra.mxu0 0.0
    %4457 = vmatprep.subr.mxu0 0.0
    %4458 = vmatpush1.xpose.msra.mxu0 0.0
    %4459 = vmatprep.subr.mxu0 0.0
    %4460 = vmatpush1.xpose.msra.mxu0 0.0
    %4461 = vmatprep.subr.mxu0 0.0
    %4462 = vmatpush1.xpose.msra.mxu0 0.0
    %4463 = vmatprep.subr.mxu0 0.0
    %4464 = vmatpush1.xpose.msra.mxu0 0.0
    %4465 = vmatprep.subr.mxu0 0.0
    %4466 = vmatpush1.xpose.msra.mxu0 0.0
    %4467 = vmatprep.subr.mxu0 0.0
    %4468 = vmatpush1.xpose.msra.mxu0 0.0
    %4469 = vmatprep.subr.mxu0 0.0
    %4470 = vmatpush1.xpose.msra.mxu0 0.0
    %4471 = vmatprep.mubr.f32.mxu0 0.0
    %4472 = vmatmul.mubr.f32.gmra.mrb[0].mxu0 %v4402
    %v4473 = vpop.f32.mrb[0].mxu0
    %v4474 = vadd.f32 0.0, %v4473
    %v4475 = vpop.f32.mrb[0].mxu0
    %4476 = vdwg.mxu0
    %v4477 = vsel %vm993, %v3942, -inf
    %4478 = vmax.xlane.f32.xlu0 %v4477
    %v4479 = vpop.xlane.xlu0 %4478
    %v4480 = vsel %vm993, %v4018, -inf
    %4481 = vmax.xlane.f32.xlu0 %v4480
    %v4482 = vpop.xlane.xlu0 %4481
    %v4483 = vsel %vm993, %v4094, -inf
    %4484 = vmax.xlane.f32.xlu0 %v4483
    %v4485 = vpop.xlane.xlu0 %4484
    %v4486 = vsel %vm993, %v4170, -inf
    %4487 = vmax.xlane.f32.xlu0 %v4486
    %v4488 = vpop.xlane.xlu0 %4487
    %v4489 = vsel %vm993, %v4246, -inf
    %4490 = vmax.xlane.f32.xlu0 %v4489
    %v4491 = vpop.xlane.xlu0 %4490
    %v4492 = vsel %vm993, %v4322, -inf
    %4493 = vmax.xlane.f32.xlu0 %v4492
    %v4494 = vpop.xlane.xlu0 %4493
    %v4495 = vsel %vm993, %v4398, -inf
    %4496 = vmax.xlane.f32.xlu0 %v4495
    %v4497 = vpop.xlane.xlu0 %4496
    %v4498 = vsel %vm993, %v4474, -inf
    %4499 = vmax.xlane.f32.xlu0 %v4498
    %v4500 = vpop.xlane.xlu0 %4499
    %v4501 = vsub.f32 %v3942, %v4479
    %v4502 = vsub.f32 %v4018, %v4482
    %v4503 = vsub.f32 %v4094, %v4485
    %v4504 = vsub.f32 %v4170, %v4488
    %v4505 = vsub.f32 %v4246, %v4491
    %v4506 = vsub.f32 %v4322, %v4494
    %v4507 = vsub.f32 %v4398, %v4497
    %v4508 = vsub.f32 %v4474, %v4500
    %v4509 = vmul.f32 %v4501, 1.442695
    %v4510 = vpow.pop %v4509
    %v4511 = vmul.f32 %v4502, 1.442695
    %v4512 = vpow.pop %v4511
    %v4513 = vmul.f32 %v4503, 1.442695
    %v4514 = vpow.pop %v4513
    %v4515 = vmul.f32 %v4504, 1.442695
    %v4516 = vpow.pop %v4515
    %v4517 = vmul.f32 %v4505, 1.442695
    %v4518 = vpow.pop %v4517
    %v4519 = vmul.f32 %v4506, 1.442695
    %v4520 = vpow.pop %v4519
    %v4521 = vmul.f32 %v4507, 1.442695
    %v4522 = vpow.pop %v4521
    %v4523 = vmul.f32 %v4508, 1.442695
    %v4524 = vpow.pop %v4523
    %v4525 = vsel %vm993, %v4510, 0.0
    %4526 = vadd.xlane.f32.xlu0 %v4525
    %v4527 = vpop.xlane.xlu0 %4526
    %v4528 = vsel %vm993, %v4512, 0.0
    %4529 = vadd.xlane.f32.xlu0 %v4528
    %v4530 = vpop.xlane.xlu0 %4529
    %v4531 = vsel %vm993, %v4514, 0.0
    %4532 = vadd.xlane.f32.xlu0 %v4531
    %v4533 = vpop.xlane.xlu0 %4532
    %v4534 = vsel %vm993, %v4516, 0.0
    %4535 = vadd.xlane.f32.xlu0 %v4534
    %v4536 = vpop.xlane.xlu0 %4535
    %v4537 = vsel %vm993, %v4518, 0.0
    %4538 = vadd.xlane.f32.xlu0 %v4537
    %v4539 = vpop.xlane.xlu0 %4538
    %v4540 = vsel %vm993, %v4520, 0.0
    %4541 = vadd.xlane.f32.xlu0 %v4540
    %v4542 = vpop.xlane.xlu0 %4541
    %v4543 = vsel %vm993, %v4522, 0.0
    %4544 = vadd.xlane.f32.xlu0 %v4543
    %v4545 = vpop.xlane.xlu0 %4544
    %v4546 = vsel %vm993, %v4524, 0.0
    %4547 = vadd.xlane.f32.xlu0 %v4546
    %v4548 = vpop.xlane.xlu0 %4547
    %v4549 = vrcp.pop %v4527
    %v4550 = vrcp.pop %v4530
    %v4551 = vrcp.pop %v4533
    %v4552 = vrcp.pop %v4536
    %v4553 = vrcp.pop %v4539
    %v4554 = vrcp.pop %v4542
    %v4555 = vrcp.pop %v4545
    %v4556 = vrcp.pop %v4548
    %v4557 = vmul.f32 %v4510, %v4549
    %v4558 = vmul.f32 %v4512, %v4550
    %v4559 = vmul.f32 %v4514, %v4551
    %v4560 = vmul.f32 %v4516, %v4552
    %v4561 = vmul.f32 %v4518, %v4553
    %v4562 = vmul.f32 %v4520, %v4554
    %v4563 = vmul.f32 %v4522, %v4555
    %v4564 = vmul.f32 %v4524, %v4556
    %v4566 = vsel %vm993, %v4557, 0
    %4568 = vmatprep.subr.mxu0 0.0
    %4569 = vmatpush1.msra.mxu0 %v3831
    %4570 = vmatprep.subr.mxu0 0.0
    %4571 = vmatpush1.msra.mxu0 0.0
    %4572 = vmatprep.subr.mxu0 0.0
    %4573 = vmatpush1.msra.mxu0 0.0
    %4574 = vmatprep.subr.mxu0 0.0
    %4575 = vmatpush1.msra.mxu0 0.0
    %4576 = vmatprep.subr.mxu0 0.0
    %4577 = vmatpush1.msra.mxu0 0.0
    %4578 = vmatprep.subr.mxu0 0.0
    %4579 = vmatpush1.msra.mxu0 0.0
    %4580 = vmatprep.subr.mxu0 0.0
    %4581 = vmatpush1.msra.mxu0 0.0
    %4582 = vmatprep.subr.mxu0 0.0
    %4583 = vmatpush1.msra.mxu0 0.0
    %4584 = vmatprep.subr.mxu0 0.0
    %4585 = vmatpush1.msra.mxu0 0.0
    %4586 = vmatprep.subr.mxu0 0.0
    %4587 = vmatpush1.msra.mxu0 0.0
    %4588 = vmatprep.subr.mxu0 0.0
    %4589 = vmatpush1.msra.mxu0 0.0
    %4590 = vmatprep.subr.mxu0 0.0
    %4591 = vmatpush1.msra.mxu0 0.0
    %4592 = vmatprep.subr.mxu0 0.0
    %4593 = vmatpush1.msra.mxu0 0.0
    %4594 = vmatprep.subr.mxu0 0.0
    %4595 = vmatpush1.msra.mxu0 0.0
    %4596 = vmatprep.subr.mxu0 0.0
    %4597 = vmatpush1.msra.mxu0 0.0
    %4598 = vmatprep.subr.mxu0 0.0
    %4599 = vmatpush1.msra.mxu0 0.0
    %4600 = vmatprep.subr.mxu0 0.0
    %4601 = vmatpush1.msra.mxu0 0.0
    %4602 = vmatprep.subr.mxu0 0.0
    %4603 = vmatpush1.msra.mxu0 0.0
    %4604 = vmatprep.subr.mxu0 0.0
    %4605 = vmatpush1.msra.mxu0 0.0
    %4606 = vmatprep.subr.mxu0 0.0
    %4607 = vmatpush1.msra.mxu0 0.0
    %4608 = vmatprep.subr.mxu0 0.0
    %4609 = vmatpush1.msra.mxu0 0.0
    %4610 = vmatprep.subr.mxu0 0.0
    %4611 = vmatpush1.msra.mxu0 0.0
    %4612 = vmatprep.subr.mxu0 0.0
    %4613 = vmatpush1.msra.mxu0 0.0
    %4614 = vmatprep.subr.mxu0 0.0
    %4615 = vmatpush1.msra.mxu0 0.0
    %4616 = vmatprep.subr.mxu0 0.0
    %4617 = vmatpush1.msra.mxu0 0.0
    %4618 = vmatprep.subr.mxu0 0.0
    %4619 = vmatpush1.msra.mxu0 0.0
    %4620 = vmatprep.subr.mxu0 0.0
    %4621 = vmatpush1.msra.mxu0 0.0
    %4622 = vmatprep.subr.mxu0 0.0
    %4623 = vmatpush1.msra.mxu0 0.0
    %4624 = vmatprep.subr.mxu0 0.0
    %4625 = vmatpush1.msra.mxu0 0.0
    %4626 = vmatprep.subr.mxu0 0.0
    %4627 = vmatpush1.msra.mxu0 0.0
    %4628 = vmatprep.subr.mxu0 0.0
    %4629 = vmatpush1.msra.mxu0 0.0
    %4630 = vmatprep.subr.mxu0 0.0
    %4631 = vmatpush1.msra.mxu0 0.0
    %4632 = vmatprep.mubr.f32.mxu0 0.0
    %4633 = vmatmul.mubr.f32.gmra.mrb[0].mxu0 %v4566
    %v4634 = vpop.f32.mrb[0].mxu0
    %v4635 = vadd.f32 0.0, %v4634
    %v4636 = vpop.f32.mrb[0].mxu0
    %4637 = vdwg.mxu0
    %v4639 = vsel %vm993, %v4558, 0
    %4641 = vmatprep.subr.mxu0 0.0
    %4642 = vmatpush1.msra.mxu0 %v3836
    %4643 = vmatprep.subr.mxu0 0.0
    %4644 = vmatpush1.msra.mxu0 0.0
    %4645 = vmatprep.subr.mxu0 0.0
    %4646 = vmatpush1.msra.mxu0 0.0
    %4647 = vmatprep.subr.mxu0 0.0
    %4648 = vmatpush1.msra.mxu0 0.0
    %4649 = vmatprep.subr.mxu0 0.0
    %4650 = vmatpush1.msra.mxu0 0.0
    %4651 = vmatprep.subr.mxu0 0.0
    %4652 = vmatpush1.msra.mxu0 0.0
    %4653 = vmatprep.subr.mxu0 0.0
    %4654 = vmatpush1.msra.mxu0 0.0
    %4655 = vmatprep.subr.mxu0 0.0
    %4656 = vmatpush1.msra.mxu0 0.0
    %4657 = vmatprep.subr.mxu0 0.0
    %4658 = vmatpush1.msra.mxu0 0.0
    %4659 = vmatprep.subr.mxu0 0.0
    %4660 = vmatpush1.msra.mxu0 0.0
    %4661 = vmatprep.subr.mxu0 0.0
    %4662 = vmatpush1.msra.mxu0 0.0
    %4663 = vmatprep.subr.mxu0 0.0
    %4664 = vmatpush1.msra.mxu0 0.0
    %4665 = vmatprep.subr.mxu0 0.0
    %4666 = vmatpush1.msra.mxu0 0.0
    %4667 = vmatprep.subr.mxu0 0.0
    %4668 = vmatpush1.msra.mxu0 0.0
    %4669 = vmatprep.subr.mxu0 0.0
    %4670 = vmatpush1.msra.mxu0 0.0
    %4671 = vmatprep.subr.mxu0 0.0
    %4672 = vmatpush1.msra.mxu0 0.0
    %4673 = vmatprep.subr.mxu0 0.0
    %4674 = vmatpush1.msra.mxu0 0.0
    %4675 = vmatprep.subr.mxu0 0.0
    %4676 = vmatpush1.msra.mxu0 0.0
    %4677 = vmatprep.subr.mxu0 0.0
    %4678 = vmatpush1.msra.mxu0 0.0
    %4679 = vmatprep.subr.mxu0 0.0
    %4680 = vmatpush1.msra.mxu0 0.0
    %4681 = vmatprep.subr.mxu0 0.0
    %4682 = vmatpush1.msra.mxu0 0.0
    %4683 = vmatprep.subr.mxu0 0.0
    %4684 = vmatpush1.msra.mxu0 0.0
    %4685 = vmatprep.subr.mxu0 0.0
    %4686 = vmatpush1.msra.mxu0 0.0
    %4687 = vmatprep.subr.mxu0 0.0
    %4688 = vmatpush1.msra.mxu0 0.0
    %4689 = vmatprep.subr.mxu0 0.0
    %4690 = vmatpush1.msra.mxu0 0.0
    %4691 = vmatprep.subr.mxu0 0.0
    %4692 = vmatpush1.msra.mxu0 0.0
    %4693 = vmatprep.subr.mxu0 0.0
    %4694 = vmatpush1.msra.mxu0 0.0
    %4695 = vmatprep.subr.mxu0 0.0
    %4696 = vmatpush1.msra.mxu0 0.0
    %4697 = vmatprep.subr.mxu0 0.0
    %4698 = vmatpush1.msra.mxu0 0.0
    %4699 = vmatprep.subr.mxu0 0.0
    %4700 = vmatpush1.msra.mxu0 0.0
    %4701 = vmatprep.subr.mxu0 0.0
    %4702 = vmatpush1.msra.mxu0 0.0
    %4703 = vmatprep.subr.mxu0 0.0
    %4704 = vmatpush1.msra.mxu0 0.0
    %4705 = vmatprep.mubr.f32.mxu0 0.0
    %4706 = vmatmul.mubr.f32.gmra.mrb[0].mxu0 %v4639
    %v4707 = vpop.f32.mrb[0].mxu0
    %v4708 = vadd.f32 0.0, %v4707
    %v4709 = vpop.f32.mrb[0].mxu0
    %4710 = vdwg.mxu0
    %v4712 = vsel %vm993, %v4559, 0
    %4714 = vmatprep.subr.mxu0 0.0
    %4715 = vmatpush1.msra.mxu0 %v3841
    %4716 = vmatprep.subr.mxu0 0.0
    %4717 = vmatpush1.msra.mxu0 0.0
    %4718 = vmatprep.subr.mxu0 0.0
    %4719 = vmatpush1.msra.mxu0 0.0
    %4720 = vmatprep.subr.mxu0 0.0
    %4721 = vmatpush1.msra.mxu0 0.0
    %4722 = vmatprep.subr.mxu0 0.0
    %4723 = vmatpush1.msra.mxu0 0.0
    %4724 = vmatprep.subr.mxu0 0.0
    %4725 = vmatpush1.msra.mxu0 0.0
    %4726 = vmatprep.subr.mxu0 0.0
    %4727 = vmatpush1.msra.mxu0 0.0
    %4728 = vmatprep.subr.mxu0 0.0
    %4729 = vmatpush1.msra.mxu0 0.0
    %4730 = vmatprep.subr.mxu0 0.0
    %4731 = vmatpush1.msra.mxu0 0.0
    %4732 = vmatprep.subr.mxu0 0.0
    %4733 = vmatpush1.msra.mxu0 0.0
    %4734 = vmatprep.subr.mxu0 0.0
    %4735 = vmatpush1.msra.mxu0 0.0
    %4736 = vmatprep.subr.mxu0 0.0
    %4737 = vmatpush1.msra.mxu0 0.0
    %4738 = vmatprep.subr.mxu0 0.0
    %4739 = vmatpush1.msra.mxu0 0.0
    %4740 = vmatprep.subr.mxu0 0.0
    %4741 = vmatpush1.msra.mxu0 0.0
    %4742 = vmatprep.subr.mxu0 0.0
    %4743 = vmatpush1.msra.mxu0 0.0
    %4744 = vmatprep.subr.mxu0 0.0
    %4745 = vmatpush1.msra.mxu0 0.0
    %4746 = vmatprep.subr.mxu0 0.0
    %4747 = vmatpush1.msra.mxu0 0.0
    %4748 = vmatprep.subr.mxu0 0.0
    %4749 = vmatpush1.msra.mxu0 0.0
    %4750 = vmatprep.subr.mxu0 0.0
    %4751 = vmatpush1.msra.mxu0 0.0
    %4752 = vmatprep.subr.mxu0 0.0
    %4753 = vmatpush1.msra.mxu0 0.0
    %4754 = vmatprep.subr.mxu0 0.0
    %4755 = vmatpush1.msra.mxu0 0.0
    %4756 = vmatprep.subr.mxu0 0.0
    %4757 = vmatpush1.msra.mxu0 0.0
    %4758 = vmatprep.subr.mxu0 0.0
    %4759 = vmatpush1.msra.mxu0 0.0
    %4760 = vmatprep.subr.mxu0 0.0
    %4761 = vmatpush1.msra.mxu0 0.0
    %4762 = vmatprep.subr.mxu0 0.0
    %4763 = vmatpush1.msra.mxu0 0.0
    %4764 = vmatprep.subr.mxu0 0.0
    %4765 = vmatpush1.msra.mxu0 0.0
    %4766 = vmatprep.subr.mxu0 0.0
    %4767 = vmatpush1.msra.mxu0 0.0
    %4768 = vmatprep.subr.mxu0 0.0
    %4769 = vmatpush1.msra.mxu0 0.0
    %4770 = vmatprep.subr.mxu0 0.0
    %4771 = vmatpush1.msra.mxu0 0.0
    %4772 = vmatprep.subr.mxu0 0.0
    %4773 = vmatpush1.msra.mxu0 0.0
    %4774 = vmatprep.subr.mxu0 0.0
    %4775 = vmatpush1.msra.mxu0 0.0
    %4776 = vmatprep.subr.mxu0 0.0
    %4777 = vmatpush1.msra.mxu0 0.0
    %4778 = vmatprep.mubr.f32.mxu0 0.0
    %4779 = vmatmul.mubr.f32.gmra.mrb[0].mxu0 %v4712
    %v4780 = vpop.f32.mrb[0].mxu0
    %v4781 = vadd.f32 0.0, %v4780
    %v4782 = vpop.f32.mrb[0].mxu0
    %4783 = vdwg.mxu0
    %v4785 = vsel %vm993, %v4560, 0
    %4787 = vmatprep.subr.mxu0 0.0
    %4788 = vmatpush1.msra.mxu0 %v3846
    %4789 = vmatprep.subr.mxu0 0.0
    %4790 = vmatpush1.msra.mxu0 0.0
    %4791 = vmatprep.subr.mxu0 0.0
    %4792 = vmatpush1.msra.mxu0 0.0
    %4793 = vmatprep.subr.mxu0 0.0
    %4794 = vmatpush1.msra.mxu0 0.0
    %4795 = vmatprep.subr.mxu0 0.0
    %4796 = vmatpush1.msra.mxu0 0.0
    %4797 = vmatprep.subr.mxu0 0.0
    %4798 = vmatpush1.msra.mxu0 0.0
    %4799 = vmatprep.subr.mxu0 0.0
    %4800 = vmatpush1.msra.mxu0 0.0
    %4801 = vmatprep.subr.mxu0 0.0
    %4802 = vmatpush1.msra.mxu0 0.0
    %4803 = vmatprep.subr.mxu0 0.0
    %4804 = vmatpush1.msra.mxu0 0.0
    %4805 = vmatprep.subr.mxu0 0.0
    %4806 = vmatpush1.msra.mxu0 0.0
    %4807 = vmatprep.subr.mxu0 0.0
    %4808 = vmatpush1.msra.mxu0 0.0
    %4809 = vmatprep.subr.mxu0 0.0
    %4810 = vmatpush1.msra.mxu0 0.0
    %4811 = vmatprep.subr.mxu0 0.0
    %4812 = vmatpush1.msra.mxu0 0.0
    %4813 = vmatprep.subr.mxu0 0.0
    %4814 = vmatpush1.msra.mxu0 0.0
    %4815 = vmatprep.subr.mxu0 0.0
    %4816 = vmatpush1.msra.mxu0 0.0
    %4817 = vmatprep.subr.mxu0 0.0
    %4818 = vmatpush1.msra.mxu0 0.0
    %4819 = vmatprep.subr.mxu0 0.0
    %4820 = vmatpush1.msra.mxu0 0.0
    %4821 = vmatprep.subr.mxu0 0.0
    %4822 = vmatpush1.msra.mxu0 0.0
    %4823 = vmatprep.subr.mxu0 0.0
    %4824 = vmatpush1.msra.mxu0 0.0
    %4825 = vmatprep.subr.mxu0 0.0
    %4826 = vmatpush1.msra.mxu0 0.0
    %4827 = vmatprep.subr.mxu0 0.0
    %4828 = vmatpush1.msra.mxu0 0.0
    %4829 = vmatprep.subr.mxu0 0.0
    %4830 = vmatpush1.msra.mxu0 0.0
    %4831 = vmatprep.subr.mxu0 0.0
    %4832 = vmatpush1.msra.mxu0 0.0
    %4833 = vmatprep.subr.mxu0 0.0
    %4834 = vmatpush1.msra.mxu0 0.0
    %4835 = vmatprep.subr.mxu0 0.0
    %4836 = vmatpush1.msra.mxu0 0.0
    %4837 = vmatprep.subr.mxu0 0.0
    %4838 = vmatpush1.msra.mxu0 0.0
    %4839 = vmatprep.subr.mxu0 0.0
    %4840 = vmatpush1.msra.mxu0 0.0
    %4841 = vmatprep.subr.mxu0 0.0
    %4842 = vmatpush1.msra.mxu0 0.0
    %4843 = vmatprep.subr.mxu0 0.0
    %4844 = vmatpush1.msra.mxu0 0.0
    %4845 = vmatprep.subr.mxu0 0.0
    %4846 = vmatpush1.msra.mxu0 0.0
    %4847 = vmatprep.subr.mxu0 0.0
    %4848 = vmatpush1.msra.mxu0 0.0
    %4849 = vmatprep.subr.mxu0 0.0
    %4850 = vmatpush1.msra.mxu0 0.0
    %4851 = vmatprep.mubr.f32.mxu0 0.0
    %4852 = vmatmul.mubr.f32.gmra.mrb[0].mxu0 %v4785
    %v4853 = vpop.f32.mrb[0].mxu0
    %v4854 = vadd.f32 0.0, %v4853
    %v4855 = vpop.f32.mrb[0].mxu0
    %4856 = vdwg.mxu0
    %v4858 = vsel %vm993, %v4561, 0
    %4860 = vmatprep.subr.mxu0 0.0
    %4861 = vmatpush1.msra.mxu0 %v3851
    %4862 = vmatprep.subr.mxu0 0.0
    %4863 = vmatpush1.msra.mxu0 0.0
    %4864 = vmatprep.subr.mxu0 0.0
    %4865 = vmatpush1.msra.mxu0 0.0
    %4866 = vmatprep.subr.mxu0 0.0
    %4867 = vmatpush1.msra.mxu0 0.0
    %4868 = vmatprep.subr.mxu0 0.0
    %4869 = vmatpush1.msra.mxu0 0.0
    %4870 = vmatprep.subr.mxu0 0.0
    %4871 = vmatpush1.msra.mxu0 0.0
    %4872 = vmatprep.subr.mxu0 0.0
    %4873 = vmatpush1.msra.mxu0 0.0
    %4874 = vmatprep.subr.mxu0 0.0
    %4875 = vmatpush1.msra.mxu0 0.0
    %4876 = vmatprep.subr.mxu0 0.0
    %4877 = vmatpush1.msra.mxu0 0.0
    %4878 = vmatprep.subr.mxu0 0.0
    %4879 = vmatpush1.msra.mxu0 0.0
    %4880 = vmatprep.subr.mxu0 0.0
    %4881 = vmatpush1.msra.mxu0 0.0
    %4882 = vmatprep.subr.mxu0 0.0
    %4883 = vmatpush1.msra.mxu0 0.0
    %4884 = vmatprep.subr.mxu0 0.0
    %4885 = vmatpush1.msra.mxu0 0.0
    %4886 = vmatprep.subr.mxu0 0.0
    %4887 = vmatpush1.msra.mxu0 0.0
    %4888 = vmatprep.subr.mxu0 0.0
    %4889 = vmatpush1.msra.mxu0 0.0
    %4890 = vmatprep.subr.mxu0 0.0
    %4891 = vmatpush1.msra.mxu0 0.0
    %4892 = vmatprep.subr.mxu0 0.0
    %4893 = vmatpush1.msra.mxu0 0.0
    %4894 = vmatprep.subr.mxu0 0.0
    %4895 = vmatpush1.msra.mxu0 0.0
    %4896 = vmatprep.subr.mxu0 0.0
    %4897 = vmatpush1.msra.mxu0 0.0
    %4898 = vmatprep.subr.mxu0 0.0
    %4899 = vmatpush1.msra.mxu0 0.0
    %4900 = vmatprep.subr.mxu0 0.0
    %4901 = vmatpush1.msra.mxu0 0.0
    %4902 = vmatprep.subr.mxu0 0.0
    %4903 = vmatpush1.msra.mxu0 0.0
    %4904 = vmatprep.subr.mxu0 0.0
    %4905 = vmatpush1.msra.mxu0 0.0
    %4906 = vmatprep.subr.mxu0 0.0
    %4907 = vmatpush1.msra.mxu0 0.0
    %4908 = vmatprep.subr.mxu0 0.0
    %4909 = vmatpush1.msra.mxu0 0.0
    %4910 = vmatprep.subr.mxu0 0.0
    %4911 = vmatpush1.msra.mxu0 0.0
    %4912 = vmatprep.subr.mxu0 0.0
    %4913 = vmatpush1.msra.mxu0 0.0
    %4914 = vmatprep.subr.mxu0 0.0
    %4915 = vmatpush1.msra.mxu0 0.0
    %4916 = vmatprep.subr.mxu0 0.0
    %4917 = vmatpush1.msra.mxu0 0.0
    %4918 = vmatprep.subr.mxu0 0.0
    %4919 = vmatpush1.msra.mxu0 0.0
    %4920 = vmatprep.subr.mxu0 0.0
    %4921 = vmatpush1.msra.mxu0 0.0
    %4922 = vmatprep.subr.mxu0 0.0
    %4923 = vmatpush1.msra.mxu0 0.0
    %4924 = vmatprep.mubr.f32.mxu0 0.0
    %4925 = vmatmul.mubr.f32.gmra.mrb[0].mxu0 %v4858
    %v4926 = vpop.f32.mrb[0].mxu0
    %v4927 = vadd.f32 0.0, %v4926
    %v4928 = vpop.f32.mrb[0].mxu0
    %4929 = vdwg.mxu0
    %v4931 = vsel %vm993, %v4562, 0
    %4933 = vmatprep.subr.mxu0 0.0
    %4934 = vmatpush1.msra.mxu0 %v3856
    %4935 = vmatprep.subr.mxu0 0.0
    %4936 = vmatpush1.msra.mxu0 0.0
    %4937 = vmatprep.subr.mxu0 0.0
    %4938 = vmatpush1.msra.mxu0 0.0
    %4939 = vmatprep.subr.mxu0 0.0
    %4940 = vmatpush1.msra.mxu0 0.0
    %4941 = vmatprep.subr.mxu0 0.0
    %4942 = vmatpush1.msra.mxu0 0.0
    %4943 = vmatprep.subr.mxu0 0.0
    %4944 = vmatpush1.msra.mxu0 0.0
    %4945 = vmatprep.subr.mxu0 0.0
    %4946 = vmatpush1.msra.mxu0 0.0
    %4947 = vmatprep.subr.mxu0 0.0
    %4948 = vmatpush1.msra.mxu0 0.0
    %4949 = vmatprep.subr.mxu0 0.0
    %4950 = vmatpush1.msra.mxu0 0.0
    %4951 = vmatprep.subr.mxu0 0.0
    %4952 = vmatpush1.msra.mxu0 0.0
    %4953 = vmatprep.subr.mxu0 0.0
    %4954 = vmatpush1.msra.mxu0 0.0
    %4955 = vmatprep.subr.mxu0 0.0
    %4956 = vmatpush1.msra.mxu0 0.0
    %4957 = vmatprep.subr.mxu0 0.0
    %4958 = vmatpush1.msra.mxu0 0.0
    %4959 = vmatprep.subr.mxu0 0.0
    %4960 = vmatpush1.msra.mxu0 0.0
    %4961 = vmatprep.subr.mxu0 0.0
    %4962 = vmatpush1.msra.mxu0 0.0
    %4963 = vmatprep.subr.mxu0 0.0
    %4964 = vmatpush1.msra.mxu0 0.0
    %4965 = vmatprep.subr.mxu0 0.0
    %4966 = vmatpush1.msra.mxu0 0.0
    %4967 = vmatprep.subr.mxu0 0.0
    %4968 = vmatpush1.msra.mxu0 0.0
    %4969 = vmatprep.subr.mxu0 0.0
    %4970 = vmatpush1.msra.mxu0 0.0
    %4971 = vmatprep.subr.mxu0 0.0
    %4972 = vmatpush1.msra.mxu0 0.0
    %4973 = vmatprep.subr.mxu0 0.0
    %4974 = vmatpush1.msra.mxu0 0.0
    %4975 = vmatprep.subr.mxu0 0.0
    %4976 = vmatpush1.msra.mxu0 0.0
    %4977 = vmatprep.subr.mxu0 0.0
    %4978 = vmatpush1.msra.mxu0 0.0
    %4979 = vmatprep.subr.mxu0 0.0
    %4980 = vmatpush1.msra.mxu0 0.0
    %4981 = vmatprep.subr.mxu0 0.0
    %4982 = vmatpush1.msra.mxu0 0.0
    %4983 = vmatprep.subr.mxu0 0.0
    %4984 = vmatpush1.msra.mxu0 0.0
    %4985 = vmatprep.subr.mxu0 0.0
    %4986 = vmatpush1.msra.mxu0 0.0
    %4987 = vmatprep.subr.mxu0 0.0
    %4988 = vmatpush1.msra.mxu0 0.0
    %4989 = vmatprep.subr.mxu0 0.0
    %4990 = vmatpush1.msra.mxu0 0.0
    %4991 = vmatprep.subr.mxu0 0.0
    %4992 = vmatpush1.msra.mxu0 0.0
    %4993 = vmatprep.subr.mxu0 0.0
    %4994 = vmatpush1.msra.mxu0 0.0
    %4995 = vmatprep.subr.mxu0 0.0
    %4996 = vmatpush1.msra.mxu0 0.0
    %4997 = vmatprep.mubr.f32.mxu0 0.0
    %4998 = vmatmul.mubr.f32.gmra.mrb[0].mxu0 %v4931
    %v4999 = vpop.f32.mrb[0].mxu0
    %v5000 = vadd.f32 0.0, %v4999
    %v5001 = vpop.f32.mrb[0].mxu0
    %5002 = vdwg.mxu0
    %v5004 = vsel %vm993, %v4563, 0
    %5006 = vmatprep.subr.mxu0 0.0
    %5007 = vmatpush1.msra.mxu0 %v3861
    %5008 = vmatprep.subr.mxu0 0.0
    %5009 = vmatpush1.msra.mxu0 0.0
    %5010 = vmatprep.subr.mxu0 0.0
    %5011 = vmatpush1.msra.mxu0 0.0
    %5012 = vmatprep.subr.mxu0 0.0
    %5013 = vmatpush1.msra.mxu0 0.0
    %5014 = vmatprep.subr.mxu0 0.0
    %5015 = vmatpush1.msra.mxu0 0.0
    %5016 = vmatprep.subr.mxu0 0.0
    %5017 = vmatpush1.msra.mxu0 0.0
    %5018 = vmatprep.subr.mxu0 0.0
    %5019 = vmatpush1.msra.mxu0 0.0
    %5020 = vmatprep.subr.mxu0 0.0
    %5021 = vmatpush1.msra.mxu0 0.0
    %5022 = vmatprep.subr.mxu0 0.0
    %5023 = vmatpush1.msra.mxu0 0.0
    %5024 = vmatprep.subr.mxu0 0.0
    %5025 = vmatpush1.msra.mxu0 0.0
    %5026 = vmatprep.subr.mxu0 0.0
    %5027 = vmatpush1.msra.mxu0 0.0
    %5028 = vmatprep.subr.mxu0 0.0
    %5029 = vmatpush1.msra.mxu0 0.0
    %5030 = vmatprep.subr.mxu0 0.0
    %5031 = vmatpush1.msra.mxu0 0.0
    %5032 = vmatprep.subr.mxu0 0.0
    %5033 = vmatpush1.msra.mxu0 0.0
    %5034 = vmatprep.subr.mxu0 0.0
    %5035 = vmatpush1.msra.mxu0 0.0
    %5036 = vmatprep.subr.mxu0 0.0
    %5037 = vmatpush1.msra.mxu0 0.0
    %5038 = vmatprep.subr.mxu0 0.0
    %5039 = vmatpush1.msra.mxu0 0.0
    %5040 = vmatprep.subr.mxu0 0.0
    %5041 = vmatpush1.msra.mxu0 0.0
    %5042 = vmatprep.subr.mxu0 0.0
    %5043 = vmatpush1.msra.mxu0 0.0
    %5044 = vmatprep.subr.mxu0 0.0
    %5045 = vmatpush1.msra.mxu0 0.0
    %5046 = vmatprep.subr.mxu0 0.0
    %5047 = vmatpush1.msra.mxu0 0.0
    %5048 = vmatprep.subr.mxu0 0.0
    %5049 = vmatpush1.msra.mxu0 0.0
    %5050 = vmatprep.subr.mxu0 0.0
    %5051 = vmatpush1.msra.mxu0 0.0
    %5052 = vmatprep.subr.mxu0 0.0
    %5053 = vmatpush1.msra.mxu0 0.0
    %5054 = vmatprep.subr.mxu0 0.0
    %5055 = vmatpush1.msra.mxu0 0.0
    %5056 = vmatprep.subr.mxu0 0.0
    %5057 = vmatpush1.msra.mxu0 0.0
    %5058 = vmatprep.subr.mxu0 0.0
    %5059 = vmatpush1.msra.mxu0 0.0
    %5060 = vmatprep.subr.mxu0 0.0
    %5061 = vmatpush1.msra.mxu0 0.0
    %5062 = vmatprep.subr.mxu0 0.0
    %5063 = vmatpush1.msra.mxu0 0.0
    %5064 = vmatprep.subr.mxu0 0.0
    %5065 = vmatpush1.msra.mxu0 0.0
    %5066 = vmatprep.subr.mxu0 0.0
    %5067 = vmatpush1.msra.mxu0 0.0
    %5068 = vmatprep.subr.mxu0 0.0
    %5069 = vmatpush1.msra.mxu0 0.0
    %5070 = vmatprep.mubr.f32.mxu0 0.0
    %5071 = vmatmul.mubr.f32.gmra.mrb[0].mxu0 %v5004
    %v5072 = vpop.f32.mrb[0].mxu0
    %v5073 = vadd.f32 0.0, %v5072
    %v5074 = vpop.f32.mrb[0].mxu0
    %5075 = vdwg.mxu0
    %v5077 = vsel %vm993, %v4564, 0
    %5079 = vmatprep.subr.mxu0 0.0
    %5080 = vmatpush1.msra.mxu0 %v3866
    %5081 = vmatprep.subr.mxu0 0.0
    %5082 = vmatpush1.msra.mxu0 0.0
    %5083 = vmatprep.subr.mxu0 0.0
    %5084 = vmatpush1.msra.mxu0 0.0
    %5085 = vmatprep.subr.mxu0 0.0
    %5086 = vmatpush1.msra.mxu0 0.0
    %5087 = vmatprep.subr.mxu0 0.0
    %5088 = vmatpush1.msra.mxu0 0.0
    %5089 = vmatprep.subr.mxu0 0.0
    %5090 = vmatpush1.msra.mxu0 0.0
    %5091 = vmatprep.subr.mxu0 0.0
    %5092 = vmatpush1.msra.mxu0 0.0
    %5093 = vmatprep.subr.mxu0 0.0
    %5094 = vmatpush1.msra.mxu0 0.0
    %5095 = vmatprep.subr.mxu0 0.0
    %5096 = vmatpush1.msra.mxu0 0.0
    %5097 = vmatprep.subr.mxu0 0.0
    %5098 = vmatpush1.msra.mxu0 0.0
    %5099 = vmatprep.subr.mxu0 0.0
    %5100 = vmatpush1.msra.mxu0 0.0
    %5101 = vmatprep.subr.mxu0 0.0
    %5102 = vmatpush1.msra.mxu0 0.0
    %5103 = vmatprep.subr.mxu0 0.0
    %5104 = vmatpush1.msra.mxu0 0.0
    %5105 = vmatprep.subr.mxu0 0.0
    %5106 = vmatpush1.msra.mxu0 0.0
    %5107 = vmatprep.subr.mxu0 0.0
    %5108 = vmatpush1.msra.mxu0 0.0
    %5109 = vmatprep.subr.mxu0 0.0
    %5110 = vmatpush1.msra.mxu0 0.0
    %5111 = vmatprep.subr.mxu0 0.0
    %5112 = vmatpush1.msra.mxu0 0.0
    %5113 = vmatprep.subr.mxu0 0.0
    %5114 = vmatpush1.msra.mxu0 0.0
    %5115 = vmatprep.subr.mxu0 0.0
    %5116 = vmatpush1.msra.mxu0 0.0
    %5117 = vmatprep.subr.mxu0 0.0
    %5118 = vmatpush1.msra.mxu0 0.0
    %5119 = vmatprep.subr.mxu0 0.0
    %5120 = vmatpush1.msra.mxu0 0.0
    %5121 = vmatprep.subr.mxu0 0.0
    %5122 = vmatpush1.msra.mxu0 0.0
    %5123 = vmatprep.subr.mxu0 0.0
    %5124 = vmatpush1.msra.mxu0 0.0
    %5125 = vmatprep.subr.mxu0 0.0
    %5126 = vmatpush1.msra.mxu0 0.0
    %5127 = vmatprep.subr.mxu0 0.0
    %5128 = vmatpush1.msra.mxu0 0.0
    %5129 = vmatprep.subr.mxu0 0.0
    %5130 = vmatpush1.msra.mxu0 0.0
    %5131 = vmatprep.subr.mxu0 0.0
    %5132 = vmatpush1.msra.mxu0 0.0
    %5133 = vmatprep.subr.mxu0 0.0
    %5134 = vmatpush1.msra.mxu0 0.0
    %5135 = vmatprep.subr.mxu0 0.0
    %5136 = vmatpush1.msra.mxu0 0.0
    %5137 = vmatprep.subr.mxu0 0.0
    %5138 = vmatpush1.msra.mxu0 0.0
    %5139 = vmatprep.subr.mxu0 0.0
    %5140 = vmatpush1.msra.mxu0 0.0
    %5141 = vmatprep.subr.mxu0 0.0
    %5142 = vmatpush1.msra.mxu0 0.0
    %5143 = vmatprep.mubr.f32.mxu0 0.0
    %5144 = vmatmul.mubr.f32.gmra.mrb[0].mxu0 %v5077
    %v5145 = vpop.f32.mrb[0].mxu0
    %v5146 = vadd.f32 0.0, %v5145
    %v5147 = vpop.f32.mrb[0].mxu0
    %5148 = vdwg.mxu0
    %s5149 = scalar_lea.vmem %s4, 32
    %v5150 = vld [vmem:[%s5149] sm:$0xff]
    %v5151 = vld [vmem:[%s5149 + $0x8] sm:$0xff]
    %v5153 = vsel %vm384, %v4635, 0
    %v5156 = vsel %vm384, %v4708, 0
    %v5159 = vsel %vm384, %v4781, 0
    %v5162 = vsel %vm384, %v4854, 0
    %v5165 = vsel %vm384, %v4927, 0
    %v5168 = vsel %vm384, %v5000, 0
    %v5171 = vsel %vm384, %v5073, 0
    %v5174 = vsel %vm384, %v5146, 0
    %5176 = vmatprep.subr.mxu0 0.0
    %5177 = vmatpush1.msra.mxu0 %v5150
    %5178 = vmatprep.subr.mxu0 0.0
    %5179 = vmatpush1.msra.mxu0 %v5151
    %5180 = vmatprep.subr.mxu0 0.0
    %5181 = vmatpush1.msra.mxu0 0.0
    %5182 = vmatprep.subr.mxu0 0.0
    %5183 = vmatpush1.msra.mxu0 0.0
    %5184 = vmatprep.subr.mxu0 0.0
    %5185 = vmatpush1.msra.mxu0 0.0
    %5186 = vmatprep.subr.mxu0 0.0
    %5187 = vmatpush1.msra.mxu0 0.0
    %5188 = vmatprep.subr.mxu0 0.0
    %5189 = vmatpush1.msra.mxu0 0.0
    %5190 = vmatprep.subr.mxu0 0.0
    %5191 = vmatpush1.msra.mxu0 0.0
    %5192 = vmatprep.subr.mxu0 0.0
    %5193 = vmatpush1.msra.mxu0 0.0
    %5194 = vmatprep.subr.mxu0 0.0
    %5195 = vmatpush1.msra.mxu0 0.0
    %5196 = vmatprep.subr.mxu0 0.0
    %5197 = vmatpush1.msra.mxu0 0.0
    %5198 = vmatprep.subr.mxu0 0.0
    %5199 = vmatpush1.msra.mxu0 0.0
    %5200 = vmatprep.subr.mxu0 0.0
    %5201 = vmatpush1.msra.mxu0 0.0
    %5202 = vmatprep.subr.mxu0 0.0
    %5203 = vmatpush1.msra.mxu0 0.0
    %5204 = vmatprep.subr.mxu0 0.0
    %5205 = vmatpush1.msra.mxu0 0.0
    %5206 = vmatprep.subr.mxu0 0.0
    %5207 = vmatpush1.msra.mxu0 0.0
    %5208 = vmatprep.subr.mxu0 0.0
    %5209 = vmatpush1.msra.mxu0 0.0
    %5210 = vmatprep.subr.mxu0 0.0
    %5211 = vmatpush1.msra.mxu0 0.0
    %5212 = vmatprep.subr.mxu0 0.0
    %5213 = vmatpush1.msra.mxu0 0.0
    %5214 = vmatprep.subr.mxu0 0.0
    %5215 = vmatpush1.msra.mxu0 0.0
    %5216 = vmatprep.subr.mxu0 0.0
    %5217 = vmatpush1.msra.mxu0 0.0
    %5218 = vmatprep.subr.mxu0 0.0
    %5219 = vmatpush1.msra.mxu0 0.0
    %5220 = vmatprep.subr.mxu0 0.0
    %5221 = vmatpush1.msra.mxu0 0.0
    %5222 = vmatprep.subr.mxu0 0.0
    %5223 = vmatpush1.msra.mxu0 0.0
    %5224 = vmatprep.subr.mxu0 0.0
    %5225 = vmatpush1.msra.mxu0 0.0
    %5226 = vmatprep.subr.mxu0 0.0
    %5227 = vmatpush1.msra.mxu0 0.0
    %5228 = vmatprep.subr.mxu0 0.0
    %5229 = vmatpush1.msra.mxu0 0.0
    %5230 = vmatprep.subr.mxu0 0.0
    %5231 = vmatpush1.msra.mxu0 0.0
    %5232 = vmatprep.subr.mxu0 0.0
    %5233 = vmatpush1.msra.mxu0 0.0
    %5234 = vmatprep.subr.mxu0 0.0
    %5235 = vmatpush1.msra.mxu0 0.0
    %5236 = vmatprep.subr.mxu0 0.0
    %5237 = vmatpush1.msra.mxu0 0.0
    %5238 = vmatprep.subr.mxu0 0.0
    %5239 = vmatpush1.msra.mxu0 0.0
    %5240 = vmatprep.mubr.f32.mxu0 0.0
    %5241 = vmatmul.mubr.f32.gmra.mrb[0].mxu0 %v5153
    %v5242 = vpop.f32.mrb[0].mxu0
    %v5243 = vadd.f32 0.0, %v5242
    %v5244 = vpop.f32.mrb[0].mxu0
    %5245 = vmatprep.mubr.f32.mxu0 0.0
    %5246 = vmatmul.mubr.f32.gmra.mrb[0].mxu0 %v5156
    %v5247 = vpop.f32.mrb[0].mxu0
    %v5248 = vadd.f32 0.0, %v5247
    %v5249 = vpop.f32.mrb[0].mxu0
    %5250 = vmatprep.mubr.f32.mxu0 0.0
    %5251 = vmatmul.mubr.f32.gmra.mrb[0].mxu0 %v5159
    %v5252 = vpop.f32.mrb[0].mxu0
    %v5253 = vadd.f32 0.0, %v5252
    %v5254 = vpop.f32.mrb[0].mxu0
    %5255 = vmatprep.mubr.f32.mxu0 0.0
    %5256 = vmatmul.mubr.f32.gmra.mrb[0].mxu0 %v5162
    %v5257 = vpop.f32.mrb[0].mxu0
    %v5258 = vadd.f32 0.0, %v5257
    %v5259 = vpop.f32.mrb[0].mxu0
    %5260 = vmatprep.mubr.f32.mxu0 0.0
    %5261 = vmatmul.mubr.f32.gmra.mrb[0].mxu0 %v5165
    %v5262 = vpop.f32.mrb[0].mxu0
    %v5263 = vadd.f32 0.0, %v5262
    %v5264 = vpop.f32.mrb[0].mxu0
    %5265 = vmatprep.mubr.f32.mxu0 0.0
    %5266 = vmatmul.mubr.f32.gmra.mrb[0].mxu0 %v5168
    %v5267 = vpop.f32.mrb[0].mxu0
    %v5268 = vadd.f32 0.0, %v5267
    %v5269 = vpop.f32.mrb[0].mxu0
    %5270 = vmatprep.mubr.f32.mxu0 0.0
    %5271 = vmatmul.mubr.f32.gmra.mrb[0].mxu0 %v5171
    %v5272 = vpop.f32.mrb[0].mxu0
    %v5273 = vadd.f32 0.0, %v5272
    %v5274 = vpop.f32.mrb[0].mxu0
    %5275 = vmatprep.mubr.f32.mxu0 0.0
    %5276 = vmatmul.mubr.f32.gmra.mrb[0].mxu0 %v5174
    %v5277 = vpop.f32.mrb[0].mxu0
    %v5278 = vadd.f32 0.0, %v5277
    %v5279 = vpop.f32.mrb[0].mxu0
    %5280 = vdwg.mxu0
    %v5281 = vadd.f32 %v3501, %v5243
    %v5282 = vadd.f32 %v3506, %v5248
    %v5283 = vadd.f32 %v3511, %v5253
    %v5284 = vadd.f32 %v3516, %v5258
    %v5285 = vadd.f32 %v3521, %v5263
    %v5286 = vadd.f32 %v3526, %v5268
    %v5287 = vadd.f32 %v3531, %v5273
    %v5288 = vadd.f32 %v3536, %v5278
    %s5289 = scalar_lea.vmem %s1, 96
    %v5290 = vld [vmem:[%s5289] sm:$0xff]
    %v5291 = vld [vmem:[%s5289 + $0x8] sm:$0xff]
    %v5292 = vld [vmem:[%s5289 + $0x10] sm:$0xff]
    %v5293 = vld [vmem:[%s5289 + $0x18] sm:$0xff]
    %5294 = vmatprep.subr.mxu0 0.0
    %5295 = vmatpush1.msra.mxu0 %v5290
    %5296 = vmatprep.subr.mxu0 0.0
    %5297 = vmatpush1.msra.mxu0 %v5291
    %5298 = vmatprep.subr.mxu0 0.0
    %5299 = vmatpush1.msra.mxu0 %v5292
    %5300 = vmatprep.subr.mxu0 0.0
    %5301 = vmatpush1.msra.mxu0 %v5293
    %5302 = vmatprep.subr.mxu0 0.0
    %5303 = vmatpush1.msra.mxu0 0.0
    %5304 = vmatprep.subr.mxu0 0.0
    %5305 = vmatpush1.msra.mxu0 0.0
    %5306 = vmatprep.subr.mxu0 0.0
    %5307 = vmatpush1.msra.mxu0 0.0
    %5308 = vmatprep.subr.mxu0 0.0
    %5309 = vmatpush1.msra.mxu0 0.0
    %5310 = vmatprep.subr.mxu0 0.0
    %5311 = vmatpush1.msra.mxu0 0.0
    %5312 = vmatprep.subr.mxu0 0.0
    %5313 = vmatpush1.msra.mxu0 0.0
    %5314 = vmatprep.subr.mxu0 0.0
    %5315 = vmatpush1.msra.mxu0 0.0
    %5316 = vmatprep.subr.mxu0 0.0
    %5317 = vmatpush1.msra.mxu0 0.0
    %5318 = vmatprep.subr.mxu0 0.0
    %5319 = vmatpush1.msra.mxu0 0.0
    %5320 = vmatprep.subr.mxu0 0.0
    %5321 = vmatpush1.msra.mxu0 0.0
    %5322 = vmatprep.subr.mxu0 0.0
    %5323 = vmatpush1.msra.mxu0 0.0
    %5324 = vmatprep.subr.mxu0 0.0
    %5325 = vmatpush1.msra.mxu0 0.0
    %5326 = vmatprep.subr.mxu0 0.0
    %5327 = vmatpush1.msra.mxu0 0.0
    %5328 = vmatprep.subr.mxu0 0.0
    %5329 = vmatpush1.msra.mxu0 0.0
    %5330 = vmatprep.subr.mxu0 0.0
    %5331 = vmatpush1.msra.mxu0 0.0
    %5332 = vmatprep.subr.mxu0 0.0
    %5333 = vmatpush1.msra.mxu0 0.0
    %5334 = vmatprep.subr.mxu0 0.0
    %5335 = vmatpush1.msra.mxu0 0.0
    %5336 = vmatprep.subr.mxu0 0.0
    %5337 = vmatpush1.msra.mxu0 0.0
    %5338 = vmatprep.subr.mxu0 0.0
    %5339 = vmatpush1.msra.mxu0 0.0
    %5340 = vmatprep.subr.mxu0 0.0
    %5341 = vmatpush1.msra.mxu0 0.0
    %5342 = vmatprep.subr.mxu0 0.0
    %5343 = vmatpush1.msra.mxu0 0.0
    %5344 = vmatprep.subr.mxu0 0.0
    %5345 = vmatpush1.msra.mxu0 0.0
    %5346 = vmatprep.subr.mxu0 0.0
    %5347 = vmatpush1.msra.mxu0 0.0
    %5348 = vmatprep.subr.mxu0 0.0
    %5349 = vmatpush1.msra.mxu0 0.0
    %5350 = vmatprep.subr.mxu0 0.0
    %5351 = vmatpush1.msra.mxu0 0.0
    %5352 = vmatprep.subr.mxu0 0.0
    %5353 = vmatpush1.msra.mxu0 0.0
    %5354 = vmatprep.subr.mxu0 0.0
    %5355 = vmatpush1.msra.mxu0 0.0
    %5356 = vmatprep.subr.mxu0 0.0
    %5357 = vmatpush1.msra.mxu0 0.0
    %5358 = vmatprep.mubr.f32.mxu0 0.0
    %5359 = vmatmul.mubr.f32.gmra.mrb[0].mxu0 %v38
    %v5360 = vpop.f32.mrb[0].mxu0
    %v5361 = vadd.f32 0.0, %v5360
    %v5362 = vpop.f32.mrb[0].mxu0
    %5363 = vmatprep.mubr.f32.mxu0 0.0
    %5364 = vmatmul.mubr.f32.gmra.mrb[0].mxu0 %v41
    %v5365 = vpop.f32.mrb[0].mxu0
    %v5366 = vadd.f32 0.0, %v5365
    %v5367 = vpop.f32.mrb[0].mxu0
    %5368 = vmatprep.mubr.f32.mxu0 0.0
    %5369 = vmatmul.mubr.f32.gmra.mrb[0].mxu0 %v44
    %v5370 = vpop.f32.mrb[0].mxu0
    %v5371 = vadd.f32 0.0, %v5370
    %v5372 = vpop.f32.mrb[0].mxu0
    %5373 = vmatprep.mubr.f32.mxu0 0.0
    %5374 = vmatmul.mubr.f32.gmra.mrb[0].mxu0 %v47
    %v5375 = vpop.f32.mrb[0].mxu0
    %v5376 = vadd.f32 0.0, %v5375
    %v5377 = vpop.f32.mrb[0].mxu0
    %5378 = vmatprep.mubr.f32.mxu0 0.0
    %5379 = vmatmul.mubr.f32.gmra.mrb[0].mxu0 %v50
    %v5380 = vpop.f32.mrb[0].mxu0
    %v5381 = vadd.f32 0.0, %v5380
    %v5382 = vpop.f32.mrb[0].mxu0
    %5383 = vmatprep.mubr.f32.mxu0 0.0
    %5384 = vmatmul.mubr.f32.gmra.mrb[0].mxu0 %v53
    %v5385 = vpop.f32.mrb[0].mxu0
    %v5386 = vadd.f32 0.0, %v5385
    %v5387 = vpop.f32.mrb[0].mxu0
    %5388 = vmatprep.mubr.f32.mxu0 0.0
    %5389 = vmatmul.mubr.f32.gmra.mrb[0].mxu0 %v56
    %v5390 = vpop.f32.mrb[0].mxu0
    %v5391 = vadd.f32 0.0, %v5390
    %v5392 = vpop.f32.mrb[0].mxu0
    %5393 = vmatprep.mubr.f32.mxu0 0.0
    %5394 = vmatmul.mubr.f32.gmra.mrb[0].mxu0 %v59
    %v5395 = vpop.f32.mrb[0].mxu0
    %v5396 = vadd.f32 0.0, %v5395
    %v5397 = vpop.f32.mrb[0].mxu0
    %5398 = vdwg.mxu0
    %s5399 = scalar_lea.vmem %s2, 96
    %v5400 = vld [vmem:[%s5399] sm:$0xff]
    %v5401 = vld [vmem:[%s5399 + $0x8] sm:$0xff]
    %v5402 = vld [vmem:[%s5399 + $0x10] sm:$0xff]
    %v5403 = vld [vmem:[%s5399 + $0x18] sm:$0xff]
    %5404 = vmatprep.subr.mxu0 0.0
    %5405 = vmatpush1.msra.mxu0 %v5400
    %5406 = vmatprep.subr.mxu0 0.0
    %5407 = vmatpush1.msra.mxu0 %v5401
    %5408 = vmatprep.subr.mxu0 0.0
    %5409 = vmatpush1.msra.mxu0 %v5402
    %5410 = vmatprep.subr.mxu0 0.0
    %5411 = vmatpush1.msra.mxu0 %v5403
    %5412 = vmatprep.subr.mxu0 0.0
    %5413 = vmatpush1.msra.mxu0 0.0
    %5414 = vmatprep.subr.mxu0 0.0
    %5415 = vmatpush1.msra.mxu0 0.0
    %5416 = vmatprep.subr.mxu0 0.0
    %5417 = vmatpush1.msra.mxu0 0.0
    %5418 = vmatprep.subr.mxu0 0.0
    %5419 = vmatpush1.msra.mxu0 0.0
    %5420 = vmatprep.subr.mxu0 0.0
    %5421 = vmatpush1.msra.mxu0 0.0
    %5422 = vmatprep.subr.mxu0 0.0
    %5423 = vmatpush1.msra.mxu0 0.0
    %5424 = vmatprep.subr.mxu0 0.0
    %5425 = vmatpush1.msra.mxu0 0.0
    %5426 = vmatprep.subr.mxu0 0.0
    %5427 = vmatpush1.msra.mxu0 0.0
    %5428 = vmatprep.subr.mxu0 0.0
    %5429 = vmatpush1.msra.mxu0 0.0
    %5430 = vmatprep.subr.mxu0 0.0
    %5431 = vmatpush1.msra.mxu0 0.0
    %5432 = vmatprep.subr.mxu0 0.0
    %5433 = vmatpush1.msra.mxu0 0.0
    %5434 = vmatprep.subr.mxu0 0.0
    %5435 = vmatpush1.msra.mxu0 0.0
    %5436 = vmatprep.subr.mxu0 0.0
    %5437 = vmatpush1.msra.mxu0 0.0
    %5438 = vmatprep.subr.mxu0 0.0
    %5439 = vmatpush1.msra.mxu0 0.0
    %5440 = vmatprep.subr.mxu0 0.0
    %5441 = vmatpush1.msra.mxu0 0.0
    %5442 = vmatprep.subr.mxu0 0.0
    %5443 = vmatpush1.msra.mxu0 0.0
    %5444 = vmatprep.subr.mxu0 0.0
    %5445 = vmatpush1.msra.mxu0 0.0
    %5446 = vmatprep.subr.mxu0 0.0
    %5447 = vmatpush1.msra.mxu0 0.0
    %5448 = vmatprep.subr.mxu0 0.0
    %5449 = vmatpush1.msra.mxu0 0.0
    %5450 = vmatprep.subr.mxu0 0.0
    %5451 = vmatpush1.msra.mxu0 0.0
    %5452 = vmatprep.subr.mxu0 0.0
    %5453 = vmatpush1.msra.mxu0 0.0
    %5454 = vmatprep.subr.mxu0 0.0
    %5455 = vmatpush1.msra.mxu0 0.0
    %5456 = vmatprep.subr.mxu0 0.0
    %5457 = vmatpush1.msra.mxu0 0.0
    %5458 = vmatprep.subr.mxu0 0.0
    %5459 = vmatpush1.msra.mxu0 0.0
    %5460 = vmatprep.subr.mxu0 0.0
    %5461 = vmatpush1.msra.mxu0 0.0
    %5462 = vmatprep.subr.mxu0 0.0
    %5463 = vmatpush1.msra.mxu0 0.0
    %5464 = vmatprep.subr.mxu0 0.0
    %5465 = vmatpush1.msra.mxu0 0.0
    %5466 = vmatprep.subr.mxu0 0.0
    %5467 = vmatpush1.msra.mxu0 0.0
    %5468 = vmatprep.mubr.f32.mxu0 0.0
    %5469 = vmatmul.mubr.f32.gmra.mrb[0].mxu0 %v38
    %v5470 = vpop.f32.mrb[0].mxu0
    %v5471 = vadd.f32 0.0, %v5470
    %v5472 = vpop.f32.mrb[0].mxu0
    %5473 = vmatprep.mubr.f32.mxu0 0.0
    %5474 = vmatmul.mubr.f32.gmra.mrb[0].mxu0 %v41
    %v5475 = vpop.f32.mrb[0].mxu0
    %v5476 = vadd.f32 0.0, %v5475
    %v5477 = vpop.f32.mrb[0].mxu0
    %5478 = vmatprep.mubr.f32.mxu0 0.0
    %5479 = vmatmul.mubr.f32.gmra.mrb[0].mxu0 %v44
    %v5480 = vpop.f32.mrb[0].mxu0
    %v5481 = vadd.f32 0.0, %v5480
    %v5482 = vpop.f32.mrb[0].mxu0
    %5483 = vmatprep.mubr.f32.mxu0 0.0
    %5484 = vmatmul.mubr.f32.gmra.mrb[0].mxu0 %v47
    %v5485 = vpop.f32.mrb[0].mxu0
    %v5486 = vadd.f32 0.0, %v5485
    %v5487 = vpop.f32.mrb[0].mxu0
    %5488 = vmatprep.mubr.f32.mxu0 0.0
    %5489 = vmatmul.mubr.f32.gmra.mrb[0].mxu0 %v50
    %v5490 = vpop.f32.mrb[0].mxu0
    %v5491 = vadd.f32 0.0, %v5490
    %v5492 = vpop.f32.mrb[0].mxu0
    %5493 = vmatprep.mubr.f32.mxu0 0.0
    %5494 = vmatmul.mubr.f32.gmra.mrb[0].mxu0 %v53
    %v5495 = vpop.f32.mrb[0].mxu0
    %v5496 = vadd.f32 0.0, %v5495
    %v5497 = vpop.f32.mrb[0].mxu0
    %5498 = vmatprep.mubr.f32.mxu0 0.0
    %5499 = vmatmul.mubr.f32.gmra.mrb[0].mxu0 %v56
    %v5500 = vpop.f32.mrb[0].mxu0
    %v5501 = vadd.f32 0.0, %v5500
    %v5502 = vpop.f32.mrb[0].mxu0
    %5503 = vmatprep.mubr.f32.mxu0 0.0
    %5504 = vmatmul.mubr.f32.gmra.mrb[0].mxu0 %v59
    %v5505 = vpop.f32.mrb[0].mxu0
    %v5506 = vadd.f32 0.0, %v5505
    %v5507 = vpop.f32.mrb[0].mxu0
    %5508 = vdwg.mxu0
    %s5509 = scalar_lea.vmem %s3, 96
    %v5510 = vld [vmem:[%s5509] sm:$0xff]
    %v5511 = vld [vmem:[%s5509 + $0x8] sm:$0xff]
    %v5512 = vld [vmem:[%s5509 + $0x10] sm:$0xff]
    %v5513 = vld [vmem:[%s5509 + $0x18] sm:$0xff]
    %5514 = vmatprep.subr.mxu0 0.0
    %5515 = vmatpush1.msra.mxu0 %v5510
    %5516 = vmatprep.subr.mxu0 0.0
    %5517 = vmatpush1.msra.mxu0 %v5511
    %5518 = vmatprep.subr.mxu0 0.0
    %5519 = vmatpush1.msra.mxu0 %v5512
    %5520 = vmatprep.subr.mxu0 0.0
    %5521 = vmatpush1.msra.mxu0 %v5513
    %5522 = vmatprep.subr.mxu0 0.0
    %5523 = vmatpush1.msra.mxu0 0.0
    %5524 = vmatprep.subr.mxu0 0.0
    %5525 = vmatpush1.msra.mxu0 0.0
    %5526 = vmatprep.subr.mxu0 0.0
    %5527 = vmatpush1.msra.mxu0 0.0
    %5528 = vmatprep.subr.mxu0 0.0
    %5529 = vmatpush1.msra.mxu0 0.0
    %5530 = vmatprep.subr.mxu0 0.0
    %5531 = vmatpush1.msra.mxu0 0.0
    %5532 = vmatprep.subr.mxu0 0.0
    %5533 = vmatpush1.msra.mxu0 0.0
    %5534 = vmatprep.subr.mxu0 0.0
    %5535 = vmatpush1.msra.mxu0 0.0
    %5536 = vmatprep.subr.mxu0 0.0
    %5537 = vmatpush1.msra.mxu0 0.0
    %5538 = vmatprep.subr.mxu0 0.0
    %5539 = vmatpush1.msra.mxu0 0.0
    %5540 = vmatprep.subr.mxu0 0.0
    %5541 = vmatpush1.msra.mxu0 0.0
    %5542 = vmatprep.subr.mxu0 0.0
    %5543 = vmatpush1.msra.mxu0 0.0
    %5544 = vmatprep.subr.mxu0 0.0
    %5545 = vmatpush1.msra.mxu0 0.0
    %5546 = vmatprep.subr.mxu0 0.0
    %5547 = vmatpush1.msra.mxu0 0.0
    %5548 = vmatprep.subr.mxu0 0.0
    %5549 = vmatpush1.msra.mxu0 0.0
    %5550 = vmatprep.subr.mxu0 0.0
    %5551 = vmatpush1.msra.mxu0 0.0
    %5552 = vmatprep.subr.mxu0 0.0
    %5553 = vmatpush1.msra.mxu0 0.0
    %5554 = vmatprep.subr.mxu0 0.0
    %5555 = vmatpush1.msra.mxu0 0.0
    %5556 = vmatprep.subr.mxu0 0.0
    %5557 = vmatpush1.msra.mxu0 0.0
    %5558 = vmatprep.subr.mxu0 0.0
    %5559 = vmatpush1.msra.mxu0 0.0
    %5560 = vmatprep.subr.mxu0 0.0
    %5561 = vmatpush1.msra.mxu0 0.0
    %5562 = vmatprep.subr.mxu0 0.0
    %5563 = vmatpush1.msra.mxu0 0.0
    %5564 = vmatprep.subr.mxu0 0.0
    %5565 = vmatpush1.msra.mxu0 0.0
    %5566 = vmatprep.subr.mxu0 0.0
    %5567 = vmatpush1.msra.mxu0 0.0
    %5568 = vmatprep.subr.mxu0 0.0
    %5569 = vmatpush1.msra.mxu0 0.0
    %5570 = vmatprep.subr.mxu0 0.0
    %5571 = vmatpush1.msra.mxu0 0.0
    %5572 = vmatprep.subr.mxu0 0.0
    %5573 = vmatpush1.msra.mxu0 0.0
    %5574 = vmatprep.subr.mxu0 0.0
    %5575 = vmatpush1.msra.mxu0 0.0
    %5576 = vmatprep.subr.mxu0 0.0
    %5577 = vmatpush1.msra.mxu0 0.0
    %5578 = vmatprep.mubr.f32.mxu0 0.0
    %5579 = vmatmul.mubr.f32.gmra.mrb[0].mxu0 %v38
    %v5580 = vpop.f32.mrb[0].mxu0
    %v5581 = vadd.f32 0.0, %v5580
    %v5582 = vpop.f32.mrb[0].mxu0
    %5583 = vmatprep.mubr.f32.mxu0 0.0
    %5584 = vmatmul.mubr.f32.gmra.mrb[0].mxu0 %v41
    %v5585 = vpop.f32.mrb[0].mxu0
    %v5586 = vadd.f32 0.0, %v5585
    %v5587 = vpop.f32.mrb[0].mxu0
    %5588 = vmatprep.mubr.f32.mxu0 0.0
    %5589 = vmatmul.mubr.f32.gmra.mrb[0].mxu0 %v44
    %v5590 = vpop.f32.mrb[0].mxu0
    %v5591 = vadd.f32 0.0, %v5590
    %v5592 = vpop.f32.mrb[0].mxu0
    %5593 = vmatprep.mubr.f32.mxu0 0.0
    %5594 = vmatmul.mubr.f32.gmra.mrb[0].mxu0 %v47
    %v5595 = vpop.f32.mrb[0].mxu0
    %v5596 = vadd.f32 0.0, %v5595
    %v5597 = vpop.f32.mrb[0].mxu0
    %5598 = vmatprep.mubr.f32.mxu0 0.0
    %5599 = vmatmul.mubr.f32.gmra.mrb[0].mxu0 %v50
    %v5600 = vpop.f32.mrb[0].mxu0
    %v5601 = vadd.f32 0.0, %v5600
    %v5602 = vpop.f32.mrb[0].mxu0
    %5603 = vmatprep.mubr.f32.mxu0 0.0
    %5604 = vmatmul.mubr.f32.gmra.mrb[0].mxu0 %v53
    %v5605 = vpop.f32.mrb[0].mxu0
    %v5606 = vadd.f32 0.0, %v5605
    %v5607 = vpop.f32.mrb[0].mxu0
    %5608 = vmatprep.mubr.f32.mxu0 0.0
    %5609 = vmatmul.mubr.f32.gmra.mrb[0].mxu0 %v56
    %v5610 = vpop.f32.mrb[0].mxu0
    %v5611 = vadd.f32 0.0, %v5610
    %v5612 = vpop.f32.mrb[0].mxu0
    %5613 = vmatprep.mubr.f32.mxu0 0.0
    %5614 = vmatmul.mubr.f32.gmra.mrb[0].mxu0 %v59
    %v5615 = vpop.f32.mrb[0].mxu0
    %v5616 = vadd.f32 0.0, %v5615
    %v5617 = vpop.f32.mrb[0].mxu0
    %5618 = vdwg.mxu0
    %v5620 = vsel %vm384, %v5361, 0
    %v5623 = vsel %vm384, %v5471, 0
    %5625 = vmatprep.subr.mxu0 0.0
    %5626 = vmatpush1.xpose.msra.mxu0 %v5623
    %5627 = vmatprep.subr.mxu0 0.0
    %5628 = vmatpush1.xpose.msra.mxu0 0.0
    %5629 = vmatprep.subr.mxu0 0.0
    %5630 = vmatpush1.xpose.msra.mxu0 0.0
    %5631 = vmatprep.subr.mxu0 0.0
    %5632 = vmatpush1.xpose.msra.mxu0 0.0
    %5633 = vmatprep.subr.mxu0 0.0
    %5634 = vmatpush1.xpose.msra.mxu0 0.0
    %5635 = vmatprep.subr.mxu0 0.0
    %5636 = vmatpush1.xpose.msra.mxu0 0.0
    %5637 = vmatprep.subr.mxu0 0.0
    %5638 = vmatpush1.xpose.msra.mxu0 0.0
    %5639 = vmatprep.subr.mxu0 0.0
    %5640 = vmatpush1.xpose.msra.mxu0 0.0
    %5641 = vmatprep.subr.mxu0 0.0
    %5642 = vmatpush1.xpose.msra.mxu0 0.0
    %5643 = vmatprep.subr.mxu0 0.0
    %5644 = vmatpush1.xpose.msra.mxu0 0.0
    %5645 = vmatprep.subr.mxu0 0.0
    %5646 = vmatpush1.xpose.msra.mxu0 0.0
    %5647 = vmatprep.subr.mxu0 0.0
    %5648 = vmatpush1.xpose.msra.mxu0 0.0
    %5649 = vmatprep.subr.mxu0 0.0
    %5650 = vmatpush1.xpose.msra.mxu0 0.0
    %5651 = vmatprep.subr.mxu0 0.0
    %5652 = vmatpush1.xpose.msra.mxu0 0.0
    %5653 = vmatprep.subr.mxu0 0.0
    %5654 = vmatpush1.xpose.msra.mxu0 0.0
    %5655 = vmatprep.subr.mxu0 0.0
    %5656 = vmatpush1.xpose.msra.mxu0 0.0
    %5657 = vmatprep.subr.mxu0 0.0
    %5658 = vmatpush1.xpose.msra.mxu0 0.0
    %5659 = vmatprep.subr.mxu0 0.0
    %5660 = vmatpush1.xpose.msra.mxu0 0.0
    %5661 = vmatprep.subr.mxu0 0.0
    %5662 = vmatpush1.xpose.msra.mxu0 0.0
    %5663 = vmatprep.subr.mxu0 0.0
    %5664 = vmatpush1.xpose.msra.mxu0 0.0
    %5665 = vmatprep.subr.mxu0 0.0
    %5666 = vmatpush1.xpose.msra.mxu0 0.0
    %5667 = vmatprep.subr.mxu0 0.0
    %5668 = vmatpush1.xpose.msra.mxu0 0.0
    %5669 = vmatprep.subr.mxu0 0.0
    %5670 = vmatpush1.xpose.msra.mxu0 0.0
    %5671 = vmatprep.subr.mxu0 0.0
    %5672 = vmatpush1.xpose.msra.mxu0 0.0
    %5673 = vmatprep.subr.mxu0 0.0
    %5674 = vmatpush1.xpose.msra.mxu0 0.0
    %5675 = vmatprep.subr.mxu0 0.0
    %5676 = vmatpush1.xpose.msra.mxu0 0.0
    %5677 = vmatprep.subr.mxu0 0.0
    %5678 = vmatpush1.xpose.msra.mxu0 0.0
    %5679 = vmatprep.subr.mxu0 0.0
    %5680 = vmatpush1.xpose.msra.mxu0 0.0
    %5681 = vmatprep.subr.mxu0 0.0
    %5682 = vmatpush1.xpose.msra.mxu0 0.0
    %5683 = vmatprep.subr.mxu0 0.0
    %5684 = vmatpush1.xpose.msra.mxu0 0.0
    %5685 = vmatprep.subr.mxu0 0.0
    %5686 = vmatpush1.xpose.msra.mxu0 0.0
    %5687 = vmatprep.subr.mxu0 0.0
    %5688 = vmatpush1.xpose.msra.mxu0 0.0
    %5689 = vmatprep.mubr.f32.mxu0 0.0
    %5690 = vmatmul.mubr.f32.gmra.mrb[0].mxu0 %v5620
    %v5691 = vpop.f32.mrb[0].mxu0
    %v5692 = vadd.f32 0.0, %v5691
    %v5693 = vpop.f32.mrb[0].mxu0
    %5694 = vdwg.mxu0
    %v5696 = vsel %vm384, %v5366, 0
    %v5699 = vsel %vm384, %v5476, 0
    %5701 = vmatprep.subr.mxu0 0.0
    %5702 = vmatpush1.xpose.msra.mxu0 %v5699
    %5703 = vmatprep.subr.mxu0 0.0
    %5704 = vmatpush1.xpose.msra.mxu0 0.0
    %5705 = vmatprep.subr.mxu0 0.0
    %5706 = vmatpush1.xpose.msra.mxu0 0.0
    %5707 = vmatprep.subr.mxu0 0.0
    %5708 = vmatpush1.xpose.msra.mxu0 0.0
    %5709 = vmatprep.subr.mxu0 0.0
    %5710 = vmatpush1.xpose.msra.mxu0 0.0
    %5711 = vmatprep.subr.mxu0 0.0
    %5712 = vmatpush1.xpose.msra.mxu0 0.0
    %5713 = vmatprep.subr.mxu0 0.0
    %5714 = vmatpush1.xpose.msra.mxu0 0.0
    %5715 = vmatprep.subr.mxu0 0.0
    %5716 = vmatpush1.xpose.msra.mxu0 0.0
    %5717 = vmatprep.subr.mxu0 0.0
    %5718 = vmatpush1.xpose.msra.mxu0 0.0
    %5719 = vmatprep.subr.mxu0 0.0
    %5720 = vmatpush1.xpose.msra.mxu0 0.0
    %5721 = vmatprep.subr.mxu0 0.0
    %5722 = vmatpush1.xpose.msra.mxu0 0.0
    %5723 = vmatprep.subr.mxu0 0.0
    %5724 = vmatpush1.xpose.msra.mxu0 0.0
    %5725 = vmatprep.subr.mxu0 0.0
    %5726 = vmatpush1.xpose.msra.mxu0 0.0
    %5727 = vmatprep.subr.mxu0 0.0
    %5728 = vmatpush1.xpose.msra.mxu0 0.0
    %5729 = vmatprep.subr.mxu0 0.0
    %5730 = vmatpush1.xpose.msra.mxu0 0.0
    %5731 = vmatprep.subr.mxu0 0.0
    %5732 = vmatpush1.xpose.msra.mxu0 0.0
    %5733 = vmatprep.subr.mxu0 0.0
    %5734 = vmatpush1.xpose.msra.mxu0 0.0
    %5735 = vmatprep.subr.mxu0 0.0
    %5736 = vmatpush1.xpose.msra.mxu0 0.0
    %5737 = vmatprep.subr.mxu0 0.0
    %5738 = vmatpush1.xpose.msra.mxu0 0.0
    %5739 = vmatprep.subr.mxu0 0.0
    %5740 = vmatpush1.xpose.msra.mxu0 0.0
    %5741 = vmatprep.subr.mxu0 0.0
    %5742 = vmatpush1.xpose.msra.mxu0 0.0
    %5743 = vmatprep.subr.mxu0 0.0
    %5744 = vmatpush1.xpose.msra.mxu0 0.0
    %5745 = vmatprep.subr.mxu0 0.0
    %5746 = vmatpush1.xpose.msra.mxu0 0.0
    %5747 = vmatprep.subr.mxu0 0.0
    %5748 = vmatpush1.xpose.msra.mxu0 0.0
    %5749 = vmatprep.subr.mxu0 0.0
    %5750 = vmatpush1.xpose.msra.mxu0 0.0
    %5751 = vmatprep.subr.mxu0 0.0
    %5752 = vmatpush1.xpose.msra.mxu0 0.0
    %5753 = vmatprep.subr.mxu0 0.0
    %5754 = vmatpush1.xpose.msra.mxu0 0.0
    %5755 = vmatprep.subr.mxu0 0.0
    %5756 = vmatpush1.xpose.msra.mxu0 0.0
    %5757 = vmatprep.subr.mxu0 0.0
    %5758 = vmatpush1.xpose.msra.mxu0 0.0
    %5759 = vmatprep.subr.mxu0 0.0
    %5760 = vmatpush1.xpose.msra.mxu0 0.0
    %5761 = vmatprep.subr.mxu0 0.0
    %5762 = vmatpush1.xpose.msra.mxu0 0.0
    %5763 = vmatprep.subr.mxu0 0.0
    %5764 = vmatpush1.xpose.msra.mxu0 0.0
    %5765 = vmatprep.mubr.f32.mxu0 0.0
    %5766 = vmatmul.mubr.f32.gmra.mrb[0].mxu0 %v5696
    %v5767 = vpop.f32.mrb[0].mxu0
    %v5768 = vadd.f32 0.0, %v5767
    %v5769 = vpop.f32.mrb[0].mxu0
    %5770 = vdwg.mxu0
    %v5772 = vsel %vm384, %v5371, 0
    %v5775 = vsel %vm384, %v5481, 0
    %5777 = vmatprep.subr.mxu0 0.0
    %5778 = vmatpush1.xpose.msra.mxu0 %v5775
    %5779 = vmatprep.subr.mxu0 0.0
    %5780 = vmatpush1.xpose.msra.mxu0 0.0
    %5781 = vmatprep.subr.mxu0 0.0
    %5782 = vmatpush1.xpose.msra.mxu0 0.0
    %5783 = vmatprep.subr.mxu0 0.0
    %5784 = vmatpush1.xpose.msra.mxu0 0.0
    %5785 = vmatprep.subr.mxu0 0.0
    %5786 = vmatpush1.xpose.msra.mxu0 0.0
    %5787 = vmatprep.subr.mxu0 0.0
    %5788 = vmatpush1.xpose.msra.mxu0 0.0
    %5789 = vmatprep.subr.mxu0 0.0
    %5790 = vmatpush1.xpose.msra.mxu0 0.0
    %5791 = vmatprep.subr.mxu0 0.0
    %5792 = vmatpush1.xpose.msra.mxu0 0.0
    %5793 = vmatprep.subr.mxu0 0.0
    %5794 = vmatpush1.xpose.msra.mxu0 0.0
    %5795 = vmatprep.subr.mxu0 0.0
    %5796 = vmatpush1.xpose.msra.mxu0 0.0
    %5797 = vmatprep.subr.mxu0 0.0
    %5798 = vmatpush1.xpose.msra.mxu0 0.0
    %5799 = vmatprep.subr.mxu0 0.0
    %5800 = vmatpush1.xpose.msra.mxu0 0.0
    %5801 = vmatprep.subr.mxu0 0.0
    %5802 = vmatpush1.xpose.msra.mxu0 0.0
    %5803 = vmatprep.subr.mxu0 0.0
    %5804 = vmatpush1.xpose.msra.mxu0 0.0
    %5805 = vmatprep.subr.mxu0 0.0
    %5806 = vmatpush1.xpose.msra.mxu0 0.0
    %5807 = vmatprep.subr.mxu0 0.0
    %5808 = vmatpush1.xpose.msra.mxu0 0.0
    %5809 = vmatprep.subr.mxu0 0.0
    %5810 = vmatpush1.xpose.msra.mxu0 0.0
    %5811 = vmatprep.subr.mxu0 0.0
    %5812 = vmatpush1.xpose.msra.mxu0 0.0
    %5813 = vmatprep.subr.mxu0 0.0
    %5814 = vmatpush1.xpose.msra.mxu0 0.0
    %5815 = vmatprep.subr.mxu0 0.0
    %5816 = vmatpush1.xpose.msra.mxu0 0.0
    %5817 = vmatprep.subr.mxu0 0.0
    %5818 = vmatpush1.xpose.msra.mxu0 0.0
    %5819 = vmatprep.subr.mxu0 0.0
    %5820 = vmatpush1.xpose.msra.mxu0 0.0
    %5821 = vmatprep.subr.mxu0 0.0
    %5822 = vmatpush1.xpose.msra.mxu0 0.0
    %5823 = vmatprep.subr.mxu0 0.0
    %5824 = vmatpush1.xpose.msra.mxu0 0.0
    %5825 = vmatprep.subr.mxu0 0.0
    %5826 = vmatpush1.xpose.msra.mxu0 0.0
    %5827 = vmatprep.subr.mxu0 0.0
    %5828 = vmatpush1.xpose.msra.mxu0 0.0
    %5829 = vmatprep.subr.mxu0 0.0
    %5830 = vmatpush1.xpose.msra.mxu0 0.0
    %5831 = vmatprep.subr.mxu0 0.0
    %5832 = vmatpush1.xpose.msra.mxu0 0.0
    %5833 = vmatprep.subr.mxu0 0.0
    %5834 = vmatpush1.xpose.msra.mxu0 0.0
    %5835 = vmatprep.subr.mxu0 0.0
    %5836 = vmatpush1.xpose.msra.mxu0 0.0
    %5837 = vmatprep.subr.mxu0 0.0
    %5838 = vmatpush1.xpose.msra.mxu0 0.0
    %5839 = vmatprep.subr.mxu0 0.0
    %5840 = vmatpush1.xpose.msra.mxu0 0.0
    %5841 = vmatprep.mubr.f32.mxu0 0.0
    %5842 = vmatmul.mubr.f32.gmra.mrb[0].mxu0 %v5772
    %v5843 = vpop.f32.mrb[0].mxu0
    %v5844 = vadd.f32 0.0, %v5843
    %v5845 = vpop.f32.mrb[0].mxu0
    %5846 = vdwg.mxu0
    %v5848 = vsel %vm384, %v5376, 0
    %v5851 = vsel %vm384, %v5486, 0
    %5853 = vmatprep.subr.mxu0 0.0
    %5854 = vmatpush1.xpose.msra.mxu0 %v5851
    %5855 = vmatprep.subr.mxu0 0.0
    %5856 = vmatpush1.xpose.msra.mxu0 0.0
    %5857 = vmatprep.subr.mxu0 0.0
    %5858 = vmatpush1.xpose.msra.mxu0 0.0
    %5859 = vmatprep.subr.mxu0 0.0
    %5860 = vmatpush1.xpose.msra.mxu0 0.0
    %5861 = vmatprep.subr.mxu0 0.0
    %5862 = vmatpush1.xpose.msra.mxu0 0.0
    %5863 = vmatprep.subr.mxu0 0.0
    %5864 = vmatpush1.xpose.msra.mxu0 0.0
    %5865 = vmatprep.subr.mxu0 0.0
    %5866 = vmatpush1.xpose.msra.mxu0 0.0
    %5867 = vmatprep.subr.mxu0 0.0
    %5868 = vmatpush1.xpose.msra.mxu0 0.0
    %5869 = vmatprep.subr.mxu0 0.0
    %5870 = vmatpush1.xpose.msra.mxu0 0.0
    %5871 = vmatprep.subr.mxu0 0.0
    %5872 = vmatpush1.xpose.msra.mxu0 0.0
    %5873 = vmatprep.subr.mxu0 0.0
    %5874 = vmatpush1.xpose.msra.mxu0 0.0
    %5875 = vmatprep.subr.mxu0 0.0
    %5876 = vmatpush1.xpose.msra.mxu0 0.0
    %5877 = vmatprep.subr.mxu0 0.0
    %5878 = vmatpush1.xpose.msra.mxu0 0.0
    %5879 = vmatprep.subr.mxu0 0.0
    %5880 = vmatpush1.xpose.msra.mxu0 0.0
    %5881 = vmatprep.subr.mxu0 0.0
    %5882 = vmatpush1.xpose.msra.mxu0 0.0
    %5883 = vmatprep.subr.mxu0 0.0
    %5884 = vmatpush1.xpose.msra.mxu0 0.0
    %5885 = vmatprep.subr.mxu0 0.0
    %5886 = vmatpush1.xpose.msra.mxu0 0.0
    %5887 = vmatprep.subr.mxu0 0.0
    %5888 = vmatpush1.xpose.msra.mxu0 0.0
    %5889 = vmatprep.subr.mxu0 0.0
    %5890 = vmatpush1.xpose.msra.mxu0 0.0
    %5891 = vmatprep.subr.mxu0 0.0
    %5892 = vmatpush1.xpose.msra.mxu0 0.0
    %5893 = vmatprep.subr.mxu0 0.0
    %5894 = vmatpush1.xpose.msra.mxu0 0.0
    %5895 = vmatprep.subr.mxu0 0.0
    %5896 = vmatpush1.xpose.msra.mxu0 0.0
    %5897 = vmatprep.subr.mxu0 0.0
    %5898 = vmatpush1.xpose.msra.mxu0 0.0
    %5899 = vmatprep.subr.mxu0 0.0
    %5900 = vmatpush1.xpose.msra.mxu0 0.0
    %5901 = vmatprep.subr.mxu0 0.0
    %5902 = vmatpush1.xpose.msra.mxu0 0.0
    %5903 = vmatprep.subr.mxu0 0.0
    %5904 = vmatpush1.xpose.msra.mxu0 0.0
    %5905 = vmatprep.subr.mxu0 0.0
    %5906 = vmatpush1.xpose.msra.mxu0 0.0
    %5907 = vmatprep.subr.mxu0 0.0
    %5908 = vmatpush1.xpose.msra.mxu0 0.0
    %5909 = vmatprep.subr.mxu0 0.0
    %5910 = vmatpush1.xpose.msra.mxu0 0.0
    %5911 = vmatprep.subr.mxu0 0.0
    %5912 = vmatpush1.xpose.msra.mxu0 0.0
    %5913 = vmatprep.subr.mxu0 0.0
    %5914 = vmatpush1.xpose.msra.mxu0 0.0
    %5915 = vmatprep.subr.mxu0 0.0
    %5916 = vmatpush1.xpose.msra.mxu0 0.0
    %5917 = vmatprep.mubr.f32.mxu0 0.0
    %5918 = vmatmul.mubr.f32.gmra.mrb[0].mxu0 %v5848
    %v5919 = vpop.f32.mrb[0].mxu0
    %v5920 = vadd.f32 0.0, %v5919
    %v5921 = vpop.f32.mrb[0].mxu0
    %5922 = vdwg.mxu0
    %v5924 = vsel %vm384, %v5381, 0
    %v5927 = vsel %vm384, %v5491, 0
    %5929 = vmatprep.subr.mxu0 0.0
    %5930 = vmatpush1.xpose.msra.mxu0 %v5927
    %5931 = vmatprep.subr.mxu0 0.0
    %5932 = vmatpush1.xpose.msra.mxu0 0.0
    %5933 = vmatprep.subr.mxu0 0.0
    %5934 = vmatpush1.xpose.msra.mxu0 0.0
    %5935 = vmatprep.subr.mxu0 0.0
    %5936 = vmatpush1.xpose.msra.mxu0 0.0
    %5937 = vmatprep.subr.mxu0 0.0
    %5938 = vmatpush1.xpose.msra.mxu0 0.0
    %5939 = vmatprep.subr.mxu0 0.0
    %5940 = vmatpush1.xpose.msra.mxu0 0.0
    %5941 = vmatprep.subr.mxu0 0.0
    %5942 = vmatpush1.xpose.msra.mxu0 0.0
    %5943 = vmatprep.subr.mxu0 0.0
    %5944 = vmatpush1.xpose.msra.mxu0 0.0
    %5945 = vmatprep.subr.mxu0 0.0
    %5946 = vmatpush1.xpose.msra.mxu0 0.0
    %5947 = vmatprep.subr.mxu0 0.0
    %5948 = vmatpush1.xpose.msra.mxu0 0.0
    %5949 = vmatprep.subr.mxu0 0.0
    %5950 = vmatpush1.xpose.msra.mxu0 0.0
    %5951 = vmatprep.subr.mxu0 0.0
    %5952 = vmatpush1.xpose.msra.mxu0 0.0
    %5953 = vmatprep.subr.mxu0 0.0
    %5954 = vmatpush1.xpose.msra.mxu0 0.0
    %5955 = vmatprep.subr.mxu0 0.0
    %5956 = vmatpush1.xpose.msra.mxu0 0.0
    %5957 = vmatprep.subr.mxu0 0.0
    %5958 = vmatpush1.xpose.msra.mxu0 0.0
    %5959 = vmatprep.subr.mxu0 0.0
    %5960 = vmatpush1.xpose.msra.mxu0 0.0
    %5961 = vmatprep.subr.mxu0 0.0
    %5962 = vmatpush1.xpose.msra.mxu0 0.0
    %5963 = vmatprep.subr.mxu0 0.0
    %5964 = vmatpush1.xpose.msra.mxu0 0.0
    %5965 = vmatprep.subr.mxu0 0.0
    %5966 = vmatpush1.xpose.msra.mxu0 0.0
    %5967 = vmatprep.subr.mxu0 0.0
    %5968 = vmatpush1.xpose.msra.mxu0 0.0
    %5969 = vmatprep.subr.mxu0 0.0
    %5970 = vmatpush1.xpose.msra.mxu0 0.0
    %5971 = vmatprep.subr.mxu0 0.0
    %5972 = vmatpush1.xpose.msra.mxu0 0.0
    %5973 = vmatprep.subr.mxu0 0.0
    %5974 = vmatpush1.xpose.msra.mxu0 0.0
    %5975 = vmatprep.subr.mxu0 0.0
    %5976 = vmatpush1.xpose.msra.mxu0 0.0
    %5977 = vmatprep.subr.mxu0 0.0
    %5978 = vmatpush1.xpose.msra.mxu0 0.0
    %5979 = vmatprep.subr.mxu0 0.0
    %5980 = vmatpush1.xpose.msra.mxu0 0.0
    %5981 = vmatprep.subr.mxu0 0.0
    %5982 = vmatpush1.xpose.msra.mxu0 0.0
    %5983 = vmatprep.subr.mxu0 0.0
    %5984 = vmatpush1.xpose.msra.mxu0 0.0
    %5985 = vmatprep.subr.mxu0 0.0
    %5986 = vmatpush1.xpose.msra.mxu0 0.0
    %5987 = vmatprep.subr.mxu0 0.0
    %5988 = vmatpush1.xpose.msra.mxu0 0.0
    %5989 = vmatprep.subr.mxu0 0.0
    %5990 = vmatpush1.xpose.msra.mxu0 0.0
    %5991 = vmatprep.subr.mxu0 0.0
    %5992 = vmatpush1.xpose.msra.mxu0 0.0
    %5993 = vmatprep.mubr.f32.mxu0 0.0
    %5994 = vmatmul.mubr.f32.gmra.mrb[0].mxu0 %v5924
    %v5995 = vpop.f32.mrb[0].mxu0
    %v5996 = vadd.f32 0.0, %v5995
    %v5997 = vpop.f32.mrb[0].mxu0
    %5998 = vdwg.mxu0
    %v6000 = vsel %vm384, %v5386, 0
    %v6003 = vsel %vm384, %v5496, 0
    %6005 = vmatprep.subr.mxu0 0.0
    %6006 = vmatpush1.xpose.msra.mxu0 %v6003
    %6007 = vmatprep.subr.mxu0 0.0
    %6008 = vmatpush1.xpose.msra.mxu0 0.0
    %6009 = vmatprep.subr.mxu0 0.0
    %6010 = vmatpush1.xpose.msra.mxu0 0.0
    %6011 = vmatprep.subr.mxu0 0.0
    %6012 = vmatpush1.xpose.msra.mxu0 0.0
    %6013 = vmatprep.subr.mxu0 0.0
    %6014 = vmatpush1.xpose.msra.mxu0 0.0
    %6015 = vmatprep.subr.mxu0 0.0
    %6016 = vmatpush1.xpose.msra.mxu0 0.0
    %6017 = vmatprep.subr.mxu0 0.0
    %6018 = vmatpush1.xpose.msra.mxu0 0.0
    %6019 = vmatprep.subr.mxu0 0.0
    %6020 = vmatpush1.xpose.msra.mxu0 0.0
    %6021 = vmatprep.subr.mxu0 0.0
    %6022 = vmatpush1.xpose.msra.mxu0 0.0
    %6023 = vmatprep.subr.mxu0 0.0
    %6024 = vmatpush1.xpose.msra.mxu0 0.0
    %6025 = vmatprep.subr.mxu0 0.0
    %6026 = vmatpush1.xpose.msra.mxu0 0.0
    %6027 = vmatprep.subr.mxu0 0.0
    %6028 = vmatpush1.xpose.msra.mxu0 0.0
    %6029 = vmatprep.subr.mxu0 0.0
    %6030 = vmatpush1.xpose.msra.mxu0 0.0
    %6031 = vmatprep.subr.mxu0 0.0
    %6032 = vmatpush1.xpose.msra.mxu0 0.0
    %6033 = vmatprep.subr.mxu0 0.0
    %6034 = vmatpush1.xpose.msra.mxu0 0.0
    %6035 = vmatprep.subr.mxu0 0.0
    %6036 = vmatpush1.xpose.msra.mxu0 0.0
    %6037 = vmatprep.subr.mxu0 0.0
    %6038 = vmatpush1.xpose.msra.mxu0 0.0
    %6039 = vmatprep.subr.mxu0 0.0
    %6040 = vmatpush1.xpose.msra.mxu0 0.0
    %6041 = vmatprep.subr.mxu0 0.0
    %6042 = vmatpush1.xpose.msra.mxu0 0.0
    %6043 = vmatprep.subr.mxu0 0.0
    %6044 = vmatpush1.xpose.msra.mxu0 0.0
    %6045 = vmatprep.subr.mxu0 0.0
    %6046 = vmatpush1.xpose.msra.mxu0 0.0
    %6047 = vmatprep.subr.mxu0 0.0
    %6048 = vmatpush1.xpose.msra.mxu0 0.0
    %6049 = vmatprep.subr.mxu0 0.0
    %6050 = vmatpush1.xpose.msra.mxu0 0.0
    %6051 = vmatprep.subr.mxu0 0.0
    %6052 = vmatpush1.xpose.msra.mxu0 0.0
    %6053 = vmatprep.subr.mxu0 0.0
    %6054 = vmatpush1.xpose.msra.mxu0 0.0
    %6055 = vmatprep.subr.mxu0 0.0
    %6056 = vmatpush1.xpose.msra.mxu0 0.0
    %6057 = vmatprep.subr.mxu0 0.0
    %6058 = vmatpush1.xpose.msra.mxu0 0.0
    %6059 = vmatprep.subr.mxu0 0.0
    %6060 = vmatpush1.xpose.msra.mxu0 0.0
    %6061 = vmatprep.subr.mxu0 0.0
    %6062 = vmatpush1.xpose.msra.mxu0 0.0
    %6063 = vmatprep.subr.mxu0 0.0
    %6064 = vmatpush1.xpose.msra.mxu0 0.0
    %6065 = vmatprep.subr.mxu0 0.0
    %6066 = vmatpush1.xpose.msra.mxu0 0.0
    %6067 = vmatprep.subr.mxu0 0.0
    %6068 = vmatpush1.xpose.msra.mxu0 0.0
    %6069 = vmatprep.mubr.f32.mxu0 0.0
    %6070 = vmatmul.mubr.f32.gmra.mrb[0].mxu0 %v6000
    %v6071 = vpop.f32.mrb[0].mxu0
    %v6072 = vadd.f32 0.0, %v6071
    %v6073 = vpop.f32.mrb[0].mxu0
    %6074 = vdwg.mxu0
    %v6076 = vsel %vm384, %v5391, 0
    %v6079 = vsel %vm384, %v5501, 0
    %6081 = vmatprep.subr.mxu0 0.0
    %6082 = vmatpush1.xpose.msra.mxu0 %v6079
    %6083 = vmatprep.subr.mxu0 0.0
    %6084 = vmatpush1.xpose.msra.mxu0 0.0
    %6085 = vmatprep.subr.mxu0 0.0
    %6086 = vmatpush1.xpose.msra.mxu0 0.0
    %6087 = vmatprep.subr.mxu0 0.0
    %6088 = vmatpush1.xpose.msra.mxu0 0.0
    %6089 = vmatprep.subr.mxu0 0.0
    %6090 = vmatpush1.xpose.msra.mxu0 0.0
    %6091 = vmatprep.subr.mxu0 0.0
    %6092 = vmatpush1.xpose.msra.mxu0 0.0
    %6093 = vmatprep.subr.mxu0 0.0
    %6094 = vmatpush1.xpose.msra.mxu0 0.0
    %6095 = vmatprep.subr.mxu0 0.0
    %6096 = vmatpush1.xpose.msra.mxu0 0.0
    %6097 = vmatprep.subr.mxu0 0.0
    %6098 = vmatpush1.xpose.msra.mxu0 0.0
    %6099 = vmatprep.subr.mxu0 0.0
    %6100 = vmatpush1.xpose.msra.mxu0 0.0
    %6101 = vmatprep.subr.mxu0 0.0
    %6102 = vmatpush1.xpose.msra.mxu0 0.0
    %6103 = vmatprep.subr.mxu0 0.0
    %6104 = vmatpush1.xpose.msra.mxu0 0.0
    %6105 = vmatprep.subr.mxu0 0.0
    %6106 = vmatpush1.xpose.msra.mxu0 0.0
    %6107 = vmatprep.subr.mxu0 0.0
    %6108 = vmatpush1.xpose.msra.mxu0 0.0
    %6109 = vmatprep.subr.mxu0 0.0
    %6110 = vmatpush1.xpose.msra.mxu0 0.0
    %6111 = vmatprep.subr.mxu0 0.0
    %6112 = vmatpush1.xpose.msra.mxu0 0.0
    %6113 = vmatprep.subr.mxu0 0.0
    %6114 = vmatpush1.xpose.msra.mxu0 0.0
    %6115 = vmatprep.subr.mxu0 0.0
    %6116 = vmatpush1.xpose.msra.mxu0 0.0
    %6117 = vmatprep.subr.mxu0 0.0
    %6118 = vmatpush1.xpose.msra.mxu0 0.0
    %6119 = vmatprep.subr.mxu0 0.0
    %6120 = vmatpush1.xpose.msra.mxu0 0.0
    %6121 = vmatprep.subr.mxu0 0.0
    %6122 = vmatpush1.xpose.msra.mxu0 0.0
    %6123 = vmatprep.subr.mxu0 0.0
    %6124 = vmatpush1.xpose.msra.mxu0 0.0
    %6125 = vmatprep.subr.mxu0 0.0
    %6126 = vmatpush1.xpose.msra.mxu0 0.0
    %6127 = vmatprep.subr.mxu0 0.0
    %6128 = vmatpush1.xpose.msra.mxu0 0.0
    %6129 = vmatprep.subr.mxu0 0.0
    %6130 = vmatpush1.xpose.msra.mxu0 0.0
    %6131 = vmatprep.subr.mxu0 0.0
    %6132 = vmatpush1.xpose.msra.mxu0 0.0
    %6133 = vmatprep.subr.mxu0 0.0
    %6134 = vmatpush1.xpose.msra.mxu0 0.0
    %6135 = vmatprep.subr.mxu0 0.0
    %6136 = vmatpush1.xpose.msra.mxu0 0.0
    %6137 = vmatprep.subr.mxu0 0.0
    %6138 = vmatpush1.xpose.msra.mxu0 0.0
    %6139 = vmatprep.subr.mxu0 0.0
    %6140 = vmatpush1.xpose.msra.mxu0 0.0
    %6141 = vmatprep.subr.mxu0 0.0
    %6142 = vmatpush1.xpose.msra.mxu0 0.0
    %6143 = vmatprep.subr.mxu0 0.0
    %6144 = vmatpush1.xpose.msra.mxu0 0.0
    %6145 = vmatprep.mubr.f32.mxu0 0.0
    %6146 = vmatmul.mubr.f32.gmra.mrb[0].mxu0 %v6076
    %v6147 = vpop.f32.mrb[0].mxu0
    %v6148 = vadd.f32 0.0, %v6147
    %v6149 = vpop.f32.mrb[0].mxu0
    %6150 = vdwg.mxu0
    %v6152 = vsel %vm384, %v5396, 0
    %v6155 = vsel %vm384, %v5506, 0
    %6157 = vmatprep.subr.mxu0 0.0
    %6158 = vmatpush1.xpose.msra.mxu0 %v6155
    %6159 = vmatprep.subr.mxu0 0.0
    %6160 = vmatpush1.xpose.msra.mxu0 0.0
    %6161 = vmatprep.subr.mxu0 0.0
    %6162 = vmatpush1.xpose.msra.mxu0 0.0
    %6163 = vmatprep.subr.mxu0 0.0
    %6164 = vmatpush1.xpose.msra.mxu0 0.0
    %6165 = vmatprep.subr.mxu0 0.0
    %6166 = vmatpush1.xpose.msra.mxu0 0.0
    %6167 = vmatprep.subr.mxu0 0.0
    %6168 = vmatpush1.xpose.msra.mxu0 0.0
    %6169 = vmatprep.subr.mxu0 0.0
    %6170 = vmatpush1.xpose.msra.mxu0 0.0
    %6171 = vmatprep.subr.mxu0 0.0
    %6172 = vmatpush1.xpose.msra.mxu0 0.0
    %6173 = vmatprep.subr.mxu0 0.0
    %6174 = vmatpush1.xpose.msra.mxu0 0.0
    %6175 = vmatprep.subr.mxu0 0.0
    %6176 = vmatpush1.xpose.msra.mxu0 0.0
    %6177 = vmatprep.subr.mxu0 0.0
    %6178 = vmatpush1.xpose.msra.mxu0 0.0
    %6179 = vmatprep.subr.mxu0 0.0
    %6180 = vmatpush1.xpose.msra.mxu0 0.0
    %6181 = vmatprep.subr.mxu0 0.0
    %6182 = vmatpush1.xpose.msra.mxu0 0.0
    %6183 = vmatprep.subr.mxu0 0.0
    %6184 = vmatpush1.xpose.msra.mxu0 0.0
    %6185 = vmatprep.subr.mxu0 0.0
    %6186 = vmatpush1.xpose.msra.mxu0 0.0
    %6187 = vmatprep.subr.mxu0 0.0
    %6188 = vmatpush1.xpose.msra.mxu0 0.0
    %6189 = vmatprep.subr.mxu0 0.0
    %6190 = vmatpush1.xpose.msra.mxu0 0.0
    %6191 = vmatprep.subr.mxu0 0.0
    %6192 = vmatpush1.xpose.msra.mxu0 0.0
    %6193 = vmatprep.subr.mxu0 0.0
    %6194 = vmatpush1.xpose.msra.mxu0 0.0
    %6195 = vmatprep.subr.mxu0 0.0
    %6196 = vmatpush1.xpose.msra.mxu0 0.0
    %6197 = vmatprep.subr.mxu0 0.0
    %6198 = vmatpush1.xpose.msra.mxu0 0.0
    %6199 = vmatprep.subr.mxu0 0.0
    %6200 = vmatpush1.xpose.msra.mxu0 0.0
    %6201 = vmatprep.subr.mxu0 0.0
    %6202 = vmatpush1.xpose.msra.mxu0 0.0
    %6203 = vmatprep.subr.mxu0 0.0
    %6204 = vmatpush1.xpose.msra.mxu0 0.0
    %6205 = vmatprep.subr.mxu0 0.0
    %6206 = vmatpush1.xpose.msra.mxu0 0.0
    %6207 = vmatprep.subr.mxu0 0.0
    %6208 = vmatpush1.xpose.msra.mxu0 0.0
    %6209 = vmatprep.subr.mxu0 0.0
    %6210 = vmatpush1.xpose.msra.mxu0 0.0
    %6211 = vmatprep.subr.mxu0 0.0
    %6212 = vmatpush1.xpose.msra.mxu0 0.0
    %6213 = vmatprep.subr.mxu0 0.0
    %6214 = vmatpush1.xpose.msra.mxu0 0.0
    %6215 = vmatprep.subr.mxu0 0.0
    %6216 = vmatpush1.xpose.msra.mxu0 0.0
    %6217 = vmatprep.subr.mxu0 0.0
    %6218 = vmatpush1.xpose.msra.mxu0 0.0
    %6219 = vmatprep.subr.mxu0 0.0
    %6220 = vmatpush1.xpose.msra.mxu0 0.0
    %6221 = vmatprep.mubr.f32.mxu0 0.0
    %6222 = vmatmul.mubr.f32.gmra.mrb[0].mxu0 %v6152
    %v6223 = vpop.f32.mrb[0].mxu0
    %v6224 = vadd.f32 0.0, %v6223
    %v6225 = vpop.f32.mrb[0].mxu0
    %6226 = vdwg.mxu0
    %v6227 = vsel %vm993, %v5692, -inf
    %6228 = vmax.xlane.f32.xlu0 %v6227
    %v6229 = vpop.xlane.xlu0 %6228
    %v6230 = vsel %vm993, %v5768, -inf
    %6231 = vmax.xlane.f32.xlu0 %v6230
    %v6232 = vpop.xlane.xlu0 %6231
    %v6233 = vsel %vm993, %v5844, -inf
    %6234 = vmax.xlane.f32.xlu0 %v6233
    %v6235 = vpop.xlane.xlu0 %6234
    %v6236 = vsel %vm993, %v5920, -inf
    %6237 = vmax.xlane.f32.xlu0 %v6236
    %v6238 = vpop.xlane.xlu0 %6237
    %v6239 = vsel %vm993, %v5996, -inf
    %6240 = vmax.xlane.f32.xlu0 %v6239
    %v6241 = vpop.xlane.xlu0 %6240
    %v6242 = vsel %vm993, %v6072, -inf
    %6243 = vmax.xlane.f32.xlu0 %v6242
    %v6244 = vpop.xlane.xlu0 %6243
    %v6245 = vsel %vm993, %v6148, -inf
    %6246 = vmax.xlane.f32.xlu0 %v6245
    %v6247 = vpop.xlane.xlu0 %6246
    %v6248 = vsel %vm993, %v6224, -inf
    %6249 = vmax.xlane.f32.xlu0 %v6248
    %v6250 = vpop.xlane.xlu0 %6249
    %v6251 = vsub.f32 %v5692, %v6229
    %v6252 = vsub.f32 %v5768, %v6232
    %v6253 = vsub.f32 %v5844, %v6235
    %v6254 = vsub.f32 %v5920, %v6238
    %v6255 = vsub.f32 %v5996, %v6241
    %v6256 = vsub.f32 %v6072, %v6244
    %v6257 = vsub.f32 %v6148, %v6247
    %v6258 = vsub.f32 %v6224, %v6250
    %v6259 = vmul.f32 %v6251, 1.442695
    %v6260 = vpow.pop %v6259
    %v6261 = vmul.f32 %v6252, 1.442695
    %v6262 = vpow.pop %v6261
    %v6263 = vmul.f32 %v6253, 1.442695
    %v6264 = vpow.pop %v6263
    %v6265 = vmul.f32 %v6254, 1.442695
    %v6266 = vpow.pop %v6265
    %v6267 = vmul.f32 %v6255, 1.442695
    %v6268 = vpow.pop %v6267
    %v6269 = vmul.f32 %v6256, 1.442695
    %v6270 = vpow.pop %v6269
    %v6271 = vmul.f32 %v6257, 1.442695
    %v6272 = vpow.pop %v6271
    %v6273 = vmul.f32 %v6258, 1.442695
    %v6274 = vpow.pop %v6273
    %v6275 = vsel %vm993, %v6260, 0.0
    %6276 = vadd.xlane.f32.xlu0 %v6275
    %v6277 = vpop.xlane.xlu0 %6276
    %v6278 = vsel %vm993, %v6262, 0.0
    %6279 = vadd.xlane.f32.xlu0 %v6278
    %v6280 = vpop.xlane.xlu0 %6279
    %v6281 = vsel %vm993, %v6264, 0.0
    %6282 = vadd.xlane.f32.xlu0 %v6281
    %v6283 = vpop.xlane.xlu0 %6282
    %v6284 = vsel %vm993, %v6266, 0.0
    %6285 = vadd.xlane.f32.xlu0 %v6284
    %v6286 = vpop.xlane.xlu0 %6285
    %v6287 = vsel %vm993, %v6268, 0.0
    %6288 = vadd.xlane.f32.xlu0 %v6287
    %v6289 = vpop.xlane.xlu0 %6288
    %v6290 = vsel %vm993, %v6270, 0.0
    %6291 = vadd.xlane.f32.xlu0 %v6290
    %v6292 = vpop.xlane.xlu0 %6291
    %v6293 = vsel %vm993, %v6272, 0.0
    %6294 = vadd.xlane.f32.xlu0 %v6293
    %v6295 = vpop.xlane.xlu0 %6294
    %v6296 = vsel %vm993, %v6274, 0.0
    %6297 = vadd.xlane.f32.xlu0 %v6296
    %v6298 = vpop.xlane.xlu0 %6297
    %v6299 = vrcp.pop %v6277
    %v6300 = vrcp.pop %v6280
    %v6301 = vrcp.pop %v6283
    %v6302 = vrcp.pop %v6286
    %v6303 = vrcp.pop %v6289
    %v6304 = vrcp.pop %v6292
    %v6305 = vrcp.pop %v6295
    %v6306 = vrcp.pop %v6298
    %v6307 = vmul.f32 %v6260, %v6299
    %v6308 = vmul.f32 %v6262, %v6300
    %v6309 = vmul.f32 %v6264, %v6301
    %v6310 = vmul.f32 %v6266, %v6302
    %v6311 = vmul.f32 %v6268, %v6303
    %v6312 = vmul.f32 %v6270, %v6304
    %v6313 = vmul.f32 %v6272, %v6305
    %v6314 = vmul.f32 %v6274, %v6306
    %v6316 = vsel %vm993, %v6307, 0
    %6318 = vmatprep.subr.mxu0 0.0
    %6319 = vmatpush1.msra.mxu0 %v5581
    %6320 = vmatprep.subr.mxu0 0.0
    %6321 = vmatpush1.msra.mxu0 0.0
    %6322 = vmatprep.subr.mxu0 0.0
    %6323 = vmatpush1.msra.mxu0 0.0
    %6324 = vmatprep.subr.mxu0 0.0
    %6325 = vmatpush1.msra.mxu0 0.0
    %6326 = vmatprep.subr.mxu0 0.0
    %6327 = vmatpush1.msra.mxu0 0.0
    %6328 = vmatprep.subr.mxu0 0.0
    %6329 = vmatpush1.msra.mxu0 0.0
    %6330 = vmatprep.subr.mxu0 0.0
    %6331 = vmatpush1.msra.mxu0 0.0
    %6332 = vmatprep.subr.mxu0 0.0
    %6333 = vmatpush1.msra.mxu0 0.0
    %6334 = vmatprep.subr.mxu0 0.0
    %6335 = vmatpush1.msra.mxu0 0.0
    %6336 = vmatprep.subr.mxu0 0.0
    %6337 = vmatpush1.msra.mxu0 0.0
    %6338 = vmatprep.subr.mxu0 0.0
    %6339 = vmatpush1.msra.mxu0 0.0
    %6340 = vmatprep.subr.mxu0 0.0
    %6341 = vmatpush1.msra.mxu0 0.0
    %6342 = vmatprep.subr.mxu0 0.0
    %6343 = vmatpush1.msra.mxu0 0.0
    %6344 = vmatprep.subr.mxu0 0.0
    %6345 = vmatpush1.msra.mxu0 0.0
    %6346 = vmatprep.subr.mxu0 0.0
    %6347 = vmatpush1.msra.mxu0 0.0
    %6348 = vmatprep.subr.mxu0 0.0
    %6349 = vmatpush1.msra.mxu0 0.0
    %6350 = vmatprep.subr.mxu0 0.0
    %6351 = vmatpush1.msra.mxu0 0.0
    %6352 = vmatprep.subr.mxu0 0.0
    %6353 = vmatpush1.msra.mxu0 0.0
    %6354 = vmatprep.subr.mxu0 0.0
    %6355 = vmatpush1.msra.mxu0 0.0
    %6356 = vmatprep.subr.mxu0 0.0
    %6357 = vmatpush1.msra.mxu0 0.0
    %6358 = vmatprep.subr.mxu0 0.0
    %6359 = vmatpush1.msra.mxu0 0.0
    %6360 = vmatprep.subr.mxu0 0.0
    %6361 = vmatpush1.msra.mxu0 0.0
    %6362 = vmatprep.subr.mxu0 0.0
    %6363 = vmatpush1.msra.mxu0 0.0
    %6364 = vmatprep.subr.mxu0 0.0
    %6365 = vmatpush1.msra.mxu0 0.0
    %6366 = vmatprep.subr.mxu0 0.0
    %6367 = vmatpush1.msra.mxu0 0.0
    %6368 = vmatprep.subr.mxu0 0.0
    %6369 = vmatpush1.msra.mxu0 0.0
    %6370 = vmatprep.subr.mxu0 0.0
    %6371 = vmatpush1.msra.mxu0 0.0
    %6372 = vmatprep.subr.mxu0 0.0
    %6373 = vmatpush1.msra.mxu0 0.0
    %6374 = vmatprep.subr.mxu0 0.0
    %6375 = vmatpush1.msra.mxu0 0.0
    %6376 = vmatprep.subr.mxu0 0.0
    %6377 = vmatpush1.msra.mxu0 0.0
    %6378 = vmatprep.subr.mxu0 0.0
    %6379 = vmatpush1.msra.mxu0 0.0
    %6380 = vmatprep.subr.mxu0 0.0
    %6381 = vmatpush1.msra.mxu0 0.0
    %6382 = vmatprep.mubr.f32.mxu0 0.0
    %6383 = vmatmul.mubr.f32.gmra.mrb[0].mxu0 %v6316
    %v6384 = vpop.f32.mrb[0].mxu0
    %v6385 = vadd.f32 0.0, %v6384
    %v6386 = vpop.f32.mrb[0].mxu0
    %6387 = vdwg.mxu0
    %v6389 = vsel %vm993, %v6308, 0
    %6391 = vmatprep.subr.mxu0 0.0
    %6392 = vmatpush1.msra.mxu0 %v5586
    %6393 = vmatprep.subr.mxu0 0.0
    %6394 = vmatpush1.msra.mxu0 0.0
    %6395 = vmatprep.subr.mxu0 0.0
    %6396 = vmatpush1.msra.mxu0 0.0
    %6397 = vmatprep.subr.mxu0 0.0
    %6398 = vmatpush1.msra.mxu0 0.0
    %6399 = vmatprep.subr.mxu0 0.0
    %6400 = vmatpush1.msra.mxu0 0.0
    %6401 = vmatprep.subr.mxu0 0.0
    %6402 = vmatpush1.msra.mxu0 0.0
    %6403 = vmatprep.subr.mxu0 0.0
    %6404 = vmatpush1.msra.mxu0 0.0
    %6405 = vmatprep.subr.mxu0 0.0
    %6406 = vmatpush1.msra.mxu0 0.0
    %6407 = vmatprep.subr.mxu0 0.0
    %6408 = vmatpush1.msra.mxu0 0.0
    %6409 = vmatprep.subr.mxu0 0.0
    %6410 = vmatpush1.msra.mxu0 0.0
    %6411 = vmatprep.subr.mxu0 0.0
    %6412 = vmatpush1.msra.mxu0 0.0
    %6413 = vmatprep.subr.mxu0 0.0
    %6414 = vmatpush1.msra.mxu0 0.0
    %6415 = vmatprep.subr.mxu0 0.0
    %6416 = vmatpush1.msra.mxu0 0.0
    %6417 = vmatprep.subr.mxu0 0.0
    %6418 = vmatpush1.msra.mxu0 0.0
    %6419 = vmatprep.subr.mxu0 0.0
    %6420 = vmatpush1.msra.mxu0 0.0
    %6421 = vmatprep.subr.mxu0 0.0
    %6422 = vmatpush1.msra.mxu0 0.0
    %6423 = vmatprep.subr.mxu0 0.0
    %6424 = vmatpush1.msra.mxu0 0.0
    %6425 = vmatprep.subr.mxu0 0.0
    %6426 = vmatpush1.msra.mxu0 0.0
    %6427 = vmatprep.subr.mxu0 0.0
    %6428 = vmatpush1.msra.mxu0 0.0
    %6429 = vmatprep.subr.mxu0 0.0
    %6430 = vmatpush1.msra.mxu0 0.0
    %6431 = vmatprep.subr.mxu0 0.0
    %6432 = vmatpush1.msra.mxu0 0.0
    %6433 = vmatprep.subr.mxu0 0.0
    %6434 = vmatpush1.msra.mxu0 0.0
    %6435 = vmatprep.subr.mxu0 0.0
    %6436 = vmatpush1.msra.mxu0 0.0
    %6437 = vmatprep.subr.mxu0 0.0
    %6438 = vmatpush1.msra.mxu0 0.0
    %6439 = vmatprep.subr.mxu0 0.0
    %6440 = vmatpush1.msra.mxu0 0.0
    %6441 = vmatprep.subr.mxu0 0.0
    %6442 = vmatpush1.msra.mxu0 0.0
    %6443 = vmatprep.subr.mxu0 0.0
    %6444 = vmatpush1.msra.mxu0 0.0
    %6445 = vmatprep.subr.mxu0 0.0
    %6446 = vmatpush1.msra.mxu0 0.0
    %6447 = vmatprep.subr.mxu0 0.0
    %6448 = vmatpush1.msra.mxu0 0.0
    %6449 = vmatprep.subr.mxu0 0.0
    %6450 = vmatpush1.msra.mxu0 0.0
    %6451 = vmatprep.subr.mxu0 0.0
    %6452 = vmatpush1.msra.mxu0 0.0
    %6453 = vmatprep.subr.mxu0 0.0
    %6454 = vmatpush1.msra.mxu0 0.0
    %6455 = vmatprep.mubr.f32.mxu0 0.0
    %6456 = vmatmul.mubr.f32.gmra.mrb[0].mxu0 %v6389
    %v6457 = vpop.f32.mrb[0].mxu0
    %v6458 = vadd.f32 0.0, %v6457
    %v6459 = vpop.f32.mrb[0].mxu0
    %6460 = vdwg.mxu0
    %v6462 = vsel %vm993, %v6309, 0
    %6464 = vmatprep.subr.mxu0 0.0
    %6465 = vmatpush1.msra.mxu0 %v5591
    %6466 = vmatprep.subr.mxu0 0.0
    %6467 = vmatpush1.msra.mxu0 0.0
    %6468 = vmatprep.subr.mxu0 0.0
    %6469 = vmatpush1.msra.mxu0 0.0
    %6470 = vmatprep.subr.mxu0 0.0
    %6471 = vmatpush1.msra.mxu0 0.0
    %6472 = vmatprep.subr.mxu0 0.0
    %6473 = vmatpush1.msra.mxu0 0.0
    %6474 = vmatprep.subr.mxu0 0.0
    %6475 = vmatpush1.msra.mxu0 0.0
    %6476 = vmatprep.subr.mxu0 0.0
    %6477 = vmatpush1.msra.mxu0 0.0
    %6478 = vmatprep.subr.mxu0 0.0
    %6479 = vmatpush1.msra.mxu0 0.0
    %6480 = vmatprep.subr.mxu0 0.0
    %6481 = vmatpush1.msra.mxu0 0.0
    %6482 = vmatprep.subr.mxu0 0.0
    %6483 = vmatpush1.msra.mxu0 0.0
    %6484 = vmatprep.subr.mxu0 0.0
    %6485 = vmatpush1.msra.mxu0 0.0
    %6486 = vmatprep.subr.mxu0 0.0
    %6487 = vmatpush1.msra.mxu0 0.0
    %6488 = vmatprep.subr.mxu0 0.0
    %6489 = vmatpush1.msra.mxu0 0.0
    %6490 = vmatprep.subr.mxu0 0.0
    %6491 = vmatpush1.msra.mxu0 0.0
    %6492 = vmatprep.subr.mxu0 0.0
    %6493 = vmatpush1.msra.mxu0 0.0
    %6494 = vmatprep.subr.mxu0 0.0
    %6495 = vmatpush1.msra.mxu0 0.0
    %6496 = vmatprep.subr.mxu0 0.0
    %6497 = vmatpush1.msra.mxu0 0.0
    %6498 = vmatprep.subr.mxu0 0.0
    %6499 = vmatpush1.msra.mxu0 0.0
    %6500 = vmatprep.subr.mxu0 0.0
    %6501 = vmatpush1.msra.mxu0 0.0
    %6502 = vmatprep.subr.mxu0 0.0
    %6503 = vmatpush1.msra.mxu0 0.0
    %6504 = vmatprep.subr.mxu0 0.0
    %6505 = vmatpush1.msra.mxu0 0.0
    %6506 = vmatprep.subr.mxu0 0.0
    %6507 = vmatpush1.msra.mxu0 0.0
    %6508 = vmatprep.subr.mxu0 0.0
    %6509 = vmatpush1.msra.mxu0 0.0
    %6510 = vmatprep.subr.mxu0 0.0
    %6511 = vmatpush1.msra.mxu0 0.0
    %6512 = vmatprep.subr.mxu0 0.0
    %6513 = vmatpush1.msra.mxu0 0.0
    %6514 = vmatprep.subr.mxu0 0.0
    %6515 = vmatpush1.msra.mxu0 0.0
    %6516 = vmatprep.subr.mxu0 0.0
    %6517 = vmatpush1.msra.mxu0 0.0
    %6518 = vmatprep.subr.mxu0 0.0
    %6519 = vmatpush1.msra.mxu0 0.0
    %6520 = vmatprep.subr.mxu0 0.0
    %6521 = vmatpush1.msra.mxu0 0.0
    %6522 = vmatprep.subr.mxu0 0.0
    %6523 = vmatpush1.msra.mxu0 0.0
    %6524 = vmatprep.subr.mxu0 0.0
    %6525 = vmatpush1.msra.mxu0 0.0
    %6526 = vmatprep.subr.mxu0 0.0
    %6527 = vmatpush1.msra.mxu0 0.0
    %6528 = vmatprep.mubr.f32.mxu0 0.0
    %6529 = vmatmul.mubr.f32.gmra.mrb[0].mxu0 %v6462
    %v6530 = vpop.f32.mrb[0].mxu0
    %v6531 = vadd.f32 0.0, %v6530
    %v6532 = vpop.f32.mrb[0].mxu0
    %6533 = vdwg.mxu0
    %v6535 = vsel %vm993, %v6310, 0
    %6537 = vmatprep.subr.mxu0 0.0
    %6538 = vmatpush1.msra.mxu0 %v5596
    %6539 = vmatprep.subr.mxu0 0.0
    %6540 = vmatpush1.msra.mxu0 0.0
    %6541 = vmatprep.subr.mxu0 0.0
    %6542 = vmatpush1.msra.mxu0 0.0
    %6543 = vmatprep.subr.mxu0 0.0
    %6544 = vmatpush1.msra.mxu0 0.0
    %6545 = vmatprep.subr.mxu0 0.0
    %6546 = vmatpush1.msra.mxu0 0.0
    %6547 = vmatprep.subr.mxu0 0.0
    %6548 = vmatpush1.msra.mxu0 0.0
    %6549 = vmatprep.subr.mxu0 0.0
    %6550 = vmatpush1.msra.mxu0 0.0
    %6551 = vmatprep.subr.mxu0 0.0
    %6552 = vmatpush1.msra.mxu0 0.0
    %6553 = vmatprep.subr.mxu0 0.0
    %6554 = vmatpush1.msra.mxu0 0.0
    %6555 = vmatprep.subr.mxu0 0.0
    %6556 = vmatpush1.msra.mxu0 0.0
    %6557 = vmatprep.subr.mxu0 0.0
    %6558 = vmatpush1.msra.mxu0 0.0
    %6559 = vmatprep.subr.mxu0 0.0
    %6560 = vmatpush1.msra.mxu0 0.0
    %6561 = vmatprep.subr.mxu0 0.0
    %6562 = vmatpush1.msra.mxu0 0.0
    %6563 = vmatprep.subr.mxu0 0.0
    %6564 = vmatpush1.msra.mxu0 0.0
    %6565 = vmatprep.subr.mxu0 0.0
    %6566 = vmatpush1.msra.mxu0 0.0
    %6567 = vmatprep.subr.mxu0 0.0
    %6568 = vmatpush1.msra.mxu0 0.0
    %6569 = vmatprep.subr.mxu0 0.0
    %6570 = vmatpush1.msra.mxu0 0.0
    %6571 = vmatprep.subr.mxu0 0.0
    %6572 = vmatpush1.msra.mxu0 0.0
    %6573 = vmatprep.subr.mxu0 0.0
    %6574 = vmatpush1.msra.mxu0 0.0
    %6575 = vmatprep.subr.mxu0 0.0
    %6576 = vmatpush1.msra.mxu0 0.0
    %6577 = vmatprep.subr.mxu0 0.0
    %6578 = vmatpush1.msra.mxu0 0.0
    %6579 = vmatprep.subr.mxu0 0.0
    %6580 = vmatpush1.msra.mxu0 0.0
    %6581 = vmatprep.subr.mxu0 0.0
    %6582 = vmatpush1.msra.mxu0 0.0
    %6583 = vmatprep.subr.mxu0 0.0
    %6584 = vmatpush1.msra.mxu0 0.0
    %6585 = vmatprep.subr.mxu0 0.0
    %6586 = vmatpush1.msra.mxu0 0.0
    %6587 = vmatprep.subr.mxu0 0.0
    %6588 = vmatpush1.msra.mxu0 0.0
    %6589 = vmatprep.subr.mxu0 0.0
    %6590 = vmatpush1.msra.mxu0 0.0
    %6591 = vmatprep.subr.mxu0 0.0
    %6592 = vmatpush1.msra.mxu0 0.0
    %6593 = vmatprep.subr.mxu0 0.0
    %6594 = vmatpush1.msra.mxu0 0.0
    %6595 = vmatprep.subr.mxu0 0.0
    %6596 = vmatpush1.msra.mxu0 0.0
    %6597 = vmatprep.subr.mxu0 0.0
    %6598 = vmatpush1.msra.mxu0 0.0
    %6599 = vmatprep.subr.mxu0 0.0
    %6600 = vmatpush1.msra.mxu0 0.0
    %6601 = vmatprep.mubr.f32.mxu0 0.0
    %6602 = vmatmul.mubr.f32.gmra.mrb[0].mxu0 %v6535
    %v6603 = vpop.f32.mrb[0].mxu0
    %v6604 = vadd.f32 0.0, %v6603
    %v6605 = vpop.f32.mrb[0].mxu0
    %6606 = vdwg.mxu0
    %v6608 = vsel %vm993, %v6311, 0
    %6610 = vmatprep.subr.mxu0 0.0
    %6611 = vmatpush1.msra.mxu0 %v5601
    %6612 = vmatprep.subr.mxu0 0.0
    %6613 = vmatpush1.msra.mxu0 0.0
    %6614 = vmatprep.subr.mxu0 0.0
    %6615 = vmatpush1.msra.mxu0 0.0
    %6616 = vmatprep.subr.mxu0 0.0
    %6617 = vmatpush1.msra.mxu0 0.0
    %6618 = vmatprep.subr.mxu0 0.0
    %6619 = vmatpush1.msra.mxu0 0.0
    %6620 = vmatprep.subr.mxu0 0.0
    %6621 = vmatpush1.msra.mxu0 0.0
    %6622 = vmatprep.subr.mxu0 0.0
    %6623 = vmatpush1.msra.mxu0 0.0
    %6624 = vmatprep.subr.mxu0 0.0
    %6625 = vmatpush1.msra.mxu0 0.0
    %6626 = vmatprep.subr.mxu0 0.0
    %6627 = vmatpush1.msra.mxu0 0.0
    %6628 = vmatprep.subr.mxu0 0.0
    %6629 = vmatpush1.msra.mxu0 0.0
    %6630 = vmatprep.subr.mxu0 0.0
    %6631 = vmatpush1.msra.mxu0 0.0
    %6632 = vmatprep.subr.mxu0 0.0
    %6633 = vmatpush1.msra.mxu0 0.0
    %6634 = vmatprep.subr.mxu0 0.0
    %6635 = vmatpush1.msra.mxu0 0.0
    %6636 = vmatprep.subr.mxu0 0.0
    %6637 = vmatpush1.msra.mxu0 0.0
    %6638 = vmatprep.subr.mxu0 0.0
    %6639 = vmatpush1.msra.mxu0 0.0
    %6640 = vmatprep.subr.mxu0 0.0
    %6641 = vmatpush1.msra.mxu0 0.0
    %6642 = vmatprep.subr.mxu0 0.0
    %6643 = vmatpush1.msra.mxu0 0.0
    %6644 = vmatprep.subr.mxu0 0.0
    %6645 = vmatpush1.msra.mxu0 0.0
    %6646 = vmatprep.subr.mxu0 0.0
    %6647 = vmatpush1.msra.mxu0 0.0
    %6648 = vmatprep.subr.mxu0 0.0
    %6649 = vmatpush1.msra.mxu0 0.0
    %6650 = vmatprep.subr.mxu0 0.0
    %6651 = vmatpush1.msra.mxu0 0.0
    %6652 = vmatprep.subr.mxu0 0.0
    %6653 = vmatpush1.msra.mxu0 0.0
    %6654 = vmatprep.subr.mxu0 0.0
    %6655 = vmatpush1.msra.mxu0 0.0
    %6656 = vmatprep.subr.mxu0 0.0
    %6657 = vmatpush1.msra.mxu0 0.0
    %6658 = vmatprep.subr.mxu0 0.0
    %6659 = vmatpush1.msra.mxu0 0.0
    %6660 = vmatprep.subr.mxu0 0.0
    %6661 = vmatpush1.msra.mxu0 0.0
    %6662 = vmatprep.subr.mxu0 0.0
    %6663 = vmatpush1.msra.mxu0 0.0
    %6664 = vmatprep.subr.mxu0 0.0
    %6665 = vmatpush1.msra.mxu0 0.0
    %6666 = vmatprep.subr.mxu0 0.0
    %6667 = vmatpush1.msra.mxu0 0.0
    %6668 = vmatprep.subr.mxu0 0.0
    %6669 = vmatpush1.msra.mxu0 0.0
    %6670 = vmatprep.subr.mxu0 0.0
    %6671 = vmatpush1.msra.mxu0 0.0
    %6672 = vmatprep.subr.mxu0 0.0
    %6673 = vmatpush1.msra.mxu0 0.0
    %6674 = vmatprep.mubr.f32.mxu0 0.0
    %6675 = vmatmul.mubr.f32.gmra.mrb[0].mxu0 %v6608
    %v6676 = vpop.f32.mrb[0].mxu0
    %v6677 = vadd.f32 0.0, %v6676
    %v6678 = vpop.f32.mrb[0].mxu0
    %6679 = vdwg.mxu0
    %v6681 = vsel %vm993, %v6312, 0
    %6683 = vmatprep.subr.mxu0 0.0
    %6684 = vmatpush1.msra.mxu0 %v5606
    %6685 = vmatprep.subr.mxu0 0.0
    %6686 = vmatpush1.msra.mxu0 0.0
    %6687 = vmatprep.subr.mxu0 0.0
    %6688 = vmatpush1.msra.mxu0 0.0
    %6689 = vmatprep.subr.mxu0 0.0
    %6690 = vmatpush1.msra.mxu0 0.0
    %6691 = vmatprep.subr.mxu0 0.0
    %6692 = vmatpush1.msra.mxu0 0.0
    %6693 = vmatprep.subr.mxu0 0.0
    %6694 = vmatpush1.msra.mxu0 0.0
    %6695 = vmatprep.subr.mxu0 0.0
    %6696 = vmatpush1.msra.mxu0 0.0
    %6697 = vmatprep.subr.mxu0 0.0
    %6698 = vmatpush1.msra.mxu0 0.0
    %6699 = vmatprep.subr.mxu0 0.0
    %6700 = vmatpush1.msra.mxu0 0.0
    %6701 = vmatprep.subr.mxu0 0.0
    %6702 = vmatpush1.msra.mxu0 0.0
    %6703 = vmatprep.subr.mxu0 0.0
    %6704 = vmatpush1.msra.mxu0 0.0
    %6705 = vmatprep.subr.mxu0 0.0
    %6706 = vmatpush1.msra.mxu0 0.0
    %6707 = vmatprep.subr.mxu0 0.0
    %6708 = vmatpush1.msra.mxu0 0.0
    %6709 = vmatprep.subr.mxu0 0.0
    %6710 = vmatpush1.msra.mxu0 0.0
    %6711 = vmatprep.subr.mxu0 0.0
    %6712 = vmatpush1.msra.mxu0 0.0
    %6713 = vmatprep.subr.mxu0 0.0
    %6714 = vmatpush1.msra.mxu0 0.0
    %6715 = vmatprep.subr.mxu0 0.0
    %6716 = vmatpush1.msra.mxu0 0.0
    %6717 = vmatprep.subr.mxu0 0.0
    %6718 = vmatpush1.msra.mxu0 0.0
    %6719 = vmatprep.subr.mxu0 0.0
    %6720 = vmatpush1.msra.mxu0 0.0
    %6721 = vmatprep.subr.mxu0 0.0
    %6722 = vmatpush1.msra.mxu0 0.0
    %6723 = vmatprep.subr.mxu0 0.0
    %6724 = vmatpush1.msra.mxu0 0.0
    %6725 = vmatprep.subr.mxu0 0.0
    %6726 = vmatpush1.msra.mxu0 0.0
    %6727 = vmatprep.subr.mxu0 0.0
    %6728 = vmatpush1.msra.mxu0 0.0
    %6729 = vmatprep.subr.mxu0 0.0
    %6730 = vmatpush1.msra.mxu0 0.0
    %6731 = vmatprep.subr.mxu0 0.0
    %6732 = vmatpush1.msra.mxu0 0.0
    %6733 = vmatprep.subr.mxu0 0.0
    %6734 = vmatpush1.msra.mxu0 0.0
    %6735 = vmatprep.subr.mxu0 0.0
    %6736 = vmatpush1.msra.mxu0 0.0
    %6737 = vmatprep.subr.mxu0 0.0
    %6738 = vmatpush1.msra.mxu0 0.0
    %6739 = vmatprep.subr.mxu0 0.0
    %6740 = vmatpush1.msra.mxu0 0.0
    %6741 = vmatprep.subr.mxu0 0.0
    %6742 = vmatpush1.msra.mxu0 0.0
    %6743 = vmatprep.subr.mxu0 0.0
    %6744 = vmatpush1.msra.mxu0 0.0
    %6745 = vmatprep.subr.mxu0 0.0
    %6746 = vmatpush1.msra.mxu0 0.0
    %6747 = vmatprep.mubr.f32.mxu0 0.0
    %6748 = vmatmul.mubr.f32.gmra.mrb[0].mxu0 %v6681
    %v6749 = vpop.f32.mrb[0].mxu0
    %v6750 = vadd.f32 0.0, %v6749
    %v6751 = vpop.f32.mrb[0].mxu0
    %6752 = vdwg.mxu0
    %v6754 = vsel %vm993, %v6313, 0
    %6756 = vmatprep.subr.mxu0 0.0
    %6757 = vmatpush1.msra.mxu0 %v5611
    %6758 = vmatprep.subr.mxu0 0.0
    %6759 = vmatpush1.msra.mxu0 0.0
    %6760 = vmatprep.subr.mxu0 0.0
    %6761 = vmatpush1.msra.mxu0 0.0
    %6762 = vmatprep.subr.mxu0 0.0
    %6763 = vmatpush1.msra.mxu0 0.0
    %6764 = vmatprep.subr.mxu0 0.0
    %6765 = vmatpush1.msra.mxu0 0.0
    %6766 = vmatprep.subr.mxu0 0.0
    %6767 = vmatpush1.msra.mxu0 0.0
    %6768 = vmatprep.subr.mxu0 0.0
    %6769 = vmatpush1.msra.mxu0 0.0
    %6770 = vmatprep.subr.mxu0 0.0
    %6771 = vmatpush1.msra.mxu0 0.0
    %6772 = vmatprep.subr.mxu0 0.0
    %6773 = vmatpush1.msra.mxu0 0.0
    %6774 = vmatprep.subr.mxu0 0.0
    %6775 = vmatpush1.msra.mxu0 0.0
    %6776 = vmatprep.subr.mxu0 0.0
    %6777 = vmatpush1.msra.mxu0 0.0
    %6778 = vmatprep.subr.mxu0 0.0
    %6779 = vmatpush1.msra.mxu0 0.0
    %6780 = vmatprep.subr.mxu0 0.0
    %6781 = vmatpush1.msra.mxu0 0.0
    %6782 = vmatprep.subr.mxu0 0.0
    %6783 = vmatpush1.msra.mxu0 0.0
    %6784 = vmatprep.subr.mxu0 0.0
    %6785 = vmatpush1.msra.mxu0 0.0
    %6786 = vmatprep.subr.mxu0 0.0
    %6787 = vmatpush1.msra.mxu0 0.0
    %6788 = vmatprep.subr.mxu0 0.0
    %6789 = vmatpush1.msra.mxu0 0.0
    %6790 = vmatprep.subr.mxu0 0.0
    %6791 = vmatpush1.msra.mxu0 0.0
    %6792 = vmatprep.subr.mxu0 0.0
    %6793 = vmatpush1.msra.mxu0 0.0
    %6794 = vmatprep.subr.mxu0 0.0
    %6795 = vmatpush1.msra.mxu0 0.0
    %6796 = vmatprep.subr.mxu0 0.0
    %6797 = vmatpush1.msra.mxu0 0.0
    %6798 = vmatprep.subr.mxu0 0.0
    %6799 = vmatpush1.msra.mxu0 0.0
    %6800 = vmatprep.subr.mxu0 0.0
    %6801 = vmatpush1.msra.mxu0 0.0
    %6802 = vmatprep.subr.mxu0 0.0
    %6803 = vmatpush1.msra.mxu0 0.0
    %6804 = vmatprep.subr.mxu0 0.0
    %6805 = vmatpush1.msra.mxu0 0.0
    %6806 = vmatprep.subr.mxu0 0.0
    %6807 = vmatpush1.msra.mxu0 0.0
    %6808 = vmatprep.subr.mxu0 0.0
    %6809 = vmatpush1.msra.mxu0 0.0
    %6810 = vmatprep.subr.mxu0 0.0
    %6811 = vmatpush1.msra.mxu0 0.0
    %6812 = vmatprep.subr.mxu0 0.0
    %6813 = vmatpush1.msra.mxu0 0.0
    %6814 = vmatprep.subr.mxu0 0.0
    %6815 = vmatpush1.msra.mxu0 0.0
    %6816 = vmatprep.subr.mxu0 0.0
    %6817 = vmatpush1.msra.mxu0 0.0
    %6818 = vmatprep.subr.mxu0 0.0
    %6819 = vmatpush1.msra.mxu0 0.0
    %6820 = vmatprep.mubr.f32.mxu0 0.0
    %6821 = vmatmul.mubr.f32.gmra.mrb[0].mxu0 %v6754
    %v6822 = vpop.f32.mrb[0].mxu0
    %v6823 = vadd.f32 0.0, %v6822
    %v6824 = vpop.f32.mrb[0].mxu0
    %6825 = vdwg.mxu0
    %v6827 = vsel %vm993, %v6314, 0
    %6829 = vmatprep.subr.mxu0 0.0
    %6830 = vmatpush1.msra.mxu0 %v5616
    %6831 = vmatprep.subr.mxu0 0.0
    %6832 = vmatpush1.msra.mxu0 0.0
    %6833 = vmatprep.subr.mxu0 0.0
    %6834 = vmatpush1.msra.mxu0 0.0
    %6835 = vmatprep.subr.mxu0 0.0
    %6836 = vmatpush1.msra.mxu0 0.0
    %6837 = vmatprep.subr.mxu0 0.0
    %6838 = vmatpush1.msra.mxu0 0.0
    %6839 = vmatprep.subr.mxu0 0.0
    %6840 = vmatpush1.msra.mxu0 0.0
    %6841 = vmatprep.subr.mxu0 0.0
    %6842 = vmatpush1.msra.mxu0 0.0
    %6843 = vmatprep.subr.mxu0 0.0
    %6844 = vmatpush1.msra.mxu0 0.0
    %6845 = vmatprep.subr.mxu0 0.0
    %6846 = vmatpush1.msra.mxu0 0.0
    %6847 = vmatprep.subr.mxu0 0.0
    %6848 = vmatpush1.msra.mxu0 0.0
    %6849 = vmatprep.subr.mxu0 0.0
    %6850 = vmatpush1.msra.mxu0 0.0
    %6851 = vmatprep.subr.mxu0 0.0
    %6852 = vmatpush1.msra.mxu0 0.0
    %6853 = vmatprep.subr.mxu0 0.0
    %6854 = vmatpush1.msra.mxu0 0.0
    %6855 = vmatprep.subr.mxu0 0.0
    %6856 = vmatpush1.msra.mxu0 0.0
    %6857 = vmatprep.subr.mxu0 0.0
    %6858 = vmatpush1.msra.mxu0 0.0
    %6859 = vmatprep.subr.mxu0 0.0
    %6860 = vmatpush1.msra.mxu0 0.0
    %6861 = vmatprep.subr.mxu0 0.0
    %6862 = vmatpush1.msra.mxu0 0.0
    %6863 = vmatprep.subr.mxu0 0.0
    %6864 = vmatpush1.msra.mxu0 0.0
    %6865 = vmatprep.subr.mxu0 0.0
    %6866 = vmatpush1.msra.mxu0 0.0
    %6867 = vmatprep.subr.mxu0 0.0
    %6868 = vmatpush1.msra.mxu0 0.0
    %6869 = vmatprep.subr.mxu0 0.0
    %6870 = vmatpush1.msra.mxu0 0.0
    %6871 = vmatprep.subr.mxu0 0.0
    %6872 = vmatpush1.msra.mxu0 0.0
    %6873 = vmatprep.subr.mxu0 0.0
    %6874 = vmatpush1.msra.mxu0 0.0
    %6875 = vmatprep.subr.mxu0 0.0
    %6876 = vmatpush1.msra.mxu0 0.0
    %6877 = vmatprep.subr.mxu0 0.0
    %6878 = vmatpush1.msra.mxu0 0.0
    %6879 = vmatprep.subr.mxu0 0.0
    %6880 = vmatpush1.msra.mxu0 0.0
    %6881 = vmatprep.subr.mxu0 0.0
    %6882 = vmatpush1.msra.mxu0 0.0
    %6883 = vmatprep.subr.mxu0 0.0
    %6884 = vmatpush1.msra.mxu0 0.0
    %6885 = vmatprep.subr.mxu0 0.0
    %6886 = vmatpush1.msra.mxu0 0.0
    %6887 = vmatprep.subr.mxu0 0.0
    %6888 = vmatpush1.msra.mxu0 0.0
    %6889 = vmatprep.subr.mxu0 0.0
    %6890 = vmatpush1.msra.mxu0 0.0
    %6891 = vmatprep.subr.mxu0 0.0
    %6892 = vmatpush1.msra.mxu0 0.0
    %6893 = vmatprep.mubr.f32.mxu0 0.0
    %6894 = vmatmul.mubr.f32.gmra.mrb[0].mxu0 %v6827
    %v6895 = vpop.f32.mrb[0].mxu0
    %v6896 = vadd.f32 0.0, %v6895
    %v6897 = vpop.f32.mrb[0].mxu0
    %6898 = vdwg.mxu0
    %s6899 = scalar_lea.vmem %s4, 48
    %v6900 = vld [vmem:[%s6899] sm:$0xff]
    %v6901 = vld [vmem:[%s6899 + $0x8] sm:$0xff]
    %v6903 = vsel %vm384, %v6385, 0
    %v6906 = vsel %vm384, %v6458, 0
    %v6909 = vsel %vm384, %v6531, 0
    %v6912 = vsel %vm384, %v6604, 0
    %v6915 = vsel %vm384, %v6677, 0
    %v6918 = vsel %vm384, %v6750, 0
    %v6921 = vsel %vm384, %v6823, 0
    %v6924 = vsel %vm384, %v6896, 0
    %6926 = vmatprep.subr.mxu0 0.0
    %6927 = vmatpush1.msra.mxu0 %v6900
    %6928 = vmatprep.subr.mxu0 0.0
    %6929 = vmatpush1.msra.mxu0 %v6901
    %6930 = vmatprep.subr.mxu0 0.0
    %6931 = vmatpush1.msra.mxu0 0.0
    %6932 = vmatprep.subr.mxu0 0.0
    %6933 = vmatpush1.msra.mxu0 0.0
    %6934 = vmatprep.subr.mxu0 0.0
    %6935 = vmatpush1.msra.mxu0 0.0
    %6936 = vmatprep.subr.mxu0 0.0
    %6937 = vmatpush1.msra.mxu0 0.0
    %6938 = vmatprep.subr.mxu0 0.0
    %6939 = vmatpush1.msra.mxu0 0.0
    %6940 = vmatprep.subr.mxu0 0.0
    %6941 = vmatpush1.msra.mxu0 0.0
    %6942 = vmatprep.subr.mxu0 0.0
    %6943 = vmatpush1.msra.mxu0 0.0
    %6944 = vmatprep.subr.mxu0 0.0
    %6945 = vmatpush1.msra.mxu0 0.0
    %6946 = vmatprep.subr.mxu0 0.0
    %6947 = vmatpush1.msra.mxu0 0.0
    %6948 = vmatprep.subr.mxu0 0.0
    %6949 = vmatpush1.msra.mxu0 0.0
    %6950 = vmatprep.subr.mxu0 0.0
    %6951 = vmatpush1.msra.mxu0 0.0
    %6952 = vmatprep.subr.mxu0 0.0
    %6953 = vmatpush1.msra.mxu0 0.0
    %6954 = vmatprep.subr.mxu0 0.0
    %6955 = vmatpush1.msra.mxu0 0.0
    %6956 = vmatprep.subr.mxu0 0.0
    %6957 = vmatpush1.msra.mxu0 0.0
    %6958 = vmatprep.subr.mxu0 0.0
    %6959 = vmatpush1.msra.mxu0 0.0
    %6960 = vmatprep.subr.mxu0 0.0
    %6961 = vmatpush1.msra.mxu0 0.0
    %6962 = vmatprep.subr.mxu0 0.0
    %6963 = vmatpush1.msra.mxu0 0.0
    %6964 = vmatprep.subr.mxu0 0.0
    %6965 = vmatpush1.msra.mxu0 0.0
    %6966 = vmatprep.subr.mxu0 0.0
    %6967 = vmatpush1.msra.mxu0 0.0
    %6968 = vmatprep.subr.mxu0 0.0
    %6969 = vmatpush1.msra.mxu0 0.0
    %6970 = vmatprep.subr.mxu0 0.0
    %6971 = vmatpush1.msra.mxu0 0.0
    %6972 = vmatprep.subr.mxu0 0.0
    %6973 = vmatpush1.msra.mxu0 0.0
    %6974 = vmatprep.subr.mxu0 0.0
    %6975 = vmatpush1.msra.mxu0 0.0
    %6976 = vmatprep.subr.mxu0 0.0
    %6977 = vmatpush1.msra.mxu0 0.0
    %6978 = vmatprep.subr.mxu0 0.0
    %6979 = vmatpush1.msra.mxu0 0.0
    %6980 = vmatprep.subr.mxu0 0.0
    %6981 = vmatpush1.msra.mxu0 0.0
    %6982 = vmatprep.subr.mxu0 0.0
    %6983 = vmatpush1.msra.mxu0 0.0
    %6984 = vmatprep.subr.mxu0 0.0
    %6985 = vmatpush1.msra.mxu0 0.0
    %6986 = vmatprep.subr.mxu0 0.0
    %6987 = vmatpush1.msra.mxu0 0.0
    %6988 = vmatprep.subr.mxu0 0.0
    %6989 = vmatpush1.msra.mxu0 0.0
    %6990 = vmatprep.mubr.f32.mxu0 0.0
    %6991 = vmatmul.mubr.f32.gmra.mrb[0].mxu0 %v6903
    %v6992 = vpop.f32.mrb[0].mxu0
    %v6993 = vadd.f32 0.0, %v6992
    %v6994 = vpop.f32.mrb[0].mxu0
    %6995 = vmatprep.mubr.f32.mxu0 0.0
    %6996 = vmatmul.mubr.f32.gmra.mrb[0].mxu0 %v6906
    %v6997 = vpop.f32.mrb[0].mxu0
    %v6998 = vadd.f32 0.0, %v6997
    %v6999 = vpop.f32.mrb[0].mxu0
    %7000 = vmatprep.mubr.f32.mxu0 0.0
    %7001 = vmatmul.mubr.f32.gmra.mrb[0].mxu0 %v6909
    %v7002 = vpop.f32.mrb[0].mxu0
    %v7003 = vadd.f32 0.0, %v7002
    %v7004 = vpop.f32.mrb[0].mxu0
    %7005 = vmatprep.mubr.f32.mxu0 0.0
    %7006 = vmatmul.mubr.f32.gmra.mrb[0].mxu0 %v6912
    %v7007 = vpop.f32.mrb[0].mxu0
    %v7008 = vadd.f32 0.0, %v7007
    %v7009 = vpop.f32.mrb[0].mxu0
    %7010 = vmatprep.mubr.f32.mxu0 0.0
    %7011 = vmatmul.mubr.f32.gmra.mrb[0].mxu0 %v6915
    %v7012 = vpop.f32.mrb[0].mxu0
    %v7013 = vadd.f32 0.0, %v7012
    %v7014 = vpop.f32.mrb[0].mxu0
    %7015 = vmatprep.mubr.f32.mxu0 0.0
    %7016 = vmatmul.mubr.f32.gmra.mrb[0].mxu0 %v6918
    %v7017 = vpop.f32.mrb[0].mxu0
    %v7018 = vadd.f32 0.0, %v7017
    %v7019 = vpop.f32.mrb[0].mxu0
    %7020 = vmatprep.mubr.f32.mxu0 0.0
    %7021 = vmatmul.mubr.f32.gmra.mrb[0].mxu0 %v6921
    %v7022 = vpop.f32.mrb[0].mxu0
    %v7023 = vadd.f32 0.0, %v7022
    %v7024 = vpop.f32.mrb[0].mxu0
    %7025 = vmatprep.mubr.f32.mxu0 0.0
    %7026 = vmatmul.mubr.f32.gmra.mrb[0].mxu0 %v6924
    %v7027 = vpop.f32.mrb[0].mxu0
    %v7028 = vadd.f32 0.0, %v7027
    %v7029 = vpop.f32.mrb[0].mxu0
    %7030 = vdwg.mxu0
    %v7031 = vadd.f32 %v5281, %v6993
    %v7032 = vadd.f32 %v5282, %v6998
    %v7033 = vadd.f32 %v5283, %v7003
    %v7034 = vadd.f32 %v5284, %v7008
    %v7035 = vadd.f32 %v5285, %v7013
    %v7036 = vadd.f32 %v5286, %v7018
    %v7037 = vadd.f32 %v5287, %v7023
    %v7038 = vadd.f32 %v5288, %v7028
    %v7039 = vld [vmem:[%s5] sm:$0x1]
    %v7041 = vlaneseq
    %v7042 = vshrl.u32 %v7041, 7
    %v7043 = vsub.s32 0, %v7042
    %v7044 = vrot.slane %v7039, %v7043
    %v7046 = vadd.f32 %v7031, %v7044
    %v7047 = vadd.f32 %v7032, %v7044
    %v7048 = vadd.f32 %v7033, %v7044
    %v7049 = vadd.f32 %v7034, %v7044
    %v7050 = vadd.f32 %v7035, %v7044
    %v7051 = vadd.f32 %v7036, %v7044
    %v7052 = vadd.f32 %v7037, %v7044
    %v7053 = vadd.f32 %v7038, %v7044
    %v7062 = vrot.slane %v7047, 7
    %vm7063 = vcmask 1041409
    %v7064 = vsel %vm7063, %v7062, %v7046
    %v7065 = vrot.slane %v7048, 6
    %vm7066 = vcmask 1042434
    %v7067 = vsel %vm7066, %v7065, %v7064
    %v7068 = vrot.slane %v7049, 5
    %vm7069 = vcmask 1043459
    %v7070 = vsel %vm7069, %v7068, %v7067
    %v7071 = vrot.slane %v7050, 4
    %vm7072 = vcmask 1044484
    %v7073 = vsel %vm7072, %v7071, %v7070
    %v7074 = vrot.slane %v7051, 3
    %vm7075 = vcmask 1045509
    %v7076 = vsel %vm7075, %v7074, %v7073
    %v7077 = vrot.slane %v7052, 2
    %vm7078 = vcmask 1046534
    %v7079 = vsel %vm7078, %v7077, %v7076
    %v7080 = vrot.slane %v7053, 1
    %vm7081 = vcmask 1047559
    %v7082 = vsel %vm7081, %v7080, %v7079
    %v7084 = vrot.slane %v7046, 1
    %v7085 = vsel %vm7063, %v7047, %v7084
    %v7086 = vrot.slane %v7048, 7
    %v7087 = vsel %vm7066, %v7086, %v7085
    %v7088 = vrot.slane %v7049, 6
    %v7089 = vsel %vm7069, %v7088, %v7087
    %v7090 = vrot.slane %v7050, 5
    %v7091 = vsel %vm7072, %v7090, %v7089
    %v7092 = vrot.slane %v7051, 4
    %v7093 = vsel %vm7075, %v7092, %v7091
    %v7094 = vrot.slane %v7052, 3
    %v7095 = vsel %vm7078, %v7094, %v7093
    %v7096 = vrot.slane %v7053, 2
    %v7097 = vsel %vm7081, %v7096, %v7095
    %7098 = vrot.lane.b32.xlu0 %v7097, 32
    %v7099 = vpop.permute.xlu0 %7098
    %v7101 = vrot.slane %v7046, 2
    %v7102 = vrot.slane %v7047, 1
    %v7103 = vsel %vm7063, %v7102, %v7101
    %v7104 = vsel %vm7066, %v7048, %v7103
    %v7105 = vrot.slane %v7049, 7
    %v7106 = vsel %vm7069, %v7105, %v7104
    %v7107 = vrot.slane %v7050, 6
    %v7108 = vsel %vm7072, %v7107, %v7106
    %v7109 = vrot.slane %v7051, 5
    %v7110 = vsel %vm7075, %v7109, %v7108
    %v7111 = vrot.slane %v7052, 4
    %v7112 = vsel %vm7078, %v7111, %v7110
    %v7113 = vrot.slane %v7053, 3
    %v7114 = vsel %vm7081, %v7113, %v7112
    %7115 = vrot.lane.b32.xlu0 %v7114, 64
    %v7116 = vpop.permute.xlu0 %7115
    %v7118 = vrot.slane %v7046, 3
    %v7119 = vrot.slane %v7047, 2
    %v7120 = vsel %vm7063, %v7119, %v7118
    %v7121 = vrot.slane %v7048, 1
    %v7122 = vsel %vm7066, %v7121, %v7120
    %v7123 = vsel %vm7069, %v7049, %v7122
    %v7124 = vrot.slane %v7050, 7
    %v7125 = vsel %vm7072, %v7124, %v7123
    %v7126 = vrot.slane %v7051, 6
    %v7127 = vsel %vm7075, %v7126, %v7125
    %v7128 = vrot.slane %v7052, 5
    %v7129 = vsel %vm7078, %v7128, %v7127
    %v7130 = vrot.slane %v7053, 4
    %v7131 = vsel %vm7081, %v7130, %v7129
    %7132 = vrot.lane.b32.xlu0 %v7131, 96
    %v7133 = vpop.permute.xlu0 %7132
    %v7135 = vrot.slane %v7046, 4
    %v7136 = vrot.slane %v7047, 3
    %v7137 = vsel %vm7063, %v7136, %v7135
    %v7138 = vrot.slane %v7048, 2
    %v7139 = vsel %vm7066, %v7138, %v7137
    %v7140 = vrot.slane %v7049, 1
    %v7141 = vsel %vm7069, %v7140, %v7139
    %v7142 = vsel %vm7072, %v7050, %v7141
    %v7143 = vrot.slane %v7051, 7
    %v7144 = vsel %vm7075, %v7143, %v7142
    %v7145 = vrot.slane %v7052, 6
    %v7146 = vsel %vm7078, %v7145, %v7144
    %v7147 = vrot.slane %v7053, 5
    %v7148 = vsel %vm7081, %v7147, %v7146
    %v7150 = vrot.slane %v7046, 5
    %v7151 = vrot.slane %v7047, 4
    %v7152 = vsel %vm7063, %v7151, %v7150
    %v7153 = vrot.slane %v7048, 3
    %v7154 = vsel %vm7066, %v7153, %v7152
    %v7155 = vrot.slane %v7049, 2
    %v7156 = vsel %vm7069, %v7155, %v7154
    %v7157 = vrot.slane %v7050, 1
    %v7158 = vsel %vm7072, %v7157, %v7156
    %v7159 = vsel %vm7075, %v7051, %v7158
    %v7160 = vrot.slane %v7052, 7
    %v7161 = vsel %vm7078, %v7160, %v7159
    %v7162 = vrot.slane %v7053, 6
    %v7163 = vsel %vm7081, %v7162, %v7161
    %7164 = vrot.lane.b32.xlu0 %v7163, 32
    %v7165 = vpop.permute.xlu0 %7164
    %v7167 = vrot.slane %v7046, 6
    %v7168 = vrot.slane %v7047, 5
    %v7169 = vsel %vm7063, %v7168, %v7167
    %v7170 = vrot.slane %v7048, 4
    %v7171 = vsel %vm7066, %v7170, %v7169
    %v7172 = vrot.slane %v7049, 3
    %v7173 = vsel %vm7069, %v7172, %v7171
    %v7174 = vrot.slane %v7050, 2
    %v7175 = vsel %vm7072, %v7174, %v7173
    %v7176 = vrot.slane %v7051, 1
    %v7177 = vsel %vm7075, %v7176, %v7175
    %v7178 = vsel %vm7078, %v7052, %v7177
    %v7179 = vrot.slane %v7053, 7
    %v7180 = vsel %vm7081, %v7179, %v7178
    %7181 = vrot.lane.b32.xlu0 %v7180, 64
    %v7182 = vpop.permute.xlu0 %7181
    %v7184 = vrot.slane %v7046, 7
    %v7185 = vrot.slane %v7047, 6
    %v7186 = vsel %vm7063, %v7185, %v7184
    %v7187 = vrot.slane %v7048, 5
    %v7188 = vsel %vm7066, %v7187, %v7186
    %v7189 = vrot.slane %v7049, 4
    %v7190 = vsel %vm7069, %v7189, %v7188
    %v7191 = vrot.slane %v7050, 3
    %v7192 = vsel %vm7072, %v7191, %v7190
    %v7193 = vrot.slane %v7051, 2
    %v7194 = vsel %vm7075, %v7193, %v7192
    %v7195 = vrot.slane %v7052, 1
    %v7196 = vsel %vm7078, %v7195, %v7194
    %v7197 = vsel %vm7081, %v7053, %v7196
    %7198 = vrot.lane.b32.xlu0 %v7197, 96
    %v7199 = vpop.permute.xlu0 %7198
    %v7201 = vsel %vm36, %v7082, %v7099
    %vm7202 = vcmask 523264
    %v7203 = vsel %vm7202, %v7201, %v7116
    %vm7204 = vcmask 785408
    %v7205 = vsel %vm7204, %v7203, %v7133
    %v7206 = vsel %vm36, %v7148, %v7165
    %v7207 = vsel %vm7202, %v7206, %v7182
    %v7208 = vsel %vm7204, %v7207, %v7199
    %7209 = vst [vmem:[#allocation2] sm:$0xff] %v7205
    %7210 = vst [vmem:[#allocation2 + $0x8] sm:$0xff] %v7208
    // Predicated region
    $region26: #{tpu_custom_call.1} parent=1 // pred_check
      _
    $region27: #{tpu_custom_call.1} parent=1 // pred_check_branch
      %7212 = sbr.rel (0) target = $region29
    $region28: #{tpu_custom_call.1} parent=1 // pred_region
      %s7214 = ssub.s32 256, 256
      %7215 = vsyncadd [#allocation3], %s7214
      %s7217 = sshll.u32 [#allocation2], 4
      %s7218 = int_to_ptr.vmem [resolvable:$true] %s7217
      %7220 = dma.vmem_to_hbm [thread:$0]  %s7218, 256, %s6, [#allocation3]
    $region29: #{tpu_custom_call.1} parent=1 // pred_fallthru
      _
    // Predicated region
    $region30: #{tpu_custom_call.1} parent=1 // pred_check
      _
    $region31: #{tpu_custom_call.1} parent=1 // pred_check_branch
      %7222 = sbr.rel (0) target = $region33
    $region32: #{tpu_custom_call.1} parent=1 // pred_region
      %7223 = dma.done [#allocation3], 256
    $region33: #{tpu_custom_call.1} parent=1 // pred_fallthru
      _
    %7224 = vsyncpa [#allocation3], 1

</llo_original>
